<compile_context>
chip_gen: v7x
topology: tpu7x:2x2x1
jax: 0.10.0
libtpu: 0.0.40
codegen_flags: <defaults>
</compile_context>

<pallas_src>
import numpy as np

import jax
import jax.numpy as jnp
from jax.experimental import pallas as pl
from jax.experimental.pallas import tpu as pltpu


# ---------------------------------------------------------------------------
# Fused kernel
# ---------------------------------------------------------------------------
def _fused_mnist_kernel(x_ref, m1, m2, m3, e1, e2, e3, cb1, cb2, cb3,
                        w1, b1, w2, b2, w3, b3,
                        out_ref, pad1, pad2, pad3):
    nb = x_ref.shape[0]          # images per grid step (static)

    # Stage the (already H-padded to 32 rows) input images into one flat
    # (nb*32, 28) VMEM tile: image n occupies rows [32n, 32n+32).
    for n in range(nb):
        pad1[32 * n:32 * (n + 1), :] = x_ref[n]

    def conv_pool_relu(pad_ref, m_ref, e_ref, bias_ref):
        """Batched 3x3 conv (padding=1) + bias + 2x2 maxpool(floor) + ReLU.

        pad_ref : (nb*P, W*Cin) bf16  — per-image H-padded activation slots.
        m_ref   : (3, 2, W*Cin, Wo*Cout) bf16 banded conv weights
                  indexed [kernel row dh, horizontal pool phase bw].
        e_ref   : (2, R_out, nb*P-2) bf16 0/1 row-selection (vertical pool);
                  all-zero rows of e produce exact zeros (next layer's padding).
        bias_ref: (1, Wo*Cout) f32, per-channel bias tiled over wo.
        Returns (R_out, Wo*Cout) f32.
        """
        rows = pad_ref.shape[0] - 2
        z = None
        for bw in range(2):                        # horizontal pool phase
            acc = jnp.dot(pad_ref[0:rows, :], m_ref[0, bw],
                          preferred_element_type=jnp.float32)
            for dh in (1, 2):                      # remaining kernel rows
                acc = acc + jnp.dot(pad_ref[dh:dh + rows, :], m_ref[dh, bw],
                                    preferred_element_type=jnp.float32)
            z = acc if z is None else jnp.maximum(z, acc)
        zb = (z + bias_ref[...]).astype(jnp.bfloat16)    # bias commutes with max
        top = jnp.dot(e_ref[0], zb, preferred_element_type=jnp.float32)
        bot = jnp.dot(e_ref[1], zb, preferred_element_type=jnp.float32)
        return jnp.maximum(jnp.maximum(top, bot), 0.0)   # ReLU commutes with max

    a1 = conv_pool_relu(pad1, m1, e1, cb1)    # (nb*16, 14*32): layer-2 padded input
    pad2[...] = a1.astype(jnp.bfloat16)
    a2 = conv_pool_relu(pad2, m2, e2, cb2)    # (nb*9,  7*64) : layer-3 padded input
    pad3[...] = a2.astype(jnp.bfloat16)
    a3 = conv_pool_relu(pad3, m3, e3, cb3)    # (3*nb,  3*128): ho-major rows
    a3 = a3.astype(jnp.bfloat16)

    # fc1: PyTorch's NCHW flatten is absorbed into the pre-permuted (3,384,128)
    # weight; row block ho of a3 (shape (nb, 384)) multiplies w1[ho].
    hid = b1[...]
    for ho in range(3):
        hid = hid + jnp.dot(a3[ho * nb:(ho + 1) * nb, :], w1[ho],
                            preferred_element_type=jnp.float32)
    # No activations between fc layers (matches the PyTorch module).
    hid = jnp.dot(hid.astype(jnp.bfloat16), w2[...],
                  preferred_element_type=jnp.float32) + b2[...]
    logits = jnp.dot(hid.astype(jnp.bfloat16), w3[...],
                     preferred_element_type=jnp.float32) + b3[...]
    out_ref[...] = logits.reshape(1, nb, 128)     # lane-dense (128) store


# ---------------------------------------------------------------------------
# One-time parameter packing (host side; NOT on the per-step critical path)
# ---------------------------------------------------------------------------
def _banded_conv_weights(w, width):
    """Fold 3x3 conv taps + W-padding + horizontal pool phase into banded matrices.

    w : (Cout, Cin, 3, 3) PyTorch layout.
    Returns bf16 (3, 2, W*Cin, Wo*Cout): [dh, bw] maps input lanes (w_in, ci)
    to output lanes (wo, co) for conv column 2*wo + bw.
    """
    w = np.asarray(w, np.float32)
    cout, cin, _, _ = w.shape
    wo_n = width // 2
    out = np.zeros((3, 2, width * cin, wo_n * cout), np.float32)
    for dh in range(3):
        for bw in range(2):
            for dw in range(3):
                tap = w[:, :, dh, dw].T              # (Cin, Cout)
                for wo in range(wo_n):
                    w_in = 2 * wo + bw + dw - 1      # padding=1; out of range -> zero
                    if 0 <= w_in < width:
                        out[dh, bw,
                            w_in * cin:(w_in + 1) * cin,
                            wo * cout:(wo + 1) * cout] = tap
    return jnp.asarray(out, dtype=jnp.bfloat16)


def pack_params(params):
    """Repack PyTorch-layout params into the kernel's bf16/banded layout (one time)."""
    packed = {}
    for name, width in (("conv1", 28), ("conv2", 14), ("conv3", 7)):
        w, b = params[name]
        idx = name[-1]
        packed["m" + idx] = _banded_conv_weights(w, width)
        packed["cb" + idx] = jnp.tile(jnp.asarray(b, jnp.float32),
                                      width // 2).reshape(1, -1)

    wf1, bf1 = params["fc1"]   # (128, 1152), (128,)
    wf2, bf2 = params["fc2"]   # (64, 128)
    wf3, bf3 = params["fc3"]   # (10, 64)
    # Permute fc1 from PyTorch (c, h, w) flatten order to the kernel's
    # (h)-blocked (w, c) lane order -> no runtime transpose of activations.
    packed["w1"] = jnp.transpose(wf1.reshape(128, 128, 3, 3),
                                 (2, 3, 1, 0)).reshape(3, 384, 128).astype(jnp.bfloat16)
    packed["b1"] = bf1.reshape(1, 128).astype(jnp.float32)
    packed["w2"] = wf2.T.astype(jnp.bfloat16)
    packed["b2"] = bf2.reshape(1, 64).astype(jnp.float32)
    # Pad fc3 from 10 to 128 output lanes (lane-dense store), slice outside.
    packed["w3"] = jnp.zeros((64, 128), jnp.float32).at[:, :10].set(wf3.T).astype(jnp.bfloat16)
    packed["b3"] = jnp.zeros((1, 128), jnp.float32).at[0, :10].set(bf3)
    return packed


def _pool_select(nb, h, p_in, p_out):
    """Batched 0/1 row-selection matrices implementing the vertical 2x2 pool.

    h    : per-image conv height.  Conv output row r of image n lives at
           batched acc row n*p_in + r.
    p_out: if nonzero, output rows follow the NEXT layer's padded layout
           (row n*p_out + 1 + ho; padding rows are all-zero -> exact zeros);
           if zero, output is unpadded and ho-major (row ho*nb + n).
    Returns bf16 (2, R_out, nb*p_in - 2), one matrix per vertical pool phase.
    """
    ho_n = h // 2
    r_in = nb * p_in - 2
    r_out = nb * p_out if p_out else nb * ho_n
    e = np.zeros((2, r_out, r_in), np.float32)
    for n in range(nb):
        for ho in range(ho_n):
            row = n * p_out + 1 + ho if p_out else ho * nb + n
            e[0, row, n * p_in + 2 * ho] = 1.0
            e[1, row, n * p_in + 2 * ho + 1] = 1.0
    return jnp.asarray(e, dtype=jnp.bfloat16)


# ---------------------------------------------------------------------------
# Forward wrapper
# ---------------------------------------------------------------------------
def _pick_images_per_step(n):
    for nb in (8, 4, 2, 1):
        if n % nb == 0:
            return nb
    return 1


def _mnist_forward_impl(x_nchw, packed):
    """x_nchw: (N, 1, 28, 28) f32 (PyTorch NCHW). Returns (N, 10) f32 logits."""
    n = x_nchw.shape[0]
    nb = _pick_images_per_step(n)
    g = n // nb

    # Cin=1 -> (N, 28, 28); zero-pad H to 32 rows per image (row 0 + rows 29..31)
    # so each image drops into an aligned 32-row slot of the conv1 buffer.
    x = x_nchw.reshape(n, 28, 28).astype(jnp.bfloat16)
    x = jnp.pad(x, ((0, 0), (1, 3), (0, 0)))

    # Row-pool selection matrices depend only on nb (trace-time constants).
    e1 = _pool_select(nb, 28, 32, 16)   # conv1 -> padded 16-row slots (conv2 input)
    e2 = _pool_select(nb, 14, 16, 9)    # conv2 -> padded 9-row slots  (conv3 input)
    e3 = _pool_select(nb, 7, 9, 0)      # conv3 -> unpadded, ho-major  (fc input)

    weight_args = (packed["m1"], packed["m2"], packed["m3"], e1, e2, e3,
                   packed["cb1"], packed["cb2"], packed["cb3"],
                   packed["w1"], packed["b1"], packed["w2"], packed["b2"],
                   packed["w3"], packed["b3"])

    def const_spec(a):
        zeros = (0,) * a.ndim
        return pl.BlockSpec(tuple(a.shape), lambda i, _z=zeros: _z)

    grid_spec = pltpu.PrefetchScalarGridSpec(
        num_scalar_prefetch=0,
        grid=(g,),
        in_specs=[pl.BlockSpec((nb, 32, 28), lambda i: (i, 0, 0))] +
                 [const_spec(a) for a in weight_args],
        out_specs=pl.BlockSpec((1, nb, 128), lambda i: (i, 0, 0)),
        scratch_shapes=[
            pltpu.VMEM((nb * 32, 28), jnp.bfloat16),        # conv1 padded input
            pltpu.VMEM((nb * 16, 14 * 32), jnp.bfloat16),   # conv2 padded input
            pltpu.VMEM((nb * 9, 7 * 64), jnp.bfloat16),     # conv3 padded input
        ])

    out = pl.pallas_call(
        _fused_mnist_kernel,
        out_shape=jax.ShapeDtypeStruct((g, nb, 128), jnp.float32),
        grid_spec=grid_spec,
        compiler_params=pltpu.CompilerParams(
            dimension_semantics=("parallel",),           # megacore split over batch tiles
            vmem_limit_bytes=32 * 1024 * 1024),
    )(x, *weight_args)

    return out.reshape(n, 128)[:, :10]


mnist_forward = jax.jit(_mnist_forward_impl)


# ---------------------------------------------------------------------------
# Init + pure-JAX reference (for a correctness sanity check)
# ---------------------------------------------------------------------------
def init_params(key):
    """Deterministic init mimicking PyTorch default U(-1/sqrt(fan_in), 1/sqrt(fan_in))."""
    keys = jax.random.split(key, 12)

    def conv_init(kw, kb, cout, cin, k):
        bound = 1.0 / (cin * k * k) ** 0.5
        w = jax.random.uniform(kw, (cout, cin, k, k), jnp.float32, -bound, bound)
        b = jax.random.uniform(kb, (cout,), jnp.float32, -bound, bound)
        return w, b

    def linear_init(kw, kb, cout, cin):
        bound = 1.0 / cin ** 0.5
        w = jax.random.uniform(kw, (cout, cin), jnp.float32, -bound, bound)
        b = jax.random.uniform(kb, (cout,), jnp.float32, -bound, bound)
        return w, b

    return {
        "conv1": conv_init(keys[0], keys[1], 32, 1, 3),
        "conv2": conv_init(keys[2], keys[3], 64, 32, 3),
        "conv3": conv_init(keys[4], keys[5], 128, 64, 3),
        "fc1": linear_init(keys[6], keys[7], 128, 128 * 3 * 3),
        "fc2": linear_init(keys[8], keys[9], 64, 128),
        "fc3": linear_init(keys[10], keys[11], 10, 64),
    }


def _reference_forward(x, params):
    def conv(x, w, b):
        y = jax.lax.conv_general_dilated(x, w, (1, 1), ((1, 1), (1, 1)),
                                         dimension_numbers=("NCHW", "OIHW", "NCHW"))
        return y + b.reshape(1, -1, 1, 1)

    def pool(x):
        return jax.lax.reduce_window(x, -jnp.inf, jax.lax.max,
                                     (1, 1, 2, 2), (1, 1, 2, 2), "VALID")

    x = jax.nn.relu(pool(conv(x, *params["conv1"])))
    x = jax.nn.relu(pool(conv(x, *params["conv2"])))
    x = jax.nn.relu(pool(conv(x, *params["conv3"])))
    x = x.reshape(x.shape[0], -1)                    # PyTorch NCHW flatten order
    w1, b1 = params["fc1"]; w2, b2 = params["fc2"]; w3, b3 = params["fc3"]
    x = x @ w1.T + b1
    x = x @ w2.T + b2
    return x @ w3.T + b3


if __name__ == "__main__":
    key = jax.random.PRNGKey(0)
    pkey, xkey = jax.random.split(key)
    params = init_params(pkey)
    packed = pack_params(params)        # one-time weight repack (banded / bf16 / permuted)

    # MNIST-shaped input (28x28 required by fc1's 128*3*3 fan-in); small batch=2.
    x = jax.random.normal(xkey, (2, 1, 28, 28), jnp.float32)

    out = mnist_forward(x, packed)
    jax.block_until_ready(out)
    assert out.shape == (2, 10) and out.dtype == jnp.float32

    # Sanity check against a pure-JAX f32 reference (kernel uses bf16 matmul inputs).
    ref = jax.jit(_reference_forward)(x, params)
    np.testing.assert_allclose(np.asarray(out), np.asarray(ref), rtol=1e-1, atol=1e-1)

    print("KERNEL_OK")
</pallas_src>

<mosaic_0001>
module attributes {stable_mosaic.version = 11 : i64} {
  func.func @_fused_mnist_kernel(%arg0: i32, %arg1: memref<2x32x28xbf16, #tpu.memory_space<vmem>>, %arg2: memref<3x2x28x448xbf16, #tpu.memory_space<vmem>>, %arg3: memref<3x2x448x448xbf16, #tpu.memory_space<vmem>>, %arg4: memref<3x2x448x384xbf16, #tpu.memory_space<vmem>>, %arg5: memref<2x32x62xbf16, #tpu.memory_space<vmem>>, %arg6: memref<2x18x30xbf16, #tpu.memory_space<vmem>>, %arg7: memref<2x6x16xbf16, #tpu.memory_space<vmem>>, %arg8: memref<1x448xf32, #tpu.memory_space<vmem>>, %arg9: memref<1x448xf32, #tpu.memory_space<vmem>>, %arg10: memref<1x384xf32, #tpu.memory_space<vmem>>, %arg11: memref<3x384x128xbf16, #tpu.memory_space<vmem>>, %arg12: memref<1x128xf32, #tpu.memory_space<vmem>>, %arg13: memref<128x64xbf16, #tpu.memory_space<vmem>>, %arg14: memref<1x64xf32, #tpu.memory_space<vmem>>, %arg15: memref<64x128xbf16, #tpu.memory_space<vmem>>, %arg16: memref<1x128xf32, #tpu.memory_space<vmem>>, %arg17: memref<1x2x128xf32, #tpu.memory_space<vmem>>, %arg18: memref<64x28xbf16, #tpu.memory_space<vmem>>, %arg19: memref<32x448xbf16, #tpu.memory_space<vmem>>, %arg20: memref<18x448xbf16, #tpu.memory_space<vmem>>) attributes {dimension_semantics = [#tpu.dimension_semantics<parallel>], iteration_bounds = array<i64: 1>, scalar_prefetch = 0 : i64, scratch_operands = 3 : i64, tpu.core_type = #tpu.core_type<tc>, window_params = [{transform_indices = @transform_0, window_bounds = array<i64: 2, 32, 28>}, {pipeline_mode = #tpu.pipeline_mode<synchronous>, transform_indices = @transform_1, window_bounds = array<i64: 3, 2, 28, 448>}, {pipeline_mode = #tpu.pipeline_mode<synchronous>, transform_indices = @transform_2, window_bounds = array<i64: 3, 2, 448, 448>}, {pipeline_mode = #tpu.pipeline_mode<synchronous>, transform_indices = @transform_3, window_bounds = array<i64: 3, 2, 448, 384>}, {pipeline_mode = #tpu.pipeline_mode<synchronous>, transform_indices = @transform_4, window_bounds = array<i64: 2, 32, 62>}, {pipeline_mode = #tpu.pipeline_mode<synchronous>, transform_indices = @transform_5, window_bounds = array<i64: 2, 18, 30>}, {pipeline_mode = #tpu.pipeline_mode<synchronous>, transform_indices = @transform_6, window_bounds = array<i64: 2, 6, 16>}, {pipeline_mode = #tpu.pipeline_mode<synchronous>, transform_indices = @transform_7, window_bounds = array<i64: 1, 448>}, {pipeline_mode = #tpu.pipeline_mode<synchronous>, transform_indices = @transform_8, window_bounds = array<i64: 1, 448>}, {pipeline_mode = #tpu.pipeline_mode<synchronous>, transform_indices = @transform_9, window_bounds = array<i64: 1, 384>}, {pipeline_mode = #tpu.pipeline_mode<synchronous>, transform_indices = @transform_10, window_bounds = array<i64: 3, 384, 128>}, {pipeline_mode = #tpu.pipeline_mode<synchronous>, transform_indices = @transform_11, window_bounds = array<i64: 1, 128>}, {pipeline_mode = #tpu.pipeline_mode<synchronous>, transform_indices = @transform_12, window_bounds = array<i64: 128, 64>}, {pipeline_mode = #tpu.pipeline_mode<synchronous>, transform_indices = @transform_13, window_bounds = array<i64: 1, 64>}, {pipeline_mode = #tpu.pipeline_mode<synchronous>, transform_indices = @transform_14, window_bounds = array<i64: 64, 128>}, {pipeline_mode = #tpu.pipeline_mode<synchronous>, transform_indices = @transform_15, window_bounds = array<i64: 1, 128>}, {transform_indices = @transform_16, window_bounds = array<i64: 1, 2, 128>}]} {
    %c0 = arith.constant 0 : index
    %c0_0 = arith.constant 0 : index
    %c0_1 = arith.constant 0 : index
    %0 = vector.load %arg1[%c0, %c0_0, %c0_1] : memref<2x32x28xbf16, #tpu.memory_space<vmem>>, vector<1x32x28xbf16>
    %1 = vector.shape_cast %0 : vector<1x32x28xbf16> to vector<32x28xbf16>
    %c0_2 = arith.constant 0 : index
    %c0_3 = arith.constant 0 : index
    %2 = vector.load %arg18[%c0_2, %c0_3] : memref<64x28xbf16, #tpu.memory_space<vmem>>, vector<32x28xbf16>
    tpu.vector_store %arg18[%c0_2, %c0_3], %1 {strides = array<i32>} : memref<64x28xbf16, #tpu.memory_space<vmem>>, vector<32x28xbf16>,
    %c1 = arith.constant 1 : index
    %c0_4 = arith.constant 0 : index
    %c0_5 = arith.constant 0 : index
    %3 = vector.load %arg1[%c1, %c0_4, %c0_5] : memref<2x32x28xbf16, #tpu.memory_space<vmem>>, vector<1x32x28xbf16>
    %4 = vector.shape_cast %3 : vector<1x32x28xbf16> to vector<32x28xbf16>
    %c32 = arith.constant 32 : index
    %c0_6 = arith.constant 0 : index
    %5 = vector.load %arg18[%c32, %c0_6] : memref<64x28xbf16, #tpu.memory_space<vmem>>, vector<32x28xbf16>
    tpu.vector_store %arg18[%c32, %c0_6], %4 {strides = array<i32>} : memref<64x28xbf16, #tpu.memory_space<vmem>>, vector<32x28xbf16>,
    %c0_7 = arith.constant 0 : index
    %c0_8 = arith.constant 0 : index
    %6 = vector.load %arg18[%c0_7, %c0_8] : memref<64x28xbf16, #tpu.memory_space<vmem>>, vector<62x28xbf16>
    %c0_9 = arith.constant 0 : index
    %c0_10 = arith.constant 0 : index
    %c0_11 = arith.constant 0 : index
    %c0_12 = arith.constant 0 : index
    %7 = vector.load %arg2[%c0_9, %c0_10, %c0_11, %c0_12] : memref<3x2x28x448xbf16, #tpu.memory_space<vmem>>, vector<1x1x28x448xbf16>
    %8 = vector.shape_cast %7 : vector<1x1x28x448xbf16> to vector<28x448xbf16>
    %cst = arith.constant dense<0.000000e+00> : vector<62x448xf32>
    %9 = tpu.matmul %6, %8, %cst {dimension_numbers = #tpu.dot_dimension_numbers<[1], [0], [0], [1], [0, 0, 1, 1], [], []>} : vector<62x28xbf16>, vector<28x448xbf16>, vector<62x448xf32> -> vector<62x448xf32>
    %c1_13 = arith.constant 1 : index
    %c0_14 = arith.constant 0 : index
    %10 = vector.load %arg18[%c1_13, %c0_14] : memref<64x28xbf16, #tpu.memory_space<vmem>>, vector<62x28xbf16>
    %c1_15 = arith.constant 1 : index
    %c0_16 = arith.constant 0 : index
    %c0_17 = arith.constant 0 : index
    %c0_18 = arith.constant 0 : index
    %11 = vector.load %arg2[%c1_15, %c0_16, %c0_17, %c0_18] : memref<3x2x28x448xbf16, #tpu.memory_space<vmem>>, vector<1x1x28x448xbf16>
    %12 = vector.shape_cast %11 : vector<1x1x28x448xbf16> to vector<28x448xbf16>
    %cst_19 = arith.constant dense<0.000000e+00> : vector<62x448xf32>
    %13 = tpu.matmul %10, %12, %cst_19 {dimension_numbers = #tpu.dot_dimension_numbers<[1], [0], [0], [1], [0, 0, 1, 1], [], []>} : vector<62x28xbf16>, vector<28x448xbf16>, vector<62x448xf32> -> vector<62x448xf32>
    %14 = arith.addf %9, %13 : vector<62x448xf32>
    %c2 = arith.constant 2 : index
    %c0_20 = arith.constant 0 : index
    %15 = vector.load %arg18[%c2, %c0_20] : memref<64x28xbf16, #tpu.memory_space<vmem>>, vector<62x28xbf16>
    %c2_21 = arith.constant 2 : index
    %c0_22 = arith.constant 0 : index
    %c0_23 = arith.constant 0 : index
    %c0_24 = arith.constant 0 : index
    %16 = vector.load %arg2[%c2_21, %c0_22, %c0_23, %c0_24] : memref<3x2x28x448xbf16, #tpu.memory_space<vmem>>, vector<1x1x28x448xbf16>
    %17 = vector.shape_cast %16 : vector<1x1x28x448xbf16> to vector<28x448xbf16>
    %cst_25 = arith.constant dense<0.000000e+00> : vector<62x448xf32>
    %18 = tpu.matmul %15, %17, %cst_25 {dimension_numbers = #tpu.dot_dimension_numbers<[1], [0], [0], [1], [0, 0, 1, 1], [], []>} : vector<62x28xbf16>, vector<28x448xbf16>, vector<62x448xf32> -> vector<62x448xf32>
    %19 = arith.addf %14, %18 : vector<62x448xf32>
    %c0_26 = arith.constant 0 : index
    %c0_27 = arith.constant 0 : index
    %20 = vector.load %arg18[%c0_26, %c0_27] : memref<64x28xbf16, #tpu.memory_space<vmem>>, vector<62x28xbf16>
    %c0_28 = arith.constant 0 : index
    %c1_29 = arith.constant 1 : index
    %c0_30 = arith.constant 0 : index
    %c0_31 = arith.constant 0 : index
    %21 = vector.load %arg2[%c0_28, %c1_29, %c0_30, %c0_31] : memref<3x2x28x448xbf16, #tpu.memory_space<vmem>>, vector<1x1x28x448xbf16>
    %22 = vector.shape_cast %21 : vector<1x1x28x448xbf16> to vector<28x448xbf16>
    %cst_32 = arith.constant dense<0.000000e+00> : vector<62x448xf32>
    %23 = tpu.matmul %20, %22, %cst_32 {dimension_numbers = #tpu.dot_dimension_numbers<[1], [0], [0], [1], [0, 0, 1, 1], [], []>} : vector<62x28xbf16>, vector<28x448xbf16>, vector<62x448xf32> -> vector<62x448xf32>
    %c1_33 = arith.constant 1 : index
    %c0_34 = arith.constant 0 : index
    %24 = vector.load %arg18[%c1_33, %c0_34] : memref<64x28xbf16, #tpu.memory_space<vmem>>, vector<62x28xbf16>
    %c1_35 = arith.constant 1 : index
    %c1_36 = arith.constant 1 : index
    %c0_37 = arith.constant 0 : index
    %c0_38 = arith.constant 0 : index
    %25 = vector.load %arg2[%c1_35, %c1_36, %c0_37, %c0_38] : memref<3x2x28x448xbf16, #tpu.memory_space<vmem>>, vector<1x1x28x448xbf16>
    %26 = vector.shape_cast %25 : vector<1x1x28x448xbf16> to vector<28x448xbf16>
    %cst_39 = arith.constant dense<0.000000e+00> : vector<62x448xf32>
    %27 = tpu.matmul %24, %26, %cst_39 {dimension_numbers = #tpu.dot_dimension_numbers<[1], [0], [0], [1], [0, 0, 1, 1], [], []>} : vector<62x28xbf16>, vector<28x448xbf16>, vector<62x448xf32> -> vector<62x448xf32>
    %28 = arith.addf %23, %27 : vector<62x448xf32>
    %c2_40 = arith.constant 2 : index
    %c0_41 = arith.constant 0 : index
    %29 = vector.load %arg18[%c2_40, %c0_41] : memref<64x28xbf16, #tpu.memory_space<vmem>>, vector<62x28xbf16>
    %c2_42 = arith.constant 2 : index
    %c1_43 = arith.constant 1 : index
    %c0_44 = arith.constant 0 : index
    %c0_45 = arith.constant 0 : index
    %30 = vector.load %arg2[%c2_42, %c1_43, %c0_44, %c0_45] : memref<3x2x28x448xbf16, #tpu.memory_space<vmem>>, vector<1x1x28x448xbf16>
    %31 = vector.shape_cast %30 : vector<1x1x28x448xbf16> to vector<28x448xbf16>
    %cst_46 = arith.constant dense<0.000000e+00> : vector<62x448xf32>
    %32 = tpu.matmul %29, %31, %cst_46 {dimension_numbers = #tpu.dot_dimension_numbers<[1], [0], [0], [1], [0, 0, 1, 1], [], []>} : vector<62x28xbf16>, vector<28x448xbf16>, vector<62x448xf32> -> vector<62x448xf32>
    %33 = arith.addf %28, %32 : vector<62x448xf32>
    %34 = arith.maximumf %19, %33 : vector<62x448xf32>
    %c0_47 = arith.constant 0 : index
    %c0_48 = arith.constant 0 : index
    %35 = vector.load %arg8[%c0_47, %c0_48] : memref<1x448xf32, #tpu.memory_space<vmem>>, vector<1x448xf32>
    %36 = vector.broadcast %35 : vector<1x448xf32> to vector<62x448xf32>
    %37 = arith.addf %34, %36 : vector<62x448xf32>
    %38 = arith.truncf %37 : vector<62x448xf32> to vector<62x448xbf16>
    %c0_49 = arith.constant 0 : index
    %c0_50 = arith.constant 0 : index
    %c0_51 = arith.constant 0 : index
    %39 = vector.load %arg5[%c0_49, %c0_50, %c0_51] : memref<2x32x62xbf16, #tpu.memory_space<vmem>>, vector<1x32x62xbf16>
    %40 = vector.shape_cast %39 : vector<1x32x62xbf16> to vector<32x62xbf16>
    %cst_52 = arith.constant dense<0.000000e+00> : vector<32x448xf32>
    %41 = tpu.matmul %40, %38, %cst_52 {dimension_numbers = #tpu.dot_dimension_numbers<[1], [0], [0], [1], [0, 0, 1, 1], [], []>} : vector<32x62xbf16>, vector<62x448xbf16>, vector<32x448xf32> -> vector<32x448xf32>
    %c1_53 = arith.constant 1 : index
    %c0_54 = arith.constant 0 : index
    %c0_55 = arith.constant 0 : index
    %42 = vector.load %arg5[%c1_53, %c0_54, %c0_55] : memref<2x32x62xbf16, #tpu.memory_space<vmem>>, vector<1x32x62xbf16>
    %43 = vector.shape_cast %42 : vector<1x32x62xbf16> to vector<32x62xbf16>
    %cst_56 = arith.constant dense<0.000000e+00> : vector<32x448xf32>
    %44 = tpu.matmul %43, %38, %cst_56 {dimension_numbers = #tpu.dot_dimension_numbers<[1], [0], [0], [1], [0, 0, 1, 1], [], []>} : vector<32x62xbf16>, vector<62x448xbf16>, vector<32x448xf32> -> vector<32x448xf32>
    %45 = arith.maximumf %41, %44 : vector<32x448xf32>
    %cst_57 = arith.constant 0.000000e+00 : f32
    %46 = vector.broadcast %cst_57 : f32 to vector<32x448xf32>
    %47 = arith.maximumf %45, %46 : vector<32x448xf32>
    %48 = arith.truncf %47 : vector<32x448xf32> to vector<32x448xbf16>
    %c0_58 = arith.constant 0 : index
    %c0_59 = arith.constant 0 : index
    %49 = vector.load %arg19[%c0_58, %c0_59] : memref<32x448xbf16, #tpu.memory_space<vmem>>, vector<32x448xbf16>
    tpu.vector_store %arg19[%c0_58, %c0_59], %48 {strides = array<i32>} : memref<32x448xbf16, #tpu.memory_space<vmem>>, vector<32x448xbf16>,
    %c0_60 = arith.constant 0 : index
    %c0_61 = arith.constant 0 : index
    %50 = vector.load %arg19[%c0_60, %c0_61] : memref<32x448xbf16, #tpu.memory_space<vmem>>, vector<30x448xbf16>
    %c0_62 = arith.constant 0 : index
    %c0_63 = arith.constant 0 : index
    %c0_64 = arith.constant 0 : index
    %c0_65 = arith.constant 0 : index
    %51 = vector.load %arg3[%c0_62, %c0_63, %c0_64, %c0_65] : memref<3x2x448x448xbf16, #tpu.memory_space<vmem>>, vector<1x1x448x448xbf16>
    %52 = vector.shape_cast %51 : vector<1x1x448x448xbf16> to vector<448x448xbf16>
    %cst_66 = arith.constant dense<0.000000e+00> : vector<30x448xf32>
    %53 = tpu.matmul %50, %52, %cst_66 {dimension_numbers = #tpu.dot_dimension_numbers<[1], [0], [0], [1], [0, 0, 1, 1], [], []>} : vector<30x448xbf16>, vector<448x448xbf16>, vector<30x448xf32> -> vector<30x448xf32>
    %c1_67 = arith.constant 1 : index
    %c0_68 = arith.constant 0 : index
    %54 = vector.load %arg19[%c1_67, %c0_68] : memref<32x448xbf16, #tpu.memory_space<vmem>>, vector<30x448xbf16>
    %c1_69 = arith.constant 1 : index
    %c0_70 = arith.constant 0 : index
    %c0_71 = arith.constant 0 : index
    %c0_72 = arith.constant 0 : index
    %55 = vector.load %arg3[%c1_69, %c0_70, %c0_71, %c0_72] : memref<3x2x448x448xbf16, #tpu.memory_space<vmem>>, vector<1x1x448x448xbf16>
    %56 = vector.shape_cast %55 : vector<1x1x448x448xbf16> to vector<448x448xbf16>
    %cst_73 = arith.constant dense<0.000000e+00> : vector<30x448xf32>
    %57 = tpu.matmul %54, %56, %cst_73 {dimension_numbers = #tpu.dot_dimension_numbers<[1], [0], [0], [1], [0, 0, 1, 1], [], []>} : vector<30x448xbf16>, vector<448x448xbf16>, vector<30x448xf32> -> vector<30x448xf32>
    %58 = arith.addf %53, %57 : vector<30x448xf32>
    %c2_74 = arith.constant 2 : index
    %c0_75 = arith.constant 0 : index
    %59 = vector.load %arg19[%c2_74, %c0_75] : memref<32x448xbf16, #tpu.memory_space<vmem>>, vector<30x448xbf16>
    %c2_76 = arith.constant 2 : index
    %c0_77 = arith.constant 0 : index
    %c0_78 = arith.constant 0 : index
    %c0_79 = arith.constant 0 : index
    %60 = vector.load %arg3[%c2_76, %c0_77, %c0_78, %c0_79] : memref<3x2x448x448xbf16, #tpu.memory_space<vmem>>, vector<1x1x448x448xbf16>
    %61 = vector.shape_cast %60 : vector<1x1x448x448xbf16> to vector<448x448xbf16>
    %cst_80 = arith.constant dense<0.000000e+00> : vector<30x448xf32>
    %62 = tpu.matmul %59, %61, %cst_80 {dimension_numbers = #tpu.dot_dimension_numbers<[1], [0], [0], [1], [0, 0, 1, 1], [], []>} : vector<30x448xbf16>, vector<448x448xbf16>, vector<30x448xf32> -> vector<30x448xf32>
    %63 = arith.addf %58, %62 : vector<30x448xf32>
    %c0_81 = arith.constant 0 : index
    %c0_82 = arith.constant 0 : index
    %64 = vector.load %arg19[%c0_81, %c0_82] : memref<32x448xbf16, #tpu.memory_space<vmem>>, vector<30x448xbf16>
    %c0_83 = arith.constant 0 : index
    %c1_84 = arith.constant 1 : index
    %c0_85 = arith.constant 0 : index
    %c0_86 = arith.constant 0 : index
    %65 = vector.load %arg3[%c0_83, %c1_84, %c0_85, %c0_86] : memref<3x2x448x448xbf16, #tpu.memory_space<vmem>>, vector<1x1x448x448xbf16>
    %66 = vector.shape_cast %65 : vector<1x1x448x448xbf16> to vector<448x448xbf16>
    %cst_87 = arith.constant dense<0.000000e+00> : vector<30x448xf32>
    %67 = tpu.matmul %64, %66, %cst_87 {dimension_numbers = #tpu.dot_dimension_numbers<[1], [0], [0], [1], [0, 0, 1, 1], [], []>} : vector<30x448xbf16>, vector<448x448xbf16>, vector<30x448xf32> -> vector<30x448xf32>
    %c1_88 = arith.constant 1 : index
    %c0_89 = arith.constant 0 : index
    %68 = vector.load %arg19[%c1_88, %c0_89] : memref<32x448xbf16, #tpu.memory_space<vmem>>, vector<30x448xbf16>
    %c1_90 = arith.constant 1 : index
    %c1_91 = arith.constant 1 : index
    %c0_92 = arith.constant 0 : index
    %c0_93 = arith.constant 0 : index
    %69 = vector.load %arg3[%c1_90, %c1_91, %c0_92, %c0_93] : memref<3x2x448x448xbf16, #tpu.memory_space<vmem>>, vector<1x1x448x448xbf16>
    %70 = vector.shape_cast %69 : vector<1x1x448x448xbf16> to vector<448x448xbf16>
    %cst_94 = arith.constant dense<0.000000e+00> : vector<30x448xf32>
    %71 = tpu.matmul %68, %70, %cst_94 {dimension_numbers = #tpu.dot_dimension_numbers<[1], [0], [0], [1], [0, 0, 1, 1], [], []>} : vector<30x448xbf16>, vector<448x448xbf16>, vector<30x448xf32> -> vector<30x448xf32>
    %72 = arith.addf %67, %71 : vector<30x448xf32>
    %c2_95 = arith.constant 2 : index
    %c0_96 = arith.constant 0 : index
    %73 = vector.load %arg19[%c2_95, %c0_96] : memref<32x448xbf16, #tpu.memory_space<vmem>>, vector<30x448xbf16>
    %c2_97 = arith.constant 2 : index
    %c1_98 = arith.constant 1 : index
    %c0_99 = arith.constant 0 : index
    %c0_100 = arith.constant 0 : index
    %74 = vector.load %arg3[%c2_97, %c1_98, %c0_99, %c0_100] : memref<3x2x448x448xbf16, #tpu.memory_space<vmem>>, vector<1x1x448x448xbf16>
    %75 = vector.shape_cast %74 : vector<1x1x448x448xbf16> to vector<448x448xbf16>
    %cst_101 = arith.constant dense<0.000000e+00> : vector<30x448xf32>
    %76 = tpu.matmul %73, %75, %cst_101 {dimension_numbers = #tpu.dot_dimension_numbers<[1], [0], [0], [1], [0, 0, 1, 1], [], []>} : vector<30x448xbf16>, vector<448x448xbf16>, vector<30x448xf32> -> vector<30x448xf32>
    %77 = arith.addf %72, %76 : vector<30x448xf32>
    %78 = arith.maximumf %63, %77 : vector<30x448xf32>
    %c0_102 = arith.constant 0 : index
    %c0_103 = arith.constant 0 : index
    %79 = vector.load %arg9[%c0_102, %c0_103] : memref<1x448xf32, #tpu.memory_space<vmem>>, vector<1x448xf32>
    %80 = vector.broadcast %79 : vector<1x448xf32> to vector<30x448xf32>
    %81 = arith.addf %78, %80 : vector<30x448xf32>
    %82 = arith.truncf %81 : vector<30x448xf32> to vector<30x448xbf16>
    %c0_104 = arith.constant 0 : index
    %c0_105 = arith.constant 0 : index
    %c0_106 = arith.constant 0 : index
    %83 = vector.load %arg6[%c0_104, %c0_105, %c0_106] : memref<2x18x30xbf16, #tpu.memory_space<vmem>>, vector<1x18x30xbf16>
    %84 = vector.shape_cast %83 : vector<1x18x30xbf16> to vector<18x30xbf16>
    %cst_107 = arith.constant dense<0.000000e+00> : vector<18x448xf32>
    %85 = tpu.matmul %84, %82, %cst_107 {dimension_numbers = #tpu.dot_dimension_numbers<[1], [0], [0], [1], [0, 0, 1, 1], [], []>} : vector<18x30xbf16>, vector<30x448xbf16>, vector<18x448xf32> -> vector<18x448xf32>
    %c1_108 = arith.constant 1 : index
    %c0_109 = arith.constant 0 : index
    %c0_110 = arith.constant 0 : index
    %86 = vector.load %arg6[%c1_108, %c0_109, %c0_110] : memref<2x18x30xbf16, #tpu.memory_space<vmem>>, vector<1x18x30xbf16>
    %87 = vector.shape_cast %86 : vector<1x18x30xbf16> to vector<18x30xbf16>
    %cst_111 = arith.constant dense<0.000000e+00> : vector<18x448xf32>
    %88 = tpu.matmul %87, %82, %cst_111 {dimension_numbers = #tpu.dot_dimension_numbers<[1], [0], [0], [1], [0, 0, 1, 1], [], []>} : vector<18x30xbf16>, vector<30x448xbf16>, vector<18x448xf32> -> vector<18x448xf32>
    %89 = arith.maximumf %85, %88 : vector<18x448xf32>
    %cst_112 = arith.constant 0.000000e+00 : f32
    %90 = vector.broadcast %cst_112 : f32 to vector<18x448xf32>
    %91 = arith.maximumf %89, %90 : vector<18x448xf32>
    %92 = arith.truncf %91 : vector<18x448xf32> to vector<18x448xbf16>
    %c0_113 = arith.constant 0 : index
    %c0_114 = arith.constant 0 : index
    %93 = vector.load %arg20[%c0_113, %c0_114] : memref<18x448xbf16, #tpu.memory_space<vmem>>, vector<18x448xbf16>
    tpu.vector_store %arg20[%c0_113, %c0_114], %92 {strides = array<i32>} : memref<18x448xbf16, #tpu.memory_space<vmem>>, vector<18x448xbf16>,
    %c0_115 = arith.constant 0 : index
    %c0_116 = arith.constant 0 : index
    %94 = vector.load %arg20[%c0_115, %c0_116] : memref<18x448xbf16, #tpu.memory_space<vmem>>, vector<16x448xbf16>
    %c0_117 = arith.constant 0 : index
    %c0_118 = arith.constant 0 : index
    %c0_119 = arith.constant 0 : index
    %c0_120 = arith.constant 0 : index
    %95 = vector.load %arg4[%c0_117, %c0_118, %c0_119, %c0_120] : memref<3x2x448x384xbf16, #tpu.memory_space<vmem>>, vector<1x1x448x384xbf16>
    %96 = vector.shape_cast %95 : vector<1x1x448x384xbf16> to vector<448x384xbf16>
    %cst_121 = arith.constant dense<0.000000e+00> : vector<16x384xf32>
    %97 = tpu.matmul %94, %96, %cst_121 {dimension_numbers = #tpu.dot_dimension_numbers<[1], [0], [0], [1], [0, 0, 1, 1], [], []>} : vector<16x448xbf16>, vector<448x384xbf16>, vector<16x384xf32> -> vector<16x384xf32>
    %c1_122 = arith.constant 1 : index
    %c0_123 = arith.constant 0 : index
    %98 = vector.load %arg20[%c1_122, %c0_123] : memref<18x448xbf16, #tpu.memory_space<vmem>>, vector<16x448xbf16>
    %c1_124 = arith.constant 1 : index
    %c0_125 = arith.constant 0 : index
    %c0_126 = arith.constant 0 : index
    %c0_127 = arith.constant 0 : index
    %99 = vector.load %arg4[%c1_124, %c0_125, %c0_126, %c0_127] : memref<3x2x448x384xbf16, #tpu.memory_space<vmem>>, vector<1x1x448x384xbf16>
    %100 = vector.shape_cast %99 : vector<1x1x448x384xbf16> to vector<448x384xbf16>
    %cst_128 = arith.constant dense<0.000000e+00> : vector<16x384xf32>
    %101 = tpu.matmul %98, %100, %cst_128 {dimension_numbers = #tpu.dot_dimension_numbers<[1], [0], [0], [1], [0, 0, 1, 1], [], []>} : vector<16x448xbf16>, vector<448x384xbf16>, vector<16x384xf32> -> vector<16x384xf32>
    %102 = arith.addf %97, %101 : vector<16x384xf32>
    %c2_129 = arith.constant 2 : index
    %c0_130 = arith.constant 0 : index
    %103 = vector.load %arg20[%c2_129, %c0_130] : memref<18x448xbf16, #tpu.memory_space<vmem>>, vector<16x448xbf16>
    %c2_131 = arith.constant 2 : index
    %c0_132 = arith.constant 0 : index
    %c0_133 = arith.constant 0 : index
    %c0_134 = arith.constant 0 : index
    %104 = vector.load %arg4[%c2_131, %c0_132, %c0_133, %c0_134] : memref<3x2x448x384xbf16, #tpu.memory_space<vmem>>, vector<1x1x448x384xbf16>
    %105 = vector.shape_cast %104 : vector<1x1x448x384xbf16> to vector<448x384xbf16>
    %cst_135 = arith.constant dense<0.000000e+00> : vector<16x384xf32>
    %106 = tpu.matmul %103, %105, %cst_135 {dimension_numbers = #tpu.dot_dimension_numbers<[1], [0], [0], [1], [0, 0, 1, 1], [], []>} : vector<16x448xbf16>, vector<448x384xbf16>, vector<16x384xf32> -> vector<16x384xf32>
    %107 = arith.addf %102, %106 : vector<16x384xf32>
    %c0_136 = arith.constant 0 : index
    %c0_137 = arith.constant 0 : index
    %108 = vector.load %arg20[%c0_136, %c0_137] : memref<18x448xbf16, #tpu.memory_space<vmem>>, vector<16x448xbf16>
    %c0_138 = arith.constant 0 : index
    %c1_139 = arith.constant 1 : index
    %c0_140 = arith.constant 0 : index
    %c0_141 = arith.constant 0 : index
    %109 = vector.load %arg4[%c0_138, %c1_139, %c0_140, %c0_141] : memref<3x2x448x384xbf16, #tpu.memory_space<vmem>>, vector<1x1x448x384xbf16>
    %110 = vector.shape_cast %109 : vector<1x1x448x384xbf16> to vector<448x384xbf16>
    %cst_142 = arith.constant dense<0.000000e+00> : vector<16x384xf32>
    %111 = tpu.matmul %108, %110, %cst_142 {dimension_numbers = #tpu.dot_dimension_numbers<[1], [0], [0], [1], [0, 0, 1, 1], [], []>} : vector<16x448xbf16>, vector<448x384xbf16>, vector<16x384xf32> -> vector<16x384xf32>
    %c1_143 = arith.constant 1 : index
    %c0_144 = arith.constant 0 : index
    %112 = vector.load %arg20[%c1_143, %c0_144] : memref<18x448xbf16, #tpu.memory_space<vmem>>, vector<16x448xbf16>
    %c1_145 = arith.constant 1 : index
    %c1_146 = arith.constant 1 : index
    %c0_147 = arith.constant 0 : index
    %c0_148 = arith.constant 0 : index
    %113 = vector.load %arg4[%c1_145, %c1_146, %c0_147, %c0_148] : memref<3x2x448x384xbf16, #tpu.memory_space<vmem>>, vector<1x1x448x384xbf16>
    %114 = vector.shape_cast %113 : vector<1x1x448x384xbf16> to vector<448x384xbf16>
    %cst_149 = arith.constant dense<0.000000e+00> : vector<16x384xf32>
    %115 = tpu.matmul %112, %114, %cst_149 {dimension_numbers = #tpu.dot_dimension_numbers<[1], [0], [0], [1], [0, 0, 1, 1], [], []>} : vector<16x448xbf16>, vector<448x384xbf16>, vector<16x384xf32> -> vector<16x384xf32>
    %116 = arith.addf %111, %115 : vector<16x384xf32>
    %c2_150 = arith.constant 2 : index
    %c0_151 = arith.constant 0 : index
    %117 = vector.load %arg20[%c2_150, %c0_151] : memref<18x448xbf16, #tpu.memory_space<vmem>>, vector<16x448xbf16>
    %c2_152 = arith.constant 2 : index
    %c1_153 = arith.constant 1 : index
    %c0_154 = arith.constant 0 : index
    %c0_155 = arith.constant 0 : index
    %118 = vector.load %arg4[%c2_152, %c1_153, %c0_154, %c0_155] : memref<3x2x448x384xbf16, #tpu.memory_space<vmem>>, vector<1x1x448x384xbf16>
    %119 = vector.shape_cast %118 : vector<1x1x448x384xbf16> to vector<448x384xbf16>
    %cst_156 = arith.constant dense<0.000000e+00> : vector<16x384xf32>
    %120 = tpu.matmul %117, %119, %cst_156 {dimension_numbers = #tpu.dot_dimension_numbers<[1], [0], [0], [1], [0, 0, 1, 1], [], []>} : vector<16x448xbf16>, vector<448x384xbf16>, vector<16x384xf32> -> vector<16x384xf32>
    %121 = arith.addf %116, %120 : vector<16x384xf32>
    %122 = arith.maximumf %107, %121 : vector<16x384xf32>
    %c0_157 = arith.constant 0 : index
    %c0_158 = arith.constant 0 : index
    %123 = vector.load %arg10[%c0_157, %c0_158] : memref<1x384xf32, #tpu.memory_space<vmem>>, vector<1x384xf32>
    %124 = vector.broadcast %123 : vector<1x384xf32> to vector<16x384xf32>
    %125 = arith.addf %122, %124 : vector<16x384xf32>
    %126 = arith.truncf %125 : vector<16x384xf32> to vector<16x384xbf16>
    %c0_159 = arith.constant 0 : index
    %c0_160 = arith.constant 0 : index
    %c0_161 = arith.constant 0 : index
    %127 = vector.load %arg7[%c0_159, %c0_160, %c0_161] : memref<2x6x16xbf16, #tpu.memory_space<vmem>>, vector<1x6x16xbf16>
    %128 = vector.shape_cast %127 : vector<1x6x16xbf16> to vector<6x16xbf16>
    %cst_162 = arith.constant dense<0.000000e+00> : vector<6x384xf32>
    %129 = tpu.matmul %128, %126, %cst_162 {dimension_numbers = #tpu.dot_dimension_numbers<[1], [0], [0], [1], [0, 0, 1, 1], [], []>} : vector<6x16xbf16>, vector<16x384xbf16>, vector<6x384xf32> -> vector<6x384xf32>
    %c1_163 = arith.constant 1 : index
    %c0_164 = arith.constant 0 : index
    %c0_165 = arith.constant 0 : index
    %130 = vector.load %arg7[%c1_163, %c0_164, %c0_165] : memref<2x6x16xbf16, #tpu.memory_space<vmem>>, vector<1x6x16xbf16>
    %131 = vector.shape_cast %130 : vector<1x6x16xbf16> to vector<6x16xbf16>
    %cst_166 = arith.constant dense<0.000000e+00> : vector<6x384xf32>
    %132 = tpu.matmul %131, %126, %cst_166 {dimension_numbers = #tpu.dot_dimension_numbers<[1], [0], [0], [1], [0, 0, 1, 1], [], []>} : vector<6x16xbf16>, vector<16x384xbf16>, vector<6x384xf32> -> vector<6x384xf32>
    %133 = arith.maximumf %129, %132 : vector<6x384xf32>
    %cst_167 = arith.constant 0.000000e+00 : f32
    %134 = vector.broadcast %cst_167 : f32 to vector<6x384xf32>
    %135 = arith.maximumf %133, %134 : vector<6x384xf32>
    %136 = arith.truncf %135 : vector<6x384xf32> to vector<6x384xbf16>
    %c0_168 = arith.constant 0 : index
    %c0_169 = arith.constant 0 : index
    %137 = vector.load %arg12[%c0_168, %c0_169] : memref<1x128xf32, #tpu.memory_space<vmem>>, vector<1x128xf32>
    %138 = vector.extract_strided_slice %136 {offsets = [0, 0], sizes = [2, 384], strides = [1, 1]} : vector<6x384xbf16> to vector<2x384xbf16>
    %c0_170 = arith.constant 0 : index
    %c0_171 = arith.constant 0 : index
    %c0_172 = arith.constant 0 : index
    %139 = vector.load %arg11[%c0_170, %c0_171, %c0_172] : memref<3x384x128xbf16, #tpu.memory_space<vmem>>, vector<1x384x128xbf16>
    %140 = vector.shape_cast %139 : vector<1x384x128xbf16> to vector<384x128xbf16>
    %cst_173 = arith.constant dense<0.000000e+00> : vector<2x128xf32>
    %141 = tpu.matmul %138, %140, %cst_173 {dimension_numbers = #tpu.dot_dimension_numbers<[1], [0], [0], [1], [0, 0, 1, 1], [], []>} : vector<2x384xbf16>, vector<384x128xbf16>, vector<2x128xf32> -> vector<2x128xf32>
    %142 = vector.broadcast %137 : vector<1x128xf32> to vector<2x128xf32>
    %143 = arith.addf %142, %141 : vector<2x128xf32>
    %144 = vector.extract_strided_slice %136 {offsets = [2, 0], sizes = [2, 384], strides = [1, 1]} : vector<6x384xbf16> to vector<2x384xbf16>
    %c1_174 = arith.constant 1 : index
    %c0_175 = arith.constant 0 : index
    %c0_176 = arith.constant 0 : index
    %145 = vector.load %arg11[%c1_174, %c0_175, %c0_176] : memref<3x384x128xbf16, #tpu.memory_space<vmem>>, vector<1x384x128xbf16>
    %146 = vector.shape_cast %145 : vector<1x384x128xbf16> to vector<384x128xbf16>
    %cst_177 = arith.constant dense<0.000000e+00> : vector<2x128xf32>
    %147 = tpu.matmul %144, %146, %cst_177 {dimension_numbers = #tpu.dot_dimension_numbers<[1], [0], [0], [1], [0, 0, 1, 1], [], []>} : vector<2x384xbf16>, vector<384x128xbf16>, vector<2x128xf32> -> vector<2x128xf32>
    %148 = arith.addf %143, %147 : vector<2x128xf32>
    %149 = vector.extract_strided_slice %136 {offsets = [4, 0], sizes = [2, 384], strides = [1, 1]} : vector<6x384xbf16> to vector<2x384xbf16>
    %c2_178 = arith.constant 2 : index
    %c0_179 = arith.constant 0 : index
    %c0_180 = arith.constant 0 : index
    %150 = vector.load %arg11[%c2_178, %c0_179, %c0_180] : memref<3x384x128xbf16, #tpu.memory_space<vmem>>, vector<1x384x128xbf16>
    %151 = vector.shape_cast %150 : vector<1x384x128xbf16> to vector<384x128xbf16>
    %cst_181 = arith.constant dense<0.000000e+00> : vector<2x128xf32>
    %152 = tpu.matmul %149, %151, %cst_181 {dimension_numbers = #tpu.dot_dimension_numbers<[1], [0], [0], [1], [0, 0, 1, 1], [], []>} : vector<2x384xbf16>, vector<384x128xbf16>, vector<2x128xf32> -> vector<2x128xf32>
    %153 = arith.addf %148, %152 : vector<2x128xf32>
    %154 = arith.truncf %153 : vector<2x128xf32> to vector<2x128xbf16>
    %c0_182 = arith.constant 0 : index
    %c0_183 = arith.constant 0 : index
    %155 = vector.load %arg13[%c0_182, %c0_183] : memref<128x64xbf16, #tpu.memory_space<vmem>>, vector<128x64xbf16>
    %cst_184 = arith.constant dense<0.000000e+00> : vector<2x64xf32>
    %156 = tpu.matmul %154, %155, %cst_184 {dimension_numbers = #tpu.dot_dimension_numbers<[1], [0], [0], [1], [0, 0, 1, 1], [], []>} : vector<2x128xbf16>, vector<128x64xbf16>, vector<2x64xf32> -> vector<2x64xf32>
    %c0_185 = arith.constant 0 : index
    %c0_186 = arith.constant 0 : index
    %157 = vector.load %arg14[%c0_185, %c0_186] : memref<1x64xf32, #tpu.memory_space<vmem>>, vector<1x64xf32>
    %158 = vector.broadcast %157 : vector<1x64xf32> to vector<2x64xf32>
    %159 = arith.addf %156, %158 : vector<2x64xf32>
    %160 = arith.truncf %159 : vector<2x64xf32> to vector<2x64xbf16>
    %c0_187 = arith.constant 0 : index
    %c0_188 = arith.constant 0 : index
    %161 = vector.load %arg15[%c0_187, %c0_188] : memref<64x128xbf16, #tpu.memory_space<vmem>>, vector<64x128xbf16>
    %cst_189 = arith.constant dense<0.000000e+00> : vector<2x128xf32>
    %162 = tpu.matmul %160, %161, %cst_189 {dimension_numbers = #tpu.dot_dimension_numbers<[1], [0], [0], [1], [0, 0, 1, 1], [], []>} : vector<2x64xbf16>, vector<64x128xbf16>, vector<2x128xf32> -> vector<2x128xf32>
    %c0_190 = arith.constant 0 : index
    %c0_191 = arith.constant 0 : index
    %163 = vector.load %arg16[%c0_190, %c0_191] : memref<1x128xf32, #tpu.memory_space<vmem>>, vector<1x128xf32>
    %164 = vector.broadcast %163 : vector<1x128xf32> to vector<2x128xf32>
    %165 = arith.addf %162, %164 : vector<2x128xf32>
    %166 = vector.shape_cast %165 : vector<2x128xf32> to vector<1x2x128xf32>
    %c0_192 = arith.constant 0 : index
    %c0_193 = arith.constant 0 : index
    %c0_194 = arith.constant 0 : index
    %167 = vector.load %arg17[%c0_192, %c0_193, %c0_194] : memref<1x2x128xf32, #tpu.memory_space<vmem>>, vector<1x2x128xf32>
    tpu.vector_store %arg17[%c0_192, %c0_193, %c0_194], %166 {strides = array<i32>} : memref<1x2x128xf32, #tpu.memory_space<vmem>>, vector<1x2x128xf32>,
    return
  }
  func.func @transform_0(%arg0: i32) -> (i32, i32, i32) {
    %c0_i32 = arith.constant 0 : i32
    %c0_i32_0 = arith.constant 0 : i32
    %c0_i32_1 = arith.constant 0 : i32
    return %arg0, %c0_i32, %c0_i32_0 : i32, i32, i32
  }
  func.func @transform_1(%arg0: i32) -> (i32, i32, i32, i32) {
    %c0_i32 = arith.constant 0 : i32
    %c0_i32_0 = arith.constant 0 : i32
    %c0_i32_1 = arith.constant 0 : i32
    %c0_i32_2 = arith.constant 0 : i32
    %c0_i32_3 = arith.constant 0 : i32
    return %c0_i32, %c0_i32_0, %c0_i32_1, %c0_i32_2 : i32, i32, i32, i32
  }
  func.func @transform_2(%arg0: i32) -> (i32, i32, i32, i32) {
    %c0_i32 = arith.constant 0 : i32
    %c0_i32_0 = arith.constant 0 : i32
    %c0_i32_1 = arith.constant 0 : i32
    %c0_i32_2 = arith.constant 0 : i32
    %c0_i32_3 = arith.constant 0 : i32
    return %c0_i32, %c0_i32_0, %c0_i32_1, %c0_i32_2 : i32, i32, i32, i32
  }
  func.func @transform_3(%arg0: i32) -> (i32, i32, i32, i32) {
    %c0_i32 = arith.constant 0 : i32
    %c0_i32_0 = arith.constant 0 : i32
    %c0_i32_1 = arith.constant 0 : i32
    %c0_i32_2 = arith.constant 0 : i32
    %c0_i32_3 = arith.constant 0 : i32
    return %c0_i32, %c0_i32_0, %c0_i32_1, %c0_i32_2 : i32, i32, i32, i32
  }
  func.func @transform_4(%arg0: i32) -> (i32, i32, i32) {
    %c0_i32 = arith.constant 0 : i32
    %c0_i32_0 = arith.constant 0 : i32
    %c0_i32_1 = arith.constant 0 : i32
    %c0_i32_2 = arith.constant 0 : i32
    return %c0_i32, %c0_i32_0, %c0_i32_1 : i32, i32, i32
  }
  func.func @transform_5(%arg0: i32) -> (i32, i32, i32) {
    %c0_i32 = arith.constant 0 : i32
    %c0_i32_0 = arith.constant 0 : i32
    %c0_i32_1 = arith.constant 0 : i32
    %c0_i32_2 = arith.constant 0 : i32
    return %c0_i32, %c0_i32_0, %c0_i32_1 : i32, i32, i32
  }
  func.func @transform_6(%arg0: i32) -> (i32, i32, i32) {
    %c0_i32 = arith.constant 0 : i32
    %c0_i32_0 = arith.constant 0 : i32
    %c0_i32_1 = arith.constant 0 : i32
    %c0_i32_2 = arith.constant 0 : i32
    return %c0_i32, %c0_i32_0, %c0_i32_1 : i32, i32, i32
  }
  func.func @transform_7(%arg0: i32) -> (i32, i32) {
    %c0_i32 = arith.constant 0 : i32
    %c0_i32_0 = arith.constant 0 : i32
    %c0_i32_1 = arith.constant 0 : i32
    return %c0_i32, %c0_i32_0 : i32, i32
  }
  func.func @transform_8(%arg0: i32) -> (i32, i32) {
    %c0_i32 = arith.constant 0 : i32
    %c0_i32_0 = arith.constant 0 : i32
    %c0_i32_1 = arith.constant 0 : i32
    return %c0_i32, %c0_i32_0 : i32, i32
  }
  func.func @transform_9(%arg0: i32) -> (i32, i32) {
    %c0_i32 = arith.constant 0 : i32
    %c0_i32_0 = arith.constant 0 : i32
    %c0_i32_1 = arith.constant 0 : i32
    return %c0_i32, %c0_i32_0 : i32, i32
  }
  func.func @transform_10(%arg0: i32) -> (i32, i32, i32) {
    %c0_i32 = arith.constant 0 : i32
    %c0_i32_0 = arith.constant 0 : i32
    %c0_i32_1 = arith.constant 0 : i32
    %c0_i32_2 = arith.constant 0 : i32
    return %c0_i32, %c0_i32_0, %c0_i32_1 : i32, i32, i32
  }
  func.func @transform_11(%arg0: i32) -> (i32, i32) {
    %c0_i32 = arith.constant 0 : i32
    %c0_i32_0 = arith.constant 0 : i32
    %c0_i32_1 = arith.constant 0 : i32
    return %c0_i32, %c0_i32_0 : i32, i32
  }
  func.func @transform_12(%arg0: i32) -> (i32, i32) {
    %c0_i32 = arith.constant 0 : i32
    %c0_i32_0 = arith.constant 0 : i32
    %c0_i32_1 = arith.constant 0 : i32
    return %c0_i32, %c0_i32_0 : i32, i32
  }
  func.func @transform_13(%arg0: i32) -> (i32, i32) {
    %c0_i32 = arith.constant 0 : i32
    %c0_i32_0 = arith.constant 0 : i32
    %c0_i32_1 = arith.constant 0 : i32
    return %c0_i32, %c0_i32_0 : i32, i32
  }
  func.func @transform_14(%arg0: i32) -> (i32, i32) {
    %c0_i32 = arith.constant 0 : i32
    %c0_i32_0 = arith.constant 0 : i32
    %c0_i32_1 = arith.constant 0 : i32
    return %c0_i32, %c0_i32_0 : i32, i32
  }
  func.func @transform_15(%arg0: i32) -> (i32, i32) {
    %c0_i32 = arith.constant 0 : i32
    %c0_i32_0 = arith.constant 0 : i32
    %c0_i32_1 = arith.constant 0 : i32
    return %c0_i32, %c0_i32_0 : i32, i32
  }
  func.func @transform_16(%arg0: i32) -> (i32, i32, i32) {
    %c0_i32 = arith.constant 0 : i32
    %c0_i32_0 = arith.constant 0 : i32
    %c0_i32_1 = arith.constant 0 : i32
    return %arg0, %c0_i32, %c0_i32_0 : i32, i32, i32
  }
}

</mosaic_0001>

<llo_original>
// kernel: _mnist_forward_impl.1
$region0: #{_mnist_forward_impl.1}
  #allocation0 [shape = 'u32[]', space=smem, size = 0x4, offset = 0x4, fixed_abs, tag = 'smem constant byte address 0x4 - core index']
  #allocation1 [shape = 'u32[144,128]{1,0:T(1,128)}', space=vmem, size = 0x12000, scoped, tag = 'internal scratch']
  #allocation2 [shape = 'bf16[64,28]{1,0:T(16,128)(2,1)}', space=vmem, size = 0x4000, scoped, tag = 'scratch operand']
  #allocation3 [shape = 'bf16[32,448]{1,0:T(16,128)(2,1)}', space=vmem, size = 0x8000, scoped, tag = 'scratch operand']
  #allocation4 [shape = 'bf16[18,448]{1,0:T(8,128)(2,1)}', space=vmem, size = 0x6000, scoped, tag = 'scratch operand']
  %s0 = inlined_call_operand.vmem [shape: bf16[2,32,28], index: 0, kind: input, shape index: {}]
  %s1 = inlined_call_operand.vmem [shape: bf16[3,2,28,448], index: 1, kind: input, shape index: {}]
  %s2 = inlined_call_operand.hbm [shape: bf16[3,2,448,448], index: 2, kind: input, shape index: {}]
  %s3 = inlined_call_operand.hbm [shape: bf16[3,2,448,384], index: 3, kind: input, shape index: {}]
  %s4 = inlined_call_operand.hbm [shape: bf16[2,32,62], index: 4, kind: input, shape index: {}]
  %s5 = inlined_call_operand.hbm [shape: bf16[2,18,30], index: 5, kind: input, shape index: {}]
  %s6 = inlined_call_operand.hbm [shape: bf16[2,6,16], index: 6, kind: input, shape index: {}]
  %s7 = inlined_call_operand.hbm [shape: f32[1,448], index: 7, kind: input, shape index: {}]
  %s8 = inlined_call_operand.hbm [shape: f32[1,448], index: 8, kind: input, shape index: {}]
  %s9 = inlined_call_operand.hbm [shape: f32[1,384], index: 9, kind: input, shape index: {}]
  %s10 = inlined_call_operand.hbm [shape: bf16[3,384,128], index: 10, kind: input, shape index: {}]
  %s11 = inlined_call_operand.hbm [shape: f32[1,128], index: 11, kind: input, shape index: {}]
  %s12 = inlined_call_operand.vmem [shape: bf16[128,64], index: 12, kind: input, shape index: {}]
  %s13 = inlined_call_operand.hbm [shape: f32[1,64], index: 13, kind: input, shape index: {}]
  %s14 = inlined_call_operand.hbm [shape: bf16[64,128], index: 14, kind: input, shape index: {}]
  %s15 = inlined_call_operand.hbm [shape: f32[1,128], index: 15, kind: input, shape index: {}]
  %s16 = inlined_call_operand.hbm [shape: f32[1,2,128], index: 16, kind: output, shape index: {}]
  %s17 = sld [smem:[#allocation0]]
  $region126: #{_mnist_forward_impl.1} parent=0
    _
  %s19 = ssub.s32 1, %s17
  %s20 = scalar_select 0, %s19, %s17
  $region1: #{_mnist_forward_impl.1} parent=0
    #allocation5 [shape = 'u8[2752512]{0}', space=vmem, size = 0x2a0000, scoped, tag = 'input window, operand 2, single buffered']
    #allocation6 [shape = 's32[1]{0}', space=sflag, size = 0x4, scoped, tag = 'scoped memory for _mnist_forward_impl.1']
    #allocation7 [shape = 's32[1]{0}', space=sflag, size = 0x4, scoped, tag = 'scoped memory for _mnist_forward_impl.1']
    #allocation8 [shape = 'u8[2064384]{0}', space=vmem, size = 0x1f8000, scoped, tag = 'input window, operand 3, single buffered']
    #allocation9 [shape = 's32[1]{0}', space=sflag, size = 0x4, scoped, tag = 'scoped memory for _mnist_forward_impl.1']
    #allocation10 [shape = 'u8[16384]{0}', space=vmem, size = 0x4000, scoped, tag = 'input window, operand 4, single buffered']
    #allocation11 [shape = 'u8[12288]{0}', space=vmem, size = 0x3000, scoped, tag = 'input window, operand 5, single buffered']
    #allocation12 [shape = 's32[1]{0}', space=sflag, size = 0x4, scoped, tag = 'scoped memory for _mnist_forward_impl.1']
    #allocation13 [shape = 'u8[4096]{0}', space=vmem, size = 0x1000, scoped, tag = 'input window, operand 6, single buffered']
    #allocation14 [shape = 'u8[2048]{0}', space=vmem, size = 0x800, scoped, tag = 'input window, operand 7, single buffered']
    #allocation15 [shape = 's32[1]{0}', space=sflag, size = 0x4, scoped, tag = 'scoped memory for _mnist_forward_impl.1']
    #allocation16 [shape = 'u8[2048]{0}', space=vmem, size = 0x800, scoped, tag = 'input window, operand 8, single buffered']
    #allocation17 [shape = 'u8[1536]{0}', space=vmem, size = 0x800, scoped, tag = 'input window, operand 9, single buffered']
    #allocation18 [shape = 's32[1]{0}', space=sflag, size = 0x4, scoped, tag = 'scoped memory for _mnist_forward_impl.1']
    #allocation19 [shape = 'u8[294912]{0}', space=vmem, size = 0x48000, scoped, tag = 'input window, operand 10, single buffered']
    #allocation20 [shape = 'u8[512]{0}', space=vmem, size = 0x400, scoped, tag = 'input window, operand 11, single buffered']
    #allocation21 [shape = 's32[1]{0}', space=sflag, size = 0x4, scoped, tag = 'scoped memory for _mnist_forward_impl.1']
    #allocation22 [shape = 'u8[512]{0}', space=vmem, size = 0x400, scoped, tag = 'input window, operand 13, single buffered']
    #allocation23 [shape = 'u8[16384]{0}', space=vmem, size = 0x4000, scoped, tag = 'input window, operand 14, single buffered']
    #allocation24 [shape = 's32[1]{0}', space=sflag, size = 0x4, scoped, tag = 'scoped memory for _mnist_forward_impl.1']
    #allocation25 [shape = 'u8[512]{0}', space=vmem, size = 0x400, scoped, tag = 'input window, operand 15, single buffered']
    #allocation26 [shape = 'u8[1024]{0}', space=vmem, size = 0x400, scoped, tag = 'output window, operand 0, single buffered']
    %21 = vsyncpa [#allocation6], 0
    %22 = vsyncpa [#allocation9], 0
    %23 = vsyncpa [#allocation12], 0
    %24 = vsyncpa [#allocation15], 0
    %25 = vsyncpa [#allocation18], 0
    %26 = vsyncpa [#allocation21], 0
    %27 = vsyncpa [#allocation24], 0
    %28 = vsyncpa [#allocation7], 0
    // Predicated region
    $region2: #{_mnist_forward_impl.1} parent=1 // pred_check
      _
    $region3: #{_mnist_forward_impl.1} parent=1 // pred_check_branch
      %30 = sbr.rel (0) target = $region5
    $region4: #{_mnist_forward_impl.1} parent=1 // pred_region
      _
    $region5: #{_mnist_forward_impl.1} parent=1 // pred_fallthru
      _
    // Predicated region
    $region6: #{_mnist_forward_impl.1} parent=1 // pred_check
      _
    $region7: #{_mnist_forward_impl.1} parent=1 // pred_check_branch
      %32 = sbr.rel (0) target = $region9
    $region8: #{_mnist_forward_impl.1} parent=1 // pred_region
      _
    $region9: #{_mnist_forward_impl.1} parent=1 // pred_fallthru
      _
    // Predicated region
    $region10: #{_mnist_forward_impl.1} parent=1 // pred_check
      _
    $region11: #{_mnist_forward_impl.1} parent=1 // pred_check_branch
      %34 = sbr.rel (0) target = $region13
    $region12: #{_mnist_forward_impl.1} parent=1 // pred_region
      %s36 = ssub.s32 86016, 86016
      %37 = vsyncadd [#allocation6], %s36
      %s38 = sshll.u32 [#allocation5], 4
      %s39 = int_to_ptr.vmem [resolvable:$true] %s38
      %44 = dma.hbm_to_vmem [thread:$0]  %s2, 86016, %s39, [#allocation6], 256, 256, 16
    $region13: #{_mnist_forward_impl.1} parent=1 // pred_fallthru
      _
    // Predicated region
    $region14: #{_mnist_forward_impl.1} parent=1 // pred_check
      _
    $region15: #{_mnist_forward_impl.1} parent=1 // pred_check_branch
      %46 = sbr.rel (0) target = $region17
    $region16: #{_mnist_forward_impl.1} parent=1 // pred_region
      %s48 = ssub.s32 64512, 64512
      %49 = vsyncadd [#allocation9], %s48
      %s50 = sshll.u32 [#allocation8], 4
      %s51 = int_to_ptr.vmem [resolvable:$true] %s50
      %56 = dma.hbm_to_vmem [thread:$0]  %s3, 64512, %s51, [#allocation9], 192, 192, 12
    $region17: #{_mnist_forward_impl.1} parent=1 // pred_fallthru
      _
    // Predicated region
    $region18: #{_mnist_forward_impl.1} parent=1 // pred_check
      _
    $region19: #{_mnist_forward_impl.1} parent=1 // pred_check_branch
      %58 = sbr.rel (0) target = $region21
    $region20: #{_mnist_forward_impl.1} parent=1 // pred_region
      %s60 = ssub.s32 512, 512
      %61 = vsyncadd [#allocation9], %s60
      %s62 = sshll.u32 [#allocation10], 4
      %s63 = int_to_ptr.vmem [resolvable:$true] %s62
      %68 = dma.hbm_to_vmem [thread:$0]  %s4, 512, %s63, [#allocation9], 64, 64, 4
    $region21: #{_mnist_forward_impl.1} parent=1 // pred_fallthru
      _
    // Predicated region
    $region22: #{_mnist_forward_impl.1} parent=1 // pred_check
      _
    $region23: #{_mnist_forward_impl.1} parent=1 // pred_check_branch
      %70 = sbr.rel (0) target = $region25
    $region24: #{_mnist_forward_impl.1} parent=1 // pred_region
      %s72 = ssub.s32 384, 384
      %73 = vsyncadd [#allocation12], %s72
      %s74 = sshll.u32 [#allocation11], 4
      %s75 = int_to_ptr.vmem [resolvable:$true] %s74
      %80 = dma.hbm_to_vmem [thread:$0]  %s5, 384, %s75, [#allocation12], 64, 64, 4
    $region25: #{_mnist_forward_impl.1} parent=1 // pred_fallthru
      _
    // Predicated region
    $region26: #{_mnist_forward_impl.1} parent=1 // pred_check
      _
    $region27: #{_mnist_forward_impl.1} parent=1 // pred_check_branch
      %82 = sbr.rel (0) target = $region29
    $region28: #{_mnist_forward_impl.1} parent=1 // pred_region
      %s84 = ssub.s32 128, 128
      %85 = vsyncadd [#allocation12], %s84
      %s86 = sshll.u32 [#allocation13], 4
      %s87 = int_to_ptr.vmem [resolvable:$true] %s86
      %92 = dma.hbm_to_vmem [thread:$0]  %s6, 128, %s87, [#allocation12], 64, 64, 4
    $region29: #{_mnist_forward_impl.1} parent=1 // pred_fallthru
      _
    // Predicated region
    $region30: #{_mnist_forward_impl.1} parent=1 // pred_check
      _
    $region31: #{_mnist_forward_impl.1} parent=1 // pred_check_branch
      %94 = sbr.rel (0) target = $region33
    $region32: #{_mnist_forward_impl.1} parent=1 // pred_region
      %s96 = ssub.s32 64, 64
      %97 = vsyncadd [#allocation15], %s96
      %s99 = sshll.u32 [#allocation14], 4
      %s100 = int_to_ptr.vmem [resolvable:$true] %s99
      %102 = dma.hbm_to_vmem [thread:$0]  %s7, 64, %s100, [#allocation15]
    $region33: #{_mnist_forward_impl.1} parent=1 // pred_fallthru
      _
    // Predicated region
    $region34: #{_mnist_forward_impl.1} parent=1 // pred_check
      _
    $region35: #{_mnist_forward_impl.1} parent=1 // pred_check_branch
      %104 = sbr.rel (0) target = $region37
    $region36: #{_mnist_forward_impl.1} parent=1 // pred_region
      %s106 = ssub.s32 64, 64
      %107 = vsyncadd [#allocation15], %s106
      %s109 = sshll.u32 [#allocation16], 4
      %s110 = int_to_ptr.vmem [resolvable:$true] %s109
      %112 = dma.hbm_to_vmem [thread:$0]  %s8, 64, %s110, [#allocation15]
    $region37: #{_mnist_forward_impl.1} parent=1 // pred_fallthru
      _
    // Predicated region
    $region38: #{_mnist_forward_impl.1} parent=1 // pred_check
      _
    $region39: #{_mnist_forward_impl.1} parent=1 // pred_check_branch
      %114 = sbr.rel (0) target = $region41
    $region40: #{_mnist_forward_impl.1} parent=1 // pred_region
      %s116 = ssub.s32 48, 48
      %117 = vsyncadd [#allocation18], %s116
      %s119 = sshll.u32 [#allocation17], 4
      %s120 = int_to_ptr.vmem [resolvable:$true] %s119
      %122 = dma.hbm_to_vmem [thread:$0]  %s9, 48, %s120, [#allocation18]
    $region41: #{_mnist_forward_impl.1} parent=1 // pred_fallthru
      _
    // Predicated region
    $region42: #{_mnist_forward_impl.1} parent=1 // pred_check
      _
    $region43: #{_mnist_forward_impl.1} parent=1 // pred_check_branch
      %124 = sbr.rel (0) target = $region45
    $region44: #{_mnist_forward_impl.1} parent=1 // pred_region
      %s126 = ssub.s32 9216, 9216
      %127 = vsyncadd [#allocation18], %s126
      %s128 = sshll.u32 [#allocation19], 4
      %s129 = int_to_ptr.vmem [resolvable:$true] %s128
      %134 = dma.hbm_to_vmem [thread:$0]  %s10, 9216, %s129, [#allocation18], 64, 64, 4
    $region45: #{_mnist_forward_impl.1} parent=1 // pred_fallthru
      _
    // Predicated region
    $region46: #{_mnist_forward_impl.1} parent=1 // pred_check
      _
    $region47: #{_mnist_forward_impl.1} parent=1 // pred_check_branch
      %136 = sbr.rel (0) target = $region49
    $region48: #{_mnist_forward_impl.1} parent=1 // pred_region
      %s138 = ssub.s32 16, 16
      %139 = vsyncadd [#allocation21], %s138
      %s141 = sshll.u32 [#allocation20], 4
      %s142 = int_to_ptr.vmem [resolvable:$true] %s141
      %144 = dma.hbm_to_vmem [thread:$0]  %s11, 16, %s142, [#allocation21]
    $region49: #{_mnist_forward_impl.1} parent=1 // pred_fallthru
      _
    // Predicated region
    $region50: #{_mnist_forward_impl.1} parent=1 // pred_check
      _
    $region51: #{_mnist_forward_impl.1} parent=1 // pred_check_branch
      %146 = sbr.rel (0) target = $region53
    $region52: #{_mnist_forward_impl.1} parent=1 // pred_region
      _
    $region53: #{_mnist_forward_impl.1} parent=1 // pred_fallthru
      _
    // Predicated region
    $region54: #{_mnist_forward_impl.1} parent=1 // pred_check
      _
    $region55: #{_mnist_forward_impl.1} parent=1 // pred_check_branch
      %148 = sbr.rel (0) target = $region57
    $region56: #{_mnist_forward_impl.1} parent=1 // pred_region
      %s150 = ssub.s32 16, 16
      %151 = vsyncadd [#allocation21], %s150
      %s153 = sshll.u32 [#allocation22], 4
      %s154 = int_to_ptr.vmem [resolvable:$true] %s153
      %156 = dma.hbm_to_vmem [thread:$0]  %s13, 16, %s154, [#allocation21]
    $region57: #{_mnist_forward_impl.1} parent=1 // pred_fallthru
      _
    // Predicated region
    $region58: #{_mnist_forward_impl.1} parent=1 // pred_check
      _
    $region59: #{_mnist_forward_impl.1} parent=1 // pred_check_branch
      %158 = sbr.rel (0) target = $region61
    $region60: #{_mnist_forward_impl.1} parent=1 // pred_region
      %s160 = ssub.s32 512, 512
      %161 = vsyncadd [#allocation24], %s160
      %s162 = sshll.u32 [#allocation23], 4
      %s163 = int_to_ptr.vmem [resolvable:$true] %s162
      %168 = dma.hbm_to_vmem [thread:$0]  %s14, 512, %s163, [#allocation24], 64, 64, 4
    $region61: #{_mnist_forward_impl.1} parent=1 // pred_fallthru
      _
    // Predicated region
    $region62: #{_mnist_forward_impl.1} parent=1 // pred_check
      _
    $region63: #{_mnist_forward_impl.1} parent=1 // pred_check_branch
      %170 = sbr.rel (0) target = $region65
    $region64: #{_mnist_forward_impl.1} parent=1 // pred_region
      %s172 = ssub.s32 16, 16
      %173 = vsyncadd [#allocation24], %s172
      %s175 = sshll.u32 [#allocation25], 4
      %s176 = int_to_ptr.vmem [resolvable:$true] %s175
      %178 = dma.hbm_to_vmem [thread:$0]  %s15, 16, %s176, [#allocation24]
    $region65: #{_mnist_forward_impl.1} parent=1 // pred_fallthru
      _
    // Predicated region
    $region66: #{_mnist_forward_impl.1} parent=1 // pred_check
      _
    $region67: #{_mnist_forward_impl.1} parent=1 // pred_check_branch
      %180 = sbr.rel (0) target = $region69
    $region68: #{_mnist_forward_impl.1} parent=1 // pred_region
      %181 = dma.done [#allocation6], 86016
    $region69: #{_mnist_forward_impl.1} parent=1 // pred_fallthru
      _
    // Predicated region
    $region70: #{_mnist_forward_impl.1} parent=1 // pred_check
      _
    $region71: #{_mnist_forward_impl.1} parent=1 // pred_check_branch
      %183 = sbr.rel (0) target = $region73
    $region72: #{_mnist_forward_impl.1} parent=1 // pred_region
      %184 = dma.done [#allocation9], 64512
    $region73: #{_mnist_forward_impl.1} parent=1 // pred_fallthru
      _
    // Predicated region
    $region74: #{_mnist_forward_impl.1} parent=1 // pred_check
      _
    $region75: #{_mnist_forward_impl.1} parent=1 // pred_check_branch
      %186 = sbr.rel (0) target = $region77
    $region76: #{_mnist_forward_impl.1} parent=1 // pred_region
      %187 = dma.done [#allocation9], 512
    $region77: #{_mnist_forward_impl.1} parent=1 // pred_fallthru
      _
    // Predicated region
    $region78: #{_mnist_forward_impl.1} parent=1 // pred_check
      _
    $region79: #{_mnist_forward_impl.1} parent=1 // pred_check_branch
      %189 = sbr.rel (0) target = $region81
    $region80: #{_mnist_forward_impl.1} parent=1 // pred_region
      %190 = dma.done [#allocation12], 384
    $region81: #{_mnist_forward_impl.1} parent=1 // pred_fallthru
      _
    // Predicated region
    $region82: #{_mnist_forward_impl.1} parent=1 // pred_check
      _
    $region83: #{_mnist_forward_impl.1} parent=1 // pred_check_branch
      %192 = sbr.rel (0) target = $region85
    $region84: #{_mnist_forward_impl.1} parent=1 // pred_region
      %193 = dma.done [#allocation12], 128
    $region85: #{_mnist_forward_impl.1} parent=1 // pred_fallthru
      _
    // Predicated region
    $region86: #{_mnist_forward_impl.1} parent=1 // pred_check
      _
    $region87: #{_mnist_forward_impl.1} parent=1 // pred_check_branch
      %195 = sbr.rel (0) target = $region89
    $region88: #{_mnist_forward_impl.1} parent=1 // pred_region
      %196 = dma.done [#allocation15], 64
    $region89: #{_mnist_forward_impl.1} parent=1 // pred_fallthru
      _
    // Predicated region
    $region90: #{_mnist_forward_impl.1} parent=1 // pred_check
      _
    $region91: #{_mnist_forward_impl.1} parent=1 // pred_check_branch
      %198 = sbr.rel (0) target = $region93
    $region92: #{_mnist_forward_impl.1} parent=1 // pred_region
      %199 = dma.done [#allocation15], 64
    $region93: #{_mnist_forward_impl.1} parent=1 // pred_fallthru
      _
    // Predicated region
    $region94: #{_mnist_forward_impl.1} parent=1 // pred_check
      _
    $region95: #{_mnist_forward_impl.1} parent=1 // pred_check_branch
      %201 = sbr.rel (0) target = $region97
    $region96: #{_mnist_forward_impl.1} parent=1 // pred_region
      %202 = dma.done [#allocation18], 48
    $region97: #{_mnist_forward_impl.1} parent=1 // pred_fallthru
      _
    // Predicated region
    $region98: #{_mnist_forward_impl.1} parent=1 // pred_check
      _
    $region99: #{_mnist_forward_impl.1} parent=1 // pred_check_branch
      %204 = sbr.rel (0) target = $region101
    $region100: #{_mnist_forward_impl.1} parent=1 // pred_region
      %205 = dma.done [#allocation18], 9216
    $region101: #{_mnist_forward_impl.1} parent=1 // pred_fallthru
      _
    // Predicated region
    $region102: #{_mnist_forward_impl.1} parent=1 // pred_check
      _
    $region103: #{_mnist_forward_impl.1} parent=1 // pred_check_branch
      %207 = sbr.rel (0) target = $region105
    $region104: #{_mnist_forward_impl.1} parent=1 // pred_region
      %208 = dma.done [#allocation21], 16
    $region105: #{_mnist_forward_impl.1} parent=1 // pred_fallthru
      _
    // Predicated region
    $region106: #{_mnist_forward_impl.1} parent=1 // pred_check
      _
    $region107: #{_mnist_forward_impl.1} parent=1 // pred_check_branch
      %210 = sbr.rel (0) target = $region109
    $region108: #{_mnist_forward_impl.1} parent=1 // pred_region
      %211 = dma.done [#allocation21], 16
    $region109: #{_mnist_forward_impl.1} parent=1 // pred_fallthru
      _
    // Predicated region
    $region110: #{_mnist_forward_impl.1} parent=1 // pred_check
      _
    $region111: #{_mnist_forward_impl.1} parent=1 // pred_check_branch
      %213 = sbr.rel (0) target = $region113
    $region112: #{_mnist_forward_impl.1} parent=1 // pred_region
      %214 = dma.done [#allocation24], 512
    $region113: #{_mnist_forward_impl.1} parent=1 // pred_fallthru
      _
    // Predicated region
    $region114: #{_mnist_forward_impl.1} parent=1 // pred_check
      _
    $region115: #{_mnist_forward_impl.1} parent=1 // pred_check_branch
      %216 = sbr.rel (0) target = $region117
    $region116: #{_mnist_forward_impl.1} parent=1 // pred_region
      %217 = dma.done [#allocation24], 16
    $region117: #{_mnist_forward_impl.1} parent=1 // pred_fallthru
      _
    %v219 = vld [vmem:[%s0] sm:$0xf]
    %v220 = vld [vmem:[%s0 + $0x4] sm:$0xf]
    %v221 = vld [vmem:[%s0 + $0x8] sm:$0xf]
    %v222 = vld [vmem:[%s0 + $0xc] sm:$0xf]
    %v227 = vunpack.c.l.b16 %v219
    %v228 = vunpack.c.l.b16 %v220
    %v229 = vunpack.c.l.b16 %v221
    %v230 = vunpack.c.l.b16 %v222
    %v231 = vpack.c.b16 %v228, %v227
    %v232 = vpack.c.b16 %v230, %v229
    %vm235 = vcmask 228352
    %236 = vst.msk [vmem:[#allocation2] sm:$0xff] %vm235, %v231
    %237 = vst.msk [vmem:[#allocation2 + $0x8] sm:$0xff] %vm235, %v232
    %s238 = scalar_lea.vmem %s0, 16
    %v239 = vld [vmem:[%s238] sm:$0xf]
    %v240 = vld [vmem:[%s238 + $0x4] sm:$0xf]
    %v241 = vld [vmem:[%s238 + $0x8] sm:$0xf]
    %v242 = vld [vmem:[%s238 + $0xc] sm:$0xf]
    %v247 = vunpack.c.l.b16 %v239
    %v248 = vunpack.c.l.b16 %v240
    %v249 = vunpack.c.l.b16 %v241
    %v250 = vunpack.c.l.b16 %v242
    %v251 = vpack.c.b16 %v248, %v247
    %v252 = vpack.c.b16 %v250, %v249
    %255 = vst.msk [vmem:[#allocation2 + $0x10] sm:$0xff] %vm235, %v251
    %256 = vst.msk [vmem:[#allocation2 + $0x18] sm:$0xff] %vm235, %v252
    %v257 = vld [vmem:[#allocation2] sm:$0xff]
    %v258 = vld [vmem:[#allocation2 + $0x8] sm:$0xff]
    %v259 = vld [vmem:[#allocation2 + $0x10] sm:$0xff]
    %v260 = vld [vmem:[#allocation2 + $0x18] sm:$0x7f]
    %v261 = vld [vmem:[%s1] sm:$0xff]
    %v262 = vld [vmem:[%s1 + $0x8] sm:$0xff]
    %v263 = vld [vmem:[%s1 + $0x10] sm:$0xff]
    %v264 = vld [vmem:[%s1 + $0x18] sm:$0xff]
    %v265 = vld [vmem:[%s1 + $0x20] sm:$0xff]
    %v266 = vld [vmem:[%s1 + $0x28] sm:$0xff]
    %v267 = vld [vmem:[%s1 + $0x30] sm:$0x33]
    %v268 = vld [vmem:[%s1 + $0x38] sm:$0x33]
    %v269 = vld [vmem:[#allocation2 + $0x18] sm:$0xff]
    %s270 = scalar_lea.vmem %s1, 128
    %v271 = vld [vmem:[%s270] sm:$0xff]
    %v272 = vld [vmem:[%s270 + $0x8] sm:$0xff]
    %v273 = vld [vmem:[%s270 + $0x10] sm:$0xff]
    %v274 = vld [vmem:[%s270 + $0x18] sm:$0xff]
    %v275 = vld [vmem:[%s270 + $0x20] sm:$0xff]
    %v276 = vld [vmem:[%s270 + $0x28] sm:$0xff]
    %v277 = vld [vmem:[%s270 + $0x30] sm:$0x33]
    %v278 = vld [vmem:[%s270 + $0x38] sm:$0x33]
    %vm279 = vsmask.f32 7424
    %v281 = vshrl.u32 %v257, 16
    %v283 = vshll.u32 %v257, 16
    %v285 = vrot.slane %v283, 1
    %v286 = vor.u32 %v281, %v285
    %v288 = vshll.u32 %v258, 16
    %v290 = vrot.slane %v288, 1
    %v291 = vsel %vm279, %v286, %v290
    %v292 = vshrl.u32 %v258, 16
    %v294 = vor.u32 %v292, %v290
    %v296 = vshll.u32 %v259, 16
    %v298 = vrot.slane %v296, 1
    %v299 = vsel %vm279, %v294, %v298
    %v300 = vshrl.u32 %v259, 16
    %v302 = vor.u32 %v300, %v298
    %v304 = vshll.u32 %v269, 16
    %v306 = vrot.slane %v304, 1
    %v307 = vsel %vm279, %v302, %v306
    %v308 = vshrl.u32 %v269, 16
    %v310 = vor.u32 %v308, %v306
    %v319 = vunpack.c.l.b16 %v271
    %v320 = vunpack.c.h.b16 %v271
    %v321 = vunpack.c.l.b16 %v272
    %v322 = vunpack.c.h.b16 %v272
    %v323 = vunpack.c.l.b16 %v273
    %v324 = vunpack.c.h.b16 %v273
    %v325 = vunpack.c.l.b16 %v274
    %v326 = vunpack.c.h.b16 %v274
    %v327 = vunpack.c.l.b16 %v275
    %v328 = vunpack.c.h.b16 %v275
    %v329 = vunpack.c.l.b16 %v276
    %v330 = vunpack.c.h.b16 %v276
    %v331 = vunpack.c.l.b16 %v277
    %v332 = vunpack.c.h.b16 %v277
    %v333 = vunpack.c.l.b16 %v278
    %v334 = vunpack.c.h.b16 %v278
    %v335 = vpack.c.b16 %v323, %v319
    %v336 = vpack.c.b16 %v324, %v320
    %v337 = vpack.c.b16 %v325, %v321
    %v338 = vpack.c.b16 %v326, %v322
    %v339 = vpack.c.b16 %v331, %v327
    %v340 = vpack.c.b16 %v332, %v328
    %v341 = vpack.c.b16 %v333, %v329
    %v342 = vpack.c.b16 %v334, %v330
    %v348 = vsel %vm235, %v291, 0
    %v351 = vsel %vm235, %v299, 0
    %v354 = vsel %vm235, %v307, 0
    %v357 = vsel %vm235, %v310, 0
    %vm359 = vcmask 1045504
    %v361 = vsel %vm359, %v339, 0
    %v364 = vsel %vm359, %v340, 0
    %v367 = vsel %vm359, %v341, 0
    %v370 = vsel %vm359, %v342, 0
    %372 = vmatprep.subr.bf16.mxu0 %v336
    %373 = vmatpush1.bf16.msra.mxu0 %v335
    %374 = vmatprep.subr.bf16.mxu0 %v364
    %375 = vmatpush1.bf16.msra.mxu0 %v361
    %376 = vmatprep.subr.bf16.mxu0 0
    %377 = vmatpush1.bf16.msra.mxu0 0
    %378 = vmatprep.subr.bf16.mxu0 0
    %379 = vmatpush1.bf16.msra.mxu0 0
    %380 = vmatprep.subr.bf16.mxu0 0
    %381 = vmatpush1.bf16.msra.mxu0 0
    %382 = vmatprep.subr.bf16.mxu0 0
    %383 = vmatpush1.bf16.msra.mxu0 0
    %384 = vmatprep.subr.bf16.mxu0 0
    %385 = vmatpush1.bf16.msra.mxu0 0
    %386 = vmatprep.subr.bf16.mxu0 0
    %387 = vmatpush1.bf16.msra.mxu0 0
    %388 = vmatprep.subr.bf16.mxu0 0
    %389 = vmatpush1.bf16.msra.mxu0 0
    %390 = vmatprep.subr.bf16.mxu0 0
    %391 = vmatpush1.bf16.msra.mxu0 0
    %392 = vmatprep.subr.bf16.mxu0 0
    %393 = vmatpush1.bf16.msra.mxu0 0
    %394 = vmatprep.subr.bf16.mxu0 0
    %395 = vmatpush1.bf16.msra.mxu0 0
    %396 = vmatprep.subr.bf16.mxu0 0
    %397 = vmatpush1.bf16.msra.mxu0 0
    %398 = vmatprep.subr.bf16.mxu0 0
    %399 = vmatpush1.bf16.msra.mxu0 0
    %400 = vmatprep.subr.bf16.mxu0 0
    %401 = vmatpush1.bf16.msra.mxu0 0
    %402 = vmatprep.subr.bf16.mxu0 0
    %403 = vmatpush1.bf16.msra.mxu0 0
    %404 = vmatprep.mubr.bf16.mxu0 0
    %405 = vmatmul.mubr.bf16.gmra.mrb[0].mxu0 %v348
    %v406 = vpop.f32.mrb[0].mxu0
    %v407 = vadd.f32 0.0, %v406
    %v408 = vpop.f32.mrb[0].mxu0
    %v409 = vadd.f32 0.0, %v408
    %v410 = vpop.f32.mrb[0].mxu0
    %v411 = vadd.f32 0.0, %v410
    %v412 = vpop.f32.mrb[0].mxu0
    %v413 = vadd.f32 0.0, %v412
    %414 = vmatprep.mubr.bf16.mxu0 0
    %415 = vmatmul.mubr.bf16.gmra.mrb[0].mxu0 %v351
    %v416 = vpop.f32.mrb[0].mxu0
    %v417 = vadd.f32 0.0, %v416
    %v418 = vpop.f32.mrb[0].mxu0
    %v419 = vadd.f32 0.0, %v418
    %v420 = vpop.f32.mrb[0].mxu0
    %v421 = vadd.f32 0.0, %v420
    %v422 = vpop.f32.mrb[0].mxu0
    %v423 = vadd.f32 0.0, %v422
    %424 = vmatprep.mubr.bf16.mxu0 0
    %425 = vmatmul.mubr.bf16.gmra.mrb[0].mxu0 %v354
    %v426 = vpop.f32.mrb[0].mxu0
    %v427 = vadd.f32 0.0, %v426
    %v428 = vpop.f32.mrb[0].mxu0
    %v429 = vadd.f32 0.0, %v428
    %v430 = vpop.f32.mrb[0].mxu0
    %v431 = vadd.f32 0.0, %v430
    %v432 = vpop.f32.mrb[0].mxu0
    %v433 = vadd.f32 0.0, %v432
    %434 = vmatprep.mubr.bf16.mxu0 0
    %435 = vmatmul.mubr.bf16.gmra.mrb[0].mxu0 %v357
    %v436 = vpop.f32.mrb[0].mxu0
    %v437 = vadd.f32 0.0, %v436
    %v438 = vpop.f32.mrb[0].mxu0
    %v439 = vadd.f32 0.0, %v438
    %v440 = vpop.f32.mrb[0].mxu0
    %v441 = vadd.f32 0.0, %v440
    %v442 = vpop.f32.mrb[0].mxu0
    %v443 = vadd.f32 0.0, %v442
    %444 = vdwg.mxu0
    %445 = vmatprep.subr.bf16.mxu0 %v338
    %446 = vmatpush1.bf16.msra.mxu0 %v337
    %447 = vmatprep.subr.bf16.mxu0 %v370
    %448 = vmatpush1.bf16.msra.mxu0 %v367
    %449 = vmatprep.subr.bf16.mxu0 0
    %450 = vmatpush1.bf16.msra.mxu0 0
    %451 = vmatprep.subr.bf16.mxu0 0
    %452 = vmatpush1.bf16.msra.mxu0 0
    %453 = vmatprep.subr.bf16.mxu0 0
    %454 = vmatpush1.bf16.msra.mxu0 0
    %455 = vmatprep.subr.bf16.mxu0 0
    %456 = vmatpush1.bf16.msra.mxu0 0
    %457 = vmatprep.subr.bf16.mxu0 0
    %458 = vmatpush1.bf16.msra.mxu0 0
    %459 = vmatprep.subr.bf16.mxu0 0
    %460 = vmatpush1.bf16.msra.mxu0 0
    %461 = vmatprep.subr.bf16.mxu0 0
    %462 = vmatpush1.bf16.msra.mxu0 0
    %463 = vmatprep.subr.bf16.mxu0 0
    %464 = vmatpush1.bf16.msra.mxu0 0
    %465 = vmatprep.subr.bf16.mxu0 0
    %466 = vmatpush1.bf16.msra.mxu0 0
    %467 = vmatprep.subr.bf16.mxu0 0
    %468 = vmatpush1.bf16.msra.mxu0 0
    %469 = vmatprep.subr.bf16.mxu0 0
    %470 = vmatpush1.bf16.msra.mxu0 0
    %471 = vmatprep.subr.bf16.mxu0 0
    %472 = vmatpush1.bf16.msra.mxu0 0
    %473 = vmatprep.subr.bf16.mxu0 0
    %474 = vmatpush1.bf16.msra.mxu0 0
    %475 = vmatprep.subr.bf16.mxu0 0
    %476 = vmatpush1.bf16.msra.mxu0 0
    %477 = vmatprep.mubr.bf16.mxu0 0
    %478 = vmatmul.mubr.bf16.gmra.mrb[0].mxu0 %v348
    %v479 = vpop.f32.mrb[0].mxu0
    %v480 = vadd.f32 0.0, %v479
    %v481 = vpop.f32.mrb[0].mxu0
    %v482 = vadd.f32 0.0, %v481
    %v483 = vpop.f32.mrb[0].mxu0
    %v484 = vadd.f32 0.0, %v483
    %v485 = vpop.f32.mrb[0].mxu0
    %v486 = vadd.f32 0.0, %v485
    %487 = vmatprep.mubr.bf16.mxu0 0
    %488 = vmatmul.mubr.bf16.gmra.mrb[0].mxu0 %v351
    %v489 = vpop.f32.mrb[0].mxu0
    %v490 = vadd.f32 0.0, %v489
    %v491 = vpop.f32.mrb[0].mxu0
    %v492 = vadd.f32 0.0, %v491
    %v493 = vpop.f32.mrb[0].mxu0
    %v494 = vadd.f32 0.0, %v493
    %v495 = vpop.f32.mrb[0].mxu0
    %v496 = vadd.f32 0.0, %v495
    %497 = vmatprep.mubr.bf16.mxu0 0
    %498 = vmatmul.mubr.bf16.gmra.mrb[0].mxu0 %v354
    %v499 = vpop.f32.mrb[0].mxu0
    %v500 = vadd.f32 0.0, %v499
    %v501 = vpop.f32.mrb[0].mxu0
    %v502 = vadd.f32 0.0, %v501
    %v503 = vpop.f32.mrb[0].mxu0
    %v504 = vadd.f32 0.0, %v503
    %v505 = vpop.f32.mrb[0].mxu0
    %v506 = vadd.f32 0.0, %v505
    %507 = vmatprep.mubr.bf16.mxu0 0
    %508 = vmatmul.mubr.bf16.gmra.mrb[0].mxu0 %v357
    %v509 = vpop.f32.mrb[0].mxu0
    %v510 = vadd.f32 0.0, %v509
    %v511 = vpop.f32.mrb[0].mxu0
    %v512 = vadd.f32 0.0, %v511
    %v513 = vpop.f32.mrb[0].mxu0
    %v514 = vadd.f32 0.0, %v513
    %v515 = vpop.f32.mrb[0].mxu0
    %v516 = vadd.f32 0.0, %v515
    %517 = vdwg.mxu0
    %v526 = vunpack.c.l.b16 %v261
    %v527 = vunpack.c.h.b16 %v261
    %v528 = vunpack.c.l.b16 %v262
    %v529 = vunpack.c.h.b16 %v262
    %v530 = vunpack.c.l.b16 %v263
    %v531 = vunpack.c.h.b16 %v263
    %v532 = vunpack.c.l.b16 %v264
    %v533 = vunpack.c.h.b16 %v264
    %v534 = vunpack.c.l.b16 %v265
    %v535 = vunpack.c.h.b16 %v265
    %v536 = vunpack.c.l.b16 %v266
    %v537 = vunpack.c.h.b16 %v266
    %v538 = vunpack.c.l.b16 %v267
    %v539 = vunpack.c.h.b16 %v267
    %v540 = vunpack.c.l.b16 %v268
    %v541 = vunpack.c.h.b16 %v268
    %v542 = vpack.c.b16 %v530, %v526
    %v543 = vpack.c.b16 %v531, %v527
    %v544 = vpack.c.b16 %v532, %v528
    %v545 = vpack.c.b16 %v533, %v529
    %v546 = vpack.c.b16 %v538, %v534
    %v547 = vpack.c.b16 %v539, %v535
    %v548 = vpack.c.b16 %v540, %v536
    %v549 = vpack.c.b16 %v541, %v537
    %v554 = vsel %vm235, %v257, 0
    %v556 = vsel %vm235, %v258, 0
    %v558 = vsel %vm235, %v259, 0
    %v561 = vsel %vm235, %v260, 0
    %v564 = vsel %vm359, %v546, 0
    %v567 = vsel %vm359, %v547, 0
    %v570 = vsel %vm359, %v548, 0
    %v573 = vsel %vm359, %v549, 0
    %575 = vmatprep.subr.bf16.mxu0 %v543
    %576 = vmatpush1.bf16.msra.mxu0 %v542
    %577 = vmatprep.subr.bf16.mxu0 %v567
    %578 = vmatpush1.bf16.msra.mxu0 %v564
    %579 = vmatprep.subr.bf16.mxu0 0
    %580 = vmatpush1.bf16.msra.mxu0 0
    %581 = vmatprep.subr.bf16.mxu0 0
    %582 = vmatpush1.bf16.msra.mxu0 0
    %583 = vmatprep.subr.bf16.mxu0 0
    %584 = vmatpush1.bf16.msra.mxu0 0
    %585 = vmatprep.subr.bf16.mxu0 0
    %586 = vmatpush1.bf16.msra.mxu0 0
    %587 = vmatprep.subr.bf16.mxu0 0
    %588 = vmatpush1.bf16.msra.mxu0 0
    %589 = vmatprep.subr.bf16.mxu0 0
    %590 = vmatpush1.bf16.msra.mxu0 0
    %591 = vmatprep.subr.bf16.mxu0 0
    %592 = vmatpush1.bf16.msra.mxu0 0
    %593 = vmatprep.subr.bf16.mxu0 0
    %594 = vmatpush1.bf16.msra.mxu0 0
    %595 = vmatprep.subr.bf16.mxu0 0
    %596 = vmatpush1.bf16.msra.mxu0 0
    %597 = vmatprep.subr.bf16.mxu0 0
    %598 = vmatpush1.bf16.msra.mxu0 0
    %599 = vmatprep.subr.bf16.mxu0 0
    %600 = vmatpush1.bf16.msra.mxu0 0
    %601 = vmatprep.subr.bf16.mxu0 0
    %602 = vmatpush1.bf16.msra.mxu0 0
    %603 = vmatprep.subr.bf16.mxu0 0
    %604 = vmatpush1.bf16.msra.mxu0 0
    %605 = vmatprep.subr.bf16.mxu0 0
    %606 = vmatpush1.bf16.msra.mxu0 0
    %607 = vmatprep.mubr.bf16.mxu0 0
    %608 = vmatmul.mubr.bf16.gmra.mrb[0].mxu0 %v554
    %v609 = vpop.f32.mrb[0].mxu0
    %v610 = vadd.f32 %v407, %v609
    %v611 = vpop.f32.mrb[0].mxu0
    %v612 = vadd.f32 %v409, %v611
    %v613 = vpop.f32.mrb[0].mxu0
    %v614 = vadd.f32 %v411, %v613
    %v615 = vpop.f32.mrb[0].mxu0
    %v616 = vadd.f32 %v413, %v615
    %617 = vmatprep.mubr.bf16.mxu0 0
    %618 = vmatmul.mubr.bf16.gmra.mrb[0].mxu0 %v556
    %v619 = vpop.f32.mrb[0].mxu0
    %v620 = vadd.f32 %v417, %v619
    %v621 = vpop.f32.mrb[0].mxu0
    %v622 = vadd.f32 %v419, %v621
    %v623 = vpop.f32.mrb[0].mxu0
    %v624 = vadd.f32 %v421, %v623
    %v625 = vpop.f32.mrb[0].mxu0
    %v626 = vadd.f32 %v423, %v625
    %627 = vmatprep.mubr.bf16.mxu0 0
    %628 = vmatmul.mubr.bf16.gmra.mrb[0].mxu0 %v558
    %v629 = vpop.f32.mrb[0].mxu0
    %v630 = vadd.f32 %v427, %v629
    %v631 = vpop.f32.mrb[0].mxu0
    %v632 = vadd.f32 %v429, %v631
    %v633 = vpop.f32.mrb[0].mxu0
    %v634 = vadd.f32 %v431, %v633
    %v635 = vpop.f32.mrb[0].mxu0
    %v636 = vadd.f32 %v433, %v635
    %637 = vmatprep.mubr.bf16.mxu0 0
    %638 = vmatmul.mubr.bf16.gmra.mrb[0].mxu0 %v561
    %v639 = vpop.f32.mrb[0].mxu0
    %v640 = vadd.f32 %v437, %v639
    %v641 = vpop.f32.mrb[0].mxu0
    %v642 = vadd.f32 %v439, %v641
    %v643 = vpop.f32.mrb[0].mxu0
    %v644 = vadd.f32 %v441, %v643
    %v645 = vpop.f32.mrb[0].mxu0
    %v646 = vadd.f32 %v443, %v645
    %647 = vdwg.mxu0
    %648 = vmatprep.subr.bf16.mxu0 %v545
    %649 = vmatpush1.bf16.msra.mxu0 %v544
    %650 = vmatprep.subr.bf16.mxu0 %v573
    %651 = vmatpush1.bf16.msra.mxu0 %v570
    %652 = vmatprep.subr.bf16.mxu0 0
    %653 = vmatpush1.bf16.msra.mxu0 0
    %654 = vmatprep.subr.bf16.mxu0 0
    %655 = vmatpush1.bf16.msra.mxu0 0
    %656 = vmatprep.subr.bf16.mxu0 0
    %657 = vmatpush1.bf16.msra.mxu0 0
    %658 = vmatprep.subr.bf16.mxu0 0
    %659 = vmatpush1.bf16.msra.mxu0 0
    %660 = vmatprep.subr.bf16.mxu0 0
    %661 = vmatpush1.bf16.msra.mxu0 0
    %662 = vmatprep.subr.bf16.mxu0 0
    %663 = vmatpush1.bf16.msra.mxu0 0
    %664 = vmatprep.subr.bf16.mxu0 0
    %665 = vmatpush1.bf16.msra.mxu0 0
    %666 = vmatprep.subr.bf16.mxu0 0
    %667 = vmatpush1.bf16.msra.mxu0 0
    %668 = vmatprep.subr.bf16.mxu0 0
    %669 = vmatpush1.bf16.msra.mxu0 0
    %670 = vmatprep.subr.bf16.mxu0 0
    %671 = vmatpush1.bf16.msra.mxu0 0
    %672 = vmatprep.subr.bf16.mxu0 0
    %673 = vmatpush1.bf16.msra.mxu0 0
    %674 = vmatprep.subr.bf16.mxu0 0
    %675 = vmatpush1.bf16.msra.mxu0 0
    %676 = vmatprep.subr.bf16.mxu0 0
    %677 = vmatpush1.bf16.msra.mxu0 0
    %678 = vmatprep.subr.bf16.mxu0 0
    %679 = vmatpush1.bf16.msra.mxu0 0
    %680 = vmatprep.mubr.bf16.mxu0 0
    %681 = vmatmul.mubr.bf16.gmra.mrb[0].mxu0 %v554
    %v682 = vpop.f32.mrb[0].mxu0
    %v683 = vadd.f32 %v480, %v682
    %v684 = vpop.f32.mrb[0].mxu0
    %v685 = vadd.f32 %v482, %v684
    %v686 = vpop.f32.mrb[0].mxu0
    %v687 = vadd.f32 %v484, %v686
    %v688 = vpop.f32.mrb[0].mxu0
    %v689 = vadd.f32 %v486, %v688
    %690 = vmatprep.mubr.bf16.mxu0 0
    %691 = vmatmul.mubr.bf16.gmra.mrb[0].mxu0 %v556
    %v692 = vpop.f32.mrb[0].mxu0
    %v693 = vadd.f32 %v490, %v692
    %v694 = vpop.f32.mrb[0].mxu0
    %v695 = vadd.f32 %v492, %v694
    %v696 = vpop.f32.mrb[0].mxu0
    %v697 = vadd.f32 %v494, %v696
    %v698 = vpop.f32.mrb[0].mxu0
    %v699 = vadd.f32 %v496, %v698
    %700 = vmatprep.mubr.bf16.mxu0 0
    %701 = vmatmul.mubr.bf16.gmra.mrb[0].mxu0 %v558
    %v702 = vpop.f32.mrb[0].mxu0
    %v703 = vadd.f32 %v500, %v702
    %v704 = vpop.f32.mrb[0].mxu0
    %v705 = vadd.f32 %v502, %v704
    %v706 = vpop.f32.mrb[0].mxu0
    %v707 = vadd.f32 %v504, %v706
    %v708 = vpop.f32.mrb[0].mxu0
    %v709 = vadd.f32 %v506, %v708
    %710 = vmatprep.mubr.bf16.mxu0 0
    %711 = vmatmul.mubr.bf16.gmra.mrb[0].mxu0 %v561
    %v712 = vpop.f32.mrb[0].mxu0
    %v713 = vadd.f32 %v510, %v712
    %v714 = vpop.f32.mrb[0].mxu0
    %v715 = vadd.f32 %v512, %v714
    %v716 = vpop.f32.mrb[0].mxu0
    %v717 = vadd.f32 %v514, %v716
    %v718 = vpop.f32.mrb[0].mxu0
    %v719 = vadd.f32 %v516, %v718
    %720 = vdwg.mxu0
    %v721 = vld [vmem:[#allocation2] sm:$0xfe]
    %s722 = scalar_lea.vmem %s1, 256
    %v723 = vld [vmem:[%s722] sm:$0xff]
    %v724 = vld [vmem:[%s722 + $0x8] sm:$0xff]
    %v725 = vld [vmem:[%s722 + $0x10] sm:$0xff]
    %v726 = vld [vmem:[%s722 + $0x18] sm:$0xff]
    %v727 = vld [vmem:[%s722 + $0x20] sm:$0xff]
    %v728 = vld [vmem:[%s722 + $0x28] sm:$0xff]
    %v729 = vld [vmem:[%s722 + $0x30] sm:$0x33]
    %v730 = vld [vmem:[%s722 + $0x38] sm:$0x33]
    %vm735 = vcmask 1046528
    %v736 = vrot.slane %v721, 1
    %v737 = vrot.slane %v258, 1
    %v738 = vsel %vm735, %v736, %v737
    %v739 = vrot.slane %v259, 1
    %v740 = vsel %vm735, %v737, %v739
    %v741 = vrot.slane %v269, 1
    %v742 = vsel %vm735, %v739, %v741
    %v751 = vunpack.c.l.b16 %v723
    %v752 = vunpack.c.h.b16 %v723
    %v753 = vunpack.c.l.b16 %v724
    %v754 = vunpack.c.h.b16 %v724
    %v755 = vunpack.c.l.b16 %v725
    %v756 = vunpack.c.h.b16 %v725
    %v757 = vunpack.c.l.b16 %v726
    %v758 = vunpack.c.h.b16 %v726
    %v759 = vunpack.c.l.b16 %v727
    %v760 = vunpack.c.h.b16 %v727
    %v761 = vunpack.c.l.b16 %v728
    %v762 = vunpack.c.h.b16 %v728
    %v763 = vunpack.c.l.b16 %v729
    %v764 = vunpack.c.h.b16 %v729
    %v765 = vunpack.c.l.b16 %v730
    %v766 = vunpack.c.h.b16 %v730
    %v767 = vpack.c.b16 %v755, %v751
    %v768 = vpack.c.b16 %v756, %v752
    %v769 = vpack.c.b16 %v757, %v753
    %v770 = vpack.c.b16 %v758, %v754
    %v771 = vpack.c.b16 %v763, %v759
    %v772 = vpack.c.b16 %v764, %v760
    %v773 = vpack.c.b16 %v765, %v761
    %v774 = vpack.c.b16 %v766, %v762
    %v780 = vsel %vm235, %v738, 0
    %v783 = vsel %vm235, %v740, 0
    %v786 = vsel %vm235, %v742, 0
    %v789 = vsel %vm235, %v741, 0
    %v792 = vsel %vm359, %v771, 0
    %v795 = vsel %vm359, %v772, 0
    %v798 = vsel %vm359, %v773, 0
    %v801 = vsel %vm359, %v774, 0
    %803 = vmatprep.subr.bf16.mxu0 %v768
    %804 = vmatpush1.bf16.msra.mxu0 %v767
    %805 = vmatprep.subr.bf16.mxu0 %v795
    %806 = vmatpush1.bf16.msra.mxu0 %v792
    %807 = vmatprep.subr.bf16.mxu0 0
    %808 = vmatpush1.bf16.msra.mxu0 0
    %809 = vmatprep.subr.bf16.mxu0 0
    %810 = vmatpush1.bf16.msra.mxu0 0
    %811 = vmatprep.subr.bf16.mxu0 0
    %812 = vmatpush1.bf16.msra.mxu0 0
    %813 = vmatprep.subr.bf16.mxu0 0
    %814 = vmatpush1.bf16.msra.mxu0 0
    %815 = vmatprep.subr.bf16.mxu0 0
    %816 = vmatpush1.bf16.msra.mxu0 0
    %817 = vmatprep.subr.bf16.mxu0 0
    %818 = vmatpush1.bf16.msra.mxu0 0
    %819 = vmatprep.subr.bf16.mxu0 0
    %820 = vmatpush1.bf16.msra.mxu0 0
    %821 = vmatprep.subr.bf16.mxu0 0
    %822 = vmatpush1.bf16.msra.mxu0 0
    %823 = vmatprep.subr.bf16.mxu0 0
    %824 = vmatpush1.bf16.msra.mxu0 0
    %825 = vmatprep.subr.bf16.mxu0 0
    %826 = vmatpush1.bf16.msra.mxu0 0
    %827 = vmatprep.subr.bf16.mxu0 0
    %828 = vmatpush1.bf16.msra.mxu0 0
    %829 = vmatprep.subr.bf16.mxu0 0
    %830 = vmatpush1.bf16.msra.mxu0 0
    %831 = vmatprep.subr.bf16.mxu0 0
    %832 = vmatpush1.bf16.msra.mxu0 0
    %833 = vmatprep.subr.bf16.mxu0 0
    %834 = vmatpush1.bf16.msra.mxu0 0
    %835 = vmatprep.mubr.bf16.mxu0 0
    %836 = vmatmul.mubr.bf16.gmra.mrb[0].mxu0 %v780
    %v837 = vpop.f32.mrb[0].mxu0
    %v838 = vadd.f32 0.0, %v837
    %v839 = vpop.f32.mrb[0].mxu0
    %v840 = vadd.f32 0.0, %v839
    %v841 = vpop.f32.mrb[0].mxu0
    %v842 = vadd.f32 0.0, %v841
    %v843 = vpop.f32.mrb[0].mxu0
    %v844 = vadd.f32 0.0, %v843
    %845 = vmatprep.mubr.bf16.mxu0 0
    %846 = vmatmul.mubr.bf16.gmra.mrb[0].mxu0 %v783
    %v847 = vpop.f32.mrb[0].mxu0
    %v848 = vadd.f32 0.0, %v847
    %v849 = vpop.f32.mrb[0].mxu0
    %v850 = vadd.f32 0.0, %v849
    %v851 = vpop.f32.mrb[0].mxu0
    %v852 = vadd.f32 0.0, %v851
    %v853 = vpop.f32.mrb[0].mxu0
    %v854 = vadd.f32 0.0, %v853
    %855 = vmatprep.mubr.bf16.mxu0 0
    %856 = vmatmul.mubr.bf16.gmra.mrb[0].mxu0 %v786
    %v857 = vpop.f32.mrb[0].mxu0
    %v858 = vadd.f32 0.0, %v857
    %v859 = vpop.f32.mrb[0].mxu0
    %v860 = vadd.f32 0.0, %v859
    %v861 = vpop.f32.mrb[0].mxu0
    %v862 = vadd.f32 0.0, %v861
    %v863 = vpop.f32.mrb[0].mxu0
    %v864 = vadd.f32 0.0, %v863
    %865 = vmatprep.mubr.bf16.mxu0 0
    %866 = vmatmul.mubr.bf16.gmra.mrb[0].mxu0 %v789
    %v867 = vpop.f32.mrb[0].mxu0
    %v868 = vadd.f32 0.0, %v867
    %v869 = vpop.f32.mrb[0].mxu0
    %v870 = vadd.f32 0.0, %v869
    %v871 = vpop.f32.mrb[0].mxu0
    %v872 = vadd.f32 0.0, %v871
    %v873 = vpop.f32.mrb[0].mxu0
    %v874 = vadd.f32 0.0, %v873
    %875 = vdwg.mxu0
    %876 = vmatprep.subr.bf16.mxu0 %v770
    %877 = vmatpush1.bf16.msra.mxu0 %v769
    %878 = vmatprep.subr.bf16.mxu0 %v801
    %879 = vmatpush1.bf16.msra.mxu0 %v798
    %880 = vmatprep.subr.bf16.mxu0 0
    %881 = vmatpush1.bf16.msra.mxu0 0
    %882 = vmatprep.subr.bf16.mxu0 0
    %883 = vmatpush1.bf16.msra.mxu0 0
    %884 = vmatprep.subr.bf16.mxu0 0
    %885 = vmatpush1.bf16.msra.mxu0 0
    %886 = vmatprep.subr.bf16.mxu0 0
    %887 = vmatpush1.bf16.msra.mxu0 0
    %888 = vmatprep.subr.bf16.mxu0 0
    %889 = vmatpush1.bf16.msra.mxu0 0
    %890 = vmatprep.subr.bf16.mxu0 0
    %891 = vmatpush1.bf16.msra.mxu0 0
    %892 = vmatprep.subr.bf16.mxu0 0
    %893 = vmatpush1.bf16.msra.mxu0 0
    %894 = vmatprep.subr.bf16.mxu0 0
    %895 = vmatpush1.bf16.msra.mxu0 0
    %896 = vmatprep.subr.bf16.mxu0 0
    %897 = vmatpush1.bf16.msra.mxu0 0
    %898 = vmatprep.subr.bf16.mxu0 0
    %899 = vmatpush1.bf16.msra.mxu0 0
    %900 = vmatprep.subr.bf16.mxu0 0
    %901 = vmatpush1.bf16.msra.mxu0 0
    %902 = vmatprep.subr.bf16.mxu0 0
    %903 = vmatpush1.bf16.msra.mxu0 0
    %904 = vmatprep.subr.bf16.mxu0 0
    %905 = vmatpush1.bf16.msra.mxu0 0
    %906 = vmatprep.subr.bf16.mxu0 0
    %907 = vmatpush1.bf16.msra.mxu0 0
    %908 = vmatprep.mubr.bf16.mxu0 0
    %909 = vmatmul.mubr.bf16.gmra.mrb[0].mxu0 %v780
    %v910 = vpop.f32.mrb[0].mxu0
    %v911 = vadd.f32 0.0, %v910
    %v912 = vpop.f32.mrb[0].mxu0
    %v913 = vadd.f32 0.0, %v912
    %v914 = vpop.f32.mrb[0].mxu0
    %v915 = vadd.f32 0.0, %v914
    %v916 = vpop.f32.mrb[0].mxu0
    %v917 = vadd.f32 0.0, %v916
    %918 = vmatprep.mubr.bf16.mxu0 0
    %919 = vmatmul.mubr.bf16.gmra.mrb[0].mxu0 %v783
    %v920 = vpop.f32.mrb[0].mxu0
    %v921 = vadd.f32 0.0, %v920
    %v922 = vpop.f32.mrb[0].mxu0
    %v923 = vadd.f32 0.0, %v922
    %v924 = vpop.f32.mrb[0].mxu0
    %v925 = vadd.f32 0.0, %v924
    %v926 = vpop.f32.mrb[0].mxu0
    %v927 = vadd.f32 0.0, %v926
    %928 = vmatprep.mubr.bf16.mxu0 0
    %929 = vmatmul.mubr.bf16.gmra.mrb[0].mxu0 %v786
    %v930 = vpop.f32.mrb[0].mxu0
    %v931 = vadd.f32 0.0, %v930
    %v932 = vpop.f32.mrb[0].mxu0
    %v933 = vadd.f32 0.0, %v932
    %v934 = vpop.f32.mrb[0].mxu0
    %v935 = vadd.f32 0.0, %v934
    %v936 = vpop.f32.mrb[0].mxu0
    %v937 = vadd.f32 0.0, %v936
    %938 = vmatprep.mubr.bf16.mxu0 0
    %939 = vmatmul.mubr.bf16.gmra.mrb[0].mxu0 %v789
    %v940 = vpop.f32.mrb[0].mxu0
    %v941 = vadd.f32 0.0, %v940
    %v942 = vpop.f32.mrb[0].mxu0
    %v943 = vadd.f32 0.0, %v942
    %v944 = vpop.f32.mrb[0].mxu0
    %v945 = vadd.f32 0.0, %v944
    %v946 = vpop.f32.mrb[0].mxu0
    %v947 = vadd.f32 0.0, %v946
    %948 = vdwg.mxu0
    %v949 = vadd.f32 %v610, %v838
    %v950 = vadd.f32 %v612, %v840
    %v951 = vadd.f32 %v683, %v911
    %v952 = vadd.f32 %v685, %v913
    %v953 = vadd.f32 %v614, %v842
    %v954 = vadd.f32 %v616, %v844
    %v955 = vadd.f32 %v687, %v915
    %v956 = vadd.f32 %v689, %v917
    %v957 = vadd.f32 %v620, %v848
    %v958 = vadd.f32 %v622, %v850
    %v959 = vadd.f32 %v693, %v921
    %v960 = vadd.f32 %v695, %v923
    %v961 = vadd.f32 %v624, %v852
    %v962 = vadd.f32 %v626, %v854
    %v963 = vadd.f32 %v697, %v925
    %v964 = vadd.f32 %v699, %v927
    %v965 = vadd.f32 %v630, %v858
    %v966 = vadd.f32 %v632, %v860
    %v967 = vadd.f32 %v703, %v931
    %v968 = vadd.f32 %v705, %v933
    %v969 = vadd.f32 %v634, %v862
    %v970 = vadd.f32 %v636, %v864
    %v971 = vadd.f32 %v707, %v935
    %v972 = vadd.f32 %v709, %v937
    %v973 = vadd.f32 %v640, %v868
    %v974 = vadd.f32 %v642, %v870
    %v975 = vadd.f32 %v713, %v941
    %v976 = vadd.f32 %v715, %v943
    %v977 = vadd.f32 %v644, %v872
    %v978 = vadd.f32 %v646, %v874
    %v979 = vadd.f32 %v717, %v945
    %v980 = vadd.f32 %v719, %v947
    %s981 = scalar_lea.vmem %s1, 64
    %v982 = vld [vmem:[%s981] sm:$0xff]
    %v983 = vld [vmem:[%s981 + $0x8] sm:$0xff]
    %v984 = vld [vmem:[%s981 + $0x10] sm:$0xff]
    %v985 = vld [vmem:[%s981 + $0x18] sm:$0xff]
    %v986 = vld [vmem:[%s981 + $0x20] sm:$0xff]
    %v987 = vld [vmem:[%s981 + $0x28] sm:$0xff]
    %v988 = vld [vmem:[%s981 + $0x30] sm:$0x33]
    %v989 = vld [vmem:[%s981 + $0x38] sm:$0x33]
    %s990 = scalar_lea.vmem %s1, 192
    %v991 = vld [vmem:[%s990] sm:$0xff]
    %v992 = vld [vmem:[%s990 + $0x8] sm:$0xff]
    %v993 = vld [vmem:[%s990 + $0x10] sm:$0xff]
    %v994 = vld [vmem:[%s990 + $0x18] sm:$0xff]
    %v995 = vld [vmem:[%s990 + $0x20] sm:$0xff]
    %v996 = vld [vmem:[%s990 + $0x28] sm:$0xff]
    %v997 = vld [vmem:[%s990 + $0x30] sm:$0x33]
    %v998 = vld [vmem:[%s990 + $0x38] sm:$0x33]
    %v1007 = vunpack.c.l.b16 %v991
    %v1008 = vunpack.c.h.b16 %v991
    %v1009 = vunpack.c.l.b16 %v992
    %v1010 = vunpack.c.h.b16 %v992
    %v1011 = vunpack.c.l.b16 %v993
    %v1012 = vunpack.c.h.b16 %v993
    %v1013 = vunpack.c.l.b16 %v994
    %v1014 = vunpack.c.h.b16 %v994
    %v1015 = vunpack.c.l.b16 %v995
    %v1016 = vunpack.c.h.b16 %v995
    %v1017 = vunpack.c.l.b16 %v996
    %v1018 = vunpack.c.h.b16 %v996
    %v1019 = vunpack.c.l.b16 %v997
    %v1020 = vunpack.c.h.b16 %v997
    %v1021 = vunpack.c.l.b16 %v998
    %v1022 = vunpack.c.h.b16 %v998
    %v1023 = vpack.c.b16 %v1011, %v1007
    %v1024 = vpack.c.b16 %v1012, %v1008
    %v1025 = vpack.c.b16 %v1013, %v1009
    %v1026 = vpack.c.b16 %v1014, %v1010
    %v1027 = vpack.c.b16 %v1019, %v1015
    %v1028 = vpack.c.b16 %v1020, %v1016
    %v1029 = vpack.c.b16 %v1021, %v1017
    %v1030 = vpack.c.b16 %v1022, %v1018
    %v1036 = vsel %vm359, %v1027, 0
    %v1039 = vsel %vm359, %v1028, 0
    %v1042 = vsel %vm359, %v1029, 0
    %v1045 = vsel %vm359, %v1030, 0
    %1047 = vmatprep.subr.bf16.mxu0 %v1024
    %1048 = vmatpush1.bf16.msra.mxu0 %v1023
    %1049 = vmatprep.subr.bf16.mxu0 %v1039
    %1050 = vmatpush1.bf16.msra.mxu0 %v1036
    %1051 = vmatprep.subr.bf16.mxu0 0
    %1052 = vmatpush1.bf16.msra.mxu0 0
    %1053 = vmatprep.subr.bf16.mxu0 0
    %1054 = vmatpush1.bf16.msra.mxu0 0
    %1055 = vmatprep.subr.bf16.mxu0 0
    %1056 = vmatpush1.bf16.msra.mxu0 0
    %1057 = vmatprep.subr.bf16.mxu0 0
    %1058 = vmatpush1.bf16.msra.mxu0 0
    %1059 = vmatprep.subr.bf16.mxu0 0
    %1060 = vmatpush1.bf16.msra.mxu0 0
    %1061 = vmatprep.subr.bf16.mxu0 0
    %1062 = vmatpush1.bf16.msra.mxu0 0
    %1063 = vmatprep.subr.bf16.mxu0 0
    %1064 = vmatpush1.bf16.msra.mxu0 0
    %1065 = vmatprep.subr.bf16.mxu0 0
    %1066 = vmatpush1.bf16.msra.mxu0 0
    %1067 = vmatprep.subr.bf16.mxu0 0
    %1068 = vmatpush1.bf16.msra.mxu0 0
    %1069 = vmatprep.subr.bf16.mxu0 0
    %1070 = vmatpush1.bf16.msra.mxu0 0
    %1071 = vmatprep.subr.bf16.mxu0 0
    %1072 = vmatpush1.bf16.msra.mxu0 0
    %1073 = vmatprep.subr.bf16.mxu0 0
    %1074 = vmatpush1.bf16.msra.mxu0 0
    %1075 = vmatprep.subr.bf16.mxu0 0
    %1076 = vmatpush1.bf16.msra.mxu0 0
    %1077 = vmatprep.subr.bf16.mxu0 0
    %1078 = vmatpush1.bf16.msra.mxu0 0
    %1079 = vmatprep.mubr.bf16.mxu0 0
    %1080 = vmatmul.mubr.bf16.gmra.mrb[0].mxu0 %v348
    %v1081 = vpop.f32.mrb[0].mxu0
    %v1082 = vadd.f32 0.0, %v1081
    %v1083 = vpop.f32.mrb[0].mxu0
    %v1084 = vadd.f32 0.0, %v1083
    %v1085 = vpop.f32.mrb[0].mxu0
    %v1086 = vadd.f32 0.0, %v1085
    %v1087 = vpop.f32.mrb[0].mxu0
    %v1088 = vadd.f32 0.0, %v1087
    %1089 = vmatprep.mubr.bf16.mxu0 0
    %1090 = vmatmul.mubr.bf16.gmra.mrb[0].mxu0 %v351
    %v1091 = vpop.f32.mrb[0].mxu0
    %v1092 = vadd.f32 0.0, %v1091
    %v1093 = vpop.f32.mrb[0].mxu0
    %v1094 = vadd.f32 0.0, %v1093
    %v1095 = vpop.f32.mrb[0].mxu0
    %v1096 = vadd.f32 0.0, %v1095
    %v1097 = vpop.f32.mrb[0].mxu0
    %v1098 = vadd.f32 0.0, %v1097
    %1099 = vmatprep.mubr.bf16.mxu0 0
    %1100 = vmatmul.mubr.bf16.gmra.mrb[0].mxu0 %v354
    %v1101 = vpop.f32.mrb[0].mxu0
    %v1102 = vadd.f32 0.0, %v1101
    %v1103 = vpop.f32.mrb[0].mxu0
    %v1104 = vadd.f32 0.0, %v1103
    %v1105 = vpop.f32.mrb[0].mxu0
    %v1106 = vadd.f32 0.0, %v1105
    %v1107 = vpop.f32.mrb[0].mxu0
    %v1108 = vadd.f32 0.0, %v1107
    %1109 = vmatprep.mubr.bf16.mxu0 0
    %1110 = vmatmul.mubr.bf16.gmra.mrb[0].mxu0 %v357
    %v1111 = vpop.f32.mrb[0].mxu0
    %v1112 = vadd.f32 0.0, %v1111
    %v1113 = vpop.f32.mrb[0].mxu0
    %v1114 = vadd.f32 0.0, %v1113
    %v1115 = vpop.f32.mrb[0].mxu0
    %v1116 = vadd.f32 0.0, %v1115
    %v1117 = vpop.f32.mrb[0].mxu0
    %v1118 = vadd.f32 0.0, %v1117
    %1119 = vdwg.mxu0
    %1120 = vmatprep.subr.bf16.mxu0 %v1026
    %1121 = vmatpush1.bf16.msra.mxu0 %v1025
    %1122 = vmatprep.subr.bf16.mxu0 %v1045
    %1123 = vmatpush1.bf16.msra.mxu0 %v1042
    %1124 = vmatprep.subr.bf16.mxu0 0
    %1125 = vmatpush1.bf16.msra.mxu0 0
    %1126 = vmatprep.subr.bf16.mxu0 0
    %1127 = vmatpush1.bf16.msra.mxu0 0
    %1128 = vmatprep.subr.bf16.mxu0 0
    %1129 = vmatpush1.bf16.msra.mxu0 0
    %1130 = vmatprep.subr.bf16.mxu0 0
    %1131 = vmatpush1.bf16.msra.mxu0 0
    %1132 = vmatprep.subr.bf16.mxu0 0
    %1133 = vmatpush1.bf16.msra.mxu0 0
    %1134 = vmatprep.subr.bf16.mxu0 0
    %1135 = vmatpush1.bf16.msra.mxu0 0
    %1136 = vmatprep.subr.bf16.mxu0 0
    %1137 = vmatpush1.bf16.msra.mxu0 0
    %1138 = vmatprep.subr.bf16.mxu0 0
    %1139 = vmatpush1.bf16.msra.mxu0 0
    %1140 = vmatprep.subr.bf16.mxu0 0
    %1141 = vmatpush1.bf16.msra.mxu0 0
    %1142 = vmatprep.subr.bf16.mxu0 0
    %1143 = vmatpush1.bf16.msra.mxu0 0
    %1144 = vmatprep.subr.bf16.mxu0 0
    %1145 = vmatpush1.bf16.msra.mxu0 0
    %1146 = vmatprep.subr.bf16.mxu0 0
    %1147 = vmatpush1.bf16.msra.mxu0 0
    %1148 = vmatprep.subr.bf16.mxu0 0
    %1149 = vmatpush1.bf16.msra.mxu0 0
    %1150 = vmatprep.subr.bf16.mxu0 0
    %1151 = vmatpush1.bf16.msra.mxu0 0
    %1152 = vmatprep.mubr.bf16.mxu0 0
    %1153 = vmatmul.mubr.bf16.gmra.mrb[0].mxu0 %v348
    %v1154 = vpop.f32.mrb[0].mxu0
    %v1155 = vadd.f32 0.0, %v1154
    %v1156 = vpop.f32.mrb[0].mxu0
    %v1157 = vadd.f32 0.0, %v1156
    %v1158 = vpop.f32.mrb[0].mxu0
    %v1159 = vadd.f32 0.0, %v1158
    %v1160 = vpop.f32.mrb[0].mxu0
    %v1161 = vadd.f32 0.0, %v1160
    %1162 = vmatprep.mubr.bf16.mxu0 0
    %1163 = vmatmul.mubr.bf16.gmra.mrb[0].mxu0 %v351
    %v1164 = vpop.f32.mrb[0].mxu0
    %v1165 = vadd.f32 0.0, %v1164
    %v1166 = vpop.f32.mrb[0].mxu0
    %v1167 = vadd.f32 0.0, %v1166
    %v1168 = vpop.f32.mrb[0].mxu0
    %v1169 = vadd.f32 0.0, %v1168
    %v1170 = vpop.f32.mrb[0].mxu0
    %v1171 = vadd.f32 0.0, %v1170
    %1172 = vmatprep.mubr.bf16.mxu0 0
    %1173 = vmatmul.mubr.bf16.gmra.mrb[0].mxu0 %v354
    %v1174 = vpop.f32.mrb[0].mxu0
    %v1175 = vadd.f32 0.0, %v1174
    %v1176 = vpop.f32.mrb[0].mxu0
    %v1177 = vadd.f32 0.0, %v1176
    %v1178 = vpop.f32.mrb[0].mxu0
    %v1179 = vadd.f32 0.0, %v1178
    %v1180 = vpop.f32.mrb[0].mxu0
    %v1181 = vadd.f32 0.0, %v1180
    %1182 = vmatprep.mubr.bf16.mxu0 0
    %1183 = vmatmul.mubr.bf16.gmra.mrb[0].mxu0 %v357
    %v1184 = vpop.f32.mrb[0].mxu0
    %v1185 = vadd.f32 0.0, %v1184
    %v1186 = vpop.f32.mrb[0].mxu0
    %v1187 = vadd.f32 0.0, %v1186
    %v1188 = vpop.f32.mrb[0].mxu0
    %v1189 = vadd.f32 0.0, %v1188
    %v1190 = vpop.f32.mrb[0].mxu0
    %v1191 = vadd.f32 0.0, %v1190
    %1192 = vdwg.mxu0
    %v1201 = vunpack.c.l.b16 %v982
    %v1202 = vunpack.c.h.b16 %v982
    %v1203 = vunpack.c.l.b16 %v983
    %v1204 = vunpack.c.h.b16 %v983
    %v1205 = vunpack.c.l.b16 %v984
    %v1206 = vunpack.c.h.b16 %v984
    %v1207 = vunpack.c.l.b16 %v985
    %v1208 = vunpack.c.h.b16 %v985
    %v1209 = vunpack.c.l.b16 %v986
    %v1210 = vunpack.c.h.b16 %v986
    %v1211 = vunpack.c.l.b16 %v987
    %v1212 = vunpack.c.h.b16 %v987
    %v1213 = vunpack.c.l.b16 %v988
    %v1214 = vunpack.c.h.b16 %v988
    %v1215 = vunpack.c.l.b16 %v989
    %v1216 = vunpack.c.h.b16 %v989
    %v1217 = vpack.c.b16 %v1205, %v1201
    %v1218 = vpack.c.b16 %v1206, %v1202
    %v1219 = vpack.c.b16 %v1207, %v1203
    %v1220 = vpack.c.b16 %v1208, %v1204
    %v1221 = vpack.c.b16 %v1213, %v1209
    %v1222 = vpack.c.b16 %v1214, %v1210
    %v1223 = vpack.c.b16 %v1215, %v1211
    %v1224 = vpack.c.b16 %v1216, %v1212
    %v1230 = vsel %vm359, %v1221, 0
    %v1233 = vsel %vm359, %v1222, 0
    %v1236 = vsel %vm359, %v1223, 0
    %v1239 = vsel %vm359, %v1224, 0
    %1241 = vmatprep.subr.bf16.mxu0 %v1218
    %1242 = vmatpush1.bf16.msra.mxu0 %v1217
    %1243 = vmatprep.subr.bf16.mxu0 %v1233
    %1244 = vmatpush1.bf16.msra.mxu0 %v1230
    %1245 = vmatprep.subr.bf16.mxu0 0
    %1246 = vmatpush1.bf16.msra.mxu0 0
    %1247 = vmatprep.subr.bf16.mxu0 0
    %1248 = vmatpush1.bf16.msra.mxu0 0
    %1249 = vmatprep.subr.bf16.mxu0 0
    %1250 = vmatpush1.bf16.msra.mxu0 0
    %1251 = vmatprep.subr.bf16.mxu0 0
    %1252 = vmatpush1.bf16.msra.mxu0 0
    %1253 = vmatprep.subr.bf16.mxu0 0
    %1254 = vmatpush1.bf16.msra.mxu0 0
    %1255 = vmatprep.subr.bf16.mxu0 0
    %1256 = vmatpush1.bf16.msra.mxu0 0
    %1257 = vmatprep.subr.bf16.mxu0 0
    %1258 = vmatpush1.bf16.msra.mxu0 0
    %1259 = vmatprep.subr.bf16.mxu0 0
    %1260 = vmatpush1.bf16.msra.mxu0 0
    %1261 = vmatprep.subr.bf16.mxu0 0
    %1262 = vmatpush1.bf16.msra.mxu0 0
    %1263 = vmatprep.subr.bf16.mxu0 0
    %1264 = vmatpush1.bf16.msra.mxu0 0
    %1265 = vmatprep.subr.bf16.mxu0 0
    %1266 = vmatpush1.bf16.msra.mxu0 0
    %1267 = vmatprep.subr.bf16.mxu0 0
    %1268 = vmatpush1.bf16.msra.mxu0 0
    %1269 = vmatprep.subr.bf16.mxu0 0
    %1270 = vmatpush1.bf16.msra.mxu0 0
    %1271 = vmatprep.subr.bf16.mxu0 0
    %1272 = vmatpush1.bf16.msra.mxu0 0
    %1273 = vmatprep.mubr.bf16.mxu0 0
    %1274 = vmatmul.mubr.bf16.gmra.mrb[0].mxu0 %v554
    %v1275 = vpop.f32.mrb[0].mxu0
    %v1276 = vadd.f32 %v1082, %v1275
    %v1277 = vpop.f32.mrb[0].mxu0
    %v1278 = vadd.f32 %v1084, %v1277
    %v1279 = vpop.f32.mrb[0].mxu0
    %v1280 = vadd.f32 %v1086, %v1279
    %v1281 = vpop.f32.mrb[0].mxu0
    %v1282 = vadd.f32 %v1088, %v1281
    %1283 = vmatprep.mubr.bf16.mxu0 0
    %1284 = vmatmul.mubr.bf16.gmra.mrb[0].mxu0 %v556
    %v1285 = vpop.f32.mrb[0].mxu0
    %v1286 = vadd.f32 %v1092, %v1285
    %v1287 = vpop.f32.mrb[0].mxu0
    %v1288 = vadd.f32 %v1094, %v1287
    %v1289 = vpop.f32.mrb[0].mxu0
    %v1290 = vadd.f32 %v1096, %v1289
    %v1291 = vpop.f32.mrb[0].mxu0
    %v1292 = vadd.f32 %v1098, %v1291
    %1293 = vmatprep.mubr.bf16.mxu0 0
    %1294 = vmatmul.mubr.bf16.gmra.mrb[0].mxu0 %v558
    %v1295 = vpop.f32.mrb[0].mxu0
    %v1296 = vadd.f32 %v1102, %v1295
    %v1297 = vpop.f32.mrb[0].mxu0
    %v1298 = vadd.f32 %v1104, %v1297
    %v1299 = vpop.f32.mrb[0].mxu0
    %v1300 = vadd.f32 %v1106, %v1299
    %v1301 = vpop.f32.mrb[0].mxu0
    %v1302 = vadd.f32 %v1108, %v1301
    %1303 = vmatprep.mubr.bf16.mxu0 0
    %1304 = vmatmul.mubr.bf16.gmra.mrb[0].mxu0 %v561
    %v1305 = vpop.f32.mrb[0].mxu0
    %v1306 = vadd.f32 %v1112, %v1305
    %v1307 = vpop.f32.mrb[0].mxu0
    %v1308 = vadd.f32 %v1114, %v1307
    %v1309 = vpop.f32.mrb[0].mxu0
    %v1310 = vadd.f32 %v1116, %v1309
    %v1311 = vpop.f32.mrb[0].mxu0
    %v1312 = vadd.f32 %v1118, %v1311
    %1313 = vdwg.mxu0
    %1314 = vmatprep.subr.bf16.mxu0 %v1220
    %1315 = vmatpush1.bf16.msra.mxu0 %v1219
    %1316 = vmatprep.subr.bf16.mxu0 %v1239
    %1317 = vmatpush1.bf16.msra.mxu0 %v1236
    %1318 = vmatprep.subr.bf16.mxu0 0
    %1319 = vmatpush1.bf16.msra.mxu0 0
    %1320 = vmatprep.subr.bf16.mxu0 0
    %1321 = vmatpush1.bf16.msra.mxu0 0
    %1322 = vmatprep.subr.bf16.mxu0 0
    %1323 = vmatpush1.bf16.msra.mxu0 0
    %1324 = vmatprep.subr.bf16.mxu0 0
    %1325 = vmatpush1.bf16.msra.mxu0 0
    %1326 = vmatprep.subr.bf16.mxu0 0
    %1327 = vmatpush1.bf16.msra.mxu0 0
    %1328 = vmatprep.subr.bf16.mxu0 0
    %1329 = vmatpush1.bf16.msra.mxu0 0
    %1330 = vmatprep.subr.bf16.mxu0 0
    %1331 = vmatpush1.bf16.msra.mxu0 0
    %1332 = vmatprep.subr.bf16.mxu0 0
    %1333 = vmatpush1.bf16.msra.mxu0 0
    %1334 = vmatprep.subr.bf16.mxu0 0
    %1335 = vmatpush1.bf16.msra.mxu0 0
    %1336 = vmatprep.subr.bf16.mxu0 0
    %1337 = vmatpush1.bf16.msra.mxu0 0
    %1338 = vmatprep.subr.bf16.mxu0 0
    %1339 = vmatpush1.bf16.msra.mxu0 0
    %1340 = vmatprep.subr.bf16.mxu0 0
    %1341 = vmatpush1.bf16.msra.mxu0 0
    %1342 = vmatprep.subr.bf16.mxu0 0
    %1343 = vmatpush1.bf16.msra.mxu0 0
    %1344 = vmatprep.subr.bf16.mxu0 0
    %1345 = vmatpush1.bf16.msra.mxu0 0
    %1346 = vmatprep.mubr.bf16.mxu0 0
    %1347 = vmatmul.mubr.bf16.gmra.mrb[0].mxu0 %v554
    %v1348 = vpop.f32.mrb[0].mxu0
    %v1349 = vadd.f32 %v1155, %v1348
    %v1350 = vpop.f32.mrb[0].mxu0
    %v1351 = vadd.f32 %v1157, %v1350
    %v1352 = vpop.f32.mrb[0].mxu0
    %v1353 = vadd.f32 %v1159, %v1352
    %v1354 = vpop.f32.mrb[0].mxu0
    %v1355 = vadd.f32 %v1161, %v1354
    %1356 = vmatprep.mubr.bf16.mxu0 0
    %1357 = vmatmul.mubr.bf16.gmra.mrb[0].mxu0 %v556
    %v1358 = vpop.f32.mrb[0].mxu0
    %v1359 = vadd.f32 %v1165, %v1358
    %v1360 = vpop.f32.mrb[0].mxu0
    %v1361 = vadd.f32 %v1167, %v1360
    %v1362 = vpop.f32.mrb[0].mxu0
    %v1363 = vadd.f32 %v1169, %v1362
    %v1364 = vpop.f32.mrb[0].mxu0
    %v1365 = vadd.f32 %v1171, %v1364
    %1366 = vmatprep.mubr.bf16.mxu0 0
    %1367 = vmatmul.mubr.bf16.gmra.mrb[0].mxu0 %v558
    %v1368 = vpop.f32.mrb[0].mxu0
    %v1369 = vadd.f32 %v1175, %v1368
    %v1370 = vpop.f32.mrb[0].mxu0
    %v1371 = vadd.f32 %v1177, %v1370
    %v1372 = vpop.f32.mrb[0].mxu0
    %v1373 = vadd.f32 %v1179, %v1372
    %v1374 = vpop.f32.mrb[0].mxu0
    %v1375 = vadd.f32 %v1181, %v1374
    %1376 = vmatprep.mubr.bf16.mxu0 0
    %1377 = vmatmul.mubr.bf16.gmra.mrb[0].mxu0 %v561
    %v1378 = vpop.f32.mrb[0].mxu0
    %v1379 = vadd.f32 %v1185, %v1378
    %v1380 = vpop.f32.mrb[0].mxu0
    %v1381 = vadd.f32 %v1187, %v1380
    %v1382 = vpop.f32.mrb[0].mxu0
    %v1383 = vadd.f32 %v1189, %v1382
    %v1384 = vpop.f32.mrb[0].mxu0
    %v1385 = vadd.f32 %v1191, %v1384
    %1386 = vdwg.mxu0
    %s1387 = scalar_lea.vmem %s1, 320
    %v1388 = vld [vmem:[%s1387] sm:$0xff]
    %v1389 = vld [vmem:[%s1387 + $0x8] sm:$0xff]
    %v1390 = vld [vmem:[%s1387 + $0x10] sm:$0xff]
    %v1391 = vld [vmem:[%s1387 + $0x18] sm:$0xff]
    %v1392 = vld [vmem:[%s1387 + $0x20] sm:$0xff]
    %v1393 = vld [vmem:[%s1387 + $0x28] sm:$0xff]
    %v1394 = vld [vmem:[%s1387 + $0x30] sm:$0x33]
    %v1395 = vld [vmem:[%s1387 + $0x38] sm:$0x33]
    %v1404 = vunpack.c.l.b16 %v1388
    %v1405 = vunpack.c.h.b16 %v1388
    %v1406 = vunpack.c.l.b16 %v1389
    %v1407 = vunpack.c.h.b16 %v1389
    %v1408 = vunpack.c.l.b16 %v1390
    %v1409 = vunpack.c.h.b16 %v1390
    %v1410 = vunpack.c.l.b16 %v1391
    %v1411 = vunpack.c.h.b16 %v1391
    %v1412 = vunpack.c.l.b16 %v1392
    %v1413 = vunpack.c.h.b16 %v1392
    %v1414 = vunpack.c.l.b16 %v1393
    %v1415 = vunpack.c.h.b16 %v1393
    %v1416 = vunpack.c.l.b16 %v1394
    %v1417 = vunpack.c.h.b16 %v1394
    %v1418 = vunpack.c.l.b16 %v1395
    %v1419 = vunpack.c.h.b16 %v1395
    %v1420 = vpack.c.b16 %v1408, %v1404
    %v1421 = vpack.c.b16 %v1409, %v1405
    %v1422 = vpack.c.b16 %v1410, %v1406
    %v1423 = vpack.c.b16 %v1411, %v1407
    %v1424 = vpack.c.b16 %v1416, %v1412
    %v1425 = vpack.c.b16 %v1417, %v1413
    %v1426 = vpack.c.b16 %v1418, %v1414
    %v1427 = vpack.c.b16 %v1419, %v1415
    %v1433 = vsel %vm359, %v1424, 0
    %v1436 = vsel %vm359, %v1425, 0
    %v1439 = vsel %vm359, %v1426, 0
    %v1442 = vsel %vm359, %v1427, 0
    %1444 = vmatprep.subr.bf16.mxu0 %v1421
    %1445 = vmatpush1.bf16.msra.mxu0 %v1420
    %1446 = vmatprep.subr.bf16.mxu0 %v1436
    %1447 = vmatpush1.bf16.msra.mxu0 %v1433
    %1448 = vmatprep.subr.bf16.mxu0 0
    %1449 = vmatpush1.bf16.msra.mxu0 0
    %1450 = vmatprep.subr.bf16.mxu0 0
    %1451 = vmatpush1.bf16.msra.mxu0 0
    %1452 = vmatprep.subr.bf16.mxu0 0
    %1453 = vmatpush1.bf16.msra.mxu0 0
    %1454 = vmatprep.subr.bf16.mxu0 0
    %1455 = vmatpush1.bf16.msra.mxu0 0
    %1456 = vmatprep.subr.bf16.mxu0 0
    %1457 = vmatpush1.bf16.msra.mxu0 0
    %1458 = vmatprep.subr.bf16.mxu0 0
    %1459 = vmatpush1.bf16.msra.mxu0 0
    %1460 = vmatprep.subr.bf16.mxu0 0
    %1461 = vmatpush1.bf16.msra.mxu0 0
    %1462 = vmatprep.subr.bf16.mxu0 0
    %1463 = vmatpush1.bf16.msra.mxu0 0
    %1464 = vmatprep.subr.bf16.mxu0 0
    %1465 = vmatpush1.bf16.msra.mxu0 0
    %1466 = vmatprep.subr.bf16.mxu0 0
    %1467 = vmatpush1.bf16.msra.mxu0 0
    %1468 = vmatprep.subr.bf16.mxu0 0
    %1469 = vmatpush1.bf16.msra.mxu0 0
    %1470 = vmatprep.subr.bf16.mxu0 0
    %1471 = vmatpush1.bf16.msra.mxu0 0
    %1472 = vmatprep.subr.bf16.mxu0 0
    %1473 = vmatpush1.bf16.msra.mxu0 0
    %1474 = vmatprep.subr.bf16.mxu0 0
    %1475 = vmatpush1.bf16.msra.mxu0 0
    %1476 = vmatprep.mubr.bf16.mxu0 0
    %1477 = vmatmul.mubr.bf16.gmra.mrb[0].mxu0 %v780
    %v1478 = vpop.f32.mrb[0].mxu0
    %v1479 = vadd.f32 0.0, %v1478
    %v1480 = vpop.f32.mrb[0].mxu0
    %v1481 = vadd.f32 0.0, %v1480
    %v1482 = vpop.f32.mrb[0].mxu0
    %v1483 = vadd.f32 0.0, %v1482
    %v1484 = vpop.f32.mrb[0].mxu0
    %v1485 = vadd.f32 0.0, %v1484
    %1486 = vmatprep.mubr.bf16.mxu0 0
    %1487 = vmatmul.mubr.bf16.gmra.mrb[0].mxu0 %v783
    %v1488 = vpop.f32.mrb[0].mxu0
    %v1489 = vadd.f32 0.0, %v1488
    %v1490 = vpop.f32.mrb[0].mxu0
    %v1491 = vadd.f32 0.0, %v1490
    %v1492 = vpop.f32.mrb[0].mxu0
    %v1493 = vadd.f32 0.0, %v1492
    %v1494 = vpop.f32.mrb[0].mxu0
    %v1495 = vadd.f32 0.0, %v1494
    %1496 = vmatprep.mubr.bf16.mxu0 0
    %1497 = vmatmul.mubr.bf16.gmra.mrb[0].mxu0 %v786
    %v1498 = vpop.f32.mrb[0].mxu0
    %v1499 = vadd.f32 0.0, %v1498
    %v1500 = vpop.f32.mrb[0].mxu0
    %v1501 = vadd.f32 0.0, %v1500
    %v1502 = vpop.f32.mrb[0].mxu0
    %v1503 = vadd.f32 0.0, %v1502
    %v1504 = vpop.f32.mrb[0].mxu0
    %v1505 = vadd.f32 0.0, %v1504
    %1506 = vmatprep.mubr.bf16.mxu0 0
    %1507 = vmatmul.mubr.bf16.gmra.mrb[0].mxu0 %v789
    %v1508 = vpop.f32.mrb[0].mxu0
    %v1509 = vadd.f32 0.0, %v1508
    %v1510 = vpop.f32.mrb[0].mxu0
    %v1511 = vadd.f32 0.0, %v1510
    %v1512 = vpop.f32.mrb[0].mxu0
    %v1513 = vadd.f32 0.0, %v1512
    %v1514 = vpop.f32.mrb[0].mxu0
    %v1515 = vadd.f32 0.0, %v1514
    %1516 = vdwg.mxu0
    %1517 = vmatprep.subr.bf16.mxu0 %v1423
    %1518 = vmatpush1.bf16.msra.mxu0 %v1422
    %1519 = vmatprep.subr.bf16.mxu0 %v1442
    %1520 = vmatpush1.bf16.msra.mxu0 %v1439
    %1521 = vmatprep.subr.bf16.mxu0 0
    %1522 = vmatpush1.bf16.msra.mxu0 0
    %1523 = vmatprep.subr.bf16.mxu0 0
    %1524 = vmatpush1.bf16.msra.mxu0 0
    %1525 = vmatprep.subr.bf16.mxu0 0
    %1526 = vmatpush1.bf16.msra.mxu0 0
    %1527 = vmatprep.subr.bf16.mxu0 0
    %1528 = vmatpush1.bf16.msra.mxu0 0
    %1529 = vmatprep.subr.bf16.mxu0 0
    %1530 = vmatpush1.bf16.msra.mxu0 0
    %1531 = vmatprep.subr.bf16.mxu0 0
    %1532 = vmatpush1.bf16.msra.mxu0 0
    %1533 = vmatprep.subr.bf16.mxu0 0
    %1534 = vmatpush1.bf16.msra.mxu0 0
    %1535 = vmatprep.subr.bf16.mxu0 0
    %1536 = vmatpush1.bf16.msra.mxu0 0
    %1537 = vmatprep.subr.bf16.mxu0 0
    %1538 = vmatpush1.bf16.msra.mxu0 0
    %1539 = vmatprep.subr.bf16.mxu0 0
    %1540 = vmatpush1.bf16.msra.mxu0 0
    %1541 = vmatprep.subr.bf16.mxu0 0
    %1542 = vmatpush1.bf16.msra.mxu0 0
    %1543 = vmatprep.subr.bf16.mxu0 0
    %1544 = vmatpush1.bf16.msra.mxu0 0
    %1545 = vmatprep.subr.bf16.mxu0 0
    %1546 = vmatpush1.bf16.msra.mxu0 0
    %1547 = vmatprep.subr.bf16.mxu0 0
    %1548 = vmatpush1.bf16.msra.mxu0 0
    %1549 = vmatprep.mubr.bf16.mxu0 0
    %1550 = vmatmul.mubr.bf16.gmra.mrb[0].mxu0 %v780
    %v1551 = vpop.f32.mrb[0].mxu0
    %v1552 = vadd.f32 0.0, %v1551
    %v1553 = vpop.f32.mrb[0].mxu0
    %v1554 = vadd.f32 0.0, %v1553
    %v1555 = vpop.f32.mrb[0].mxu0
    %v1556 = vadd.f32 0.0, %v1555
    %v1557 = vpop.f32.mrb[0].mxu0
    %v1558 = vadd.f32 0.0, %v1557
    %1559 = vmatprep.mubr.bf16.mxu0 0
    %1560 = vmatmul.mubr.bf16.gmra.mrb[0].mxu0 %v783
    %v1561 = vpop.f32.mrb[0].mxu0
    %v1562 = vadd.f32 0.0, %v1561
    %v1563 = vpop.f32.mrb[0].mxu0
    %v1564 = vadd.f32 0.0, %v1563
    %v1565 = vpop.f32.mrb[0].mxu0
    %v1566 = vadd.f32 0.0, %v1565
    %v1567 = vpop.f32.mrb[0].mxu0
    %v1568 = vadd.f32 0.0, %v1567
    %1569 = vmatprep.mubr.bf16.mxu0 0
    %1570 = vmatmul.mubr.bf16.gmra.mrb[0].mxu0 %v786
    %v1571 = vpop.f32.mrb[0].mxu0
    %v1572 = vadd.f32 0.0, %v1571
    %v1573 = vpop.f32.mrb[0].mxu0
    %v1574 = vadd.f32 0.0, %v1573
    %v1575 = vpop.f32.mrb[0].mxu0
    %v1576 = vadd.f32 0.0, %v1575
    %v1577 = vpop.f32.mrb[0].mxu0
    %v1578 = vadd.f32 0.0, %v1577
    %1579 = vmatprep.mubr.bf16.mxu0 0
    %1580 = vmatmul.mubr.bf16.gmra.mrb[0].mxu0 %v789
    %v1581 = vpop.f32.mrb[0].mxu0
    %v1582 = vadd.f32 0.0, %v1581
    %v1583 = vpop.f32.mrb[0].mxu0
    %v1584 = vadd.f32 0.0, %v1583
    %v1585 = vpop.f32.mrb[0].mxu0
    %v1586 = vadd.f32 0.0, %v1585
    %v1587 = vpop.f32.mrb[0].mxu0
    %v1588 = vadd.f32 0.0, %v1587
    %1589 = vdwg.mxu0
    %v1590 = vadd.f32 %v1276, %v1479
    %v1591 = vadd.f32 %v1278, %v1481
    %v1592 = vadd.f32 %v1349, %v1552
    %v1593 = vadd.f32 %v1351, %v1554
    %v1594 = vadd.f32 %v1280, %v1483
    %v1595 = vadd.f32 %v1282, %v1485
    %v1596 = vadd.f32 %v1353, %v1556
    %v1597 = vadd.f32 %v1355, %v1558
    %v1598 = vadd.f32 %v1286, %v1489
    %v1599 = vadd.f32 %v1288, %v1491
    %v1600 = vadd.f32 %v1359, %v1562
    %v1601 = vadd.f32 %v1361, %v1564
    %v1602 = vadd.f32 %v1290, %v1493
    %v1603 = vadd.f32 %v1292, %v1495
    %v1604 = vadd.f32 %v1363, %v1566
    %v1605 = vadd.f32 %v1365, %v1568
    %v1606 = vadd.f32 %v1296, %v1499
    %v1607 = vadd.f32 %v1298, %v1501
    %v1608 = vadd.f32 %v1369, %v1572
    %v1609 = vadd.f32 %v1371, %v1574
    %v1610 = vadd.f32 %v1300, %v1503
    %v1611 = vadd.f32 %v1302, %v1505
    %v1612 = vadd.f32 %v1373, %v1576
    %v1613 = vadd.f32 %v1375, %v1578
    %v1614 = vadd.f32 %v1306, %v1509
    %v1615 = vadd.f32 %v1308, %v1511
    %v1616 = vadd.f32 %v1379, %v1582
    %v1617 = vadd.f32 %v1381, %v1584
    %v1618 = vadd.f32 %v1310, %v1513
    %v1619 = vadd.f32 %v1312, %v1515
    %v1620 = vadd.f32 %v1383, %v1586
    %v1621 = vadd.f32 %v1385, %v1588
    %v1622 = vmax.f32 %v949, %v1590
    %v1623 = vmax.f32 %v950, %v1591
    %v1624 = vmax.f32 %v951, %v1592
    %v1625 = vmax.f32 %v952, %v1593
    %v1626 = vmax.f32 %v953, %v1594
    %v1627 = vmax.f32 %v954, %v1595
    %v1628 = vmax.f32 %v955, %v1596
    %v1629 = vmax.f32 %v956, %v1597
    %v1630 = vmax.f32 %v957, %v1598
    %v1631 = vmax.f32 %v958, %v1599
    %v1632 = vmax.f32 %v959, %v1600
    %v1633 = vmax.f32 %v960, %v1601
    %v1634 = vmax.f32 %v961, %v1602
    %v1635 = vmax.f32 %v962, %v1603
    %v1636 = vmax.f32 %v963, %v1604
    %v1637 = vmax.f32 %v964, %v1605
    %v1638 = vmax.f32 %v965, %v1606
    %v1639 = vmax.f32 %v966, %v1607
    %v1640 = vmax.f32 %v967, %v1608
    %v1641 = vmax.f32 %v968, %v1609
    %v1642 = vmax.f32 %v969, %v1610
    %v1643 = vmax.f32 %v970, %v1611
    %v1644 = vmax.f32 %v971, %v1612
    %v1645 = vmax.f32 %v972, %v1613
    %v1646 = vmax.f32 %v973, %v1614
    %v1647 = vmax.f32 %v974, %v1615
    %v1648 = vmax.f32 %v975, %v1616
    %v1649 = vmax.f32 %v976, %v1617
    %v1650 = vmax.f32 %v977, %v1618
    %v1651 = vmax.f32 %v978, %v1619
    %v1652 = vmax.f32 %v979, %v1620
    %v1653 = vmax.f32 %v980, %v1621
    %v1654 = vld [vmem:[#allocation14] sm:$0xf]
    %v1656 = vlaneseq
    %v1657 = vshrl.u32 %v1656, 7
    %v1658 = vsub.s32 0, %v1657
    %v1659 = vrot.slane %v1654, %v1658
    %v1660 = vlaneseq
    %v1661 = vshrl.u32 %v1660, 7
    %v1662 = vsub.s32 1, %v1661
    %v1663 = vrot.slane %v1654, %v1662
    %v1664 = vlaneseq
    %v1665 = vshrl.u32 %v1664, 7
    %v1666 = vsub.s32 2, %v1665
    %v1667 = vrot.slane %v1654, %v1666
    %v1668 = vlaneseq
    %v1669 = vshrl.u32 %v1668, 7
    %v1670 = vsub.s32 3, %v1669
    %v1671 = vrot.slane %v1654, %v1670
    %v1676 = vadd.f32 %v1622, %v1659
    %v1677 = vadd.f32 %v1623, %v1663
    %v1678 = vadd.f32 %v1624, %v1667
    %v1679 = vadd.f32 %v1625, %v1671
    %v1680 = vadd.f32 %v1626, %v1659
    %v1681 = vadd.f32 %v1627, %v1663
    %v1682 = vadd.f32 %v1628, %v1667
    %v1683 = vadd.f32 %v1629, %v1671
    %v1684 = vadd.f32 %v1630, %v1659
    %v1685 = vadd.f32 %v1631, %v1663
    %v1686 = vadd.f32 %v1632, %v1667
    %v1687 = vadd.f32 %v1633, %v1671
    %v1688 = vadd.f32 %v1634, %v1659
    %v1689 = vadd.f32 %v1635, %v1663
    %v1690 = vadd.f32 %v1636, %v1667
    %v1691 = vadd.f32 %v1637, %v1671
    %v1692 = vadd.f32 %v1638, %v1659
    %v1693 = vadd.f32 %v1639, %v1663
    %v1694 = vadd.f32 %v1640, %v1667
    %v1695 = vadd.f32 %v1641, %v1671
    %v1696 = vadd.f32 %v1642, %v1659
    %v1697 = vadd.f32 %v1643, %v1663
    %v1698 = vadd.f32 %v1644, %v1667
    %v1699 = vadd.f32 %v1645, %v1671
    %v1700 = vadd.f32 %v1646, %v1659
    %v1701 = vadd.f32 %v1647, %v1663
    %v1702 = vadd.f32 %v1648, %v1667
    %v1703 = vadd.f32 %v1649, %v1671
    %v1704 = vadd.f32 %v1650, %v1659
    %v1705 = vadd.f32 %v1651, %v1663
    %v1706 = vadd.f32 %v1652, %v1667
    %v1707 = vadd.f32 %v1653, %v1671
    %v1708 = vpack.c.bf16 %v1680, %v1676
    %v1709 = vpack.c.bf16 %v1681, %v1677
    %v1710 = vpack.c.bf16 %v1682, %v1678
    %v1711 = vpack.c.bf16 %v1683, %v1679
    %v1712 = vpack.c.bf16 %v1688, %v1684
    %v1713 = vpack.c.bf16 %v1689, %v1685
    %v1714 = vpack.c.bf16 %v1690, %v1686
    %v1715 = vpack.c.bf16 %v1691, %v1687
    %v1716 = vpack.c.bf16 %v1696, %v1692
    %v1717 = vpack.c.bf16 %v1697, %v1693
    %v1718 = vpack.c.bf16 %v1698, %v1694
    %v1719 = vpack.c.bf16 %v1699, %v1695
    %v1720 = vpack.c.bf16 %v1704, %v1700
    %v1721 = vpack.c.bf16 %v1705, %v1701
    %v1722 = vpack.c.bf16 %v1706, %v1702
    %v1723 = vpack.c.bf16 %v1707, %v1703
    %v1724 = vld [vmem:[#allocation10] sm:$0xf]
    %v1725 = vld [vmem:[#allocation10 + $0x4] sm:$0xf]
    %v1726 = vld [vmem:[#allocation10 + $0x8] sm:$0xf]
    %v1727 = vld [vmem:[#allocation10 + $0xc] sm:$0xf]
    %v1732 = vunpack.c.l.b16 %v1724
    %v1733 = vunpack.c.l.b16 %v1725
    %v1734 = vunpack.c.l.b16 %v1726
    %v1735 = vunpack.c.l.b16 %v1727
    %v1736 = vpack.c.b16 %v1733, %v1732
    %v1737 = vpack.c.b16 %v1735, %v1734
    %vm1738 = vcmask 506880
    %v1740 = vsel %vm1738, %v1736, 0
    %v1743 = vsel %vm1738, %v1737, 0
    %vm1745 = vcmask 1046528
    %v1747 = vsel %vm1745, %v1720, 0
    %v1750 = vsel %vm1745, %v1721, 0
    %v1753 = vsel %vm1745, %v1722, 0
    %v1756 = vsel %vm1745, %v1723, 0
    %1758 = vmatprep.subr.bf16.mxu0 %v1709
    %1759 = vmatpush1.bf16.msra.mxu0 %v1708
    %1760 = vmatprep.subr.bf16.mxu0 %v1713
    %1761 = vmatpush1.bf16.msra.mxu0 %v1712
    %1762 = vmatprep.subr.bf16.mxu0 %v1717
    %1763 = vmatpush1.bf16.msra.mxu0 %v1716
    %1764 = vmatprep.subr.bf16.mxu0 %v1750
    %1765 = vmatpush1.bf16.msra.mxu0 %v1747
    %1766 = vmatprep.subr.bf16.mxu0 0
    %1767 = vmatpush1.bf16.msra.mxu0 0
    %1768 = vmatprep.subr.bf16.mxu0 0
    %1769 = vmatpush1.bf16.msra.mxu0 0
    %1770 = vmatprep.subr.bf16.mxu0 0
    %1771 = vmatpush1.bf16.msra.mxu0 0
    %1772 = vmatprep.subr.bf16.mxu0 0
    %1773 = vmatpush1.bf16.msra.mxu0 0
    %1774 = vmatprep.subr.bf16.mxu0 0
    %1775 = vmatpush1.bf16.msra.mxu0 0
    %1776 = vmatprep.subr.bf16.mxu0 0
    %1777 = vmatpush1.bf16.msra.mxu0 0
    %1778 = vmatprep.subr.bf16.mxu0 0
    %1779 = vmatpush1.bf16.msra.mxu0 0
    %1780 = vmatprep.subr.bf16.mxu0 0
    %1781 = vmatpush1.bf16.msra.mxu0 0
    %1782 = vmatprep.subr.bf16.mxu0 0
    %1783 = vmatpush1.bf16.msra.mxu0 0
    %1784 = vmatprep.subr.bf16.mxu0 0
    %1785 = vmatpush1.bf16.msra.mxu0 0
    %1786 = vmatprep.subr.bf16.mxu0 0
    %1787 = vmatpush1.bf16.msra.mxu0 0
    %1788 = vmatprep.subr.bf16.mxu0 0
    %1789 = vmatpush1.bf16.msra.mxu0 0
    %1790 = vmatprep.mubr.bf16.mxu0 0
    %1791 = vmatmul.mubr.bf16.gmra.mrb[0].mxu0 %v1740
    %v1792 = vpop.f32.mrb[0].mxu0
    %v1793 = vadd.f32 0.0, %v1792
    %v1794 = vpop.f32.mrb[0].mxu0
    %v1795 = vadd.f32 0.0, %v1794
    %v1796 = vpop.f32.mrb[0].mxu0
    %v1797 = vadd.f32 0.0, %v1796
    %v1798 = vpop.f32.mrb[0].mxu0
    %v1799 = vadd.f32 0.0, %v1798
    %1800 = vmatprep.mubr.bf16.mxu0 0
    %1801 = vmatmul.mubr.bf16.gmra.mrb[0].mxu0 %v1743
    %v1802 = vpop.f32.mrb[0].mxu0
    %v1803 = vadd.f32 0.0, %v1802
    %v1804 = vpop.f32.mrb[0].mxu0
    %v1805 = vadd.f32 0.0, %v1804
    %v1806 = vpop.f32.mrb[0].mxu0
    %v1807 = vadd.f32 0.0, %v1806
    %v1808 = vpop.f32.mrb[0].mxu0
    %v1809 = vadd.f32 0.0, %v1808
    %1810 = vdwg.mxu0
    %1811 = vmatprep.subr.bf16.mxu0 %v1711
    %1812 = vmatpush1.bf16.msra.mxu0 %v1710
    %1813 = vmatprep.subr.bf16.mxu0 %v1715
    %1814 = vmatpush1.bf16.msra.mxu0 %v1714
    %1815 = vmatprep.subr.bf16.mxu0 %v1719
    %1816 = vmatpush1.bf16.msra.mxu0 %v1718
    %1817 = vmatprep.subr.bf16.mxu0 %v1756
    %1818 = vmatpush1.bf16.msra.mxu0 %v1753
    %1819 = vmatprep.subr.bf16.mxu0 0
    %1820 = vmatpush1.bf16.msra.mxu0 0
    %1821 = vmatprep.subr.bf16.mxu0 0
    %1822 = vmatpush1.bf16.msra.mxu0 0
    %1823 = vmatprep.subr.bf16.mxu0 0
    %1824 = vmatpush1.bf16.msra.mxu0 0
    %1825 = vmatprep.subr.bf16.mxu0 0
    %1826 = vmatpush1.bf16.msra.mxu0 0
    %1827 = vmatprep.subr.bf16.mxu0 0
    %1828 = vmatpush1.bf16.msra.mxu0 0
    %1829 = vmatprep.subr.bf16.mxu0 0
    %1830 = vmatpush1.bf16.msra.mxu0 0
    %1831 = vmatprep.subr.bf16.mxu0 0
    %1832 = vmatpush1.bf16.msra.mxu0 0
    %1833 = vmatprep.subr.bf16.mxu0 0
    %1834 = vmatpush1.bf16.msra.mxu0 0
    %1835 = vmatprep.subr.bf16.mxu0 0
    %1836 = vmatpush1.bf16.msra.mxu0 0
    %1837 = vmatprep.subr.bf16.mxu0 0
    %1838 = vmatpush1.bf16.msra.mxu0 0
    %1839 = vmatprep.subr.bf16.mxu0 0
    %1840 = vmatpush1.bf16.msra.mxu0 0
    %1841 = vmatprep.subr.bf16.mxu0 0
    %1842 = vmatpush1.bf16.msra.mxu0 0
    %1843 = vmatprep.mubr.bf16.mxu0 0
    %1844 = vmatmul.mubr.bf16.gmra.mrb[0].mxu0 %v1740
    %v1845 = vpop.f32.mrb[0].mxu0
    %v1846 = vadd.f32 0.0, %v1845
    %v1847 = vpop.f32.mrb[0].mxu0
    %v1848 = vadd.f32 0.0, %v1847
    %v1849 = vpop.f32.mrb[0].mxu0
    %v1850 = vadd.f32 0.0, %v1849
    %v1851 = vpop.f32.mrb[0].mxu0
    %v1852 = vadd.f32 0.0, %v1851
    %1853 = vmatprep.mubr.bf16.mxu0 0
    %1854 = vmatmul.mubr.bf16.gmra.mrb[0].mxu0 %v1743
    %v1855 = vpop.f32.mrb[0].mxu0
    %v1856 = vadd.f32 0.0, %v1855
    %v1857 = vpop.f32.mrb[0].mxu0
    %v1858 = vadd.f32 0.0, %v1857
    %v1859 = vpop.f32.mrb[0].mxu0
    %v1860 = vadd.f32 0.0, %v1859
    %v1861 = vpop.f32.mrb[0].mxu0
    %v1862 = vadd.f32 0.0, %v1861
    %1863 = vdwg.mxu0
    %s1864 = scalar_lea.vmem [#allocation10], 16
    %v1865 = vld [vmem:[%s1864] sm:$0xf]
    %v1866 = vld [vmem:[%s1864 + $0x4] sm:$0xf]
    %v1867 = vld [vmem:[%s1864 + $0x8] sm:$0xf]
    %v1868 = vld [vmem:[%s1864 + $0xc] sm:$0xf]
    %v1873 = vunpack.c.l.b16 %v1865
    %v1874 = vunpack.c.l.b16 %v1866
    %v1875 = vunpack.c.l.b16 %v1867
    %v1876 = vunpack.c.l.b16 %v1868
    %v1877 = vpack.c.b16 %v1874, %v1873
    %v1878 = vpack.c.b16 %v1876, %v1875
    %v1880 = vsel %vm1738, %v1877, 0
    %v1883 = vsel %vm1738, %v1878, 0
    %1885 = vmatprep.subr.bf16.mxu0 %v1709
    %1886 = vmatpush1.bf16.msra.mxu0 %v1708
    %1887 = vmatprep.subr.bf16.mxu0 %v1713
    %1888 = vmatpush1.bf16.msra.mxu0 %v1712
    %1889 = vmatprep.subr.bf16.mxu0 %v1717
    %1890 = vmatpush1.bf16.msra.mxu0 %v1716
    %1891 = vmatprep.subr.bf16.mxu0 %v1750
    %1892 = vmatpush1.bf16.msra.mxu0 %v1747
    %1893 = vmatprep.subr.bf16.mxu0 0
    %1894 = vmatpush1.bf16.msra.mxu0 0
    %1895 = vmatprep.subr.bf16.mxu0 0
    %1896 = vmatpush1.bf16.msra.mxu0 0
    %1897 = vmatprep.subr.bf16.mxu0 0
    %1898 = vmatpush1.bf16.msra.mxu0 0
    %1899 = vmatprep.subr.bf16.mxu0 0
    %1900 = vmatpush1.bf16.msra.mxu0 0
    %1901 = vmatprep.subr.bf16.mxu0 0
    %1902 = vmatpush1.bf16.msra.mxu0 0
    %1903 = vmatprep.subr.bf16.mxu0 0
    %1904 = vmatpush1.bf16.msra.mxu0 0
    %1905 = vmatprep.subr.bf16.mxu0 0
    %1906 = vmatpush1.bf16.msra.mxu0 0
    %1907 = vmatprep.subr.bf16.mxu0 0
    %1908 = vmatpush1.bf16.msra.mxu0 0
    %1909 = vmatprep.subr.bf16.mxu0 0
    %1910 = vmatpush1.bf16.msra.mxu0 0
    %1911 = vmatprep.subr.bf16.mxu0 0
    %1912 = vmatpush1.bf16.msra.mxu0 0
    %1913 = vmatprep.subr.bf16.mxu0 0
    %1914 = vmatpush1.bf16.msra.mxu0 0
    %1915 = vmatprep.subr.bf16.mxu0 0
    %1916 = vmatpush1.bf16.msra.mxu0 0
    %1917 = vmatprep.mubr.bf16.mxu0 0
    %1918 = vmatmul.mubr.bf16.gmra.mrb[0].mxu0 %v1880
    %v1919 = vpop.f32.mrb[0].mxu0
    %v1920 = vadd.f32 0.0, %v1919
    %v1921 = vpop.f32.mrb[0].mxu0
    %v1922 = vadd.f32 0.0, %v1921
    %v1923 = vpop.f32.mrb[0].mxu0
    %v1924 = vadd.f32 0.0, %v1923
    %v1925 = vpop.f32.mrb[0].mxu0
    %v1926 = vadd.f32 0.0, %v1925
    %1927 = vmatprep.mubr.bf16.mxu0 0
    %1928 = vmatmul.mubr.bf16.gmra.mrb[0].mxu0 %v1883
    %v1929 = vpop.f32.mrb[0].mxu0
    %v1930 = vadd.f32 0.0, %v1929
    %v1931 = vpop.f32.mrb[0].mxu0
    %v1932 = vadd.f32 0.0, %v1931
    %v1933 = vpop.f32.mrb[0].mxu0
    %v1934 = vadd.f32 0.0, %v1933
    %v1935 = vpop.f32.mrb[0].mxu0
    %v1936 = vadd.f32 0.0, %v1935
    %1937 = vdwg.mxu0
    %1938 = vmatprep.subr.bf16.mxu0 %v1711
    %1939 = vmatpush1.bf16.msra.mxu0 %v1710
    %1940 = vmatprep.subr.bf16.mxu0 %v1715
    %1941 = vmatpush1.bf16.msra.mxu0 %v1714
    %1942 = vmatprep.subr.bf16.mxu0 %v1719
    %1943 = vmatpush1.bf16.msra.mxu0 %v1718
    %1944 = vmatprep.subr.bf16.mxu0 %v1756
    %1945 = vmatpush1.bf16.msra.mxu0 %v1753
    %1946 = vmatprep.subr.bf16.mxu0 0
    %1947 = vmatpush1.bf16.msra.mxu0 0
    %1948 = vmatprep.subr.bf16.mxu0 0
    %1949 = vmatpush1.bf16.msra.mxu0 0
    %1950 = vmatprep.subr.bf16.mxu0 0
    %1951 = vmatpush1.bf16.msra.mxu0 0
    %1952 = vmatprep.subr.bf16.mxu0 0
    %1953 = vmatpush1.bf16.msra.mxu0 0
    %1954 = vmatprep.subr.bf16.mxu0 0
    %1955 = vmatpush1.bf16.msra.mxu0 0
    %1956 = vmatprep.subr.bf16.mxu0 0
    %1957 = vmatpush1.bf16.msra.mxu0 0
    %1958 = vmatprep.subr.bf16.mxu0 0
    %1959 = vmatpush1.bf16.msra.mxu0 0
    %1960 = vmatprep.subr.bf16.mxu0 0
    %1961 = vmatpush1.bf16.msra.mxu0 0
    %1962 = vmatprep.subr.bf16.mxu0 0
    %1963 = vmatpush1.bf16.msra.mxu0 0
    %1964 = vmatprep.subr.bf16.mxu0 0
    %1965 = vmatpush1.bf16.msra.mxu0 0
    %1966 = vmatprep.subr.bf16.mxu0 0
    %1967 = vmatpush1.bf16.msra.mxu0 0
    %1968 = vmatprep.subr.bf16.mxu0 0
    %1969 = vmatpush1.bf16.msra.mxu0 0
    %1970 = vmatprep.mubr.bf16.mxu0 0
    %1971 = vmatmul.mubr.bf16.gmra.mrb[0].mxu0 %v1880
    %v1972 = vpop.f32.mrb[0].mxu0
    %v1973 = vadd.f32 0.0, %v1972
    %v1974 = vpop.f32.mrb[0].mxu0
    %v1975 = vadd.f32 0.0, %v1974
    %v1976 = vpop.f32.mrb[0].mxu0
    %v1977 = vadd.f32 0.0, %v1976
    %v1978 = vpop.f32.mrb[0].mxu0
    %v1979 = vadd.f32 0.0, %v1978
    %1980 = vmatprep.mubr.bf16.mxu0 0
    %1981 = vmatmul.mubr.bf16.gmra.mrb[0].mxu0 %v1883
    %v1982 = vpop.f32.mrb[0].mxu0
    %v1983 = vadd.f32 0.0, %v1982
    %v1984 = vpop.f32.mrb[0].mxu0
    %v1985 = vadd.f32 0.0, %v1984
    %v1986 = vpop.f32.mrb[0].mxu0
    %v1987 = vadd.f32 0.0, %v1986
    %v1988 = vpop.f32.mrb[0].mxu0
    %v1989 = vadd.f32 0.0, %v1988
    %1990 = vdwg.mxu0
    %v1991 = vmax.f32 %v1793, %v1920
    %v1992 = vmax.f32 %v1795, %v1922
    %v1993 = vmax.f32 %v1846, %v1973
    %v1994 = vmax.f32 %v1848, %v1975
    %v1995 = vmax.f32 %v1797, %v1924
    %v1996 = vmax.f32 %v1799, %v1926
    %v1997 = vmax.f32 %v1850, %v1977
    %v1998 = vmax.f32 %v1852, %v1979
    %v1999 = vmax.f32 %v1803, %v1930
    %v2000 = vmax.f32 %v1805, %v1932
    %v2001 = vmax.f32 %v1856, %v1983
    %v2002 = vmax.f32 %v1858, %v1985
    %v2003 = vmax.f32 %v1807, %v1934
    %v2004 = vmax.f32 %v1809, %v1936
    %v2005 = vmax.f32 %v1860, %v1987
    %v2006 = vmax.f32 %v1862, %v1989
    %v2007 = vmax.f32 %v1991, 0.0
    %v2008 = vmax.f32 %v1992, 0.0
    %v2009 = vmax.f32 %v1993, 0.0
    %v2010 = vmax.f32 %v1994, 0.0
    %v2011 = vmax.f32 %v1995, 0.0
    %v2012 = vmax.f32 %v1996, 0.0
    %v2013 = vmax.f32 %v1997, 0.0
    %v2014 = vmax.f32 %v1998, 0.0
    %v2015 = vmax.f32 %v1999, 0.0
    %v2016 = vmax.f32 %v2000, 0.0
    %v2017 = vmax.f32 %v2001, 0.0
    %v2018 = vmax.f32 %v2002, 0.0
    %v2019 = vmax.f32 %v2003, 0.0
    %v2020 = vmax.f32 %v2004, 0.0
    %v2021 = vmax.f32 %v2005, 0.0
    %v2022 = vmax.f32 %v2006, 0.0
    %v2023 = vpack.c.bf16 %v2011, %v2007
    %v2024 = vpack.c.bf16 %v2012, %v2008
    %v2025 = vpack.c.bf16 %v2013, %v2009
    %v2026 = vpack.c.bf16 %v2014, %v2010
    %v2027 = vpack.c.bf16 %v2019, %v2015
    %v2028 = vpack.c.bf16 %v2020, %v2016
    %v2029 = vpack.c.bf16 %v2021, %v2017
    %v2030 = vpack.c.bf16 %v2022, %v2018
    %2031 = vst [vmem:[#allocation3] sm:$0xff] %v2023
    %2032 = vst [vmem:[#allocation3 + $0x8] sm:$0xff] %v2024
    %2033 = vst [vmem:[#allocation3 + $0x10] sm:$0xff] %v2025
    %vm2034 = vcmask 523264
    %2035 = vst.msk [vmem:[#allocation3 + $0x18] sm:$0xff] %vm2034, %v2026
    %2036 = vst [vmem:[#allocation3 + $0x20] sm:$0xff] %v2027
    %2037 = vst [vmem:[#allocation3 + $0x28] sm:$0xff] %v2028
    %2038 = vst [vmem:[#allocation3 + $0x30] sm:$0xff] %v2029
    %2039 = vst.msk [vmem:[#allocation3 + $0x38] sm:$0xff] %vm2034, %v2030
    %v2040 = vld [vmem:[#allocation3] sm:$0xff]
    %v2041 = vld [vmem:[#allocation3 + $0x8] sm:$0xff]
    %v2042 = vld [vmem:[#allocation3 + $0x10] sm:$0xff]
    %v2043 = vld [vmem:[#allocation3 + $0x18] sm:$0xff]
    %v2044 = vld [vmem:[#allocation3 + $0x20] sm:$0x7f]
    %v2045 = vld [vmem:[#allocation3 + $0x28] sm:$0x7f]
    %v2046 = vld [vmem:[#allocation3 + $0x30] sm:$0x7f]
    %v2047 = vld [vmem:[#allocation3 + $0x38] sm:$0x7f]
    %v2048 = vld [vmem:[#allocation5] sm:$0xff]
    %v2049 = vld [vmem:[#allocation5 + $0x8] sm:$0xff]
    %v2050 = vld [vmem:[#allocation5 + $0x10] sm:$0xff]
    %v2051 = vld [vmem:[#allocation5 + $0x18] sm:$0xff]
    %v2052 = vld [vmem:[#allocation5 + $0x20] sm:$0xff]
    %v2053 = vld [vmem:[#allocation5 + $0x28] sm:$0xff]
    %v2054 = vld [vmem:[#allocation5 + $0x30] sm:$0xff]
    %v2055 = vld [vmem:[#allocation5 + $0x38] sm:$0xff]
    %v2056 = vld [vmem:[#allocation5 + $0x40] sm:$0xff]
    %v2057 = vld [vmem:[#allocation5 + $0x48] sm:$0xff]
    %v2058 = vld [vmem:[#allocation5 + $0x50] sm:$0xff]
    %v2059 = vld [vmem:[#allocation5 + $0x58] sm:$0xff]
    %v2060 = vld [vmem:[#allocation5 + $0x60] sm:$0xff]
    %v2061 = vld [vmem:[#allocation5 + $0x68] sm:$0xff]
    %v2062 = vld [vmem:[#allocation5 + $0x70] sm:$0xff]
    %v2063 = vld [vmem:[#allocation5 + $0x78] sm:$0xff]
    %v2064 = vld [vmem:[#allocation5 + $0x80] sm:$0xff]
    %v2065 = vld [vmem:[#allocation5 + $0x88] sm:$0xff]
    %v2066 = vld [vmem:[#allocation5 + $0x90] sm:$0xff]
    %v2067 = vld [vmem:[#allocation5 + $0x98] sm:$0xff]
    %v2068 = vld [vmem:[#allocation5 + $0xa0] sm:$0xff]
    %v2069 = vld [vmem:[#allocation5 + $0xa8] sm:$0xff]
    %v2070 = vld [vmem:[#allocation5 + $0xb0] sm:$0xff]
    %v2071 = vld [vmem:[#allocation5 + $0xb8] sm:$0xff]
    %v2072 = vld [vmem:[#allocation5 + $0xc0] sm:$0xff]
    %v2073 = vld [vmem:[#allocation5 + $0xc8] sm:$0xff]
    %v2074 = vld [vmem:[#allocation5 + $0xd0] sm:$0xff]
    %v2075 = vld [vmem:[#allocation5 + $0xd8] sm:$0xff]
    %v2076 = vld [vmem:[#allocation5 + $0xe0] sm:$0xff]
    %v2077 = vld [vmem:[#allocation5 + $0xe8] sm:$0xff]
    %v2078 = vld [vmem:[#allocation5 + $0xf0] sm:$0xff]
    %v2079 = vld [vmem:[#allocation5 + $0xf8] sm:$0xff]
    %v2080 = vld [vmem:[#allocation5 + $0x100] sm:$0xff]
    %v2081 = vld [vmem:[#allocation5 + $0x108] sm:$0xff]
    %v2082 = vld [vmem:[#allocation5 + $0x110] sm:$0xff]
    %v2083 = vld [vmem:[#allocation5 + $0x118] sm:$0xff]
    %v2084 = vld [vmem:[#allocation5 + $0x120] sm:$0xff]
    %v2085 = vld [vmem:[#allocation5 + $0x128] sm:$0xff]
    %v2086 = vld [vmem:[#allocation5 + $0x130] sm:$0xff]
    %v2087 = vld [vmem:[#allocation5 + $0x138] sm:$0xff]
    %v2088 = vld [vmem:[#allocation5 + $0x140] sm:$0xff]
    %v2089 = vld [vmem:[#allocation5 + $0x148] sm:$0xff]
    %v2090 = vld [vmem:[#allocation5 + $0x150] sm:$0xff]
    %v2091 = vld [vmem:[#allocation5 + $0x158] sm:$0xff]
    %v2092 = vld [vmem:[#allocation5 + $0x160] sm:$0xff]
    %v2093 = vld [vmem:[#allocation5 + $0x168] sm:$0xff]
    %v2094 = vld [vmem:[#allocation5 + $0x170] sm:$0xff]
    %v2095 = vld [vmem:[#allocation5 + $0x178] sm:$0xff]
    %v2096 = vld [vmem:[#allocation5 + $0x180] sm:$0xff]
    %v2097 = vld [vmem:[#allocation5 + $0x188] sm:$0xff]
    %v2098 = vld [vmem:[#allocation5 + $0x190] sm:$0xff]
    %v2099 = vld [vmem:[#allocation5 + $0x198] sm:$0xff]
    %v2100 = vld [vmem:[#allocation5 + $0x1a0] sm:$0xff]
    %v2101 = vld [vmem:[#allocation5 + $0x1a8] sm:$0xff]
    %v2102 = vld [vmem:[#allocation5 + $0x1b0] sm:$0xff]
    %v2103 = vld [vmem:[#allocation5 + $0x1b8] sm:$0xff]
    %v2104 = vld [vmem:[#allocation5 + $0x1c0] sm:$0xff]
    %v2105 = vld [vmem:[#allocation5 + $0x1c8] sm:$0xff]
    %v2106 = vld [vmem:[#allocation5 + $0x1d0] sm:$0xff]
    %v2107 = vld [vmem:[#allocation5 + $0x1d8] sm:$0xff]
    %v2108 = vld [vmem:[#allocation5 + $0x1e0] sm:$0xff]
    %v2109 = vld [vmem:[#allocation5 + $0x1e8] sm:$0xff]
    %v2110 = vld [vmem:[#allocation5 + $0x1f0] sm:$0xff]
    %v2111 = vld [vmem:[#allocation5 + $0x1f8] sm:$0xff]
    %v2112 = vld [vmem:[#allocation5 + $0x200] sm:$0xff]
    %v2113 = vld [vmem:[#allocation5 + $0x208] sm:$0xff]
    %v2114 = vld [vmem:[#allocation5 + $0x210] sm:$0xff]
    %v2115 = vld [vmem:[#allocation5 + $0x218] sm:$0xff]
    %v2116 = vld [vmem:[#allocation5 + $0x220] sm:$0xff]
    %v2117 = vld [vmem:[#allocation5 + $0x228] sm:$0xff]
    %v2118 = vld [vmem:[#allocation5 + $0x230] sm:$0xff]
    %v2119 = vld [vmem:[#allocation5 + $0x238] sm:$0xff]
    %v2120 = vld [vmem:[#allocation5 + $0x240] sm:$0xff]
    %v2121 = vld [vmem:[#allocation5 + $0x248] sm:$0xff]
    %v2122 = vld [vmem:[#allocation5 + $0x250] sm:$0xff]
    %v2123 = vld [vmem:[#allocation5 + $0x258] sm:$0xff]
    %v2124 = vld [vmem:[#allocation5 + $0x260] sm:$0xff]
    %v2125 = vld [vmem:[#allocation5 + $0x268] sm:$0xff]
    %v2126 = vld [vmem:[#allocation5 + $0x270] sm:$0xff]
    %v2127 = vld [vmem:[#allocation5 + $0x278] sm:$0xff]
    %v2128 = vld [vmem:[#allocation5 + $0x280] sm:$0xff]
    %v2129 = vld [vmem:[#allocation5 + $0x288] sm:$0xff]
    %v2130 = vld [vmem:[#allocation5 + $0x290] sm:$0xff]
    %v2131 = vld [vmem:[#allocation5 + $0x298] sm:$0xff]
    %v2132 = vld [vmem:[#allocation5 + $0x2a0] sm:$0xff]
    %v2133 = vld [vmem:[#allocation5 + $0x2a8] sm:$0xff]
    %v2134 = vld [vmem:[#allocation5 + $0x2b0] sm:$0xff]
    %v2135 = vld [vmem:[#allocation5 + $0x2b8] sm:$0xff]
    %v2136 = vld [vmem:[#allocation5 + $0x2c0] sm:$0xff]
    %v2137 = vld [vmem:[#allocation5 + $0x2c8] sm:$0xff]
    %v2138 = vld [vmem:[#allocation5 + $0x2d0] sm:$0xff]
    %v2139 = vld [vmem:[#allocation5 + $0x2d8] sm:$0xff]
    %v2140 = vld [vmem:[#allocation5 + $0x2e0] sm:$0xff]
    %v2141 = vld [vmem:[#allocation5 + $0x2e8] sm:$0xff]
    %v2142 = vld [vmem:[#allocation5 + $0x2f0] sm:$0xff]
    %v2143 = vld [vmem:[#allocation5 + $0x2f8] sm:$0xff]
    %v2144 = vld [vmem:[#allocation5 + $0x300] sm:$0xff]
    %v2145 = vld [vmem:[#allocation5 + $0x308] sm:$0xff]
    %v2146 = vld [vmem:[#allocation5 + $0x310] sm:$0xff]
    %v2147 = vld [vmem:[#allocation5 + $0x318] sm:$0xff]
    %v2148 = vld [vmem:[#allocation5 + $0x320] sm:$0xff]
    %v2149 = vld [vmem:[#allocation5 + $0x328] sm:$0xff]
    %v2150 = vld [vmem:[#allocation5 + $0x330] sm:$0xff]
    %v2151 = vld [vmem:[#allocation5 + $0x338] sm:$0xff]
    %v2152 = vld [vmem:[#allocation5 + $0x340] sm:$0xff]
    %v2153 = vld [vmem:[#allocation5 + $0x348] sm:$0xff]
    %v2154 = vld [vmem:[#allocation5 + $0x350] sm:$0xff]
    %v2155 = vld [vmem:[#allocation5 + $0x358] sm:$0xff]
    %v2156 = vld [vmem:[#allocation5 + $0x360] sm:$0xff]
    %v2157 = vld [vmem:[#allocation5 + $0x368] sm:$0xff]
    %v2158 = vld [vmem:[#allocation5 + $0x370] sm:$0xff]
    %v2159 = vld [vmem:[#allocation5 + $0x378] sm:$0xff]
    %v2160 = vld [vmem:[#allocation3 + $0x20] sm:$0xff]
    %v2161 = vld [vmem:[#allocation3 + $0x28] sm:$0xff]
    %v2162 = vld [vmem:[#allocation3 + $0x30] sm:$0xff]
    %v2163 = vld [vmem:[#allocation3 + $0x38] sm:$0xff]
    %s2164 = scalar_lea.vmem [#allocation5], 1792
    %v2165 = vld [vmem:[%s2164] sm:$0xff]
    %v2166 = vld [vmem:[%s2164 + $0x8] sm:$0xff]
    %v2167 = vld [vmem:[%s2164 + $0x10] sm:$0xff]
    %v2168 = vld [vmem:[%s2164 + $0x18] sm:$0xff]
    %v2169 = vld [vmem:[%s2164 + $0x20] sm:$0xff]
    %v2170 = vld [vmem:[%s2164 + $0x28] sm:$0xff]
    %v2171 = vld [vmem:[%s2164 + $0x30] sm:$0xff]
    %v2172 = vld [vmem:[%s2164 + $0x38] sm:$0xff]
    %v2173 = vld [vmem:[%s2164 + $0x40] sm:$0xff]
    %v2174 = vld [vmem:[%s2164 + $0x48] sm:$0xff]
    %v2175 = vld [vmem:[%s2164 + $0x50] sm:$0xff]
    %v2176 = vld [vmem:[%s2164 + $0x58] sm:$0xff]
    %v2177 = vld [vmem:[%s2164 + $0x60] sm:$0xff]
    %v2178 = vld [vmem:[%s2164 + $0x68] sm:$0xff]
    %v2179 = vld [vmem:[%s2164 + $0x70] sm:$0xff]
    %v2180 = vld [vmem:[%s2164 + $0x78] sm:$0xff]
    %v2181 = vld [vmem:[%s2164 + $0x80] sm:$0xff]
    %v2182 = vld [vmem:[%s2164 + $0x88] sm:$0xff]
    %v2183 = vld [vmem:[%s2164 + $0x90] sm:$0xff]
    %v2184 = vld [vmem:[%s2164 + $0x98] sm:$0xff]
    %v2185 = vld [vmem:[%s2164 + $0xa0] sm:$0xff]
    %v2186 = vld [vmem:[%s2164 + $0xa8] sm:$0xff]
    %v2187 = vld [vmem:[%s2164 + $0xb0] sm:$0xff]
    %v2188 = vld [vmem:[%s2164 + $0xb8] sm:$0xff]
    %v2189 = vld [vmem:[%s2164 + $0xc0] sm:$0xff]
    %v2190 = vld [vmem:[%s2164 + $0xc8] sm:$0xff]
    %v2191 = vld [vmem:[%s2164 + $0xd0] sm:$0xff]
    %v2192 = vld [vmem:[%s2164 + $0xd8] sm:$0xff]
    %v2193 = vld [vmem:[%s2164 + $0xe0] sm:$0xff]
    %v2194 = vld [vmem:[%s2164 + $0xe8] sm:$0xff]
    %v2195 = vld [vmem:[%s2164 + $0xf0] sm:$0xff]
    %v2196 = vld [vmem:[%s2164 + $0xf8] sm:$0xff]
    %v2197 = vld [vmem:[%s2164 + $0x100] sm:$0xff]
    %v2198 = vld [vmem:[%s2164 + $0x108] sm:$0xff]
    %v2199 = vld [vmem:[%s2164 + $0x110] sm:$0xff]
    %v2200 = vld [vmem:[%s2164 + $0x118] sm:$0xff]
    %v2201 = vld [vmem:[%s2164 + $0x120] sm:$0xff]
    %v2202 = vld [vmem:[%s2164 + $0x128] sm:$0xff]
    %v2203 = vld [vmem:[%s2164 + $0x130] sm:$0xff]
    %v2204 = vld [vmem:[%s2164 + $0x138] sm:$0xff]
    %v2205 = vld [vmem:[%s2164 + $0x140] sm:$0xff]
    %v2206 = vld [vmem:[%s2164 + $0x148] sm:$0xff]
    %v2207 = vld [vmem:[%s2164 + $0x150] sm:$0xff]
    %v2208 = vld [vmem:[%s2164 + $0x158] sm:$0xff]
    %v2209 = vld [vmem:[%s2164 + $0x160] sm:$0xff]
    %v2210 = vld [vmem:[%s2164 + $0x168] sm:$0xff]
    %v2211 = vld [vmem:[%s2164 + $0x170] sm:$0xff]
    %v2212 = vld [vmem:[%s2164 + $0x178] sm:$0xff]
    %v2213 = vld [vmem:[%s2164 + $0x180] sm:$0xff]
    %v2214 = vld [vmem:[%s2164 + $0x188] sm:$0xff]
    %v2215 = vld [vmem:[%s2164 + $0x190] sm:$0xff]
    %v2216 = vld [vmem:[%s2164 + $0x198] sm:$0xff]
    %v2217 = vld [vmem:[%s2164 + $0x1a0] sm:$0xff]
    %v2218 = vld [vmem:[%s2164 + $0x1a8] sm:$0xff]
    %v2219 = vld [vmem:[%s2164 + $0x1b0] sm:$0xff]
    %v2220 = vld [vmem:[%s2164 + $0x1b8] sm:$0xff]
    %v2221 = vld [vmem:[%s2164 + $0x1c0] sm:$0xff]
    %v2222 = vld [vmem:[%s2164 + $0x1c8] sm:$0xff]
    %v2223 = vld [vmem:[%s2164 + $0x1d0] sm:$0xff]
    %v2224 = vld [vmem:[%s2164 + $0x1d8] sm:$0xff]
    %v2225 = vld [vmem:[%s2164 + $0x1e0] sm:$0xff]
    %v2226 = vld [vmem:[%s2164 + $0x1e8] sm:$0xff]
    %v2227 = vld [vmem:[%s2164 + $0x1f0] sm:$0xff]
    %v2228 = vld [vmem:[%s2164 + $0x1f8] sm:$0xff]
    %v2229 = vld [vmem:[%s2164 + $0x200] sm:$0xff]
    %v2230 = vld [vmem:[%s2164 + $0x208] sm:$0xff]
    %v2231 = vld [vmem:[%s2164 + $0x210] sm:$0xff]
    %v2232 = vld [vmem:[%s2164 + $0x218] sm:$0xff]
    %v2233 = vld [vmem:[%s2164 + $0x220] sm:$0xff]
    %v2234 = vld [vmem:[%s2164 + $0x228] sm:$0xff]
    %v2235 = vld [vmem:[%s2164 + $0x230] sm:$0xff]
    %v2236 = vld [vmem:[%s2164 + $0x238] sm:$0xff]
    %v2237 = vld [vmem:[%s2164 + $0x240] sm:$0xff]
    %v2238 = vld [vmem:[%s2164 + $0x248] sm:$0xff]
    %v2239 = vld [vmem:[%s2164 + $0x250] sm:$0xff]
    %v2240 = vld [vmem:[%s2164 + $0x258] sm:$0xff]
    %v2241 = vld [vmem:[%s2164 + $0x260] sm:$0xff]
    %v2242 = vld [vmem:[%s2164 + $0x268] sm:$0xff]
    %v2243 = vld [vmem:[%s2164 + $0x270] sm:$0xff]
    %v2244 = vld [vmem:[%s2164 + $0x278] sm:$0xff]
    %v2245 = vld [vmem:[%s2164 + $0x280] sm:$0xff]
    %v2246 = vld [vmem:[%s2164 + $0x288] sm:$0xff]
    %v2247 = vld [vmem:[%s2164 + $0x290] sm:$0xff]
    %v2248 = vld [vmem:[%s2164 + $0x298] sm:$0xff]
    %v2249 = vld [vmem:[%s2164 + $0x2a0] sm:$0xff]
    %v2250 = vld [vmem:[%s2164 + $0x2a8] sm:$0xff]
    %v2251 = vld [vmem:[%s2164 + $0x2b0] sm:$0xff]
    %v2252 = vld [vmem:[%s2164 + $0x2b8] sm:$0xff]
    %v2253 = vld [vmem:[%s2164 + $0x2c0] sm:$0xff]
    %v2254 = vld [vmem:[%s2164 + $0x2c8] sm:$0xff]
    %v2255 = vld [vmem:[%s2164 + $0x2d0] sm:$0xff]
    %v2256 = vld [vmem:[%s2164 + $0x2d8] sm:$0xff]
    %v2257 = vld [vmem:[%s2164 + $0x2e0] sm:$0xff]
    %v2258 = vld [vmem:[%s2164 + $0x2e8] sm:$0xff]
    %v2259 = vld [vmem:[%s2164 + $0x2f0] sm:$0xff]
    %v2260 = vld [vmem:[%s2164 + $0x2f8] sm:$0xff]
    %v2261 = vld [vmem:[%s2164 + $0x300] sm:$0xff]
    %v2262 = vld [vmem:[%s2164 + $0x308] sm:$0xff]
    %v2263 = vld [vmem:[%s2164 + $0x310] sm:$0xff]
    %v2264 = vld [vmem:[%s2164 + $0x318] sm:$0xff]
    %v2265 = vld [vmem:[%s2164 + $0x320] sm:$0xff]
    %v2266 = vld [vmem:[%s2164 + $0x328] sm:$0xff]
    %v2267 = vld [vmem:[%s2164 + $0x330] sm:$0xff]
    %v2268 = vld [vmem:[%s2164 + $0x338] sm:$0xff]
    %v2269 = vld [vmem:[%s2164 + $0x340] sm:$0xff]
    %v2270 = vld [vmem:[%s2164 + $0x348] sm:$0xff]
    %v2271 = vld [vmem:[%s2164 + $0x350] sm:$0xff]
    %v2272 = vld [vmem:[%s2164 + $0x358] sm:$0xff]
    %v2273 = vld [vmem:[%s2164 + $0x360] sm:$0xff]
    %v2274 = vld [vmem:[%s2164 + $0x368] sm:$0xff]
    %v2275 = vld [vmem:[%s2164 + $0x370] sm:$0xff]
    %v2276 = vld [vmem:[%s2164 + $0x378] sm:$0xff]
    %v2278 = vshrl.u32 %v2040, 16
    %v2280 = vshll.u32 %v2040, 16
    %v2282 = vrot.slane %v2280, 1
    %v2283 = vor.u32 %v2278, %v2282
    %v2285 = vshll.u32 %v2160, 16
    %v2287 = vrot.slane %v2285, 1
    %v2288 = vsel %vm279, %v2283, %v2287
    %v2290 = vshrl.u32 %v2041, 16
    %v2292 = vshll.u32 %v2041, 16
    %v2294 = vrot.slane %v2292, 1
    %v2295 = vor.u32 %v2290, %v2294
    %v2297 = vshll.u32 %v2161, 16
    %v2299 = vrot.slane %v2297, 1
    %v2300 = vsel %vm279, %v2295, %v2299
    %v2302 = vshrl.u32 %v2042, 16
    %v2304 = vshll.u32 %v2042, 16
    %v2306 = vrot.slane %v2304, 1
    %v2307 = vor.u32 %v2302, %v2306
    %v2309 = vshll.u32 %v2162, 16
    %v2311 = vrot.slane %v2309, 1
    %v2312 = vsel %vm279, %v2307, %v2311
    %v2314 = vshrl.u32 %v2043, 16
    %v2316 = vshll.u32 %v2043, 16
    %v2318 = vrot.slane %v2316, 1
    %v2319 = vor.u32 %v2314, %v2318
    %v2321 = vshll.u32 %v2163, 16
    %v2323 = vrot.slane %v2321, 1
    %v2324 = vsel %vm279, %v2319, %v2323
    %v2325 = vshrl.u32 %v2160, 16
    %v2327 = vor.u32 %v2325, %v2287
    %v2328 = vshrl.u32 %v2161, 16
    %v2330 = vor.u32 %v2328, %v2299
    %v2331 = vshrl.u32 %v2162, 16
    %v2333 = vor.u32 %v2331, %v2311
    %v2334 = vshrl.u32 %v2163, 16
    %v2336 = vor.u32 %v2334, %v2323
    %v2455 = vunpack.c.l.b16 %v2165
    %v2456 = vunpack.c.h.b16 %v2165
    %v2457 = vunpack.c.l.b16 %v2166
    %v2458 = vunpack.c.h.b16 %v2166
    %v2459 = vunpack.c.l.b16 %v2167
    %v2460 = vunpack.c.h.b16 %v2167
    %v2461 = vunpack.c.l.b16 %v2168
    %v2462 = vunpack.c.h.b16 %v2168
    %v2463 = vunpack.c.l.b16 %v2169
    %v2464 = vunpack.c.h.b16 %v2169
    %v2465 = vunpack.c.l.b16 %v2170
    %v2466 = vunpack.c.h.b16 %v2170
    %v2467 = vunpack.c.l.b16 %v2171
    %v2468 = vunpack.c.h.b16 %v2171
    %v2469 = vunpack.c.l.b16 %v2172
    %v2470 = vunpack.c.h.b16 %v2172
    %v2471 = vunpack.c.l.b16 %v2173
    %v2472 = vunpack.c.h.b16 %v2173
    %v2473 = vunpack.c.l.b16 %v2174
    %v2474 = vunpack.c.h.b16 %v2174
    %v2475 = vunpack.c.l.b16 %v2175
    %v2476 = vunpack.c.h.b16 %v2175
    %v2477 = vunpack.c.l.b16 %v2176
    %v2478 = vunpack.c.h.b16 %v2176
    %v2479 = vunpack.c.l.b16 %v2177
    %v2480 = vunpack.c.h.b16 %v2177
    %v2481 = vunpack.c.l.b16 %v2178
    %v2482 = vunpack.c.h.b16 %v2178
    %v2483 = vunpack.c.l.b16 %v2179
    %v2484 = vunpack.c.h.b16 %v2179
    %v2485 = vunpack.c.l.b16 %v2180
    %v2486 = vunpack.c.h.b16 %v2180
    %v2487 = vunpack.c.l.b16 %v2181
    %v2488 = vunpack.c.h.b16 %v2181
    %v2489 = vunpack.c.l.b16 %v2182
    %v2490 = vunpack.c.h.b16 %v2182
    %v2491 = vunpack.c.l.b16 %v2183
    %v2492 = vunpack.c.h.b16 %v2183
    %v2493 = vunpack.c.l.b16 %v2184
    %v2494 = vunpack.c.h.b16 %v2184
    %v2495 = vunpack.c.l.b16 %v2185
    %v2496 = vunpack.c.h.b16 %v2185
    %v2497 = vunpack.c.l.b16 %v2186
    %v2498 = vunpack.c.h.b16 %v2186
    %v2499 = vunpack.c.l.b16 %v2187
    %v2500 = vunpack.c.h.b16 %v2187
    %v2501 = vunpack.c.l.b16 %v2188
    %v2502 = vunpack.c.h.b16 %v2188
    %v2503 = vunpack.c.l.b16 %v2189
    %v2504 = vunpack.c.h.b16 %v2189
    %v2505 = vunpack.c.l.b16 %v2190
    %v2506 = vunpack.c.h.b16 %v2190
    %v2507 = vunpack.c.l.b16 %v2191
    %v2508 = vunpack.c.h.b16 %v2191
    %v2509 = vunpack.c.l.b16 %v2192
    %v2510 = vunpack.c.h.b16 %v2192
    %v2511 = vunpack.c.l.b16 %v2193
    %v2512 = vunpack.c.h.b16 %v2193
    %v2513 = vunpack.c.l.b16 %v2194
    %v2514 = vunpack.c.h.b16 %v2194
    %v2515 = vunpack.c.l.b16 %v2195
    %v2516 = vunpack.c.h.b16 %v2195
    %v2517 = vunpack.c.l.b16 %v2196
    %v2518 = vunpack.c.h.b16 %v2196
    %v2519 = vunpack.c.l.b16 %v2197
    %v2520 = vunpack.c.h.b16 %v2197
    %v2521 = vunpack.c.l.b16 %v2198
    %v2522 = vunpack.c.h.b16 %v2198
    %v2523 = vunpack.c.l.b16 %v2199
    %v2524 = vunpack.c.h.b16 %v2199
    %v2525 = vunpack.c.l.b16 %v2200
    %v2526 = vunpack.c.h.b16 %v2200
    %v2527 = vunpack.c.l.b16 %v2201
    %v2528 = vunpack.c.h.b16 %v2201
    %v2529 = vunpack.c.l.b16 %v2202
    %v2530 = vunpack.c.h.b16 %v2202
    %v2531 = vunpack.c.l.b16 %v2203
    %v2532 = vunpack.c.h.b16 %v2203
    %v2533 = vunpack.c.l.b16 %v2204
    %v2534 = vunpack.c.h.b16 %v2204
    %v2535 = vunpack.c.l.b16 %v2205
    %v2536 = vunpack.c.h.b16 %v2205
    %v2537 = vunpack.c.l.b16 %v2206
    %v2538 = vunpack.c.h.b16 %v2206
    %v2539 = vunpack.c.l.b16 %v2207
    %v2540 = vunpack.c.h.b16 %v2207
    %v2541 = vunpack.c.l.b16 %v2208
    %v2542 = vunpack.c.h.b16 %v2208
    %v2543 = vunpack.c.l.b16 %v2209
    %v2544 = vunpack.c.h.b16 %v2209
    %v2545 = vunpack.c.l.b16 %v2210
    %v2546 = vunpack.c.h.b16 %v2210
    %v2547 = vunpack.c.l.b16 %v2211
    %v2548 = vunpack.c.h.b16 %v2211
    %v2549 = vunpack.c.l.b16 %v2212
    %v2550 = vunpack.c.h.b16 %v2212
    %v2551 = vunpack.c.l.b16 %v2213
    %v2552 = vunpack.c.h.b16 %v2213
    %v2553 = vunpack.c.l.b16 %v2214
    %v2554 = vunpack.c.h.b16 %v2214
    %v2555 = vunpack.c.l.b16 %v2215
    %v2556 = vunpack.c.h.b16 %v2215
    %v2557 = vunpack.c.l.b16 %v2216
    %v2558 = vunpack.c.h.b16 %v2216
    %v2559 = vunpack.c.l.b16 %v2217
    %v2560 = vunpack.c.h.b16 %v2217
    %v2561 = vunpack.c.l.b16 %v2218
    %v2562 = vunpack.c.h.b16 %v2218
    %v2563 = vunpack.c.l.b16 %v2219
    %v2564 = vunpack.c.h.b16 %v2219
    %v2565 = vunpack.c.l.b16 %v2220
    %v2566 = vunpack.c.h.b16 %v2220
    %v2567 = vunpack.c.l.b16 %v2221
    %v2568 = vunpack.c.h.b16 %v2221
    %v2569 = vunpack.c.l.b16 %v2222
    %v2570 = vunpack.c.h.b16 %v2222
    %v2571 = vunpack.c.l.b16 %v2223
    %v2572 = vunpack.c.h.b16 %v2223
    %v2573 = vunpack.c.l.b16 %v2224
    %v2574 = vunpack.c.h.b16 %v2224
    %v2575 = vunpack.c.l.b16 %v2225
    %v2576 = vunpack.c.h.b16 %v2225
    %v2577 = vunpack.c.l.b16 %v2226
    %v2578 = vunpack.c.h.b16 %v2226
    %v2579 = vunpack.c.l.b16 %v2227
    %v2580 = vunpack.c.h.b16 %v2227
    %v2581 = vunpack.c.l.b16 %v2228
    %v2582 = vunpack.c.h.b16 %v2228
    %v2583 = vunpack.c.l.b16 %v2229
    %v2584 = vunpack.c.h.b16 %v2229
    %v2585 = vunpack.c.l.b16 %v2230
    %v2586 = vunpack.c.h.b16 %v2230
    %v2587 = vunpack.c.l.b16 %v2231
    %v2588 = vunpack.c.h.b16 %v2231
    %v2589 = vunpack.c.l.b16 %v2232
    %v2590 = vunpack.c.h.b16 %v2232
    %v2591 = vunpack.c.l.b16 %v2233
    %v2592 = vunpack.c.h.b16 %v2233
    %v2593 = vunpack.c.l.b16 %v2234
    %v2594 = vunpack.c.h.b16 %v2234
    %v2595 = vunpack.c.l.b16 %v2235
    %v2596 = vunpack.c.h.b16 %v2235
    %v2597 = vunpack.c.l.b16 %v2236
    %v2598 = vunpack.c.h.b16 %v2236
    %v2599 = vunpack.c.l.b16 %v2237
    %v2600 = vunpack.c.h.b16 %v2237
    %v2601 = vunpack.c.l.b16 %v2238
    %v2602 = vunpack.c.h.b16 %v2238
    %v2603 = vunpack.c.l.b16 %v2239
    %v2604 = vunpack.c.h.b16 %v2239
    %v2605 = vunpack.c.l.b16 %v2240
    %v2606 = vunpack.c.h.b16 %v2240
    %v2607 = vunpack.c.l.b16 %v2241
    %v2608 = vunpack.c.h.b16 %v2241
    %v2609 = vunpack.c.l.b16 %v2242
    %v2610 = vunpack.c.h.b16 %v2242
    %v2611 = vunpack.c.l.b16 %v2243
    %v2612 = vunpack.c.h.b16 %v2243
    %v2613 = vunpack.c.l.b16 %v2244
    %v2614 = vunpack.c.h.b16 %v2244
    %v2615 = vunpack.c.l.b16 %v2245
    %v2616 = vunpack.c.h.b16 %v2245
    %v2617 = vunpack.c.l.b16 %v2246
    %v2618 = vunpack.c.h.b16 %v2246
    %v2619 = vunpack.c.l.b16 %v2247
    %v2620 = vunpack.c.h.b16 %v2247
    %v2621 = vunpack.c.l.b16 %v2248
    %v2622 = vunpack.c.h.b16 %v2248
    %v2623 = vunpack.c.l.b16 %v2249
    %v2624 = vunpack.c.h.b16 %v2249
    %v2625 = vunpack.c.l.b16 %v2250
    %v2626 = vunpack.c.h.b16 %v2250
    %v2627 = vunpack.c.l.b16 %v2251
    %v2628 = vunpack.c.h.b16 %v2251
    %v2629 = vunpack.c.l.b16 %v2252
    %v2630 = vunpack.c.h.b16 %v2252
    %v2631 = vunpack.c.l.b16 %v2253
    %v2632 = vunpack.c.h.b16 %v2253
    %v2633 = vunpack.c.l.b16 %v2254
    %v2634 = vunpack.c.h.b16 %v2254
    %v2635 = vunpack.c.l.b16 %v2255
    %v2636 = vunpack.c.h.b16 %v2255
    %v2637 = vunpack.c.l.b16 %v2256
    %v2638 = vunpack.c.h.b16 %v2256
    %v2639 = vunpack.c.l.b16 %v2257
    %v2640 = vunpack.c.h.b16 %v2257
    %v2641 = vunpack.c.l.b16 %v2258
    %v2642 = vunpack.c.h.b16 %v2258
    %v2643 = vunpack.c.l.b16 %v2259
    %v2644 = vunpack.c.h.b16 %v2259
    %v2645 = vunpack.c.l.b16 %v2260
    %v2646 = vunpack.c.h.b16 %v2260
    %v2647 = vunpack.c.l.b16 %v2261
    %v2648 = vunpack.c.h.b16 %v2261
    %v2649 = vunpack.c.l.b16 %v2262
    %v2650 = vunpack.c.h.b16 %v2262
    %v2651 = vunpack.c.l.b16 %v2263
    %v2652 = vunpack.c.h.b16 %v2263
    %v2653 = vunpack.c.l.b16 %v2264
    %v2654 = vunpack.c.h.b16 %v2264
    %v2655 = vunpack.c.l.b16 %v2265
    %v2656 = vunpack.c.h.b16 %v2265
    %v2657 = vunpack.c.l.b16 %v2266
    %v2658 = vunpack.c.h.b16 %v2266
    %v2659 = vunpack.c.l.b16 %v2267
    %v2660 = vunpack.c.h.b16 %v2267
    %v2661 = vunpack.c.l.b16 %v2268
    %v2662 = vunpack.c.h.b16 %v2268
    %v2663 = vunpack.c.l.b16 %v2269
    %v2664 = vunpack.c.h.b16 %v2269
    %v2665 = vunpack.c.l.b16 %v2270
    %v2666 = vunpack.c.h.b16 %v2270
    %v2667 = vunpack.c.l.b16 %v2271
    %v2668 = vunpack.c.h.b16 %v2271
    %v2669 = vunpack.c.l.b16 %v2272
    %v2670 = vunpack.c.h.b16 %v2272
    %v2671 = vunpack.c.l.b16 %v2273
    %v2672 = vunpack.c.h.b16 %v2273
    %v2673 = vunpack.c.l.b16 %v2274
    %v2674 = vunpack.c.h.b16 %v2274
    %v2675 = vunpack.c.l.b16 %v2275
    %v2676 = vunpack.c.h.b16 %v2275
    %v2677 = vunpack.c.l.b16 %v2276
    %v2678 = vunpack.c.h.b16 %v2276
    %v2679 = vpack.c.b16 %v2459, %v2455
    %v2680 = vpack.c.b16 %v2460, %v2456
    %v2681 = vpack.c.b16 %v2461, %v2457
    %v2682 = vpack.c.b16 %v2462, %v2458
    %v2683 = vpack.c.b16 %v2467, %v2463
    %v2684 = vpack.c.b16 %v2468, %v2464
    %v2685 = vpack.c.b16 %v2469, %v2465
    %v2686 = vpack.c.b16 %v2470, %v2466
    %v2687 = vpack.c.b16 %v2475, %v2471
    %v2688 = vpack.c.b16 %v2476, %v2472
    %v2689 = vpack.c.b16 %v2477, %v2473
    %v2690 = vpack.c.b16 %v2478, %v2474
    %v2691 = vpack.c.b16 %v2483, %v2479
    %v2692 = vpack.c.b16 %v2484, %v2480
    %v2693 = vpack.c.b16 %v2485, %v2481
    %v2694 = vpack.c.b16 %v2486, %v2482
    %v2695 = vpack.c.b16 %v2491, %v2487
    %v2696 = vpack.c.b16 %v2492, %v2488
    %v2697 = vpack.c.b16 %v2493, %v2489
    %v2698 = vpack.c.b16 %v2494, %v2490
    %v2699 = vpack.c.b16 %v2499, %v2495
    %v2700 = vpack.c.b16 %v2500, %v2496
    %v2701 = vpack.c.b16 %v2501, %v2497
    %v2702 = vpack.c.b16 %v2502, %v2498
    %v2703 = vpack.c.b16 %v2507, %v2503
    %v2704 = vpack.c.b16 %v2508, %v2504
    %v2705 = vpack.c.b16 %v2509, %v2505
    %v2706 = vpack.c.b16 %v2510, %v2506
    %v2707 = vpack.c.b16 %v2515, %v2511
    %v2708 = vpack.c.b16 %v2516, %v2512
    %v2709 = vpack.c.b16 %v2517, %v2513
    %v2710 = vpack.c.b16 %v2518, %v2514
    %v2711 = vpack.c.b16 %v2523, %v2519
    %v2712 = vpack.c.b16 %v2524, %v2520
    %v2713 = vpack.c.b16 %v2525, %v2521
    %v2714 = vpack.c.b16 %v2526, %v2522
    %v2715 = vpack.c.b16 %v2531, %v2527
    %v2716 = vpack.c.b16 %v2532, %v2528
    %v2717 = vpack.c.b16 %v2533, %v2529
    %v2718 = vpack.c.b16 %v2534, %v2530
    %v2719 = vpack.c.b16 %v2539, %v2535
    %v2720 = vpack.c.b16 %v2540, %v2536
    %v2721 = vpack.c.b16 %v2541, %v2537
    %v2722 = vpack.c.b16 %v2542, %v2538
    %v2723 = vpack.c.b16 %v2547, %v2543
    %v2724 = vpack.c.b16 %v2548, %v2544
    %v2725 = vpack.c.b16 %v2549, %v2545
    %v2726 = vpack.c.b16 %v2550, %v2546
    %v2727 = vpack.c.b16 %v2555, %v2551
    %v2728 = vpack.c.b16 %v2556, %v2552
    %v2729 = vpack.c.b16 %v2557, %v2553
    %v2730 = vpack.c.b16 %v2558, %v2554
    %v2731 = vpack.c.b16 %v2563, %v2559
    %v2732 = vpack.c.b16 %v2564, %v2560
    %v2733 = vpack.c.b16 %v2565, %v2561
    %v2734 = vpack.c.b16 %v2566, %v2562
    %v2735 = vpack.c.b16 %v2571, %v2567
    %v2736 = vpack.c.b16 %v2572, %v2568
    %v2737 = vpack.c.b16 %v2573, %v2569
    %v2738 = vpack.c.b16 %v2574, %v2570
    %v2739 = vpack.c.b16 %v2579, %v2575
    %v2740 = vpack.c.b16 %v2580, %v2576
    %v2741 = vpack.c.b16 %v2581, %v2577
    %v2742 = vpack.c.b16 %v2582, %v2578
    %v2743 = vpack.c.b16 %v2587, %v2583
    %v2744 = vpack.c.b16 %v2588, %v2584
    %v2745 = vpack.c.b16 %v2589, %v2585
    %v2746 = vpack.c.b16 %v2590, %v2586
    %v2747 = vpack.c.b16 %v2595, %v2591
    %v2748 = vpack.c.b16 %v2596, %v2592
    %v2749 = vpack.c.b16 %v2597, %v2593
    %v2750 = vpack.c.b16 %v2598, %v2594
    %v2751 = vpack.c.b16 %v2603, %v2599
    %v2752 = vpack.c.b16 %v2604, %v2600
    %v2753 = vpack.c.b16 %v2605, %v2601
    %v2754 = vpack.c.b16 %v2606, %v2602
    %v2755 = vpack.c.b16 %v2611, %v2607
    %v2756 = vpack.c.b16 %v2612, %v2608
    %v2757 = vpack.c.b16 %v2613, %v2609
    %v2758 = vpack.c.b16 %v2614, %v2610
    %v2759 = vpack.c.b16 %v2619, %v2615
    %v2760 = vpack.c.b16 %v2620, %v2616
    %v2761 = vpack.c.b16 %v2621, %v2617
    %v2762 = vpack.c.b16 %v2622, %v2618
    %v2763 = vpack.c.b16 %v2627, %v2623
    %v2764 = vpack.c.b16 %v2628, %v2624
    %v2765 = vpack.c.b16 %v2629, %v2625
    %v2766 = vpack.c.b16 %v2630, %v2626
    %v2767 = vpack.c.b16 %v2635, %v2631
    %v2768 = vpack.c.b16 %v2636, %v2632
    %v2769 = vpack.c.b16 %v2637, %v2633
    %v2770 = vpack.c.b16 %v2638, %v2634
    %v2771 = vpack.c.b16 %v2643, %v2639
    %v2772 = vpack.c.b16 %v2644, %v2640
    %v2773 = vpack.c.b16 %v2645, %v2641
    %v2774 = vpack.c.b16 %v2646, %v2642
    %v2775 = vpack.c.b16 %v2651, %v2647
    %v2776 = vpack.c.b16 %v2652, %v2648
    %v2777 = vpack.c.b16 %v2653, %v2649
    %v2778 = vpack.c.b16 %v2654, %v2650
    %v2779 = vpack.c.b16 %v2659, %v2655
    %v2780 = vpack.c.b16 %v2660, %v2656
    %v2781 = vpack.c.b16 %v2661, %v2657
    %v2782 = vpack.c.b16 %v2662, %v2658
    %v2783 = vpack.c.b16 %v2667, %v2663
    %v2784 = vpack.c.b16 %v2668, %v2664
    %v2785 = vpack.c.b16 %v2669, %v2665
    %v2786 = vpack.c.b16 %v2670, %v2666
    %v2787 = vpack.c.b16 %v2675, %v2671
    %v2788 = vpack.c.b16 %v2676, %v2672
    %v2789 = vpack.c.b16 %v2677, %v2673
    %v2790 = vpack.c.b16 %v2678, %v2674
    %v2904 = vsel %vm2034, %v2324, 0
    %v2907 = vsel %vm2034, %v2336, 0
    %2909 = vmatprep.subr.bf16.mxu0 %v2680
    %2910 = vmatpush1.bf16.msra.mxu0 %v2679
    %2911 = vmatprep.subr.bf16.mxu0 %v2684
    %2912 = vmatpush1.bf16.msra.mxu0 %v2683
    %2913 = vmatprep.subr.bf16.mxu0 %v2688
    %2914 = vmatpush1.bf16.msra.mxu0 %v2687
    %2915 = vmatprep.subr.bf16.mxu0 %v2692
    %2916 = vmatpush1.bf16.msra.mxu0 %v2691
    %2917 = vmatprep.subr.bf16.mxu0 %v2696
    %2918 = vmatpush1.bf16.msra.mxu0 %v2695
    %2919 = vmatprep.subr.bf16.mxu0 %v2700
    %2920 = vmatpush1.bf16.msra.mxu0 %v2699
    %2921 = vmatprep.subr.bf16.mxu0 %v2704
    %2922 = vmatpush1.bf16.msra.mxu0 %v2703
    %2923 = vmatprep.subr.bf16.mxu0 %v2708
    %2924 = vmatpush1.bf16.msra.mxu0 %v2707
    %2925 = vmatprep.subr.bf16.mxu0 %v2712
    %2926 = vmatpush1.bf16.msra.mxu0 %v2711
    %2927 = vmatprep.subr.bf16.mxu0 %v2716
    %2928 = vmatpush1.bf16.msra.mxu0 %v2715
    %2929 = vmatprep.subr.bf16.mxu0 %v2720
    %2930 = vmatpush1.bf16.msra.mxu0 %v2719
    %2931 = vmatprep.subr.bf16.mxu0 %v2724
    %2932 = vmatpush1.bf16.msra.mxu0 %v2723
    %2933 = vmatprep.subr.bf16.mxu0 %v2728
    %2934 = vmatpush1.bf16.msra.mxu0 %v2727
    %2935 = vmatprep.subr.bf16.mxu0 %v2732
    %2936 = vmatpush1.bf16.msra.mxu0 %v2731
    %2937 = vmatprep.subr.bf16.mxu0 %v2736
    %2938 = vmatpush1.bf16.msra.mxu0 %v2735
    %2939 = vmatprep.subr.bf16.mxu0 %v2740
    %2940 = vmatpush1.bf16.msra.mxu0 %v2739
    %2941 = vmatprep.mubr.bf16.mxu0 %v2300
    %2942 = vmatmul.mubr.bf16.gmra.mrb[0].mxu0 %v2288
    %v2943 = vpop.f32.mrb[0].mxu0
    %v2944 = vadd.f32 0.0, %v2943
    %v2945 = vpop.f32.mrb[0].mxu0
    %v2946 = vadd.f32 0.0, %v2945
    %v2947 = vpop.f32.mrb[0].mxu0
    %v2948 = vadd.f32 0.0, %v2947
    %v2949 = vpop.f32.mrb[0].mxu0
    %v2950 = vadd.f32 0.0, %v2949
    %2951 = vmatprep.mubr.bf16.mxu0 %v2330
    %2952 = vmatmul.mubr.bf16.gmra.mrb[0].mxu0 %v2327
    %v2953 = vpop.f32.mrb[0].mxu0
    %v2954 = vadd.f32 0.0, %v2953
    %v2955 = vpop.f32.mrb[0].mxu0
    %v2956 = vadd.f32 0.0, %v2955
    %v2957 = vpop.f32.mrb[0].mxu0
    %v2958 = vadd.f32 0.0, %v2957
    %v2959 = vpop.f32.mrb[0].mxu0
    %v2960 = vadd.f32 0.0, %v2959
    %2961 = vdwg.mxu0
    %2962 = vmatprep.subr.bf16.mxu0 %v2744
    %2963 = vmatpush1.bf16.msra.mxu0 %v2743
    %2964 = vmatprep.subr.bf16.mxu0 %v2748
    %2965 = vmatpush1.bf16.msra.mxu0 %v2747
    %2966 = vmatprep.subr.bf16.mxu0 %v2752
    %2967 = vmatpush1.bf16.msra.mxu0 %v2751
    %2968 = vmatprep.subr.bf16.mxu0 %v2756
    %2969 = vmatpush1.bf16.msra.mxu0 %v2755
    %2970 = vmatprep.subr.bf16.mxu0 %v2760
    %2971 = vmatpush1.bf16.msra.mxu0 %v2759
    %2972 = vmatprep.subr.bf16.mxu0 %v2764
    %2973 = vmatpush1.bf16.msra.mxu0 %v2763
    %2974 = vmatprep.subr.bf16.mxu0 %v2768
    %2975 = vmatpush1.bf16.msra.mxu0 %v2767
    %2976 = vmatprep.subr.bf16.mxu0 %v2772
    %2977 = vmatpush1.bf16.msra.mxu0 %v2771
    %2978 = vmatprep.subr.bf16.mxu0 %v2776
    %2979 = vmatpush1.bf16.msra.mxu0 %v2775
    %2980 = vmatprep.subr.bf16.mxu0 %v2780
    %2981 = vmatpush1.bf16.msra.mxu0 %v2779
    %2982 = vmatprep.subr.bf16.mxu0 %v2784
    %2983 = vmatpush1.bf16.msra.mxu0 %v2783
    %2984 = vmatprep.subr.bf16.mxu0 %v2788
    %2985 = vmatpush1.bf16.msra.mxu0 %v2787
    %2986 = vmatprep.subr.bf16.mxu0 0
    %2987 = vmatpush1.bf16.msra.mxu0 0
    %2988 = vmatprep.subr.bf16.mxu0 0
    %2989 = vmatpush1.bf16.msra.mxu0 0
    %2990 = vmatprep.subr.bf16.mxu0 0
    %2991 = vmatpush1.bf16.msra.mxu0 0
    %2992 = vmatprep.subr.bf16.mxu0 0
    %2993 = vmatpush1.bf16.msra.mxu0 0
    %2994 = vmatprep.mubr.bf16.mxu0 %v2904
    %2995 = vmatmul.mubr.bf16.gmra.mrb[0].mxu0 %v2312
    %v2996 = vpop.f32.mrb[0].mxu0
    %v2997 = vadd.f32 %v2944, %v2996
    %v2998 = vpop.f32.mrb[0].mxu0
    %v2999 = vadd.f32 %v2946, %v2998
    %v3000 = vpop.f32.mrb[0].mxu0
    %v3001 = vadd.f32 %v2948, %v3000
    %v3002 = vpop.f32.mrb[0].mxu0
    %v3003 = vadd.f32 %v2950, %v3002
    %3004 = vmatprep.mubr.bf16.mxu0 %v2907
    %3005 = vmatmul.mubr.bf16.gmra.mrb[0].mxu0 %v2333
    %v3006 = vpop.f32.mrb[0].mxu0
    %v3007 = vadd.f32 %v2954, %v3006
    %v3008 = vpop.f32.mrb[0].mxu0
    %v3009 = vadd.f32 %v2956, %v3008
    %v3010 = vpop.f32.mrb[0].mxu0
    %v3011 = vadd.f32 %v2958, %v3010
    %v3012 = vpop.f32.mrb[0].mxu0
    %v3013 = vadd.f32 %v2960, %v3012
    %3014 = vdwg.mxu0
    %3015 = vmatprep.subr.bf16.mxu0 %v2682
    %3016 = vmatpush1.bf16.msra.mxu0 %v2681
    %3017 = vmatprep.subr.bf16.mxu0 %v2686
    %3018 = vmatpush1.bf16.msra.mxu0 %v2685
    %3019 = vmatprep.subr.bf16.mxu0 %v2690
    %3020 = vmatpush1.bf16.msra.mxu0 %v2689
    %3021 = vmatprep.subr.bf16.mxu0 %v2694
    %3022 = vmatpush1.bf16.msra.mxu0 %v2693
    %3023 = vmatprep.subr.bf16.mxu0 %v2698
    %3024 = vmatpush1.bf16.msra.mxu0 %v2697
    %3025 = vmatprep.subr.bf16.mxu0 %v2702
    %3026 = vmatpush1.bf16.msra.mxu0 %v2701
    %3027 = vmatprep.subr.bf16.mxu0 %v2706
    %3028 = vmatpush1.bf16.msra.mxu0 %v2705
    %3029 = vmatprep.subr.bf16.mxu0 %v2710
    %3030 = vmatpush1.bf16.msra.mxu0 %v2709
    %3031 = vmatprep.subr.bf16.mxu0 %v2714
    %3032 = vmatpush1.bf16.msra.mxu0 %v2713
    %3033 = vmatprep.subr.bf16.mxu0 %v2718
    %3034 = vmatpush1.bf16.msra.mxu0 %v2717
    %3035 = vmatprep.subr.bf16.mxu0 %v2722
    %3036 = vmatpush1.bf16.msra.mxu0 %v2721
    %3037 = vmatprep.subr.bf16.mxu0 %v2726
    %3038 = vmatpush1.bf16.msra.mxu0 %v2725
    %3039 = vmatprep.subr.bf16.mxu0 %v2730
    %3040 = vmatpush1.bf16.msra.mxu0 %v2729
    %3041 = vmatprep.subr.bf16.mxu0 %v2734
    %3042 = vmatpush1.bf16.msra.mxu0 %v2733
    %3043 = vmatprep.subr.bf16.mxu0 %v2738
    %3044 = vmatpush1.bf16.msra.mxu0 %v2737
    %3045 = vmatprep.subr.bf16.mxu0 %v2742
    %3046 = vmatpush1.bf16.msra.mxu0 %v2741
    %3047 = vmatprep.mubr.bf16.mxu0 %v2300
    %3048 = vmatmul.mubr.bf16.gmra.mrb[0].mxu0 %v2288
    %v3049 = vpop.f32.mrb[0].mxu0
    %v3050 = vadd.f32 0.0, %v3049
    %v3051 = vpop.f32.mrb[0].mxu0
    %v3052 = vadd.f32 0.0, %v3051
    %v3053 = vpop.f32.mrb[0].mxu0
    %v3054 = vadd.f32 0.0, %v3053
    %v3055 = vpop.f32.mrb[0].mxu0
    %v3056 = vadd.f32 0.0, %v3055
    %3057 = vmatprep.mubr.bf16.mxu0 %v2330
    %3058 = vmatmul.mubr.bf16.gmra.mrb[0].mxu0 %v2327
    %v3059 = vpop.f32.mrb[0].mxu0
    %v3060 = vadd.f32 0.0, %v3059
    %v3061 = vpop.f32.mrb[0].mxu0
    %v3062 = vadd.f32 0.0, %v3061
    %v3063 = vpop.f32.mrb[0].mxu0
    %v3064 = vadd.f32 0.0, %v3063
    %v3065 = vpop.f32.mrb[0].mxu0
    %v3066 = vadd.f32 0.0, %v3065
    %3067 = vdwg.mxu0
    %3068 = vmatprep.subr.bf16.mxu0 %v2746
    %3069 = vmatpush1.bf16.msra.mxu0 %v2745
    %3070 = vmatprep.subr.bf16.mxu0 %v2750
    %3071 = vmatpush1.bf16.msra.mxu0 %v2749
    %3072 = vmatprep.subr.bf16.mxu0 %v2754
    %3073 = vmatpush1.bf16.msra.mxu0 %v2753
    %3074 = vmatprep.subr.bf16.mxu0 %v2758
    %3075 = vmatpush1.bf16.msra.mxu0 %v2757
    %3076 = vmatprep.subr.bf16.mxu0 %v2762
    %3077 = vmatpush1.bf16.msra.mxu0 %v2761
    %3078 = vmatprep.subr.bf16.mxu0 %v2766
    %3079 = vmatpush1.bf16.msra.mxu0 %v2765
    %3080 = vmatprep.subr.bf16.mxu0 %v2770
    %3081 = vmatpush1.bf16.msra.mxu0 %v2769
    %3082 = vmatprep.subr.bf16.mxu0 %v2774
    %3083 = vmatpush1.bf16.msra.mxu0 %v2773
    %3084 = vmatprep.subr.bf16.mxu0 %v2778
    %3085 = vmatpush1.bf16.msra.mxu0 %v2777
    %3086 = vmatprep.subr.bf16.mxu0 %v2782
    %3087 = vmatpush1.bf16.msra.mxu0 %v2781
    %3088 = vmatprep.subr.bf16.mxu0 %v2786
    %3089 = vmatpush1.bf16.msra.mxu0 %v2785
    %3090 = vmatprep.subr.bf16.mxu0 %v2790
    %3091 = vmatpush1.bf16.msra.mxu0 %v2789
    %3092 = vmatprep.subr.bf16.mxu0 0
    %3093 = vmatpush1.bf16.msra.mxu0 0
    %3094 = vmatprep.subr.bf16.mxu0 0
    %3095 = vmatpush1.bf16.msra.mxu0 0
    %3096 = vmatprep.subr.bf16.mxu0 0
    %3097 = vmatpush1.bf16.msra.mxu0 0
    %3098 = vmatprep.subr.bf16.mxu0 0
    %3099 = vmatpush1.bf16.msra.mxu0 0
    %3100 = vmatprep.mubr.bf16.mxu0 %v2904
    %3101 = vmatmul.mubr.bf16.gmra.mrb[0].mxu0 %v2312
    %v3102 = vpop.f32.mrb[0].mxu0
    %v3103 = vadd.f32 %v3050, %v3102
    %v3104 = vpop.f32.mrb[0].mxu0
    %v3105 = vadd.f32 %v3052, %v3104
    %v3106 = vpop.f32.mrb[0].mxu0
    %v3107 = vadd.f32 %v3054, %v3106
    %v3108 = vpop.f32.mrb[0].mxu0
    %v3109 = vadd.f32 %v3056, %v3108
    %3110 = vmatprep.mubr.bf16.mxu0 %v2907
    %3111 = vmatmul.mubr.bf16.gmra.mrb[0].mxu0 %v2333
    %v3112 = vpop.f32.mrb[0].mxu0
    %v3113 = vadd.f32 %v3060, %v3112
    %v3114 = vpop.f32.mrb[0].mxu0
    %v3115 = vadd.f32 %v3062, %v3114
    %v3116 = vpop.f32.mrb[0].mxu0
    %v3117 = vadd.f32 %v3064, %v3116
    %v3118 = vpop.f32.mrb[0].mxu0
    %v3119 = vadd.f32 %v3066, %v3118
    %3120 = vdwg.mxu0
    %v3233 = vunpack.c.l.b16 %v2048
    %v3234 = vunpack.c.h.b16 %v2048
    %v3235 = vunpack.c.l.b16 %v2049
    %v3236 = vunpack.c.h.b16 %v2049
    %v3237 = vunpack.c.l.b16 %v2050
    %v3238 = vunpack.c.h.b16 %v2050
    %v3239 = vunpack.c.l.b16 %v2051
    %v3240 = vunpack.c.h.b16 %v2051
    %v3241 = vunpack.c.l.b16 %v2052
    %v3242 = vunpack.c.h.b16 %v2052
    %v3243 = vunpack.c.l.b16 %v2053
    %v3244 = vunpack.c.h.b16 %v2053
    %v3245 = vunpack.c.l.b16 %v2054
    %v3246 = vunpack.c.h.b16 %v2054
    %v3247 = vunpack.c.l.b16 %v2055
    %v3248 = vunpack.c.h.b16 %v2055
    %v3249 = vunpack.c.l.b16 %v2056
    %v3250 = vunpack.c.h.b16 %v2056
    %v3251 = vunpack.c.l.b16 %v2057
    %v3252 = vunpack.c.h.b16 %v2057
    %v3253 = vunpack.c.l.b16 %v2058
    %v3254 = vunpack.c.h.b16 %v2058
    %v3255 = vunpack.c.l.b16 %v2059
    %v3256 = vunpack.c.h.b16 %v2059
    %v3257 = vunpack.c.l.b16 %v2060
    %v3258 = vunpack.c.h.b16 %v2060
    %v3259 = vunpack.c.l.b16 %v2061
    %v3260 = vunpack.c.h.b16 %v2061
    %v3261 = vunpack.c.l.b16 %v2062
    %v3262 = vunpack.c.h.b16 %v2062
    %v3263 = vunpack.c.l.b16 %v2063
    %v3264 = vunpack.c.h.b16 %v2063
    %v3265 = vunpack.c.l.b16 %v2064
    %v3266 = vunpack.c.h.b16 %v2064
    %v3267 = vunpack.c.l.b16 %v2065
    %v3268 = vunpack.c.h.b16 %v2065
    %v3269 = vunpack.c.l.b16 %v2066
    %v3270 = vunpack.c.h.b16 %v2066
    %v3271 = vunpack.c.l.b16 %v2067
    %v3272 = vunpack.c.h.b16 %v2067
    %v3273 = vunpack.c.l.b16 %v2068
    %v3274 = vunpack.c.h.b16 %v2068
    %v3275 = vunpack.c.l.b16 %v2069
    %v3276 = vunpack.c.h.b16 %v2069
    %v3277 = vunpack.c.l.b16 %v2070
    %v3278 = vunpack.c.h.b16 %v2070
    %v3279 = vunpack.c.l.b16 %v2071
    %v3280 = vunpack.c.h.b16 %v2071
    %v3281 = vunpack.c.l.b16 %v2072
    %v3282 = vunpack.c.h.b16 %v2072
    %v3283 = vunpack.c.l.b16 %v2073
    %v3284 = vunpack.c.h.b16 %v2073
    %v3285 = vunpack.c.l.b16 %v2074
    %v3286 = vunpack.c.h.b16 %v2074
    %v3287 = vunpack.c.l.b16 %v2075
    %v3288 = vunpack.c.h.b16 %v2075
    %v3289 = vunpack.c.l.b16 %v2076
    %v3290 = vunpack.c.h.b16 %v2076
    %v3291 = vunpack.c.l.b16 %v2077
    %v3292 = vunpack.c.h.b16 %v2077
    %v3293 = vunpack.c.l.b16 %v2078
    %v3294 = vunpack.c.h.b16 %v2078
    %v3295 = vunpack.c.l.b16 %v2079
    %v3296 = vunpack.c.h.b16 %v2079
    %v3297 = vunpack.c.l.b16 %v2080
    %v3298 = vunpack.c.h.b16 %v2080
    %v3299 = vunpack.c.l.b16 %v2081
    %v3300 = vunpack.c.h.b16 %v2081
    %v3301 = vunpack.c.l.b16 %v2082
    %v3302 = vunpack.c.h.b16 %v2082
    %v3303 = vunpack.c.l.b16 %v2083
    %v3304 = vunpack.c.h.b16 %v2083
    %v3305 = vunpack.c.l.b16 %v2084
    %v3306 = vunpack.c.h.b16 %v2084
    %v3307 = vunpack.c.l.b16 %v2085
    %v3308 = vunpack.c.h.b16 %v2085
    %v3309 = vunpack.c.l.b16 %v2086
    %v3310 = vunpack.c.h.b16 %v2086
    %v3311 = vunpack.c.l.b16 %v2087
    %v3312 = vunpack.c.h.b16 %v2087
    %v3313 = vunpack.c.l.b16 %v2088
    %v3314 = vunpack.c.h.b16 %v2088
    %v3315 = vunpack.c.l.b16 %v2089
    %v3316 = vunpack.c.h.b16 %v2089
    %v3317 = vunpack.c.l.b16 %v2090
    %v3318 = vunpack.c.h.b16 %v2090
    %v3319 = vunpack.c.l.b16 %v2091
    %v3320 = vunpack.c.h.b16 %v2091
    %v3321 = vunpack.c.l.b16 %v2092
    %v3322 = vunpack.c.h.b16 %v2092
    %v3323 = vunpack.c.l.b16 %v2093
    %v3324 = vunpack.c.h.b16 %v2093
    %v3325 = vunpack.c.l.b16 %v2094
    %v3326 = vunpack.c.h.b16 %v2094
    %v3327 = vunpack.c.l.b16 %v2095
    %v3328 = vunpack.c.h.b16 %v2095
    %v3329 = vunpack.c.l.b16 %v2096
    %v3330 = vunpack.c.h.b16 %v2096
    %v3331 = vunpack.c.l.b16 %v2097
    %v3332 = vunpack.c.h.b16 %v2097
    %v3333 = vunpack.c.l.b16 %v2098
    %v3334 = vunpack.c.h.b16 %v2098
    %v3335 = vunpack.c.l.b16 %v2099
    %v3336 = vunpack.c.h.b16 %v2099
    %v3337 = vunpack.c.l.b16 %v2100
    %v3338 = vunpack.c.h.b16 %v2100
    %v3339 = vunpack.c.l.b16 %v2101
    %v3340 = vunpack.c.h.b16 %v2101
    %v3341 = vunpack.c.l.b16 %v2102
    %v3342 = vunpack.c.h.b16 %v2102
    %v3343 = vunpack.c.l.b16 %v2103
    %v3344 = vunpack.c.h.b16 %v2103
    %v3345 = vunpack.c.l.b16 %v2104
    %v3346 = vunpack.c.h.b16 %v2104
    %v3347 = vunpack.c.l.b16 %v2105
    %v3348 = vunpack.c.h.b16 %v2105
    %v3349 = vunpack.c.l.b16 %v2106
    %v3350 = vunpack.c.h.b16 %v2106
    %v3351 = vunpack.c.l.b16 %v2107
    %v3352 = vunpack.c.h.b16 %v2107
    %v3353 = vunpack.c.l.b16 %v2108
    %v3354 = vunpack.c.h.b16 %v2108
    %v3355 = vunpack.c.l.b16 %v2109
    %v3356 = vunpack.c.h.b16 %v2109
    %v3357 = vunpack.c.l.b16 %v2110
    %v3358 = vunpack.c.h.b16 %v2110
    %v3359 = vunpack.c.l.b16 %v2111
    %v3360 = vunpack.c.h.b16 %v2111
    %v3361 = vunpack.c.l.b16 %v2112
    %v3362 = vunpack.c.h.b16 %v2112
    %v3363 = vunpack.c.l.b16 %v2113
    %v3364 = vunpack.c.h.b16 %v2113
    %v3365 = vunpack.c.l.b16 %v2114
    %v3366 = vunpack.c.h.b16 %v2114
    %v3367 = vunpack.c.l.b16 %v2115
    %v3368 = vunpack.c.h.b16 %v2115
    %v3369 = vunpack.c.l.b16 %v2116
    %v3370 = vunpack.c.h.b16 %v2116
    %v3371 = vunpack.c.l.b16 %v2117
    %v3372 = vunpack.c.h.b16 %v2117
    %v3373 = vunpack.c.l.b16 %v2118
    %v3374 = vunpack.c.h.b16 %v2118
    %v3375 = vunpack.c.l.b16 %v2119
    %v3376 = vunpack.c.h.b16 %v2119
    %v3377 = vunpack.c.l.b16 %v2120
    %v3378 = vunpack.c.h.b16 %v2120
    %v3379 = vunpack.c.l.b16 %v2121
    %v3380 = vunpack.c.h.b16 %v2121
    %v3381 = vunpack.c.l.b16 %v2122
    %v3382 = vunpack.c.h.b16 %v2122
    %v3383 = vunpack.c.l.b16 %v2123
    %v3384 = vunpack.c.h.b16 %v2123
    %v3385 = vunpack.c.l.b16 %v2124
    %v3386 = vunpack.c.h.b16 %v2124
    %v3387 = vunpack.c.l.b16 %v2125
    %v3388 = vunpack.c.h.b16 %v2125
    %v3389 = vunpack.c.l.b16 %v2126
    %v3390 = vunpack.c.h.b16 %v2126
    %v3391 = vunpack.c.l.b16 %v2127
    %v3392 = vunpack.c.h.b16 %v2127
    %v3393 = vunpack.c.l.b16 %v2128
    %v3394 = vunpack.c.h.b16 %v2128
    %v3395 = vunpack.c.l.b16 %v2129
    %v3396 = vunpack.c.h.b16 %v2129
    %v3397 = vunpack.c.l.b16 %v2130
    %v3398 = vunpack.c.h.b16 %v2130
    %v3399 = vunpack.c.l.b16 %v2131
    %v3400 = vunpack.c.h.b16 %v2131
    %v3401 = vunpack.c.l.b16 %v2132
    %v3402 = vunpack.c.h.b16 %v2132
    %v3403 = vunpack.c.l.b16 %v2133
    %v3404 = vunpack.c.h.b16 %v2133
    %v3405 = vunpack.c.l.b16 %v2134
    %v3406 = vunpack.c.h.b16 %v2134
    %v3407 = vunpack.c.l.b16 %v2135
    %v3408 = vunpack.c.h.b16 %v2135
    %v3409 = vunpack.c.l.b16 %v2136
    %v3410 = vunpack.c.h.b16 %v2136
    %v3411 = vunpack.c.l.b16 %v2137
    %v3412 = vunpack.c.h.b16 %v2137
    %v3413 = vunpack.c.l.b16 %v2138
    %v3414 = vunpack.c.h.b16 %v2138
    %v3415 = vunpack.c.l.b16 %v2139
    %v3416 = vunpack.c.h.b16 %v2139
    %v3417 = vunpack.c.l.b16 %v2140
    %v3418 = vunpack.c.h.b16 %v2140
    %v3419 = vunpack.c.l.b16 %v2141
    %v3420 = vunpack.c.h.b16 %v2141
    %v3421 = vunpack.c.l.b16 %v2142
    %v3422 = vunpack.c.h.b16 %v2142
    %v3423 = vunpack.c.l.b16 %v2143
    %v3424 = vunpack.c.h.b16 %v2143
    %v3425 = vunpack.c.l.b16 %v2144
    %v3426 = vunpack.c.h.b16 %v2144
    %v3427 = vunpack.c.l.b16 %v2145
    %v3428 = vunpack.c.h.b16 %v2145
    %v3429 = vunpack.c.l.b16 %v2146
    %v3430 = vunpack.c.h.b16 %v2146
    %v3431 = vunpack.c.l.b16 %v2147
    %v3432 = vunpack.c.h.b16 %v2147
    %v3433 = vunpack.c.l.b16 %v2148
    %v3434 = vunpack.c.h.b16 %v2148
    %v3435 = vunpack.c.l.b16 %v2149
    %v3436 = vunpack.c.h.b16 %v2149
    %v3437 = vunpack.c.l.b16 %v2150
    %v3438 = vunpack.c.h.b16 %v2150
    %v3439 = vunpack.c.l.b16 %v2151
    %v3440 = vunpack.c.h.b16 %v2151
    %v3441 = vunpack.c.l.b16 %v2152
    %v3442 = vunpack.c.h.b16 %v2152
    %v3443 = vunpack.c.l.b16 %v2153
    %v3444 = vunpack.c.h.b16 %v2153
    %v3445 = vunpack.c.l.b16 %v2154
    %v3446 = vunpack.c.h.b16 %v2154
    %v3447 = vunpack.c.l.b16 %v2155
    %v3448 = vunpack.c.h.b16 %v2155
    %v3449 = vunpack.c.l.b16 %v2156
    %v3450 = vunpack.c.h.b16 %v2156
    %v3451 = vunpack.c.l.b16 %v2157
    %v3452 = vunpack.c.h.b16 %v2157
    %v3453 = vunpack.c.l.b16 %v2158
    %v3454 = vunpack.c.h.b16 %v2158
    %v3455 = vunpack.c.l.b16 %v2159
    %v3456 = vunpack.c.h.b16 %v2159
    %v3457 = vpack.c.b16 %v3237, %v3233
    %v3458 = vpack.c.b16 %v3238, %v3234
    %v3459 = vpack.c.b16 %v3239, %v3235
    %v3460 = vpack.c.b16 %v3240, %v3236
    %v3461 = vpack.c.b16 %v3245, %v3241
    %v3462 = vpack.c.b16 %v3246, %v3242
    %v3463 = vpack.c.b16 %v3247, %v3243
    %v3464 = vpack.c.b16 %v3248, %v3244
    %v3465 = vpack.c.b16 %v3253, %v3249
    %v3466 = vpack.c.b16 %v3254, %v3250
    %v3467 = vpack.c.b16 %v3255, %v3251
    %v3468 = vpack.c.b16 %v3256, %v3252
    %v3469 = vpack.c.b16 %v3261, %v3257
    %v3470 = vpack.c.b16 %v3262, %v3258
    %v3471 = vpack.c.b16 %v3263, %v3259
    %v3472 = vpack.c.b16 %v3264, %v3260
    %v3473 = vpack.c.b16 %v3269, %v3265
    %v3474 = vpack.c.b16 %v3270, %v3266
    %v3475 = vpack.c.b16 %v3271, %v3267
    %v3476 = vpack.c.b16 %v3272, %v3268
    %v3477 = vpack.c.b16 %v3277, %v3273
    %v3478 = vpack.c.b16 %v3278, %v3274
    %v3479 = vpack.c.b16 %v3279, %v3275
    %v3480 = vpack.c.b16 %v3280, %v3276
    %v3481 = vpack.c.b16 %v3285, %v3281
    %v3482 = vpack.c.b16 %v3286, %v3282
    %v3483 = vpack.c.b16 %v3287, %v3283
    %v3484 = vpack.c.b16 %v3288, %v3284
    %v3485 = vpack.c.b16 %v3293, %v3289
    %v3486 = vpack.c.b16 %v3294, %v3290
    %v3487 = vpack.c.b16 %v3295, %v3291
    %v3488 = vpack.c.b16 %v3296, %v3292
    %v3489 = vpack.c.b16 %v3301, %v3297
    %v3490 = vpack.c.b16 %v3302, %v3298
    %v3491 = vpack.c.b16 %v3303, %v3299
    %v3492 = vpack.c.b16 %v3304, %v3300
    %v3493 = vpack.c.b16 %v3309, %v3305
    %v3494 = vpack.c.b16 %v3310, %v3306
    %v3495 = vpack.c.b16 %v3311, %v3307
    %v3496 = vpack.c.b16 %v3312, %v3308
    %v3497 = vpack.c.b16 %v3317, %v3313
    %v3498 = vpack.c.b16 %v3318, %v3314
    %v3499 = vpack.c.b16 %v3319, %v3315
    %v3500 = vpack.c.b16 %v3320, %v3316
    %v3501 = vpack.c.b16 %v3325, %v3321
    %v3502 = vpack.c.b16 %v3326, %v3322
    %v3503 = vpack.c.b16 %v3327, %v3323
    %v3504 = vpack.c.b16 %v3328, %v3324
    %v3505 = vpack.c.b16 %v3333, %v3329
    %v3506 = vpack.c.b16 %v3334, %v3330
    %v3507 = vpack.c.b16 %v3335, %v3331
    %v3508 = vpack.c.b16 %v3336, %v3332
    %v3509 = vpack.c.b16 %v3341, %v3337
    %v3510 = vpack.c.b16 %v3342, %v3338
    %v3511 = vpack.c.b16 %v3343, %v3339
    %v3512 = vpack.c.b16 %v3344, %v3340
    %v3513 = vpack.c.b16 %v3349, %v3345
    %v3514 = vpack.c.b16 %v3350, %v3346
    %v3515 = vpack.c.b16 %v3351, %v3347
    %v3516 = vpack.c.b16 %v3352, %v3348
    %v3517 = vpack.c.b16 %v3357, %v3353
    %v3518 = vpack.c.b16 %v3358, %v3354
    %v3519 = vpack.c.b16 %v3359, %v3355
    %v3520 = vpack.c.b16 %v3360, %v3356
    %v3521 = vpack.c.b16 %v3365, %v3361
    %v3522 = vpack.c.b16 %v3366, %v3362
    %v3523 = vpack.c.b16 %v3367, %v3363
    %v3524 = vpack.c.b16 %v3368, %v3364
    %v3525 = vpack.c.b16 %v3373, %v3369
    %v3526 = vpack.c.b16 %v3374, %v3370
    %v3527 = vpack.c.b16 %v3375, %v3371
    %v3528 = vpack.c.b16 %v3376, %v3372
    %v3529 = vpack.c.b16 %v3381, %v3377
    %v3530 = vpack.c.b16 %v3382, %v3378
    %v3531 = vpack.c.b16 %v3383, %v3379
    %v3532 = vpack.c.b16 %v3384, %v3380
    %v3533 = vpack.c.b16 %v3389, %v3385
    %v3534 = vpack.c.b16 %v3390, %v3386
    %v3535 = vpack.c.b16 %v3391, %v3387
    %v3536 = vpack.c.b16 %v3392, %v3388
    %v3537 = vpack.c.b16 %v3397, %v3393
    %v3538 = vpack.c.b16 %v3398, %v3394
    %v3539 = vpack.c.b16 %v3399, %v3395
    %v3540 = vpack.c.b16 %v3400, %v3396
    %v3541 = vpack.c.b16 %v3405, %v3401
    %v3542 = vpack.c.b16 %v3406, %v3402
    %v3543 = vpack.c.b16 %v3407, %v3403
    %v3544 = vpack.c.b16 %v3408, %v3404
    %v3545 = vpack.c.b16 %v3413, %v3409
    %v3546 = vpack.c.b16 %v3414, %v3410
    %v3547 = vpack.c.b16 %v3415, %v3411
    %v3548 = vpack.c.b16 %v3416, %v3412
    %v3549 = vpack.c.b16 %v3421, %v3417
    %v3550 = vpack.c.b16 %v3422, %v3418
    %v3551 = vpack.c.b16 %v3423, %v3419
    %v3552 = vpack.c.b16 %v3424, %v3420
    %v3553 = vpack.c.b16 %v3429, %v3425
    %v3554 = vpack.c.b16 %v3430, %v3426
    %v3555 = vpack.c.b16 %v3431, %v3427
    %v3556 = vpack.c.b16 %v3432, %v3428
    %v3557 = vpack.c.b16 %v3437, %v3433
    %v3558 = vpack.c.b16 %v3438, %v3434
    %v3559 = vpack.c.b16 %v3439, %v3435
    %v3560 = vpack.c.b16 %v3440, %v3436
    %v3561 = vpack.c.b16 %v3445, %v3441
    %v3562 = vpack.c.b16 %v3446, %v3442
    %v3563 = vpack.c.b16 %v3447, %v3443
    %v3564 = vpack.c.b16 %v3448, %v3444
    %v3565 = vpack.c.b16 %v3453, %v3449
    %v3566 = vpack.c.b16 %v3454, %v3450
    %v3567 = vpack.c.b16 %v3455, %v3451
    %v3568 = vpack.c.b16 %v3456, %v3452
    %v3681 = vsel %vm2034, %v2043, 0
    %v3684 = vsel %vm2034, %v2047, 0
    %3686 = vmatprep.subr.bf16.mxu0 %v3458
    %3687 = vmatpush1.bf16.msra.mxu0 %v3457
    %3688 = vmatprep.subr.bf16.mxu0 %v3462
    %3689 = vmatpush1.bf16.msra.mxu0 %v3461
    %3690 = vmatprep.subr.bf16.mxu0 %v3466
    %3691 = vmatpush1.bf16.msra.mxu0 %v3465
    %3692 = vmatprep.subr.bf16.mxu0 %v3470
    %3693 = vmatpush1.bf16.msra.mxu0 %v3469
    %3694 = vmatprep.subr.bf16.mxu0 %v3474
    %3695 = vmatpush1.bf16.msra.mxu0 %v3473
    %3696 = vmatprep.subr.bf16.mxu0 %v3478
    %3697 = vmatpush1.bf16.msra.mxu0 %v3477
    %3698 = vmatprep.subr.bf16.mxu0 %v3482
    %3699 = vmatpush1.bf16.msra.mxu0 %v3481
    %3700 = vmatprep.subr.bf16.mxu0 %v3486
    %3701 = vmatpush1.bf16.msra.mxu0 %v3485
    %3702 = vmatprep.subr.bf16.mxu0 %v3490
    %3703 = vmatpush1.bf16.msra.mxu0 %v3489
    %3704 = vmatprep.subr.bf16.mxu0 %v3494
    %3705 = vmatpush1.bf16.msra.mxu0 %v3493
    %3706 = vmatprep.subr.bf16.mxu0 %v3498
    %3707 = vmatpush1.bf16.msra.mxu0 %v3497
    %3708 = vmatprep.subr.bf16.mxu0 %v3502
    %3709 = vmatpush1.bf16.msra.mxu0 %v3501
    %3710 = vmatprep.subr.bf16.mxu0 %v3506
    %3711 = vmatpush1.bf16.msra.mxu0 %v3505
    %3712 = vmatprep.subr.bf16.mxu0 %v3510
    %3713 = vmatpush1.bf16.msra.mxu0 %v3509
    %3714 = vmatprep.subr.bf16.mxu0 %v3514
    %3715 = vmatpush1.bf16.msra.mxu0 %v3513
    %3716 = vmatprep.subr.bf16.mxu0 %v3518
    %3717 = vmatpush1.bf16.msra.mxu0 %v3517
    %3718 = vmatprep.mubr.bf16.mxu0 %v2041
    %3719 = vmatmul.mubr.bf16.gmra.mrb[0].mxu0 %v2040
    %v3720 = vpop.f32.mrb[0].mxu0
    %v3721 = vadd.f32 %v2997, %v3720
    %v3722 = vpop.f32.mrb[0].mxu0
    %v3723 = vadd.f32 %v2999, %v3722
    %v3724 = vpop.f32.mrb[0].mxu0
    %v3725 = vadd.f32 %v3001, %v3724
    %v3726 = vpop.f32.mrb[0].mxu0
    %v3727 = vadd.f32 %v3003, %v3726
    %3728 = vmatprep.mubr.bf16.mxu0 %v2045
    %3729 = vmatmul.mubr.bf16.gmra.mrb[0].mxu0 %v2044
    %v3730 = vpop.f32.mrb[0].mxu0
    %v3731 = vadd.f32 %v3007, %v3730
    %v3732 = vpop.f32.mrb[0].mxu0
    %v3733 = vadd.f32 %v3009, %v3732
    %v3734 = vpop.f32.mrb[0].mxu0
    %v3735 = vadd.f32 %v3011, %v3734
    %v3736 = vpop.f32.mrb[0].mxu0
    %v3737 = vadd.f32 %v3013, %v3736
    %3738 = vdwg.mxu0
    %3739 = vmatprep.subr.bf16.mxu0 %v3522
    %3740 = vmatpush1.bf16.msra.mxu0 %v3521
    %3741 = vmatprep.subr.bf16.mxu0 %v3526
    %3742 = vmatpush1.bf16.msra.mxu0 %v3525
    %3743 = vmatprep.subr.bf16.mxu0 %v3530
    %3744 = vmatpush1.bf16.msra.mxu0 %v3529
    %3745 = vmatprep.subr.bf16.mxu0 %v3534
    %3746 = vmatpush1.bf16.msra.mxu0 %v3533
    %3747 = vmatprep.subr.bf16.mxu0 %v3538
    %3748 = vmatpush1.bf16.msra.mxu0 %v3537
    %3749 = vmatprep.subr.bf16.mxu0 %v3542
    %3750 = vmatpush1.bf16.msra.mxu0 %v3541
    %3751 = vmatprep.subr.bf16.mxu0 %v3546
    %3752 = vmatpush1.bf16.msra.mxu0 %v3545
    %3753 = vmatprep.subr.bf16.mxu0 %v3550
    %3754 = vmatpush1.bf16.msra.mxu0 %v3549
    %3755 = vmatprep.subr.bf16.mxu0 %v3554
    %3756 = vmatpush1.bf16.msra.mxu0 %v3553
    %3757 = vmatprep.subr.bf16.mxu0 %v3558
    %3758 = vmatpush1.bf16.msra.mxu0 %v3557
    %3759 = vmatprep.subr.bf16.mxu0 %v3562
    %3760 = vmatpush1.bf16.msra.mxu0 %v3561
    %3761 = vmatprep.subr.bf16.mxu0 %v3566
    %3762 = vmatpush1.bf16.msra.mxu0 %v3565
    %3763 = vmatprep.subr.bf16.mxu0 0
    %3764 = vmatpush1.bf16.msra.mxu0 0
    %3765 = vmatprep.subr.bf16.mxu0 0
    %3766 = vmatpush1.bf16.msra.mxu0 0
    %3767 = vmatprep.subr.bf16.mxu0 0
    %3768 = vmatpush1.bf16.msra.mxu0 0
    %3769 = vmatprep.subr.bf16.mxu0 0
    %3770 = vmatpush1.bf16.msra.mxu0 0
    %3771 = vmatprep.mubr.bf16.mxu0 %v3681
    %3772 = vmatmul.mubr.bf16.gmra.mrb[0].mxu0 %v2042
    %v3773 = vpop.f32.mrb[0].mxu0
    %v3774 = vadd.f32 %v3721, %v3773
    %v3775 = vpop.f32.mrb[0].mxu0
    %v3776 = vadd.f32 %v3723, %v3775
    %v3777 = vpop.f32.mrb[0].mxu0
    %v3778 = vadd.f32 %v3725, %v3777
    %v3779 = vpop.f32.mrb[0].mxu0
    %v3780 = vadd.f32 %v3727, %v3779
    %3781 = vmatprep.mubr.bf16.mxu0 %v3684
    %3782 = vmatmul.mubr.bf16.gmra.mrb[0].mxu0 %v2046
    %v3783 = vpop.f32.mrb[0].mxu0
    %v3784 = vadd.f32 %v3731, %v3783
    %v3785 = vpop.f32.mrb[0].mxu0
    %v3786 = vadd.f32 %v3733, %v3785
    %v3787 = vpop.f32.mrb[0].mxu0
    %v3788 = vadd.f32 %v3735, %v3787
    %v3789 = vpop.f32.mrb[0].mxu0
    %v3790 = vadd.f32 %v3737, %v3789
    %3791 = vdwg.mxu0
    %3792 = vmatprep.subr.bf16.mxu0 %v3460
    %3793 = vmatpush1.bf16.msra.mxu0 %v3459
    %3794 = vmatprep.subr.bf16.mxu0 %v3464
    %3795 = vmatpush1.bf16.msra.mxu0 %v3463
    %3796 = vmatprep.subr.bf16.mxu0 %v3468
    %3797 = vmatpush1.bf16.msra.mxu0 %v3467
    %3798 = vmatprep.subr.bf16.mxu0 %v3472
    %3799 = vmatpush1.bf16.msra.mxu0 %v3471
    %3800 = vmatprep.subr.bf16.mxu0 %v3476
    %3801 = vmatpush1.bf16.msra.mxu0 %v3475
    %3802 = vmatprep.subr.bf16.mxu0 %v3480
    %3803 = vmatpush1.bf16.msra.mxu0 %v3479
    %3804 = vmatprep.subr.bf16.mxu0 %v3484
    %3805 = vmatpush1.bf16.msra.mxu0 %v3483
    %3806 = vmatprep.subr.bf16.mxu0 %v3488
    %3807 = vmatpush1.bf16.msra.mxu0 %v3487
    %3808 = vmatprep.subr.bf16.mxu0 %v3492
    %3809 = vmatpush1.bf16.msra.mxu0 %v3491
    %3810 = vmatprep.subr.bf16.mxu0 %v3496
    %3811 = vmatpush1.bf16.msra.mxu0 %v3495
    %3812 = vmatprep.subr.bf16.mxu0 %v3500
    %3813 = vmatpush1.bf16.msra.mxu0 %v3499
    %3814 = vmatprep.subr.bf16.mxu0 %v3504
    %3815 = vmatpush1.bf16.msra.mxu0 %v3503
    %3816 = vmatprep.subr.bf16.mxu0 %v3508
    %3817 = vmatpush1.bf16.msra.mxu0 %v3507
    %3818 = vmatprep.subr.bf16.mxu0 %v3512
    %3819 = vmatpush1.bf16.msra.mxu0 %v3511
    %3820 = vmatprep.subr.bf16.mxu0 %v3516
    %3821 = vmatpush1.bf16.msra.mxu0 %v3515
    %3822 = vmatprep.subr.bf16.mxu0 %v3520
    %3823 = vmatpush1.bf16.msra.mxu0 %v3519
    %3824 = vmatprep.mubr.bf16.mxu0 %v2041
    %3825 = vmatmul.mubr.bf16.gmra.mrb[0].mxu0 %v2040
    %v3826 = vpop.f32.mrb[0].mxu0
    %v3827 = vadd.f32 %v3103, %v3826
    %v3828 = vpop.f32.mrb[0].mxu0
    %v3829 = vadd.f32 %v3105, %v3828
    %v3830 = vpop.f32.mrb[0].mxu0
    %v3831 = vadd.f32 %v3107, %v3830
    %v3832 = vpop.f32.mrb[0].mxu0
    %v3833 = vadd.f32 %v3109, %v3832
    %3834 = vmatprep.mubr.bf16.mxu0 %v2045
    %3835 = vmatmul.mubr.bf16.gmra.mrb[0].mxu0 %v2044
    %v3836 = vpop.f32.mrb[0].mxu0
    %v3837 = vadd.f32 %v3113, %v3836
    %v3838 = vpop.f32.mrb[0].mxu0
    %v3839 = vadd.f32 %v3115, %v3838
    %v3840 = vpop.f32.mrb[0].mxu0
    %v3841 = vadd.f32 %v3117, %v3840
    %v3842 = vpop.f32.mrb[0].mxu0
    %v3843 = vadd.f32 %v3119, %v3842
    %3844 = vdwg.mxu0
    %3845 = vmatprep.subr.bf16.mxu0 %v3524
    %3846 = vmatpush1.bf16.msra.mxu0 %v3523
    %3847 = vmatprep.subr.bf16.mxu0 %v3528
    %3848 = vmatpush1.bf16.msra.mxu0 %v3527
    %3849 = vmatprep.subr.bf16.mxu0 %v3532
    %3850 = vmatpush1.bf16.msra.mxu0 %v3531
    %3851 = vmatprep.subr.bf16.mxu0 %v3536
    %3852 = vmatpush1.bf16.msra.mxu0 %v3535
    %3853 = vmatprep.subr.bf16.mxu0 %v3540
    %3854 = vmatpush1.bf16.msra.mxu0 %v3539
    %3855 = vmatprep.subr.bf16.mxu0 %v3544
    %3856 = vmatpush1.bf16.msra.mxu0 %v3543
    %3857 = vmatprep.subr.bf16.mxu0 %v3548
    %3858 = vmatpush1.bf16.msra.mxu0 %v3547
    %3859 = vmatprep.subr.bf16.mxu0 %v3552
    %3860 = vmatpush1.bf16.msra.mxu0 %v3551
    %3861 = vmatprep.subr.bf16.mxu0 %v3556
    %3862 = vmatpush1.bf16.msra.mxu0 %v3555
    %3863 = vmatprep.subr.bf16.mxu0 %v3560
    %3864 = vmatpush1.bf16.msra.mxu0 %v3559
    %3865 = vmatprep.subr.bf16.mxu0 %v3564
    %3866 = vmatpush1.bf16.msra.mxu0 %v3563
    %3867 = vmatprep.subr.bf16.mxu0 %v3568
    %3868 = vmatpush1.bf16.msra.mxu0 %v3567
    %3869 = vmatprep.subr.bf16.mxu0 0
    %3870 = vmatpush1.bf16.msra.mxu0 0
    %3871 = vmatprep.subr.bf16.mxu0 0
    %3872 = vmatpush1.bf16.msra.mxu0 0
    %3873 = vmatprep.subr.bf16.mxu0 0
    %3874 = vmatpush1.bf16.msra.mxu0 0
    %3875 = vmatprep.subr.bf16.mxu0 0
    %3876 = vmatpush1.bf16.msra.mxu0 0
    %3877 = vmatprep.mubr.bf16.mxu0 %v3681
    %3878 = vmatmul.mubr.bf16.gmra.mrb[0].mxu0 %v2042
    %v3879 = vpop.f32.mrb[0].mxu0
    %v3880 = vadd.f32 %v3827, %v3879
    %v3881 = vpop.f32.mrb[0].mxu0
    %v3882 = vadd.f32 %v3829, %v3881
    %v3883 = vpop.f32.mrb[0].mxu0
    %v3884 = vadd.f32 %v3831, %v3883
    %v3885 = vpop.f32.mrb[0].mxu0
    %v3886 = vadd.f32 %v3833, %v3885
    %3887 = vmatprep.mubr.bf16.mxu0 %v3684
    %3888 = vmatmul.mubr.bf16.gmra.mrb[0].mxu0 %v2046
    %v3889 = vpop.f32.mrb[0].mxu0
    %v3890 = vadd.f32 %v3837, %v3889
    %v3891 = vpop.f32.mrb[0].mxu0
    %v3892 = vadd.f32 %v3839, %v3891
    %v3893 = vpop.f32.mrb[0].mxu0
    %v3894 = vadd.f32 %v3841, %v3893
    %v3895 = vpop.f32.mrb[0].mxu0
    %v3896 = vadd.f32 %v3843, %v3895
    %3897 = vdwg.mxu0
    %v3898 = vld [vmem:[#allocation3] sm:$0xfe]
    %v3899 = vld [vmem:[#allocation3 + $0x8] sm:$0xfe]
    %v3900 = vld [vmem:[#allocation3 + $0x10] sm:$0xfe]
    %v3901 = vld [vmem:[#allocation3 + $0x18] sm:$0xfe]
    %s3902 = scalar_lea.vmem [#allocation5], 3584
    %v3903 = vld [vmem:[%s3902] sm:$0xff]
    %v3904 = vld [vmem:[%s3902 + $0x8] sm:$0xff]
    %v3905 = vld [vmem:[%s3902 + $0x10] sm:$0xff]
    %v3906 = vld [vmem:[%s3902 + $0x18] sm:$0xff]
    %v3907 = vld [vmem:[%s3902 + $0x20] sm:$0xff]
    %v3908 = vld [vmem:[%s3902 + $0x28] sm:$0xff]
    %v3909 = vld [vmem:[%s3902 + $0x30] sm:$0xff]
    %v3910 = vld [vmem:[%s3902 + $0x38] sm:$0xff]
    %v3911 = vld [vmem:[%s3902 + $0x40] sm:$0xff]
    %v3912 = vld [vmem:[%s3902 + $0x48] sm:$0xff]
    %v3913 = vld [vmem:[%s3902 + $0x50] sm:$0xff]
    %v3914 = vld [vmem:[%s3902 + $0x58] sm:$0xff]
    %v3915 = vld [vmem:[%s3902 + $0x60] sm:$0xff]
    %v3916 = vld [vmem:[%s3902 + $0x68] sm:$0xff]
    %v3917 = vld [vmem:[%s3902 + $0x70] sm:$0xff]
    %v3918 = vld [vmem:[%s3902 + $0x78] sm:$0xff]
    %v3919 = vld [vmem:[%s3902 + $0x80] sm:$0xff]
    %v3920 = vld [vmem:[%s3902 + $0x88] sm:$0xff]
    %v3921 = vld [vmem:[%s3902 + $0x90] sm:$0xff]
    %v3922 = vld [vmem:[%s3902 + $0x98] sm:$0xff]
    %v3923 = vld [vmem:[%s3902 + $0xa0] sm:$0xff]
    %v3924 = vld [vmem:[%s3902 + $0xa8] sm:$0xff]
    %v3925 = vld [vmem:[%s3902 + $0xb0] sm:$0xff]
    %v3926 = vld [vmem:[%s3902 + $0xb8] sm:$0xff]
    %v3927 = vld [vmem:[%s3902 + $0xc0] sm:$0xff]
    %v3928 = vld [vmem:[%s3902 + $0xc8] sm:$0xff]
    %v3929 = vld [vmem:[%s3902 + $0xd0] sm:$0xff]
    %v3930 = vld [vmem:[%s3902 + $0xd8] sm:$0xff]
    %v3931 = vld [vmem:[%s3902 + $0xe0] sm:$0xff]
    %v3932 = vld [vmem:[%s3902 + $0xe8] sm:$0xff]
    %v3933 = vld [vmem:[%s3902 + $0xf0] sm:$0xff]
    %v3934 = vld [vmem:[%s3902 + $0xf8] sm:$0xff]
    %v3935 = vld [vmem:[%s3902 + $0x100] sm:$0xff]
    %v3936 = vld [vmem:[%s3902 + $0x108] sm:$0xff]
    %v3937 = vld [vmem:[%s3902 + $0x110] sm:$0xff]
    %v3938 = vld [vmem:[%s3902 + $0x118] sm:$0xff]
    %v3939 = vld [vmem:[%s3902 + $0x120] sm:$0xff]
    %v3940 = vld [vmem:[%s3902 + $0x128] sm:$0xff]
    %v3941 = vld [vmem:[%s3902 + $0x130] sm:$0xff]
    %v3942 = vld [vmem:[%s3902 + $0x138] sm:$0xff]
    %v3943 = vld [vmem:[%s3902 + $0x140] sm:$0xff]
    %v3944 = vld [vmem:[%s3902 + $0x148] sm:$0xff]
    %v3945 = vld [vmem:[%s3902 + $0x150] sm:$0xff]
    %v3946 = vld [vmem:[%s3902 + $0x158] sm:$0xff]
    %v3947 = vld [vmem:[%s3902 + $0x160] sm:$0xff]
    %v3948 = vld [vmem:[%s3902 + $0x168] sm:$0xff]
    %v3949 = vld [vmem:[%s3902 + $0x170] sm:$0xff]
    %v3950 = vld [vmem:[%s3902 + $0x178] sm:$0xff]
    %v3951 = vld [vmem:[%s3902 + $0x180] sm:$0xff]
    %v3952 = vld [vmem:[%s3902 + $0x188] sm:$0xff]
    %v3953 = vld [vmem:[%s3902 + $0x190] sm:$0xff]
    %v3954 = vld [vmem:[%s3902 + $0x198] sm:$0xff]
    %v3955 = vld [vmem:[%s3902 + $0x1a0] sm:$0xff]
    %v3956 = vld [vmem:[%s3902 + $0x1a8] sm:$0xff]
    %v3957 = vld [vmem:[%s3902 + $0x1b0] sm:$0xff]
    %v3958 = vld [vmem:[%s3902 + $0x1b8] sm:$0xff]
    %v3959 = vld [vmem:[%s3902 + $0x1c0] sm:$0xff]
    %v3960 = vld [vmem:[%s3902 + $0x1c8] sm:$0xff]
    %v3961 = vld [vmem:[%s3902 + $0x1d0] sm:$0xff]
    %v3962 = vld [vmem:[%s3902 + $0x1d8] sm:$0xff]
    %v3963 = vld [vmem:[%s3902 + $0x1e0] sm:$0xff]
    %v3964 = vld [vmem:[%s3902 + $0x1e8] sm:$0xff]
    %v3965 = vld [vmem:[%s3902 + $0x1f0] sm:$0xff]
    %v3966 = vld [vmem:[%s3902 + $0x1f8] sm:$0xff]
    %v3967 = vld [vmem:[%s3902 + $0x200] sm:$0xff]
    %v3968 = vld [vmem:[%s3902 + $0x208] sm:$0xff]
    %v3969 = vld [vmem:[%s3902 + $0x210] sm:$0xff]
    %v3970 = vld [vmem:[%s3902 + $0x218] sm:$0xff]
    %v3971 = vld [vmem:[%s3902 + $0x220] sm:$0xff]
    %v3972 = vld [vmem:[%s3902 + $0x228] sm:$0xff]
    %v3973 = vld [vmem:[%s3902 + $0x230] sm:$0xff]
    %v3974 = vld [vmem:[%s3902 + $0x238] sm:$0xff]
    %v3975 = vld [vmem:[%s3902 + $0x240] sm:$0xff]
    %v3976 = vld [vmem:[%s3902 + $0x248] sm:$0xff]
    %v3977 = vld [vmem:[%s3902 + $0x250] sm:$0xff]
    %v3978 = vld [vmem:[%s3902 + $0x258] sm:$0xff]
    %v3979 = vld [vmem:[%s3902 + $0x260] sm:$0xff]
    %v3980 = vld [vmem:[%s3902 + $0x268] sm:$0xff]
    %v3981 = vld [vmem:[%s3902 + $0x270] sm:$0xff]
    %v3982 = vld [vmem:[%s3902 + $0x278] sm:$0xff]
    %v3983 = vld [vmem:[%s3902 + $0x280] sm:$0xff]
    %v3984 = vld [vmem:[%s3902 + $0x288] sm:$0xff]
    %v3985 = vld [vmem:[%s3902 + $0x290] sm:$0xff]
    %v3986 = vld [vmem:[%s3902 + $0x298] sm:$0xff]
    %v3987 = vld [vmem:[%s3902 + $0x2a0] sm:$0xff]
    %v3988 = vld [vmem:[%s3902 + $0x2a8] sm:$0xff]
    %v3989 = vld [vmem:[%s3902 + $0x2b0] sm:$0xff]
    %v3990 = vld [vmem:[%s3902 + $0x2b8] sm:$0xff]
    %v3991 = vld [vmem:[%s3902 + $0x2c0] sm:$0xff]
    %v3992 = vld [vmem:[%s3902 + $0x2c8] sm:$0xff]
    %v3993 = vld [vmem:[%s3902 + $0x2d0] sm:$0xff]
    %v3994 = vld [vmem:[%s3902 + $0x2d8] sm:$0xff]
    %v3995 = vld [vmem:[%s3902 + $0x2e0] sm:$0xff]
    %v3996 = vld [vmem:[%s3902 + $0x2e8] sm:$0xff]
    %v3997 = vld [vmem:[%s3902 + $0x2f0] sm:$0xff]
    %v3998 = vld [vmem:[%s3902 + $0x2f8] sm:$0xff]
    %v3999 = vld [vmem:[%s3902 + $0x300] sm:$0xff]
    %v4000 = vld [vmem:[%s3902 + $0x308] sm:$0xff]
    %v4001 = vld [vmem:[%s3902 + $0x310] sm:$0xff]
    %v4002 = vld [vmem:[%s3902 + $0x318] sm:$0xff]
    %v4003 = vld [vmem:[%s3902 + $0x320] sm:$0xff]
    %v4004 = vld [vmem:[%s3902 + $0x328] sm:$0xff]
    %v4005 = vld [vmem:[%s3902 + $0x330] sm:$0xff]
    %v4006 = vld [vmem:[%s3902 + $0x338] sm:$0xff]
    %v4007 = vld [vmem:[%s3902 + $0x340] sm:$0xff]
    %v4008 = vld [vmem:[%s3902 + $0x348] sm:$0xff]
    %v4009 = vld [vmem:[%s3902 + $0x350] sm:$0xff]
    %v4010 = vld [vmem:[%s3902 + $0x358] sm:$0xff]
    %v4011 = vld [vmem:[%s3902 + $0x360] sm:$0xff]
    %v4012 = vld [vmem:[%s3902 + $0x368] sm:$0xff]
    %v4013 = vld [vmem:[%s3902 + $0x370] sm:$0xff]
    %v4014 = vld [vmem:[%s3902 + $0x378] sm:$0xff]
    %v4023 = vrot.slane %v3898, 1
    %v4024 = vrot.slane %v2160, 1
    %v4025 = vsel %vm735, %v4023, %v4024
    %v4026 = vrot.slane %v3899, 1
    %v4027 = vrot.slane %v2161, 1
    %v4028 = vsel %vm735, %v4026, %v4027
    %v4029 = vrot.slane %v3900, 1
    %v4030 = vrot.slane %v2162, 1
    %v4031 = vsel %vm735, %v4029, %v4030
    %v4032 = vrot.slane %v3901, 1
    %v4033 = vrot.slane %v2163, 1
    %v4034 = vsel %vm735, %v4032, %v4033
    %v4153 = vunpack.c.l.b16 %v3903
    %v4154 = vunpack.c.h.b16 %v3903
    %v4155 = vunpack.c.l.b16 %v3904
    %v4156 = vunpack.c.h.b16 %v3904
    %v4157 = vunpack.c.l.b16 %v3905
    %v4158 = vunpack.c.h.b16 %v3905
    %v4159 = vunpack.c.l.b16 %v3906
    %v4160 = vunpack.c.h.b16 %v3906
    %v4161 = vunpack.c.l.b16 %v3907
    %v4162 = vunpack.c.h.b16 %v3907
    %v4163 = vunpack.c.l.b16 %v3908
    %v4164 = vunpack.c.h.b16 %v3908
    %v4165 = vunpack.c.l.b16 %v3909
    %v4166 = vunpack.c.h.b16 %v3909
    %v4167 = vunpack.c.l.b16 %v3910
    %v4168 = vunpack.c.h.b16 %v3910
    %v4169 = vunpack.c.l.b16 %v3911
    %v4170 = vunpack.c.h.b16 %v3911
    %v4171 = vunpack.c.l.b16 %v3912
    %v4172 = vunpack.c.h.b16 %v3912
    %v4173 = vunpack.c.l.b16 %v3913
    %v4174 = vunpack.c.h.b16 %v3913
    %v4175 = vunpack.c.l.b16 %v3914
    %v4176 = vunpack.c.h.b16 %v3914
    %v4177 = vunpack.c.l.b16 %v3915
    %v4178 = vunpack.c.h.b16 %v3915
    %v4179 = vunpack.c.l.b16 %v3916
    %v4180 = vunpack.c.h.b16 %v3916
    %v4181 = vunpack.c.l.b16 %v3917
    %v4182 = vunpack.c.h.b16 %v3917
    %v4183 = vunpack.c.l.b16 %v3918
    %v4184 = vunpack.c.h.b16 %v3918
    %v4185 = vunpack.c.l.b16 %v3919
    %v4186 = vunpack.c.h.b16 %v3919
    %v4187 = vunpack.c.l.b16 %v3920
    %v4188 = vunpack.c.h.b16 %v3920
    %v4189 = vunpack.c.l.b16 %v3921
    %v4190 = vunpack.c.h.b16 %v3921
    %v4191 = vunpack.c.l.b16 %v3922
    %v4192 = vunpack.c.h.b16 %v3922
    %v4193 = vunpack.c.l.b16 %v3923
    %v4194 = vunpack.c.h.b16 %v3923
    %v4195 = vunpack.c.l.b16 %v3924
    %v4196 = vunpack.c.h.b16 %v3924
    %v4197 = vunpack.c.l.b16 %v3925
    %v4198 = vunpack.c.h.b16 %v3925
    %v4199 = vunpack.c.l.b16 %v3926
    %v4200 = vunpack.c.h.b16 %v3926
    %v4201 = vunpack.c.l.b16 %v3927
    %v4202 = vunpack.c.h.b16 %v3927
    %v4203 = vunpack.c.l.b16 %v3928
    %v4204 = vunpack.c.h.b16 %v3928
    %v4205 = vunpack.c.l.b16 %v3929
    %v4206 = vunpack.c.h.b16 %v3929
    %v4207 = vunpack.c.l.b16 %v3930
    %v4208 = vunpack.c.h.b16 %v3930
    %v4209 = vunpack.c.l.b16 %v3931
    %v4210 = vunpack.c.h.b16 %v3931
    %v4211 = vunpack.c.l.b16 %v3932
    %v4212 = vunpack.c.h.b16 %v3932
    %v4213 = vunpack.c.l.b16 %v3933
    %v4214 = vunpack.c.h.b16 %v3933
    %v4215 = vunpack.c.l.b16 %v3934
    %v4216 = vunpack.c.h.b16 %v3934
    %v4217 = vunpack.c.l.b16 %v3935
    %v4218 = vunpack.c.h.b16 %v3935
    %v4219 = vunpack.c.l.b16 %v3936
    %v4220 = vunpack.c.h.b16 %v3936
    %v4221 = vunpack.c.l.b16 %v3937
    %v4222 = vunpack.c.h.b16 %v3937
    %v4223 = vunpack.c.l.b16 %v3938
    %v4224 = vunpack.c.h.b16 %v3938
    %v4225 = vunpack.c.l.b16 %v3939
    %v4226 = vunpack.c.h.b16 %v3939
    %v4227 = vunpack.c.l.b16 %v3940
    %v4228 = vunpack.c.h.b16 %v3940
    %v4229 = vunpack.c.l.b16 %v3941
    %v4230 = vunpack.c.h.b16 %v3941
    %v4231 = vunpack.c.l.b16 %v3942
    %v4232 = vunpack.c.h.b16 %v3942
    %v4233 = vunpack.c.l.b16 %v3943
    %v4234 = vunpack.c.h.b16 %v3943
    %v4235 = vunpack.c.l.b16 %v3944
    %v4236 = vunpack.c.h.b16 %v3944
    %v4237 = vunpack.c.l.b16 %v3945
    %v4238 = vunpack.c.h.b16 %v3945
    %v4239 = vunpack.c.l.b16 %v3946
    %v4240 = vunpack.c.h.b16 %v3946
    %v4241 = vunpack.c.l.b16 %v3947
    %v4242 = vunpack.c.h.b16 %v3947
    %v4243 = vunpack.c.l.b16 %v3948
    %v4244 = vunpack.c.h.b16 %v3948
    %v4245 = vunpack.c.l.b16 %v3949
    %v4246 = vunpack.c.h.b16 %v3949
    %v4247 = vunpack.c.l.b16 %v3950
    %v4248 = vunpack.c.h.b16 %v3950
    %v4249 = vunpack.c.l.b16 %v3951
    %v4250 = vunpack.c.h.b16 %v3951
    %v4251 = vunpack.c.l.b16 %v3952
    %v4252 = vunpack.c.h.b16 %v3952
    %v4253 = vunpack.c.l.b16 %v3953
    %v4254 = vunpack.c.h.b16 %v3953
    %v4255 = vunpack.c.l.b16 %v3954
    %v4256 = vunpack.c.h.b16 %v3954
    %v4257 = vunpack.c.l.b16 %v3955
    %v4258 = vunpack.c.h.b16 %v3955
    %v4259 = vunpack.c.l.b16 %v3956
    %v4260 = vunpack.c.h.b16 %v3956
    %v4261 = vunpack.c.l.b16 %v3957
    %v4262 = vunpack.c.h.b16 %v3957
    %v4263 = vunpack.c.l.b16 %v3958
    %v4264 = vunpack.c.h.b16 %v3958
    %v4265 = vunpack.c.l.b16 %v3959
    %v4266 = vunpack.c.h.b16 %v3959
    %v4267 = vunpack.c.l.b16 %v3960
    %v4268 = vunpack.c.h.b16 %v3960
    %v4269 = vunpack.c.l.b16 %v3961
    %v4270 = vunpack.c.h.b16 %v3961
    %v4271 = vunpack.c.l.b16 %v3962
    %v4272 = vunpack.c.h.b16 %v3962
    %v4273 = vunpack.c.l.b16 %v3963
    %v4274 = vunpack.c.h.b16 %v3963
    %v4275 = vunpack.c.l.b16 %v3964
    %v4276 = vunpack.c.h.b16 %v3964
    %v4277 = vunpack.c.l.b16 %v3965
    %v4278 = vunpack.c.h.b16 %v3965
    %v4279 = vunpack.c.l.b16 %v3966
    %v4280 = vunpack.c.h.b16 %v3966
    %v4281 = vunpack.c.l.b16 %v3967
    %v4282 = vunpack.c.h.b16 %v3967
    %v4283 = vunpack.c.l.b16 %v3968
    %v4284 = vunpack.c.h.b16 %v3968
    %v4285 = vunpack.c.l.b16 %v3969
    %v4286 = vunpack.c.h.b16 %v3969
    %v4287 = vunpack.c.l.b16 %v3970
    %v4288 = vunpack.c.h.b16 %v3970
    %v4289 = vunpack.c.l.b16 %v3971
    %v4290 = vunpack.c.h.b16 %v3971
    %v4291 = vunpack.c.l.b16 %v3972
    %v4292 = vunpack.c.h.b16 %v3972
    %v4293 = vunpack.c.l.b16 %v3973
    %v4294 = vunpack.c.h.b16 %v3973
    %v4295 = vunpack.c.l.b16 %v3974
    %v4296 = vunpack.c.h.b16 %v3974
    %v4297 = vunpack.c.l.b16 %v3975
    %v4298 = vunpack.c.h.b16 %v3975
    %v4299 = vunpack.c.l.b16 %v3976
    %v4300 = vunpack.c.h.b16 %v3976
    %v4301 = vunpack.c.l.b16 %v3977
    %v4302 = vunpack.c.h.b16 %v3977
    %v4303 = vunpack.c.l.b16 %v3978
    %v4304 = vunpack.c.h.b16 %v3978
    %v4305 = vunpack.c.l.b16 %v3979
    %v4306 = vunpack.c.h.b16 %v3979
    %v4307 = vunpack.c.l.b16 %v3980
    %v4308 = vunpack.c.h.b16 %v3980
    %v4309 = vunpack.c.l.b16 %v3981
    %v4310 = vunpack.c.h.b16 %v3981
    %v4311 = vunpack.c.l.b16 %v3982
    %v4312 = vunpack.c.h.b16 %v3982
    %v4313 = vunpack.c.l.b16 %v3983
    %v4314 = vunpack.c.h.b16 %v3983
    %v4315 = vunpack.c.l.b16 %v3984
    %v4316 = vunpack.c.h.b16 %v3984
    %v4317 = vunpack.c.l.b16 %v3985
    %v4318 = vunpack.c.h.b16 %v3985
    %v4319 = vunpack.c.l.b16 %v3986
    %v4320 = vunpack.c.h.b16 %v3986
    %v4321 = vunpack.c.l.b16 %v3987
    %v4322 = vunpack.c.h.b16 %v3987
    %v4323 = vunpack.c.l.b16 %v3988
    %v4324 = vunpack.c.h.b16 %v3988
    %v4325 = vunpack.c.l.b16 %v3989
    %v4326 = vunpack.c.h.b16 %v3989
    %v4327 = vunpack.c.l.b16 %v3990
    %v4328 = vunpack.c.h.b16 %v3990
    %v4329 = vunpack.c.l.b16 %v3991
    %v4330 = vunpack.c.h.b16 %v3991
    %v4331 = vunpack.c.l.b16 %v3992
    %v4332 = vunpack.c.h.b16 %v3992
    %v4333 = vunpack.c.l.b16 %v3993
    %v4334 = vunpack.c.h.b16 %v3993
    %v4335 = vunpack.c.l.b16 %v3994
    %v4336 = vunpack.c.h.b16 %v3994
    %v4337 = vunpack.c.l.b16 %v3995
    %v4338 = vunpack.c.h.b16 %v3995
    %v4339 = vunpack.c.l.b16 %v3996
    %v4340 = vunpack.c.h.b16 %v3996
    %v4341 = vunpack.c.l.b16 %v3997
    %v4342 = vunpack.c.h.b16 %v3997
    %v4343 = vunpack.c.l.b16 %v3998
    %v4344 = vunpack.c.h.b16 %v3998
    %v4345 = vunpack.c.l.b16 %v3999
    %v4346 = vunpack.c.h.b16 %v3999
    %v4347 = vunpack.c.l.b16 %v4000
    %v4348 = vunpack.c.h.b16 %v4000
    %v4349 = vunpack.c.l.b16 %v4001
    %v4350 = vunpack.c.h.b16 %v4001
    %v4351 = vunpack.c.l.b16 %v4002
    %v4352 = vunpack.c.h.b16 %v4002
    %v4353 = vunpack.c.l.b16 %v4003
    %v4354 = vunpack.c.h.b16 %v4003
    %v4355 = vunpack.c.l.b16 %v4004
    %v4356 = vunpack.c.h.b16 %v4004
    %v4357 = vunpack.c.l.b16 %v4005
    %v4358 = vunpack.c.h.b16 %v4005
    %v4359 = vunpack.c.l.b16 %v4006
    %v4360 = vunpack.c.h.b16 %v4006
    %v4361 = vunpack.c.l.b16 %v4007
    %v4362 = vunpack.c.h.b16 %v4007
    %v4363 = vunpack.c.l.b16 %v4008
    %v4364 = vunpack.c.h.b16 %v4008
    %v4365 = vunpack.c.l.b16 %v4009
    %v4366 = vunpack.c.h.b16 %v4009
    %v4367 = vunpack.c.l.b16 %v4010
    %v4368 = vunpack.c.h.b16 %v4010
    %v4369 = vunpack.c.l.b16 %v4011
    %v4370 = vunpack.c.h.b16 %v4011
    %v4371 = vunpack.c.l.b16 %v4012
    %v4372 = vunpack.c.h.b16 %v4012
    %v4373 = vunpack.c.l.b16 %v4013
    %v4374 = vunpack.c.h.b16 %v4013
    %v4375 = vunpack.c.l.b16 %v4014
    %v4376 = vunpack.c.h.b16 %v4014
    %v4377 = vpack.c.b16 %v4157, %v4153
    %v4378 = vpack.c.b16 %v4158, %v4154
    %v4379 = vpack.c.b16 %v4159, %v4155
    %v4380 = vpack.c.b16 %v4160, %v4156
    %v4381 = vpack.c.b16 %v4165, %v4161
    %v4382 = vpack.c.b16 %v4166, %v4162
    %v4383 = vpack.c.b16 %v4167, %v4163
    %v4384 = vpack.c.b16 %v4168, %v4164
    %v4385 = vpack.c.b16 %v4173, %v4169
    %v4386 = vpack.c.b16 %v4174, %v4170
    %v4387 = vpack.c.b16 %v4175, %v4171
    %v4388 = vpack.c.b16 %v4176, %v4172
    %v4389 = vpack.c.b16 %v4181, %v4177
    %v4390 = vpack.c.b16 %v4182, %v4178
    %v4391 = vpack.c.b16 %v4183, %v4179
    %v4392 = vpack.c.b16 %v4184, %v4180
    %v4393 = vpack.c.b16 %v4189, %v4185
    %v4394 = vpack.c.b16 %v4190, %v4186
    %v4395 = vpack.c.b16 %v4191, %v4187
    %v4396 = vpack.c.b16 %v4192, %v4188
    %v4397 = vpack.c.b16 %v4197, %v4193
    %v4398 = vpack.c.b16 %v4198, %v4194
    %v4399 = vpack.c.b16 %v4199, %v4195
    %v4400 = vpack.c.b16 %v4200, %v4196
    %v4401 = vpack.c.b16 %v4205, %v4201
    %v4402 = vpack.c.b16 %v4206, %v4202
    %v4403 = vpack.c.b16 %v4207, %v4203
    %v4404 = vpack.c.b16 %v4208, %v4204
    %v4405 = vpack.c.b16 %v4213, %v4209
    %v4406 = vpack.c.b16 %v4214, %v4210
    %v4407 = vpack.c.b16 %v4215, %v4211
    %v4408 = vpack.c.b16 %v4216, %v4212
    %v4409 = vpack.c.b16 %v4221, %v4217
    %v4410 = vpack.c.b16 %v4222, %v4218
    %v4411 = vpack.c.b16 %v4223, %v4219
    %v4412 = vpack.c.b16 %v4224, %v4220
    %v4413 = vpack.c.b16 %v4229, %v4225
    %v4414 = vpack.c.b16 %v4230, %v4226
    %v4415 = vpack.c.b16 %v4231, %v4227
    %v4416 = vpack.c.b16 %v4232, %v4228
    %v4417 = vpack.c.b16 %v4237, %v4233
    %v4418 = vpack.c.b16 %v4238, %v4234
    %v4419 = vpack.c.b16 %v4239, %v4235
    %v4420 = vpack.c.b16 %v4240, %v4236
    %v4421 = vpack.c.b16 %v4245, %v4241
    %v4422 = vpack.c.b16 %v4246, %v4242
    %v4423 = vpack.c.b16 %v4247, %v4243
    %v4424 = vpack.c.b16 %v4248, %v4244
    %v4425 = vpack.c.b16 %v4253, %v4249
    %v4426 = vpack.c.b16 %v4254, %v4250
    %v4427 = vpack.c.b16 %v4255, %v4251
    %v4428 = vpack.c.b16 %v4256, %v4252
    %v4429 = vpack.c.b16 %v4261, %v4257
    %v4430 = vpack.c.b16 %v4262, %v4258
    %v4431 = vpack.c.b16 %v4263, %v4259
    %v4432 = vpack.c.b16 %v4264, %v4260
    %v4433 = vpack.c.b16 %v4269, %v4265
    %v4434 = vpack.c.b16 %v4270, %v4266
    %v4435 = vpack.c.b16 %v4271, %v4267
    %v4436 = vpack.c.b16 %v4272, %v4268
    %v4437 = vpack.c.b16 %v4277, %v4273
    %v4438 = vpack.c.b16 %v4278, %v4274
    %v4439 = vpack.c.b16 %v4279, %v4275
    %v4440 = vpack.c.b16 %v4280, %v4276
    %v4441 = vpack.c.b16 %v4285, %v4281
    %v4442 = vpack.c.b16 %v4286, %v4282
    %v4443 = vpack.c.b16 %v4287, %v4283
    %v4444 = vpack.c.b16 %v4288, %v4284
    %v4445 = vpack.c.b16 %v4293, %v4289
    %v4446 = vpack.c.b16 %v4294, %v4290
    %v4447 = vpack.c.b16 %v4295, %v4291
    %v4448 = vpack.c.b16 %v4296, %v4292
    %v4449 = vpack.c.b16 %v4301, %v4297
    %v4450 = vpack.c.b16 %v4302, %v4298
    %v4451 = vpack.c.b16 %v4303, %v4299
    %v4452 = vpack.c.b16 %v4304, %v4300
    %v4453 = vpack.c.b16 %v4309, %v4305
    %v4454 = vpack.c.b16 %v4310, %v4306
    %v4455 = vpack.c.b16 %v4311, %v4307
    %v4456 = vpack.c.b16 %v4312, %v4308
    %v4457 = vpack.c.b16 %v4317, %v4313
    %v4458 = vpack.c.b16 %v4318, %v4314
    %v4459 = vpack.c.b16 %v4319, %v4315
    %v4460 = vpack.c.b16 %v4320, %v4316
    %v4461 = vpack.c.b16 %v4325, %v4321
    %v4462 = vpack.c.b16 %v4326, %v4322
    %v4463 = vpack.c.b16 %v4327, %v4323
    %v4464 = vpack.c.b16 %v4328, %v4324
    %v4465 = vpack.c.b16 %v4333, %v4329
    %v4466 = vpack.c.b16 %v4334, %v4330
    %v4467 = vpack.c.b16 %v4335, %v4331
    %v4468 = vpack.c.b16 %v4336, %v4332
    %v4469 = vpack.c.b16 %v4341, %v4337
    %v4470 = vpack.c.b16 %v4342, %v4338
    %v4471 = vpack.c.b16 %v4343, %v4339
    %v4472 = vpack.c.b16 %v4344, %v4340
    %v4473 = vpack.c.b16 %v4349, %v4345
    %v4474 = vpack.c.b16 %v4350, %v4346
    %v4475 = vpack.c.b16 %v4351, %v4347
    %v4476 = vpack.c.b16 %v4352, %v4348
    %v4477 = vpack.c.b16 %v4357, %v4353
    %v4478 = vpack.c.b16 %v4358, %v4354
    %v4479 = vpack.c.b16 %v4359, %v4355
    %v4480 = vpack.c.b16 %v4360, %v4356
    %v4481 = vpack.c.b16 %v4365, %v4361
    %v4482 = vpack.c.b16 %v4366, %v4362
    %v4483 = vpack.c.b16 %v4367, %v4363
    %v4484 = vpack.c.b16 %v4368, %v4364
    %v4485 = vpack.c.b16 %v4373, %v4369
    %v4486 = vpack.c.b16 %v4374, %v4370
    %v4487 = vpack.c.b16 %v4375, %v4371
    %v4488 = vpack.c.b16 %v4376, %v4372
    %v4602 = vsel %vm2034, %v4034, 0
    %v4605 = vsel %vm2034, %v4033, 0
    %4607 = vmatprep.subr.bf16.mxu0 %v4378
    %4608 = vmatpush1.bf16.msra.mxu0 %v4377
    %4609 = vmatprep.subr.bf16.mxu0 %v4382
    %4610 = vmatpush1.bf16.msra.mxu0 %v4381
    %4611 = vmatprep.subr.bf16.mxu0 %v4386
    %4612 = vmatpush1.bf16.msra.mxu0 %v4385
    %4613 = vmatprep.subr.bf16.mxu0 %v4390
    %4614 = vmatpush1.bf16.msra.mxu0 %v4389
    %4615 = vmatprep.subr.bf16.mxu0 %v4394
    %4616 = vmatpush1.bf16.msra.mxu0 %v4393
    %4617 = vmatprep.subr.bf16.mxu0 %v4398
    %4618 = vmatpush1.bf16.msra.mxu0 %v4397
    %4619 = vmatprep.subr.bf16.mxu0 %v4402
    %4620 = vmatpush1.bf16.msra.mxu0 %v4401
    %4621 = vmatprep.subr.bf16.mxu0 %v4406
    %4622 = vmatpush1.bf16.msra.mxu0 %v4405
    %4623 = vmatprep.subr.bf16.mxu0 %v4410
    %4624 = vmatpush1.bf16.msra.mxu0 %v4409
    %4625 = vmatprep.subr.bf16.mxu0 %v4414
    %4626 = vmatpush1.bf16.msra.mxu0 %v4413
    %4627 = vmatprep.subr.bf16.mxu0 %v4418
    %4628 = vmatpush1.bf16.msra.mxu0 %v4417
    %4629 = vmatprep.subr.bf16.mxu0 %v4422
    %4630 = vmatpush1.bf16.msra.mxu0 %v4421
    %4631 = vmatprep.subr.bf16.mxu0 %v4426
    %4632 = vmatpush1.bf16.msra.mxu0 %v4425
    %4633 = vmatprep.subr.bf16.mxu0 %v4430
    %4634 = vmatpush1.bf16.msra.mxu0 %v4429
    %4635 = vmatprep.subr.bf16.mxu0 %v4434
    %4636 = vmatpush1.bf16.msra.mxu0 %v4433
    %4637 = vmatprep.subr.bf16.mxu0 %v4438
    %4638 = vmatpush1.bf16.msra.mxu0 %v4437
    %4639 = vmatprep.mubr.bf16.mxu0 %v4028
    %4640 = vmatmul.mubr.bf16.gmra.mrb[0].mxu0 %v4025
    %v4641 = vpop.f32.mrb[0].mxu0
    %v4642 = vadd.f32 0.0, %v4641
    %v4643 = vpop.f32.mrb[0].mxu0
    %v4644 = vadd.f32 0.0, %v4643
    %v4645 = vpop.f32.mrb[0].mxu0
    %v4646 = vadd.f32 0.0, %v4645
    %v4647 = vpop.f32.mrb[0].mxu0
    %v4648 = vadd.f32 0.0, %v4647
    %4649 = vmatprep.mubr.bf16.mxu0 %v4027
    %4650 = vmatmul.mubr.bf16.gmra.mrb[0].mxu0 %v4024
    %v4651 = vpop.f32.mrb[0].mxu0
    %v4652 = vadd.f32 0.0, %v4651
    %v4653 = vpop.f32.mrb[0].mxu0
    %v4654 = vadd.f32 0.0, %v4653
    %v4655 = vpop.f32.mrb[0].mxu0
    %v4656 = vadd.f32 0.0, %v4655
    %v4657 = vpop.f32.mrb[0].mxu0
    %v4658 = vadd.f32 0.0, %v4657
    %4659 = vdwg.mxu0
    %4660 = vmatprep.subr.bf16.mxu0 %v4442
    %4661 = vmatpush1.bf16.msra.mxu0 %v4441
    %4662 = vmatprep.subr.bf16.mxu0 %v4446
    %4663 = vmatpush1.bf16.msra.mxu0 %v4445
    %4664 = vmatprep.subr.bf16.mxu0 %v4450
    %4665 = vmatpush1.bf16.msra.mxu0 %v4449
    %4666 = vmatprep.subr.bf16.mxu0 %v4454
    %4667 = vmatpush1.bf16.msra.mxu0 %v4453
    %4668 = vmatprep.subr.bf16.mxu0 %v4458
    %4669 = vmatpush1.bf16.msra.mxu0 %v4457
    %4670 = vmatprep.subr.bf16.mxu0 %v4462
    %4671 = vmatpush1.bf16.msra.mxu0 %v4461
    %4672 = vmatprep.subr.bf16.mxu0 %v4466
    %4673 = vmatpush1.bf16.msra.mxu0 %v4465
    %4674 = vmatprep.subr.bf16.mxu0 %v4470
    %4675 = vmatpush1.bf16.msra.mxu0 %v4469
    %4676 = vmatprep.subr.bf16.mxu0 %v4474
    %4677 = vmatpush1.bf16.msra.mxu0 %v4473
    %4678 = vmatprep.subr.bf16.mxu0 %v4478
    %4679 = vmatpush1.bf16.msra.mxu0 %v4477
    %4680 = vmatprep.subr.bf16.mxu0 %v4482
    %4681 = vmatpush1.bf16.msra.mxu0 %v4481
    %4682 = vmatprep.subr.bf16.mxu0 %v4486
    %4683 = vmatpush1.bf16.msra.mxu0 %v4485
    %4684 = vmatprep.subr.bf16.mxu0 0
    %4685 = vmatpush1.bf16.msra.mxu0 0
    %4686 = vmatprep.subr.bf16.mxu0 0
    %4687 = vmatpush1.bf16.msra.mxu0 0
    %4688 = vmatprep.subr.bf16.mxu0 0
    %4689 = vmatpush1.bf16.msra.mxu0 0
    %4690 = vmatprep.subr.bf16.mxu0 0
    %4691 = vmatpush1.bf16.msra.mxu0 0
    %4692 = vmatprep.mubr.bf16.mxu0 %v4602
    %4693 = vmatmul.mubr.bf16.gmra.mrb[0].mxu0 %v4031
    %v4694 = vpop.f32.mrb[0].mxu0
    %v4695 = vadd.f32 %v4642, %v4694
    %v4696 = vpop.f32.mrb[0].mxu0
    %v4697 = vadd.f32 %v4644, %v4696
    %v4698 = vpop.f32.mrb[0].mxu0
    %v4699 = vadd.f32 %v4646, %v4698
    %v4700 = vpop.f32.mrb[0].mxu0
    %v4701 = vadd.f32 %v4648, %v4700
    %4702 = vmatprep.mubr.bf16.mxu0 %v4605
    %4703 = vmatmul.mubr.bf16.gmra.mrb[0].mxu0 %v4030
    %v4704 = vpop.f32.mrb[0].mxu0
    %v4705 = vadd.f32 %v4652, %v4704
    %v4706 = vpop.f32.mrb[0].mxu0
    %v4707 = vadd.f32 %v4654, %v4706
    %v4708 = vpop.f32.mrb[0].mxu0
    %v4709 = vadd.f32 %v4656, %v4708
    %v4710 = vpop.f32.mrb[0].mxu0
    %v4711 = vadd.f32 %v4658, %v4710
    %4712 = vdwg.mxu0
    %4713 = vmatprep.subr.bf16.mxu0 %v4380
    %4714 = vmatpush1.bf16.msra.mxu0 %v4379
    %4715 = vmatprep.subr.bf16.mxu0 %v4384
    %4716 = vmatpush1.bf16.msra.mxu0 %v4383
    %4717 = vmatprep.subr.bf16.mxu0 %v4388
    %4718 = vmatpush1.bf16.msra.mxu0 %v4387
    %4719 = vmatprep.subr.bf16.mxu0 %v4392
    %4720 = vmatpush1.bf16.msra.mxu0 %v4391
    %4721 = vmatprep.subr.bf16.mxu0 %v4396
    %4722 = vmatpush1.bf16.msra.mxu0 %v4395
    %4723 = vmatprep.subr.bf16.mxu0 %v4400
    %4724 = vmatpush1.bf16.msra.mxu0 %v4399
    %4725 = vmatprep.subr.bf16.mxu0 %v4404
    %4726 = vmatpush1.bf16.msra.mxu0 %v4403
    %4727 = vmatprep.subr.bf16.mxu0 %v4408
    %4728 = vmatpush1.bf16.msra.mxu0 %v4407
    %4729 = vmatprep.subr.bf16.mxu0 %v4412
    %4730 = vmatpush1.bf16.msra.mxu0 %v4411
    %4731 = vmatprep.subr.bf16.mxu0 %v4416
    %4732 = vmatpush1.bf16.msra.mxu0 %v4415
    %4733 = vmatprep.subr.bf16.mxu0 %v4420
    %4734 = vmatpush1.bf16.msra.mxu0 %v4419
    %4735 = vmatprep.subr.bf16.mxu0 %v4424
    %4736 = vmatpush1.bf16.msra.mxu0 %v4423
    %4737 = vmatprep.subr.bf16.mxu0 %v4428
    %4738 = vmatpush1.bf16.msra.mxu0 %v4427
    %4739 = vmatprep.subr.bf16.mxu0 %v4432
    %4740 = vmatpush1.bf16.msra.mxu0 %v4431
    %4741 = vmatprep.subr.bf16.mxu0 %v4436
    %4742 = vmatpush1.bf16.msra.mxu0 %v4435
    %4743 = vmatprep.subr.bf16.mxu0 %v4440
    %4744 = vmatpush1.bf16.msra.mxu0 %v4439
    %4745 = vmatprep.mubr.bf16.mxu0 %v4028
    %4746 = vmatmul.mubr.bf16.gmra.mrb[0].mxu0 %v4025
    %v4747 = vpop.f32.mrb[0].mxu0
    %v4748 = vadd.f32 0.0, %v4747
    %v4749 = vpop.f32.mrb[0].mxu0
    %v4750 = vadd.f32 0.0, %v4749
    %v4751 = vpop.f32.mrb[0].mxu0
    %v4752 = vadd.f32 0.0, %v4751
    %v4753 = vpop.f32.mrb[0].mxu0
    %v4754 = vadd.f32 0.0, %v4753
    %4755 = vmatprep.mubr.bf16.mxu0 %v4027
    %4756 = vmatmul.mubr.bf16.gmra.mrb[0].mxu0 %v4024
    %v4757 = vpop.f32.mrb[0].mxu0
    %v4758 = vadd.f32 0.0, %v4757
    %v4759 = vpop.f32.mrb[0].mxu0
    %v4760 = vadd.f32 0.0, %v4759
    %v4761 = vpop.f32.mrb[0].mxu0
    %v4762 = vadd.f32 0.0, %v4761
    %v4763 = vpop.f32.mrb[0].mxu0
    %v4764 = vadd.f32 0.0, %v4763
    %4765 = vdwg.mxu0
    %4766 = vmatprep.subr.bf16.mxu0 %v4444
    %4767 = vmatpush1.bf16.msra.mxu0 %v4443
    %4768 = vmatprep.subr.bf16.mxu0 %v4448
    %4769 = vmatpush1.bf16.msra.mxu0 %v4447
    %4770 = vmatprep.subr.bf16.mxu0 %v4452
    %4771 = vmatpush1.bf16.msra.mxu0 %v4451
    %4772 = vmatprep.subr.bf16.mxu0 %v4456
    %4773 = vmatpush1.bf16.msra.mxu0 %v4455
    %4774 = vmatprep.subr.bf16.mxu0 %v4460
    %4775 = vmatpush1.bf16.msra.mxu0 %v4459
    %4776 = vmatprep.subr.bf16.mxu0 %v4464
    %4777 = vmatpush1.bf16.msra.mxu0 %v4463
    %4778 = vmatprep.subr.bf16.mxu0 %v4468
    %4779 = vmatpush1.bf16.msra.mxu0 %v4467
    %4780 = vmatprep.subr.bf16.mxu0 %v4472
    %4781 = vmatpush1.bf16.msra.mxu0 %v4471
    %4782 = vmatprep.subr.bf16.mxu0 %v4476
    %4783 = vmatpush1.bf16.msra.mxu0 %v4475
    %4784 = vmatprep.subr.bf16.mxu0 %v4480
    %4785 = vmatpush1.bf16.msra.mxu0 %v4479
    %4786 = vmatprep.subr.bf16.mxu0 %v4484
    %4787 = vmatpush1.bf16.msra.mxu0 %v4483
    %4788 = vmatprep.subr.bf16.mxu0 %v4488
    %4789 = vmatpush1.bf16.msra.mxu0 %v4487
    %4790 = vmatprep.subr.bf16.mxu0 0
    %4791 = vmatpush1.bf16.msra.mxu0 0
    %4792 = vmatprep.subr.bf16.mxu0 0
    %4793 = vmatpush1.bf16.msra.mxu0 0
    %4794 = vmatprep.subr.bf16.mxu0 0
    %4795 = vmatpush1.bf16.msra.mxu0 0
    %4796 = vmatprep.subr.bf16.mxu0 0
    %4797 = vmatpush1.bf16.msra.mxu0 0
    %4798 = vmatprep.mubr.bf16.mxu0 %v4602
    %4799 = vmatmul.mubr.bf16.gmra.mrb[0].mxu0 %v4031
    %v4800 = vpop.f32.mrb[0].mxu0
    %v4801 = vadd.f32 %v4748, %v4800
    %v4802 = vpop.f32.mrb[0].mxu0
    %v4803 = vadd.f32 %v4750, %v4802
    %v4804 = vpop.f32.mrb[0].mxu0
    %v4805 = vadd.f32 %v4752, %v4804
    %v4806 = vpop.f32.mrb[0].mxu0
    %v4807 = vadd.f32 %v4754, %v4806
    %4808 = vmatprep.mubr.bf16.mxu0 %v4605
    %4809 = vmatmul.mubr.bf16.gmra.mrb[0].mxu0 %v4030
    %v4810 = vpop.f32.mrb[0].mxu0
    %v4811 = vadd.f32 %v4758, %v4810
    %v4812 = vpop.f32.mrb[0].mxu0
    %v4813 = vadd.f32 %v4760, %v4812
    %v4814 = vpop.f32.mrb[0].mxu0
    %v4815 = vadd.f32 %v4762, %v4814
    %v4816 = vpop.f32.mrb[0].mxu0
    %v4817 = vadd.f32 %v4764, %v4816
    %4818 = vdwg.mxu0
    %v4819 = vadd.f32 %v3774, %v4695
    %v4820 = vadd.f32 %v3776, %v4697
    %v4821 = vadd.f32 %v3880, %v4801
    %v4822 = vadd.f32 %v3882, %v4803
    %v4823 = vadd.f32 %v3778, %v4699
    %v4824 = vadd.f32 %v3780, %v4701
    %v4825 = vadd.f32 %v3884, %v4805
    %v4826 = vadd.f32 %v3886, %v4807
    %v4827 = vadd.f32 %v3784, %v4705
    %v4828 = vadd.f32 %v3786, %v4707
    %v4829 = vadd.f32 %v3890, %v4811
    %v4830 = vadd.f32 %v3892, %v4813
    %v4831 = vadd.f32 %v3788, %v4709
    %v4832 = vadd.f32 %v3790, %v4711
    %v4833 = vadd.f32 %v3894, %v4815
    %v4834 = vadd.f32 %v3896, %v4817
    %s4835 = scalar_lea.vmem [#allocation5], 896
    %v4836 = vld [vmem:[%s4835] sm:$0xff]
    %v4837 = vld [vmem:[%s4835 + $0x8] sm:$0xff]
    %v4838 = vld [vmem:[%s4835 + $0x10] sm:$0xff]
    %v4839 = vld [vmem:[%s4835 + $0x18] sm:$0xff]
    %v4840 = vld [vmem:[%s4835 + $0x20] sm:$0xff]
    %v4841 = vld [vmem:[%s4835 + $0x28] sm:$0xff]
    %v4842 = vld [vmem:[%s4835 + $0x30] sm:$0xff]
    %v4843 = vld [vmem:[%s4835 + $0x38] sm:$0xff]
    %v4844 = vld [vmem:[%s4835 + $0x40] sm:$0xff]
    %v4845 = vld [vmem:[%s4835 + $0x48] sm:$0xff]
    %v4846 = vld [vmem:[%s4835 + $0x50] sm:$0xff]
    %v4847 = vld [vmem:[%s4835 + $0x58] sm:$0xff]
    %v4848 = vld [vmem:[%s4835 + $0x60] sm:$0xff]
    %v4849 = vld [vmem:[%s4835 + $0x68] sm:$0xff]
    %v4850 = vld [vmem:[%s4835 + $0x70] sm:$0xff]
    %v4851 = vld [vmem:[%s4835 + $0x78] sm:$0xff]
    %v4852 = vld [vmem:[%s4835 + $0x80] sm:$0xff]
    %v4853 = vld [vmem:[%s4835 + $0x88] sm:$0xff]
    %v4854 = vld [vmem:[%s4835 + $0x90] sm:$0xff]
    %v4855 = vld [vmem:[%s4835 + $0x98] sm:$0xff]
    %v4856 = vld [vmem:[%s4835 + $0xa0] sm:$0xff]
    %v4857 = vld [vmem:[%s4835 + $0xa8] sm:$0xff]
    %v4858 = vld [vmem:[%s4835 + $0xb0] sm:$0xff]
    %v4859 = vld [vmem:[%s4835 + $0xb8] sm:$0xff]
    %v4860 = vld [vmem:[%s4835 + $0xc0] sm:$0xff]
    %v4861 = vld [vmem:[%s4835 + $0xc8] sm:$0xff]
    %v4862 = vld [vmem:[%s4835 + $0xd0] sm:$0xff]
    %v4863 = vld [vmem:[%s4835 + $0xd8] sm:$0xff]
    %v4864 = vld [vmem:[%s4835 + $0xe0] sm:$0xff]
    %v4865 = vld [vmem:[%s4835 + $0xe8] sm:$0xff]
    %v4866 = vld [vmem:[%s4835 + $0xf0] sm:$0xff]
    %v4867 = vld [vmem:[%s4835 + $0xf8] sm:$0xff]
    %v4868 = vld [vmem:[%s4835 + $0x100] sm:$0xff]
    %v4869 = vld [vmem:[%s4835 + $0x108] sm:$0xff]
    %v4870 = vld [vmem:[%s4835 + $0x110] sm:$0xff]
    %v4871 = vld [vmem:[%s4835 + $0x118] sm:$0xff]
    %v4872 = vld [vmem:[%s4835 + $0x120] sm:$0xff]
    %v4873 = vld [vmem:[%s4835 + $0x128] sm:$0xff]
    %v4874 = vld [vmem:[%s4835 + $0x130] sm:$0xff]
    %v4875 = vld [vmem:[%s4835 + $0x138] sm:$0xff]
    %v4876 = vld [vmem:[%s4835 + $0x140] sm:$0xff]
    %v4877 = vld [vmem:[%s4835 + $0x148] sm:$0xff]
    %v4878 = vld [vmem:[%s4835 + $0x150] sm:$0xff]
    %v4879 = vld [vmem:[%s4835 + $0x158] sm:$0xff]
    %v4880 = vld [vmem:[%s4835 + $0x160] sm:$0xff]
    %v4881 = vld [vmem:[%s4835 + $0x168] sm:$0xff]
    %v4882 = vld [vmem:[%s4835 + $0x170] sm:$0xff]
    %v4883 = vld [vmem:[%s4835 + $0x178] sm:$0xff]
    %v4884 = vld [vmem:[%s4835 + $0x180] sm:$0xff]
    %v4885 = vld [vmem:[%s4835 + $0x188] sm:$0xff]
    %v4886 = vld [vmem:[%s4835 + $0x190] sm:$0xff]
    %v4887 = vld [vmem:[%s4835 + $0x198] sm:$0xff]
    %v4888 = vld [vmem:[%s4835 + $0x1a0] sm:$0xff]
    %v4889 = vld [vmem:[%s4835 + $0x1a8] sm:$0xff]
    %v4890 = vld [vmem:[%s4835 + $0x1b0] sm:$0xff]
    %v4891 = vld [vmem:[%s4835 + $0x1b8] sm:$0xff]
    %v4892 = vld [vmem:[%s4835 + $0x1c0] sm:$0xff]
    %v4893 = vld [vmem:[%s4835 + $0x1c8] sm:$0xff]
    %v4894 = vld [vmem:[%s4835 + $0x1d0] sm:$0xff]
    %v4895 = vld [vmem:[%s4835 + $0x1d8] sm:$0xff]
    %v4896 = vld [vmem:[%s4835 + $0x1e0] sm:$0xff]
    %v4897 = vld [vmem:[%s4835 + $0x1e8] sm:$0xff]
    %v4898 = vld [vmem:[%s4835 + $0x1f0] sm:$0xff]
    %v4899 = vld [vmem:[%s4835 + $0x1f8] sm:$0xff]
    %v4900 = vld [vmem:[%s4835 + $0x200] sm:$0xff]
    %v4901 = vld [vmem:[%s4835 + $0x208] sm:$0xff]
    %v4902 = vld [vmem:[%s4835 + $0x210] sm:$0xff]
    %v4903 = vld [vmem:[%s4835 + $0x218] sm:$0xff]
    %v4904 = vld [vmem:[%s4835 + $0x220] sm:$0xff]
    %v4905 = vld [vmem:[%s4835 + $0x228] sm:$0xff]
    %v4906 = vld [vmem:[%s4835 + $0x230] sm:$0xff]
    %v4907 = vld [vmem:[%s4835 + $0x238] sm:$0xff]
    %v4908 = vld [vmem:[%s4835 + $0x240] sm:$0xff]
    %v4909 = vld [vmem:[%s4835 + $0x248] sm:$0xff]
    %v4910 = vld [vmem:[%s4835 + $0x250] sm:$0xff]
    %v4911 = vld [vmem:[%s4835 + $0x258] sm:$0xff]
    %v4912 = vld [vmem:[%s4835 + $0x260] sm:$0xff]
    %v4913 = vld [vmem:[%s4835 + $0x268] sm:$0xff]
    %v4914 = vld [vmem:[%s4835 + $0x270] sm:$0xff]
    %v4915 = vld [vmem:[%s4835 + $0x278] sm:$0xff]
    %v4916 = vld [vmem:[%s4835 + $0x280] sm:$0xff]
    %v4917 = vld [vmem:[%s4835 + $0x288] sm:$0xff]
    %v4918 = vld [vmem:[%s4835 + $0x290] sm:$0xff]
    %v4919 = vld [vmem:[%s4835 + $0x298] sm:$0xff]
    %v4920 = vld [vmem:[%s4835 + $0x2a0] sm:$0xff]
    %v4921 = vld [vmem:[%s4835 + $0x2a8] sm:$0xff]
    %v4922 = vld [vmem:[%s4835 + $0x2b0] sm:$0xff]
    %v4923 = vld [vmem:[%s4835 + $0x2b8] sm:$0xff]
    %v4924 = vld [vmem:[%s4835 + $0x2c0] sm:$0xff]
    %v4925 = vld [vmem:[%s4835 + $0x2c8] sm:$0xff]
    %v4926 = vld [vmem:[%s4835 + $0x2d0] sm:$0xff]
    %v4927 = vld [vmem:[%s4835 + $0x2d8] sm:$0xff]
    %v4928 = vld [vmem:[%s4835 + $0x2e0] sm:$0xff]
    %v4929 = vld [vmem:[%s4835 + $0x2e8] sm:$0xff]
    %v4930 = vld [vmem:[%s4835 + $0x2f0] sm:$0xff]
    %v4931 = vld [vmem:[%s4835 + $0x2f8] sm:$0xff]
    %v4932 = vld [vmem:[%s4835 + $0x300] sm:$0xff]
    %v4933 = vld [vmem:[%s4835 + $0x308] sm:$0xff]
    %v4934 = vld [vmem:[%s4835 + $0x310] sm:$0xff]
    %v4935 = vld [vmem:[%s4835 + $0x318] sm:$0xff]
    %v4936 = vld [vmem:[%s4835 + $0x320] sm:$0xff]
    %v4937 = vld [vmem:[%s4835 + $0x328] sm:$0xff]
    %v4938 = vld [vmem:[%s4835 + $0x330] sm:$0xff]
    %v4939 = vld [vmem:[%s4835 + $0x338] sm:$0xff]
    %v4940 = vld [vmem:[%s4835 + $0x340] sm:$0xff]
    %v4941 = vld [vmem:[%s4835 + $0x348] sm:$0xff]
    %v4942 = vld [vmem:[%s4835 + $0x350] sm:$0xff]
    %v4943 = vld [vmem:[%s4835 + $0x358] sm:$0xff]
    %v4944 = vld [vmem:[%s4835 + $0x360] sm:$0xff]
    %v4945 = vld [vmem:[%s4835 + $0x368] sm:$0xff]
    %v4946 = vld [vmem:[%s4835 + $0x370] sm:$0xff]
    %v4947 = vld [vmem:[%s4835 + $0x378] sm:$0xff]
    %s4948 = scalar_lea.vmem [#allocation5], 2688
    %v4949 = vld [vmem:[%s4948] sm:$0xff]
    %v4950 = vld [vmem:[%s4948 + $0x8] sm:$0xff]
    %v4951 = vld [vmem:[%s4948 + $0x10] sm:$0xff]
    %v4952 = vld [vmem:[%s4948 + $0x18] sm:$0xff]
    %v4953 = vld [vmem:[%s4948 + $0x20] sm:$0xff]
    %v4954 = vld [vmem:[%s4948 + $0x28] sm:$0xff]
    %v4955 = vld [vmem:[%s4948 + $0x30] sm:$0xff]
    %v4956 = vld [vmem:[%s4948 + $0x38] sm:$0xff]
    %v4957 = vld [vmem:[%s4948 + $0x40] sm:$0xff]
    %v4958 = vld [vmem:[%s4948 + $0x48] sm:$0xff]
    %v4959 = vld [vmem:[%s4948 + $0x50] sm:$0xff]
    %v4960 = vld [vmem:[%s4948 + $0x58] sm:$0xff]
    %v4961 = vld [vmem:[%s4948 + $0x60] sm:$0xff]
    %v4962 = vld [vmem:[%s4948 + $0x68] sm:$0xff]
    %v4963 = vld [vmem:[%s4948 + $0x70] sm:$0xff]
    %v4964 = vld [vmem:[%s4948 + $0x78] sm:$0xff]
    %v4965 = vld [vmem:[%s4948 + $0x80] sm:$0xff]
    %v4966 = vld [vmem:[%s4948 + $0x88] sm:$0xff]
    %v4967 = vld [vmem:[%s4948 + $0x90] sm:$0xff]
    %v4968 = vld [vmem:[%s4948 + $0x98] sm:$0xff]
    %v4969 = vld [vmem:[%s4948 + $0xa0] sm:$0xff]
    %v4970 = vld [vmem:[%s4948 + $0xa8] sm:$0xff]
    %v4971 = vld [vmem:[%s4948 + $0xb0] sm:$0xff]
    %v4972 = vld [vmem:[%s4948 + $0xb8] sm:$0xff]
    %v4973 = vld [vmem:[%s4948 + $0xc0] sm:$0xff]
    %v4974 = vld [vmem:[%s4948 + $0xc8] sm:$0xff]
    %v4975 = vld [vmem:[%s4948 + $0xd0] sm:$0xff]
    %v4976 = vld [vmem:[%s4948 + $0xd8] sm:$0xff]
    %v4977 = vld [vmem:[%s4948 + $0xe0] sm:$0xff]
    %v4978 = vld [vmem:[%s4948 + $0xe8] sm:$0xff]
    %v4979 = vld [vmem:[%s4948 + $0xf0] sm:$0xff]
    %v4980 = vld [vmem:[%s4948 + $0xf8] sm:$0xff]
    %v4981 = vld [vmem:[%s4948 + $0x100] sm:$0xff]
    %v4982 = vld [vmem:[%s4948 + $0x108] sm:$0xff]
    %v4983 = vld [vmem:[%s4948 + $0x110] sm:$0xff]
    %v4984 = vld [vmem:[%s4948 + $0x118] sm:$0xff]
    %v4985 = vld [vmem:[%s4948 + $0x120] sm:$0xff]
    %v4986 = vld [vmem:[%s4948 + $0x128] sm:$0xff]
    %v4987 = vld [vmem:[%s4948 + $0x130] sm:$0xff]
    %v4988 = vld [vmem:[%s4948 + $0x138] sm:$0xff]
    %v4989 = vld [vmem:[%s4948 + $0x140] sm:$0xff]
    %v4990 = vld [vmem:[%s4948 + $0x148] sm:$0xff]
    %v4991 = vld [vmem:[%s4948 + $0x150] sm:$0xff]
    %v4992 = vld [vmem:[%s4948 + $0x158] sm:$0xff]
    %v4993 = vld [vmem:[%s4948 + $0x160] sm:$0xff]
    %v4994 = vld [vmem:[%s4948 + $0x168] sm:$0xff]
    %v4995 = vld [vmem:[%s4948 + $0x170] sm:$0xff]
    %v4996 = vld [vmem:[%s4948 + $0x178] sm:$0xff]
    %v4997 = vld [vmem:[%s4948 + $0x180] sm:$0xff]
    %v4998 = vld [vmem:[%s4948 + $0x188] sm:$0xff]
    %v4999 = vld [vmem:[%s4948 + $0x190] sm:$0xff]
    %v5000 = vld [vmem:[%s4948 + $0x198] sm:$0xff]
    %v5001 = vld [vmem:[%s4948 + $0x1a0] sm:$0xff]
    %v5002 = vld [vmem:[%s4948 + $0x1a8] sm:$0xff]
    %v5003 = vld [vmem:[%s4948 + $0x1b0] sm:$0xff]
    %v5004 = vld [vmem:[%s4948 + $0x1b8] sm:$0xff]
    %v5005 = vld [vmem:[%s4948 + $0x1c0] sm:$0xff]
    %v5006 = vld [vmem:[%s4948 + $0x1c8] sm:$0xff]
    %v5007 = vld [vmem:[%s4948 + $0x1d0] sm:$0xff]
    %v5008 = vld [vmem:[%s4948 + $0x1d8] sm:$0xff]
    %v5009 = vld [vmem:[%s4948 + $0x1e0] sm:$0xff]
    %v5010 = vld [vmem:[%s4948 + $0x1e8] sm:$0xff]
    %v5011 = vld [vmem:[%s4948 + $0x1f0] sm:$0xff]
    %v5012 = vld [vmem:[%s4948 + $0x1f8] sm:$0xff]
    %v5013 = vld [vmem:[%s4948 + $0x200] sm:$0xff]
    %v5014 = vld [vmem:[%s4948 + $0x208] sm:$0xff]
    %v5015 = vld [vmem:[%s4948 + $0x210] sm:$0xff]
    %v5016 = vld [vmem:[%s4948 + $0x218] sm:$0xff]
    %v5017 = vld [vmem:[%s4948 + $0x220] sm:$0xff]
    %v5018 = vld [vmem:[%s4948 + $0x228] sm:$0xff]
    %v5019 = vld [vmem:[%s4948 + $0x230] sm:$0xff]
    %v5020 = vld [vmem:[%s4948 + $0x238] sm:$0xff]
    %v5021 = vld [vmem:[%s4948 + $0x240] sm:$0xff]
    %v5022 = vld [vmem:[%s4948 + $0x248] sm:$0xff]
    %v5023 = vld [vmem:[%s4948 + $0x250] sm:$0xff]
    %v5024 = vld [vmem:[%s4948 + $0x258] sm:$0xff]
    %v5025 = vld [vmem:[%s4948 + $0x260] sm:$0xff]
    %v5026 = vld [vmem:[%s4948 + $0x268] sm:$0xff]
    %v5027 = vld [vmem:[%s4948 + $0x270] sm:$0xff]
    %v5028 = vld [vmem:[%s4948 + $0x278] sm:$0xff]
    %v5029 = vld [vmem:[%s4948 + $0x280] sm:$0xff]
    %v5030 = vld [vmem:[%s4948 + $0x288] sm:$0xff]
    %v5031 = vld [vmem:[%s4948 + $0x290] sm:$0xff]
    %v5032 = vld [vmem:[%s4948 + $0x298] sm:$0xff]
    %v5033 = vld [vmem:[%s4948 + $0x2a0] sm:$0xff]
    %v5034 = vld [vmem:[%s4948 + $0x2a8] sm:$0xff]
    %v5035 = vld [vmem:[%s4948 + $0x2b0] sm:$0xff]
    %v5036 = vld [vmem:[%s4948 + $0x2b8] sm:$0xff]
    %v5037 = vld [vmem:[%s4948 + $0x2c0] sm:$0xff]
    %v5038 = vld [vmem:[%s4948 + $0x2c8] sm:$0xff]
    %v5039 = vld [vmem:[%s4948 + $0x2d0] sm:$0xff]
    %v5040 = vld [vmem:[%s4948 + $0x2d8] sm:$0xff]
    %v5041 = vld [vmem:[%s4948 + $0x2e0] sm:$0xff]
    %v5042 = vld [vmem:[%s4948 + $0x2e8] sm:$0xff]
    %v5043 = vld [vmem:[%s4948 + $0x2f0] sm:$0xff]
    %v5044 = vld [vmem:[%s4948 + $0x2f8] sm:$0xff]
    %v5045 = vld [vmem:[%s4948 + $0x300] sm:$0xff]
    %v5046 = vld [vmem:[%s4948 + $0x308] sm:$0xff]
    %v5047 = vld [vmem:[%s4948 + $0x310] sm:$0xff]
    %v5048 = vld [vmem:[%s4948 + $0x318] sm:$0xff]
    %v5049 = vld [vmem:[%s4948 + $0x320] sm:$0xff]
    %v5050 = vld [vmem:[%s4948 + $0x328] sm:$0xff]
    %v5051 = vld [vmem:[%s4948 + $0x330] sm:$0xff]
    %v5052 = vld [vmem:[%s4948 + $0x338] sm:$0xff]
    %v5053 = vld [vmem:[%s4948 + $0x340] sm:$0xff]
    %v5054 = vld [vmem:[%s4948 + $0x348] sm:$0xff]
    %v5055 = vld [vmem:[%s4948 + $0x350] sm:$0xff]
    %v5056 = vld [vmem:[%s4948 + $0x358] sm:$0xff]
    %v5057 = vld [vmem:[%s4948 + $0x360] sm:$0xff]
    %v5058 = vld [vmem:[%s4948 + $0x368] sm:$0xff]
    %v5059 = vld [vmem:[%s4948 + $0x370] sm:$0xff]
    %v5060 = vld [vmem:[%s4948 + $0x378] sm:$0xff]
    %v5173 = vunpack.c.l.b16 %v4949
    %v5174 = vunpack.c.h.b16 %v4949
    %v5175 = vunpack.c.l.b16 %v4950
    %v5176 = vunpack.c.h.b16 %v4950
    %v5177 = vunpack.c.l.b16 %v4951
    %v5178 = vunpack.c.h.b16 %v4951
    %v5179 = vunpack.c.l.b16 %v4952
    %v5180 = vunpack.c.h.b16 %v4952
    %v5181 = vunpack.c.l.b16 %v4953
    %v5182 = vunpack.c.h.b16 %v4953
    %v5183 = vunpack.c.l.b16 %v4954
    %v5184 = vunpack.c.h.b16 %v4954
    %v5185 = vunpack.c.l.b16 %v4955
    %v5186 = vunpack.c.h.b16 %v4955
    %v5187 = vunpack.c.l.b16 %v4956
    %v5188 = vunpack.c.h.b16 %v4956
    %v5189 = vunpack.c.l.b16 %v4957
    %v5190 = vunpack.c.h.b16 %v4957
    %v5191 = vunpack.c.l.b16 %v4958
    %v5192 = vunpack.c.h.b16 %v4958
    %v5193 = vunpack.c.l.b16 %v4959
    %v5194 = vunpack.c.h.b16 %v4959
    %v5195 = vunpack.c.l.b16 %v4960
    %v5196 = vunpack.c.h.b16 %v4960
    %v5197 = vunpack.c.l.b16 %v4961
    %v5198 = vunpack.c.h.b16 %v4961
    %v5199 = vunpack.c.l.b16 %v4962
    %v5200 = vunpack.c.h.b16 %v4962
    %v5201 = vunpack.c.l.b16 %v4963
    %v5202 = vunpack.c.h.b16 %v4963
    %v5203 = vunpack.c.l.b16 %v4964
    %v5204 = vunpack.c.h.b16 %v4964
    %v5205 = vunpack.c.l.b16 %v4965
    %v5206 = vunpack.c.h.b16 %v4965
    %v5207 = vunpack.c.l.b16 %v4966
    %v5208 = vunpack.c.h.b16 %v4966
    %v5209 = vunpack.c.l.b16 %v4967
    %v5210 = vunpack.c.h.b16 %v4967
    %v5211 = vunpack.c.l.b16 %v4968
    %v5212 = vunpack.c.h.b16 %v4968
    %v5213 = vunpack.c.l.b16 %v4969
    %v5214 = vunpack.c.h.b16 %v4969
    %v5215 = vunpack.c.l.b16 %v4970
    %v5216 = vunpack.c.h.b16 %v4970
    %v5217 = vunpack.c.l.b16 %v4971
    %v5218 = vunpack.c.h.b16 %v4971
    %v5219 = vunpack.c.l.b16 %v4972
    %v5220 = vunpack.c.h.b16 %v4972
    %v5221 = vunpack.c.l.b16 %v4973
    %v5222 = vunpack.c.h.b16 %v4973
    %v5223 = vunpack.c.l.b16 %v4974
    %v5224 = vunpack.c.h.b16 %v4974
    %v5225 = vunpack.c.l.b16 %v4975
    %v5226 = vunpack.c.h.b16 %v4975
    %v5227 = vunpack.c.l.b16 %v4976
    %v5228 = vunpack.c.h.b16 %v4976
    %v5229 = vunpack.c.l.b16 %v4977
    %v5230 = vunpack.c.h.b16 %v4977
    %v5231 = vunpack.c.l.b16 %v4978
    %v5232 = vunpack.c.h.b16 %v4978
    %v5233 = vunpack.c.l.b16 %v4979
    %v5234 = vunpack.c.h.b16 %v4979
    %v5235 = vunpack.c.l.b16 %v4980
    %v5236 = vunpack.c.h.b16 %v4980
    %v5237 = vunpack.c.l.b16 %v4981
    %v5238 = vunpack.c.h.b16 %v4981
    %v5239 = vunpack.c.l.b16 %v4982
    %v5240 = vunpack.c.h.b16 %v4982
    %v5241 = vunpack.c.l.b16 %v4983
    %v5242 = vunpack.c.h.b16 %v4983
    %v5243 = vunpack.c.l.b16 %v4984
    %v5244 = vunpack.c.h.b16 %v4984
    %v5245 = vunpack.c.l.b16 %v4985
    %v5246 = vunpack.c.h.b16 %v4985
    %v5247 = vunpack.c.l.b16 %v4986
    %v5248 = vunpack.c.h.b16 %v4986
    %v5249 = vunpack.c.l.b16 %v4987
    %v5250 = vunpack.c.h.b16 %v4987
    %v5251 = vunpack.c.l.b16 %v4988
    %v5252 = vunpack.c.h.b16 %v4988
    %v5253 = vunpack.c.l.b16 %v4989
    %v5254 = vunpack.c.h.b16 %v4989
    %v5255 = vunpack.c.l.b16 %v4990
    %v5256 = vunpack.c.h.b16 %v4990
    %v5257 = vunpack.c.l.b16 %v4991
    %v5258 = vunpack.c.h.b16 %v4991
    %v5259 = vunpack.c.l.b16 %v4992
    %v5260 = vunpack.c.h.b16 %v4992
    %v5261 = vunpack.c.l.b16 %v4993
    %v5262 = vunpack.c.h.b16 %v4993
    %v5263 = vunpack.c.l.b16 %v4994
    %v5264 = vunpack.c.h.b16 %v4994
    %v5265 = vunpack.c.l.b16 %v4995
    %v5266 = vunpack.c.h.b16 %v4995
    %v5267 = vunpack.c.l.b16 %v4996
    %v5268 = vunpack.c.h.b16 %v4996
    %v5269 = vunpack.c.l.b16 %v4997
    %v5270 = vunpack.c.h.b16 %v4997
    %v5271 = vunpack.c.l.b16 %v4998
    %v5272 = vunpack.c.h.b16 %v4998
    %v5273 = vunpack.c.l.b16 %v4999
    %v5274 = vunpack.c.h.b16 %v4999
    %v5275 = vunpack.c.l.b16 %v5000
    %v5276 = vunpack.c.h.b16 %v5000
    %v5277 = vunpack.c.l.b16 %v5001
    %v5278 = vunpack.c.h.b16 %v5001
    %v5279 = vunpack.c.l.b16 %v5002
    %v5280 = vunpack.c.h.b16 %v5002
    %v5281 = vunpack.c.l.b16 %v5003
    %v5282 = vunpack.c.h.b16 %v5003
    %v5283 = vunpack.c.l.b16 %v5004
    %v5284 = vunpack.c.h.b16 %v5004
    %v5285 = vunpack.c.l.b16 %v5005
    %v5286 = vunpack.c.h.b16 %v5005
    %v5287 = vunpack.c.l.b16 %v5006
    %v5288 = vunpack.c.h.b16 %v5006
    %v5289 = vunpack.c.l.b16 %v5007
    %v5290 = vunpack.c.h.b16 %v5007
    %v5291 = vunpack.c.l.b16 %v5008
    %v5292 = vunpack.c.h.b16 %v5008
    %v5293 = vunpack.c.l.b16 %v5009
    %v5294 = vunpack.c.h.b16 %v5009
    %v5295 = vunpack.c.l.b16 %v5010
    %v5296 = vunpack.c.h.b16 %v5010
    %v5297 = vunpack.c.l.b16 %v5011
    %v5298 = vunpack.c.h.b16 %v5011
    %v5299 = vunpack.c.l.b16 %v5012
    %v5300 = vunpack.c.h.b16 %v5012
    %v5301 = vunpack.c.l.b16 %v5013
    %v5302 = vunpack.c.h.b16 %v5013
    %v5303 = vunpack.c.l.b16 %v5014
    %v5304 = vunpack.c.h.b16 %v5014
    %v5305 = vunpack.c.l.b16 %v5015
    %v5306 = vunpack.c.h.b16 %v5015
    %v5307 = vunpack.c.l.b16 %v5016
    %v5308 = vunpack.c.h.b16 %v5016
    %v5309 = vunpack.c.l.b16 %v5017
    %v5310 = vunpack.c.h.b16 %v5017
    %v5311 = vunpack.c.l.b16 %v5018
    %v5312 = vunpack.c.h.b16 %v5018
    %v5313 = vunpack.c.l.b16 %v5019
    %v5314 = vunpack.c.h.b16 %v5019
    %v5315 = vunpack.c.l.b16 %v5020
    %v5316 = vunpack.c.h.b16 %v5020
    %v5317 = vunpack.c.l.b16 %v5021
    %v5318 = vunpack.c.h.b16 %v5021
    %v5319 = vunpack.c.l.b16 %v5022
    %v5320 = vunpack.c.h.b16 %v5022
    %v5321 = vunpack.c.l.b16 %v5023
    %v5322 = vunpack.c.h.b16 %v5023
    %v5323 = vunpack.c.l.b16 %v5024
    %v5324 = vunpack.c.h.b16 %v5024
    %v5325 = vunpack.c.l.b16 %v5025
    %v5326 = vunpack.c.h.b16 %v5025
    %v5327 = vunpack.c.l.b16 %v5026
    %v5328 = vunpack.c.h.b16 %v5026
    %v5329 = vunpack.c.l.b16 %v5027
    %v5330 = vunpack.c.h.b16 %v5027
    %v5331 = vunpack.c.l.b16 %v5028
    %v5332 = vunpack.c.h.b16 %v5028
    %v5333 = vunpack.c.l.b16 %v5029
    %v5334 = vunpack.c.h.b16 %v5029
    %v5335 = vunpack.c.l.b16 %v5030
    %v5336 = vunpack.c.h.b16 %v5030
    %v5337 = vunpack.c.l.b16 %v5031
    %v5338 = vunpack.c.h.b16 %v5031
    %v5339 = vunpack.c.l.b16 %v5032
    %v5340 = vunpack.c.h.b16 %v5032
    %v5341 = vunpack.c.l.b16 %v5033
    %v5342 = vunpack.c.h.b16 %v5033
    %v5343 = vunpack.c.l.b16 %v5034
    %v5344 = vunpack.c.h.b16 %v5034
    %v5345 = vunpack.c.l.b16 %v5035
    %v5346 = vunpack.c.h.b16 %v5035
    %v5347 = vunpack.c.l.b16 %v5036
    %v5348 = vunpack.c.h.b16 %v5036
    %v5349 = vunpack.c.l.b16 %v5037
    %v5350 = vunpack.c.h.b16 %v5037
    %v5351 = vunpack.c.l.b16 %v5038
    %v5352 = vunpack.c.h.b16 %v5038
    %v5353 = vunpack.c.l.b16 %v5039
    %v5354 = vunpack.c.h.b16 %v5039
    %v5355 = vunpack.c.l.b16 %v5040
    %v5356 = vunpack.c.h.b16 %v5040
    %v5357 = vunpack.c.l.b16 %v5041
    %v5358 = vunpack.c.h.b16 %v5041
    %v5359 = vunpack.c.l.b16 %v5042
    %v5360 = vunpack.c.h.b16 %v5042
    %v5361 = vunpack.c.l.b16 %v5043
    %v5362 = vunpack.c.h.b16 %v5043
    %v5363 = vunpack.c.l.b16 %v5044
    %v5364 = vunpack.c.h.b16 %v5044
    %v5365 = vunpack.c.l.b16 %v5045
    %v5366 = vunpack.c.h.b16 %v5045
    %v5367 = vunpack.c.l.b16 %v5046
    %v5368 = vunpack.c.h.b16 %v5046
    %v5369 = vunpack.c.l.b16 %v5047
    %v5370 = vunpack.c.h.b16 %v5047
    %v5371 = vunpack.c.l.b16 %v5048
    %v5372 = vunpack.c.h.b16 %v5048
    %v5373 = vunpack.c.l.b16 %v5049
    %v5374 = vunpack.c.h.b16 %v5049
    %v5375 = vunpack.c.l.b16 %v5050
    %v5376 = vunpack.c.h.b16 %v5050
    %v5377 = vunpack.c.l.b16 %v5051
    %v5378 = vunpack.c.h.b16 %v5051
    %v5379 = vunpack.c.l.b16 %v5052
    %v5380 = vunpack.c.h.b16 %v5052
    %v5381 = vunpack.c.l.b16 %v5053
    %v5382 = vunpack.c.h.b16 %v5053
    %v5383 = vunpack.c.l.b16 %v5054
    %v5384 = vunpack.c.h.b16 %v5054
    %v5385 = vunpack.c.l.b16 %v5055
    %v5386 = vunpack.c.h.b16 %v5055
    %v5387 = vunpack.c.l.b16 %v5056
    %v5388 = vunpack.c.h.b16 %v5056
    %v5389 = vunpack.c.l.b16 %v5057
    %v5390 = vunpack.c.h.b16 %v5057
    %v5391 = vunpack.c.l.b16 %v5058
    %v5392 = vunpack.c.h.b16 %v5058
    %v5393 = vunpack.c.l.b16 %v5059
    %v5394 = vunpack.c.h.b16 %v5059
    %v5395 = vunpack.c.l.b16 %v5060
    %v5396 = vunpack.c.h.b16 %v5060
    %v5397 = vpack.c.b16 %v5177, %v5173
    %v5398 = vpack.c.b16 %v5178, %v5174
    %v5399 = vpack.c.b16 %v5179, %v5175
    %v5400 = vpack.c.b16 %v5180, %v5176
    %v5401 = vpack.c.b16 %v5185, %v5181
    %v5402 = vpack.c.b16 %v5186, %v5182
    %v5403 = vpack.c.b16 %v5187, %v5183
    %v5404 = vpack.c.b16 %v5188, %v5184
    %v5405 = vpack.c.b16 %v5193, %v5189
    %v5406 = vpack.c.b16 %v5194, %v5190
    %v5407 = vpack.c.b16 %v5195, %v5191
    %v5408 = vpack.c.b16 %v5196, %v5192
    %v5409 = vpack.c.b16 %v5201, %v5197
    %v5410 = vpack.c.b16 %v5202, %v5198
    %v5411 = vpack.c.b16 %v5203, %v5199
    %v5412 = vpack.c.b16 %v5204, %v5200
    %v5413 = vpack.c.b16 %v5209, %v5205
    %v5414 = vpack.c.b16 %v5210, %v5206
    %v5415 = vpack.c.b16 %v5211, %v5207
    %v5416 = vpack.c.b16 %v5212, %v5208
    %v5417 = vpack.c.b16 %v5217, %v5213
    %v5418 = vpack.c.b16 %v5218, %v5214
    %v5419 = vpack.c.b16 %v5219, %v5215
    %v5420 = vpack.c.b16 %v5220, %v5216
    %v5421 = vpack.c.b16 %v5225, %v5221
    %v5422 = vpack.c.b16 %v5226, %v5222
    %v5423 = vpack.c.b16 %v5227, %v5223
    %v5424 = vpack.c.b16 %v5228, %v5224
    %v5425 = vpack.c.b16 %v5233, %v5229
    %v5426 = vpack.c.b16 %v5234, %v5230
    %v5427 = vpack.c.b16 %v5235, %v5231
    %v5428 = vpack.c.b16 %v5236, %v5232
    %v5429 = vpack.c.b16 %v5241, %v5237
    %v5430 = vpack.c.b16 %v5242, %v5238
    %v5431 = vpack.c.b16 %v5243, %v5239
    %v5432 = vpack.c.b16 %v5244, %v5240
    %v5433 = vpack.c.b16 %v5249, %v5245
    %v5434 = vpack.c.b16 %v5250, %v5246
    %v5435 = vpack.c.b16 %v5251, %v5247
    %v5436 = vpack.c.b16 %v5252, %v5248
    %v5437 = vpack.c.b16 %v5257, %v5253
    %v5438 = vpack.c.b16 %v5258, %v5254
    %v5439 = vpack.c.b16 %v5259, %v5255
    %v5440 = vpack.c.b16 %v5260, %v5256
    %v5441 = vpack.c.b16 %v5265, %v5261
    %v5442 = vpack.c.b16 %v5266, %v5262
    %v5443 = vpack.c.b16 %v5267, %v5263
    %v5444 = vpack.c.b16 %v5268, %v5264
    %v5445 = vpack.c.b16 %v5273, %v5269
    %v5446 = vpack.c.b16 %v5274, %v5270
    %v5447 = vpack.c.b16 %v5275, %v5271
    %v5448 = vpack.c.b16 %v5276, %v5272
    %v5449 = vpack.c.b16 %v5281, %v5277
    %v5450 = vpack.c.b16 %v5282, %v5278
    %v5451 = vpack.c.b16 %v5283, %v5279
    %v5452 = vpack.c.b16 %v5284, %v5280
    %v5453 = vpack.c.b16 %v5289, %v5285
    %v5454 = vpack.c.b16 %v5290, %v5286
    %v5455 = vpack.c.b16 %v5291, %v5287
    %v5456 = vpack.c.b16 %v5292, %v5288
    %v5457 = vpack.c.b16 %v5297, %v5293
    %v5458 = vpack.c.b16 %v5298, %v5294
    %v5459 = vpack.c.b16 %v5299, %v5295
    %v5460 = vpack.c.b16 %v5300, %v5296
    %v5461 = vpack.c.b16 %v5305, %v5301
    %v5462 = vpack.c.b16 %v5306, %v5302
    %v5463 = vpack.c.b16 %v5307, %v5303
    %v5464 = vpack.c.b16 %v5308, %v5304
    %v5465 = vpack.c.b16 %v5313, %v5309
    %v5466 = vpack.c.b16 %v5314, %v5310
    %v5467 = vpack.c.b16 %v5315, %v5311
    %v5468 = vpack.c.b16 %v5316, %v5312
    %v5469 = vpack.c.b16 %v5321, %v5317
    %v5470 = vpack.c.b16 %v5322, %v5318
    %v5471 = vpack.c.b16 %v5323, %v5319
    %v5472 = vpack.c.b16 %v5324, %v5320
    %v5473 = vpack.c.b16 %v5329, %v5325
    %v5474 = vpack.c.b16 %v5330, %v5326
    %v5475 = vpack.c.b16 %v5331, %v5327
    %v5476 = vpack.c.b16 %v5332, %v5328
    %v5477 = vpack.c.b16 %v5337, %v5333
    %v5478 = vpack.c.b16 %v5338, %v5334
    %v5479 = vpack.c.b16 %v5339, %v5335
    %v5480 = vpack.c.b16 %v5340, %v5336
    %v5481 = vpack.c.b16 %v5345, %v5341
    %v5482 = vpack.c.b16 %v5346, %v5342
    %v5483 = vpack.c.b16 %v5347, %v5343
    %v5484 = vpack.c.b16 %v5348, %v5344
    %v5485 = vpack.c.b16 %v5353, %v5349
    %v5486 = vpack.c.b16 %v5354, %v5350
    %v5487 = vpack.c.b16 %v5355, %v5351
    %v5488 = vpack.c.b16 %v5356, %v5352
    %v5489 = vpack.c.b16 %v5361, %v5357
    %v5490 = vpack.c.b16 %v5362, %v5358
    %v5491 = vpack.c.b16 %v5363, %v5359
    %v5492 = vpack.c.b16 %v5364, %v5360
    %v5493 = vpack.c.b16 %v5369, %v5365
    %v5494 = vpack.c.b16 %v5370, %v5366
    %v5495 = vpack.c.b16 %v5371, %v5367
    %v5496 = vpack.c.b16 %v5372, %v5368
    %v5497 = vpack.c.b16 %v5377, %v5373
    %v5498 = vpack.c.b16 %v5378, %v5374
    %v5499 = vpack.c.b16 %v5379, %v5375
    %v5500 = vpack.c.b16 %v5380, %v5376
    %v5501 = vpack.c.b16 %v5385, %v5381
    %v5502 = vpack.c.b16 %v5386, %v5382
    %v5503 = vpack.c.b16 %v5387, %v5383
    %v5504 = vpack.c.b16 %v5388, %v5384
    %v5505 = vpack.c.b16 %v5393, %v5389
    %v5506 = vpack.c.b16 %v5394, %v5390
    %v5507 = vpack.c.b16 %v5395, %v5391
    %v5508 = vpack.c.b16 %v5396, %v5392
    %5621 = vmatprep.subr.bf16.mxu0 %v5398
    %5622 = vmatpush1.bf16.msra.mxu0 %v5397
    %5623 = vmatprep.subr.bf16.mxu0 %v5402
    %5624 = vmatpush1.bf16.msra.mxu0 %v5401
    %5625 = vmatprep.subr.bf16.mxu0 %v5406
    %5626 = vmatpush1.bf16.msra.mxu0 %v5405
    %5627 = vmatprep.subr.bf16.mxu0 %v5410
    %5628 = vmatpush1.bf16.msra.mxu0 %v5409
    %5629 = vmatprep.subr.bf16.mxu0 %v5414
    %5630 = vmatpush1.bf16.msra.mxu0 %v5413
    %5631 = vmatprep.subr.bf16.mxu0 %v5418
    %5632 = vmatpush1.bf16.msra.mxu0 %v5417
    %5633 = vmatprep.subr.bf16.mxu0 %v5422
    %5634 = vmatpush1.bf16.msra.mxu0 %v5421
    %5635 = vmatprep.subr.bf16.mxu0 %v5426
    %5636 = vmatpush1.bf16.msra.mxu0 %v5425
    %5637 = vmatprep.subr.bf16.mxu0 %v5430
    %5638 = vmatpush1.bf16.msra.mxu0 %v5429
    %5639 = vmatprep.subr.bf16.mxu0 %v5434
    %5640 = vmatpush1.bf16.msra.mxu0 %v5433
    %5641 = vmatprep.subr.bf16.mxu0 %v5438
    %5642 = vmatpush1.bf16.msra.mxu0 %v5437
    %5643 = vmatprep.subr.bf16.mxu0 %v5442
    %5644 = vmatpush1.bf16.msra.mxu0 %v5441
    %5645 = vmatprep.subr.bf16.mxu0 %v5446
    %5646 = vmatpush1.bf16.msra.mxu0 %v5445
    %5647 = vmatprep.subr.bf16.mxu0 %v5450
    %5648 = vmatpush1.bf16.msra.mxu0 %v5449
    %5649 = vmatprep.subr.bf16.mxu0 %v5454
    %5650 = vmatpush1.bf16.msra.mxu0 %v5453
    %5651 = vmatprep.subr.bf16.mxu0 %v5458
    %5652 = vmatpush1.bf16.msra.mxu0 %v5457
    %5653 = vmatprep.mubr.bf16.mxu0 %v2300
    %5654 = vmatmul.mubr.bf16.gmra.mrb[0].mxu0 %v2288
    %v5655 = vpop.f32.mrb[0].mxu0
    %v5656 = vadd.f32 0.0, %v5655
    %v5657 = vpop.f32.mrb[0].mxu0
    %v5658 = vadd.f32 0.0, %v5657
    %v5659 = vpop.f32.mrb[0].mxu0
    %v5660 = vadd.f32 0.0, %v5659
    %v5661 = vpop.f32.mrb[0].mxu0
    %v5662 = vadd.f32 0.0, %v5661
    %5663 = vmatprep.mubr.bf16.mxu0 %v2330
    %5664 = vmatmul.mubr.bf16.gmra.mrb[0].mxu0 %v2327
    %v5665 = vpop.f32.mrb[0].mxu0
    %v5666 = vadd.f32 0.0, %v5665
    %v5667 = vpop.f32.mrb[0].mxu0
    %v5668 = vadd.f32 0.0, %v5667
    %v5669 = vpop.f32.mrb[0].mxu0
    %v5670 = vadd.f32 0.0, %v5669
    %v5671 = vpop.f32.mrb[0].mxu0
    %v5672 = vadd.f32 0.0, %v5671
    %5673 = vdwg.mxu0
    %5674 = vmatprep.subr.bf16.mxu0 %v5462
    %5675 = vmatpush1.bf16.msra.mxu0 %v5461
    %5676 = vmatprep.subr.bf16.mxu0 %v5466
    %5677 = vmatpush1.bf16.msra.mxu0 %v5465
    %5678 = vmatprep.subr.bf16.mxu0 %v5470
    %5679 = vmatpush1.bf16.msra.mxu0 %v5469
    %5680 = vmatprep.subr.bf16.mxu0 %v5474
    %5681 = vmatpush1.bf16.msra.mxu0 %v5473
    %5682 = vmatprep.subr.bf16.mxu0 %v5478
    %5683 = vmatpush1.bf16.msra.mxu0 %v5477
    %5684 = vmatprep.subr.bf16.mxu0 %v5482
    %5685 = vmatpush1.bf16.msra.mxu0 %v5481
    %5686 = vmatprep.subr.bf16.mxu0 %v5486
    %5687 = vmatpush1.bf16.msra.mxu0 %v5485
    %5688 = vmatprep.subr.bf16.mxu0 %v5490
    %5689 = vmatpush1.bf16.msra.mxu0 %v5489
    %5690 = vmatprep.subr.bf16.mxu0 %v5494
    %5691 = vmatpush1.bf16.msra.mxu0 %v5493
    %5692 = vmatprep.subr.bf16.mxu0 %v5498
    %5693 = vmatpush1.bf16.msra.mxu0 %v5497
    %5694 = vmatprep.subr.bf16.mxu0 %v5502
    %5695 = vmatpush1.bf16.msra.mxu0 %v5501
    %5696 = vmatprep.subr.bf16.mxu0 %v5506
    %5697 = vmatpush1.bf16.msra.mxu0 %v5505
    %5698 = vmatprep.subr.bf16.mxu0 0
    %5699 = vmatpush1.bf16.msra.mxu0 0
    %5700 = vmatprep.subr.bf16.mxu0 0
    %5701 = vmatpush1.bf16.msra.mxu0 0
    %5702 = vmatprep.subr.bf16.mxu0 0
    %5703 = vmatpush1.bf16.msra.mxu0 0
    %5704 = vmatprep.subr.bf16.mxu0 0
    %5705 = vmatpush1.bf16.msra.mxu0 0
    %5706 = vmatprep.mubr.bf16.mxu0 %v2904
    %5707 = vmatmul.mubr.bf16.gmra.mrb[0].mxu0 %v2312
    %v5708 = vpop.f32.mrb[0].mxu0
    %v5709 = vadd.f32 %v5656, %v5708
    %v5710 = vpop.f32.mrb[0].mxu0
    %v5711 = vadd.f32 %v5658, %v5710
    %v5712 = vpop.f32.mrb[0].mxu0
    %v5713 = vadd.f32 %v5660, %v5712
    %v5714 = vpop.f32.mrb[0].mxu0
    %v5715 = vadd.f32 %v5662, %v5714
    %5716 = vmatprep.mubr.bf16.mxu0 %v2907
    %5717 = vmatmul.mubr.bf16.gmra.mrb[0].mxu0 %v2333
    %v5718 = vpop.f32.mrb[0].mxu0
    %v5719 = vadd.f32 %v5666, %v5718
    %v5720 = vpop.f32.mrb[0].mxu0
    %v5721 = vadd.f32 %v5668, %v5720
    %v5722 = vpop.f32.mrb[0].mxu0
    %v5723 = vadd.f32 %v5670, %v5722
    %v5724 = vpop.f32.mrb[0].mxu0
    %v5725 = vadd.f32 %v5672, %v5724
    %5726 = vdwg.mxu0
    %5727 = vmatprep.subr.bf16.mxu0 %v5400
    %5728 = vmatpush1.bf16.msra.mxu0 %v5399
    %5729 = vmatprep.subr.bf16.mxu0 %v5404
    %5730 = vmatpush1.bf16.msra.mxu0 %v5403
    %5731 = vmatprep.subr.bf16.mxu0 %v5408
    %5732 = vmatpush1.bf16.msra.mxu0 %v5407
    %5733 = vmatprep.subr.bf16.mxu0 %v5412
    %5734 = vmatpush1.bf16.msra.mxu0 %v5411
    %5735 = vmatprep.subr.bf16.mxu0 %v5416
    %5736 = vmatpush1.bf16.msra.mxu0 %v5415
    %5737 = vmatprep.subr.bf16.mxu0 %v5420
    %5738 = vmatpush1.bf16.msra.mxu0 %v5419
    %5739 = vmatprep.subr.bf16.mxu0 %v5424
    %5740 = vmatpush1.bf16.msra.mxu0 %v5423
    %5741 = vmatprep.subr.bf16.mxu0 %v5428
    %5742 = vmatpush1.bf16.msra.mxu0 %v5427
    %5743 = vmatprep.subr.bf16.mxu0 %v5432
    %5744 = vmatpush1.bf16.msra.mxu0 %v5431
    %5745 = vmatprep.subr.bf16.mxu0 %v5436
    %5746 = vmatpush1.bf16.msra.mxu0 %v5435
    %5747 = vmatprep.subr.bf16.mxu0 %v5440
    %5748 = vmatpush1.bf16.msra.mxu0 %v5439
    %5749 = vmatprep.subr.bf16.mxu0 %v5444
    %5750 = vmatpush1.bf16.msra.mxu0 %v5443
    %5751 = vmatprep.subr.bf16.mxu0 %v5448
    %5752 = vmatpush1.bf16.msra.mxu0 %v5447
    %5753 = vmatprep.subr.bf16.mxu0 %v5452
    %5754 = vmatpush1.bf16.msra.mxu0 %v5451
    %5755 = vmatprep.subr.bf16.mxu0 %v5456
    %5756 = vmatpush1.bf16.msra.mxu0 %v5455
    %5757 = vmatprep.subr.bf16.mxu0 %v5460
    %5758 = vmatpush1.bf16.msra.mxu0 %v5459
    %5759 = vmatprep.mubr.bf16.mxu0 %v2300
    %5760 = vmatmul.mubr.bf16.gmra.mrb[0].mxu0 %v2288
    %v5761 = vpop.f32.mrb[0].mxu0
    %v5762 = vadd.f32 0.0, %v5761
    %v5763 = vpop.f32.mrb[0].mxu0
    %v5764 = vadd.f32 0.0, %v5763
    %v5765 = vpop.f32.mrb[0].mxu0
    %v5766 = vadd.f32 0.0, %v5765
    %v5767 = vpop.f32.mrb[0].mxu0
    %v5768 = vadd.f32 0.0, %v5767
    %5769 = vmatprep.mubr.bf16.mxu0 %v2330
    %5770 = vmatmul.mubr.bf16.gmra.mrb[0].mxu0 %v2327
    %v5771 = vpop.f32.mrb[0].mxu0
    %v5772 = vadd.f32 0.0, %v5771
    %v5773 = vpop.f32.mrb[0].mxu0
    %v5774 = vadd.f32 0.0, %v5773
    %v5775 = vpop.f32.mrb[0].mxu0
    %v5776 = vadd.f32 0.0, %v5775
    %v5777 = vpop.f32.mrb[0].mxu0
    %v5778 = vadd.f32 0.0, %v5777
    %5779 = vdwg.mxu0
    %5780 = vmatprep.subr.bf16.mxu0 %v5464
    %5781 = vmatpush1.bf16.msra.mxu0 %v5463
    %5782 = vmatprep.subr.bf16.mxu0 %v5468
    %5783 = vmatpush1.bf16.msra.mxu0 %v5467
    %5784 = vmatprep.subr.bf16.mxu0 %v5472
    %5785 = vmatpush1.bf16.msra.mxu0 %v5471
    %5786 = vmatprep.subr.bf16.mxu0 %v5476
    %5787 = vmatpush1.bf16.msra.mxu0 %v5475
    %5788 = vmatprep.subr.bf16.mxu0 %v5480
    %5789 = vmatpush1.bf16.msra.mxu0 %v5479
    %5790 = vmatprep.subr.bf16.mxu0 %v5484
    %5791 = vmatpush1.bf16.msra.mxu0 %v5483
    %5792 = vmatprep.subr.bf16.mxu0 %v5488
    %5793 = vmatpush1.bf16.msra.mxu0 %v5487
    %5794 = vmatprep.subr.bf16.mxu0 %v5492
    %5795 = vmatpush1.bf16.msra.mxu0 %v5491
    %5796 = vmatprep.subr.bf16.mxu0 %v5496
    %5797 = vmatpush1.bf16.msra.mxu0 %v5495
    %5798 = vmatprep.subr.bf16.mxu0 %v5500
    %5799 = vmatpush1.bf16.msra.mxu0 %v5499
    %5800 = vmatprep.subr.bf16.mxu0 %v5504
    %5801 = vmatpush1.bf16.msra.mxu0 %v5503
    %5802 = vmatprep.subr.bf16.mxu0 %v5508
    %5803 = vmatpush1.bf16.msra.mxu0 %v5507
    %5804 = vmatprep.subr.bf16.mxu0 0
    %5805 = vmatpush1.bf16.msra.mxu0 0
    %5806 = vmatprep.subr.bf16.mxu0 0
    %5807 = vmatpush1.bf16.msra.mxu0 0
    %5808 = vmatprep.subr.bf16.mxu0 0
    %5809 = vmatpush1.bf16.msra.mxu0 0
    %5810 = vmatprep.subr.bf16.mxu0 0
    %5811 = vmatpush1.bf16.msra.mxu0 0
    %5812 = vmatprep.mubr.bf16.mxu0 %v2904
    %5813 = vmatmul.mubr.bf16.gmra.mrb[0].mxu0 %v2312
    %v5814 = vpop.f32.mrb[0].mxu0
    %v5815 = vadd.f32 %v5762, %v5814
    %v5816 = vpop.f32.mrb[0].mxu0
    %v5817 = vadd.f32 %v5764, %v5816
    %v5818 = vpop.f32.mrb[0].mxu0
    %v5819 = vadd.f32 %v5766, %v5818
    %v5820 = vpop.f32.mrb[0].mxu0
    %v5821 = vadd.f32 %v5768, %v5820
    %5822 = vmatprep.mubr.bf16.mxu0 %v2907
    %5823 = vmatmul.mubr.bf16.gmra.mrb[0].mxu0 %v2333
    %v5824 = vpop.f32.mrb[0].mxu0
    %v5825 = vadd.f32 %v5772, %v5824
    %v5826 = vpop.f32.mrb[0].mxu0
    %v5827 = vadd.f32 %v5774, %v5826
    %v5828 = vpop.f32.mrb[0].mxu0
    %v5829 = vadd.f32 %v5776, %v5828
    %v5830 = vpop.f32.mrb[0].mxu0
    %v5831 = vadd.f32 %v5778, %v5830
    %5832 = vdwg.mxu0
    %v5945 = vunpack.c.l.b16 %v4836
    %v5946 = vunpack.c.h.b16 %v4836
    %v5947 = vunpack.c.l.b16 %v4837
    %v5948 = vunpack.c.h.b16 %v4837
    %v5949 = vunpack.c.l.b16 %v4838
    %v5950 = vunpack.c.h.b16 %v4838
    %v5951 = vunpack.c.l.b16 %v4839
    %v5952 = vunpack.c.h.b16 %v4839
    %v5953 = vunpack.c.l.b16 %v4840
    %v5954 = vunpack.c.h.b16 %v4840
    %v5955 = vunpack.c.l.b16 %v4841
    %v5956 = vunpack.c.h.b16 %v4841
    %v5957 = vunpack.c.l.b16 %v4842
    %v5958 = vunpack.c.h.b16 %v4842
    %v5959 = vunpack.c.l.b16 %v4843
    %v5960 = vunpack.c.h.b16 %v4843
    %v5961 = vunpack.c.l.b16 %v4844
    %v5962 = vunpack.c.h.b16 %v4844
    %v5963 = vunpack.c.l.b16 %v4845
    %v5964 = vunpack.c.h.b16 %v4845
    %v5965 = vunpack.c.l.b16 %v4846
    %v5966 = vunpack.c.h.b16 %v4846
    %v5967 = vunpack.c.l.b16 %v4847
    %v5968 = vunpack.c.h.b16 %v4847
    %v5969 = vunpack.c.l.b16 %v4848
    %v5970 = vunpack.c.h.b16 %v4848
    %v5971 = vunpack.c.l.b16 %v4849
    %v5972 = vunpack.c.h.b16 %v4849
    %v5973 = vunpack.c.l.b16 %v4850
    %v5974 = vunpack.c.h.b16 %v4850
    %v5975 = vunpack.c.l.b16 %v4851
    %v5976 = vunpack.c.h.b16 %v4851
    %v5977 = vunpack.c.l.b16 %v4852
    %v5978 = vunpack.c.h.b16 %v4852
    %v5979 = vunpack.c.l.b16 %v4853
    %v5980 = vunpack.c.h.b16 %v4853
    %v5981 = vunpack.c.l.b16 %v4854
    %v5982 = vunpack.c.h.b16 %v4854
    %v5983 = vunpack.c.l.b16 %v4855
    %v5984 = vunpack.c.h.b16 %v4855
    %v5985 = vunpack.c.l.b16 %v4856
    %v5986 = vunpack.c.h.b16 %v4856
    %v5987 = vunpack.c.l.b16 %v4857
    %v5988 = vunpack.c.h.b16 %v4857
    %v5989 = vunpack.c.l.b16 %v4858
    %v5990 = vunpack.c.h.b16 %v4858
    %v5991 = vunpack.c.l.b16 %v4859
    %v5992 = vunpack.c.h.b16 %v4859
    %v5993 = vunpack.c.l.b16 %v4860
    %v5994 = vunpack.c.h.b16 %v4860
    %v5995 = vunpack.c.l.b16 %v4861
    %v5996 = vunpack.c.h.b16 %v4861
    %v5997 = vunpack.c.l.b16 %v4862
    %v5998 = vunpack.c.h.b16 %v4862
    %v5999 = vunpack.c.l.b16 %v4863
    %v6000 = vunpack.c.h.b16 %v4863
    %v6001 = vunpack.c.l.b16 %v4864
    %v6002 = vunpack.c.h.b16 %v4864
    %v6003 = vunpack.c.l.b16 %v4865
    %v6004 = vunpack.c.h.b16 %v4865
    %v6005 = vunpack.c.l.b16 %v4866
    %v6006 = vunpack.c.h.b16 %v4866
    %v6007 = vunpack.c.l.b16 %v4867
    %v6008 = vunpack.c.h.b16 %v4867
    %v6009 = vunpack.c.l.b16 %v4868
    %v6010 = vunpack.c.h.b16 %v4868
    %v6011 = vunpack.c.l.b16 %v4869
    %v6012 = vunpack.c.h.b16 %v4869
    %v6013 = vunpack.c.l.b16 %v4870
    %v6014 = vunpack.c.h.b16 %v4870
    %v6015 = vunpack.c.l.b16 %v4871
    %v6016 = vunpack.c.h.b16 %v4871
    %v6017 = vunpack.c.l.b16 %v4872
    %v6018 = vunpack.c.h.b16 %v4872
    %v6019 = vunpack.c.l.b16 %v4873
    %v6020 = vunpack.c.h.b16 %v4873
    %v6021 = vunpack.c.l.b16 %v4874
    %v6022 = vunpack.c.h.b16 %v4874
    %v6023 = vunpack.c.l.b16 %v4875
    %v6024 = vunpack.c.h.b16 %v4875
    %v6025 = vunpack.c.l.b16 %v4876
    %v6026 = vunpack.c.h.b16 %v4876
    %v6027 = vunpack.c.l.b16 %v4877
    %v6028 = vunpack.c.h.b16 %v4877
    %v6029 = vunpack.c.l.b16 %v4878
    %v6030 = vunpack.c.h.b16 %v4878
    %v6031 = vunpack.c.l.b16 %v4879
    %v6032 = vunpack.c.h.b16 %v4879
    %v6033 = vunpack.c.l.b16 %v4880
    %v6034 = vunpack.c.h.b16 %v4880
    %v6035 = vunpack.c.l.b16 %v4881
    %v6036 = vunpack.c.h.b16 %v4881
    %v6037 = vunpack.c.l.b16 %v4882
    %v6038 = vunpack.c.h.b16 %v4882
    %v6039 = vunpack.c.l.b16 %v4883
    %v6040 = vunpack.c.h.b16 %v4883
    %v6041 = vunpack.c.l.b16 %v4884
    %v6042 = vunpack.c.h.b16 %v4884
    %v6043 = vunpack.c.l.b16 %v4885
    %v6044 = vunpack.c.h.b16 %v4885
    %v6045 = vunpack.c.l.b16 %v4886
    %v6046 = vunpack.c.h.b16 %v4886
    %v6047 = vunpack.c.l.b16 %v4887
    %v6048 = vunpack.c.h.b16 %v4887
    %v6049 = vunpack.c.l.b16 %v4888
    %v6050 = vunpack.c.h.b16 %v4888
    %v6051 = vunpack.c.l.b16 %v4889
    %v6052 = vunpack.c.h.b16 %v4889
    %v6053 = vunpack.c.l.b16 %v4890
    %v6054 = vunpack.c.h.b16 %v4890
    %v6055 = vunpack.c.l.b16 %v4891
    %v6056 = vunpack.c.h.b16 %v4891
    %v6057 = vunpack.c.l.b16 %v4892
    %v6058 = vunpack.c.h.b16 %v4892
    %v6059 = vunpack.c.l.b16 %v4893
    %v6060 = vunpack.c.h.b16 %v4893
    %v6061 = vunpack.c.l.b16 %v4894
    %v6062 = vunpack.c.h.b16 %v4894
    %v6063 = vunpack.c.l.b16 %v4895
    %v6064 = vunpack.c.h.b16 %v4895
    %v6065 = vunpack.c.l.b16 %v4896
    %v6066 = vunpack.c.h.b16 %v4896
    %v6067 = vunpack.c.l.b16 %v4897
    %v6068 = vunpack.c.h.b16 %v4897
    %v6069 = vunpack.c.l.b16 %v4898
    %v6070 = vunpack.c.h.b16 %v4898
    %v6071 = vunpack.c.l.b16 %v4899
    %v6072 = vunpack.c.h.b16 %v4899
    %v6073 = vunpack.c.l.b16 %v4900
    %v6074 = vunpack.c.h.b16 %v4900
    %v6075 = vunpack.c.l.b16 %v4901
    %v6076 = vunpack.c.h.b16 %v4901
    %v6077 = vunpack.c.l.b16 %v4902
    %v6078 = vunpack.c.h.b16 %v4902
    %v6079 = vunpack.c.l.b16 %v4903
    %v6080 = vunpack.c.h.b16 %v4903
    %v6081 = vunpack.c.l.b16 %v4904
    %v6082 = vunpack.c.h.b16 %v4904
    %v6083 = vunpack.c.l.b16 %v4905
    %v6084 = vunpack.c.h.b16 %v4905
    %v6085 = vunpack.c.l.b16 %v4906
    %v6086 = vunpack.c.h.b16 %v4906
    %v6087 = vunpack.c.l.b16 %v4907
    %v6088 = vunpack.c.h.b16 %v4907
    %v6089 = vunpack.c.l.b16 %v4908
    %v6090 = vunpack.c.h.b16 %v4908
    %v6091 = vunpack.c.l.b16 %v4909
    %v6092 = vunpack.c.h.b16 %v4909
    %v6093 = vunpack.c.l.b16 %v4910
    %v6094 = vunpack.c.h.b16 %v4910
    %v6095 = vunpack.c.l.b16 %v4911
    %v6096 = vunpack.c.h.b16 %v4911
    %v6097 = vunpack.c.l.b16 %v4912
    %v6098 = vunpack.c.h.b16 %v4912
    %v6099 = vunpack.c.l.b16 %v4913
    %v6100 = vunpack.c.h.b16 %v4913
    %v6101 = vunpack.c.l.b16 %v4914
    %v6102 = vunpack.c.h.b16 %v4914
    %v6103 = vunpack.c.l.b16 %v4915
    %v6104 = vunpack.c.h.b16 %v4915
    %v6105 = vunpack.c.l.b16 %v4916
    %v6106 = vunpack.c.h.b16 %v4916
    %v6107 = vunpack.c.l.b16 %v4917
    %v6108 = vunpack.c.h.b16 %v4917
    %v6109 = vunpack.c.l.b16 %v4918
    %v6110 = vunpack.c.h.b16 %v4918
    %v6111 = vunpack.c.l.b16 %v4919
    %v6112 = vunpack.c.h.b16 %v4919
    %v6113 = vunpack.c.l.b16 %v4920
    %v6114 = vunpack.c.h.b16 %v4920
    %v6115 = vunpack.c.l.b16 %v4921
    %v6116 = vunpack.c.h.b16 %v4921
    %v6117 = vunpack.c.l.b16 %v4922
    %v6118 = vunpack.c.h.b16 %v4922
    %v6119 = vunpack.c.l.b16 %v4923
    %v6120 = vunpack.c.h.b16 %v4923
    %v6121 = vunpack.c.l.b16 %v4924
    %v6122 = vunpack.c.h.b16 %v4924
    %v6123 = vunpack.c.l.b16 %v4925
    %v6124 = vunpack.c.h.b16 %v4925
    %v6125 = vunpack.c.l.b16 %v4926
    %v6126 = vunpack.c.h.b16 %v4926
    %v6127 = vunpack.c.l.b16 %v4927
    %v6128 = vunpack.c.h.b16 %v4927
    %v6129 = vunpack.c.l.b16 %v4928
    %v6130 = vunpack.c.h.b16 %v4928
    %v6131 = vunpack.c.l.b16 %v4929
    %v6132 = vunpack.c.h.b16 %v4929
    %v6133 = vunpack.c.l.b16 %v4930
    %v6134 = vunpack.c.h.b16 %v4930
    %v6135 = vunpack.c.l.b16 %v4931
    %v6136 = vunpack.c.h.b16 %v4931
    %v6137 = vunpack.c.l.b16 %v4932
    %v6138 = vunpack.c.h.b16 %v4932
    %v6139 = vunpack.c.l.b16 %v4933
    %v6140 = vunpack.c.h.b16 %v4933
    %v6141 = vunpack.c.l.b16 %v4934
    %v6142 = vunpack.c.h.b16 %v4934
    %v6143 = vunpack.c.l.b16 %v4935
    %v6144 = vunpack.c.h.b16 %v4935
    %v6145 = vunpack.c.l.b16 %v4936
    %v6146 = vunpack.c.h.b16 %v4936
    %v6147 = vunpack.c.l.b16 %v4937
    %v6148 = vunpack.c.h.b16 %v4937
    %v6149 = vunpack.c.l.b16 %v4938
    %v6150 = vunpack.c.h.b16 %v4938
    %v6151 = vunpack.c.l.b16 %v4939
    %v6152 = vunpack.c.h.b16 %v4939
    %v6153 = vunpack.c.l.b16 %v4940
    %v6154 = vunpack.c.h.b16 %v4940
    %v6155 = vunpack.c.l.b16 %v4941
    %v6156 = vunpack.c.h.b16 %v4941
    %v6157 = vunpack.c.l.b16 %v4942
    %v6158 = vunpack.c.h.b16 %v4942
    %v6159 = vunpack.c.l.b16 %v4943
    %v6160 = vunpack.c.h.b16 %v4943
    %v6161 = vunpack.c.l.b16 %v4944
    %v6162 = vunpack.c.h.b16 %v4944
    %v6163 = vunpack.c.l.b16 %v4945
    %v6164 = vunpack.c.h.b16 %v4945
    %v6165 = vunpack.c.l.b16 %v4946
    %v6166 = vunpack.c.h.b16 %v4946
    %v6167 = vunpack.c.l.b16 %v4947
    %v6168 = vunpack.c.h.b16 %v4947
    %v6169 = vpack.c.b16 %v5949, %v5945
    %v6170 = vpack.c.b16 %v5950, %v5946
    %v6171 = vpack.c.b16 %v5951, %v5947
    %v6172 = vpack.c.b16 %v5952, %v5948
    %v6173 = vpack.c.b16 %v5957, %v5953
    %v6174 = vpack.c.b16 %v5958, %v5954
    %v6175 = vpack.c.b16 %v5959, %v5955
    %v6176 = vpack.c.b16 %v5960, %v5956
    %v6177 = vpack.c.b16 %v5965, %v5961
    %v6178 = vpack.c.b16 %v5966, %v5962
    %v6179 = vpack.c.b16 %v5967, %v5963
    %v6180 = vpack.c.b16 %v5968, %v5964
    %v6181 = vpack.c.b16 %v5973, %v5969
    %v6182 = vpack.c.b16 %v5974, %v5970
    %v6183 = vpack.c.b16 %v5975, %v5971
    %v6184 = vpack.c.b16 %v5976, %v5972
    %v6185 = vpack.c.b16 %v5981, %v5977
    %v6186 = vpack.c.b16 %v5982, %v5978
    %v6187 = vpack.c.b16 %v5983, %v5979
    %v6188 = vpack.c.b16 %v5984, %v5980
    %v6189 = vpack.c.b16 %v5989, %v5985
    %v6190 = vpack.c.b16 %v5990, %v5986
    %v6191 = vpack.c.b16 %v5991, %v5987
    %v6192 = vpack.c.b16 %v5992, %v5988
    %v6193 = vpack.c.b16 %v5997, %v5993
    %v6194 = vpack.c.b16 %v5998, %v5994
    %v6195 = vpack.c.b16 %v5999, %v5995
    %v6196 = vpack.c.b16 %v6000, %v5996
    %v6197 = vpack.c.b16 %v6005, %v6001
    %v6198 = vpack.c.b16 %v6006, %v6002
    %v6199 = vpack.c.b16 %v6007, %v6003
    %v6200 = vpack.c.b16 %v6008, %v6004
    %v6201 = vpack.c.b16 %v6013, %v6009
    %v6202 = vpack.c.b16 %v6014, %v6010
    %v6203 = vpack.c.b16 %v6015, %v6011
    %v6204 = vpack.c.b16 %v6016, %v6012
    %v6205 = vpack.c.b16 %v6021, %v6017
    %v6206 = vpack.c.b16 %v6022, %v6018
    %v6207 = vpack.c.b16 %v6023, %v6019
    %v6208 = vpack.c.b16 %v6024, %v6020
    %v6209 = vpack.c.b16 %v6029, %v6025
    %v6210 = vpack.c.b16 %v6030, %v6026
    %v6211 = vpack.c.b16 %v6031, %v6027
    %v6212 = vpack.c.b16 %v6032, %v6028
    %v6213 = vpack.c.b16 %v6037, %v6033
    %v6214 = vpack.c.b16 %v6038, %v6034
    %v6215 = vpack.c.b16 %v6039, %v6035
    %v6216 = vpack.c.b16 %v6040, %v6036
    %v6217 = vpack.c.b16 %v6045, %v6041
    %v6218 = vpack.c.b16 %v6046, %v6042
    %v6219 = vpack.c.b16 %v6047, %v6043
    %v6220 = vpack.c.b16 %v6048, %v6044
    %v6221 = vpack.c.b16 %v6053, %v6049
    %v6222 = vpack.c.b16 %v6054, %v6050
    %v6223 = vpack.c.b16 %v6055, %v6051
    %v6224 = vpack.c.b16 %v6056, %v6052
    %v6225 = vpack.c.b16 %v6061, %v6057
    %v6226 = vpack.c.b16 %v6062, %v6058
    %v6227 = vpack.c.b16 %v6063, %v6059
    %v6228 = vpack.c.b16 %v6064, %v6060
    %v6229 = vpack.c.b16 %v6069, %v6065
    %v6230 = vpack.c.b16 %v6070, %v6066
    %v6231 = vpack.c.b16 %v6071, %v6067
    %v6232 = vpack.c.b16 %v6072, %v6068
    %v6233 = vpack.c.b16 %v6077, %v6073
    %v6234 = vpack.c.b16 %v6078, %v6074
    %v6235 = vpack.c.b16 %v6079, %v6075
    %v6236 = vpack.c.b16 %v6080, %v6076
    %v6237 = vpack.c.b16 %v6085, %v6081
    %v6238 = vpack.c.b16 %v6086, %v6082
    %v6239 = vpack.c.b16 %v6087, %v6083
    %v6240 = vpack.c.b16 %v6088, %v6084
    %v6241 = vpack.c.b16 %v6093, %v6089
    %v6242 = vpack.c.b16 %v6094, %v6090
    %v6243 = vpack.c.b16 %v6095, %v6091
    %v6244 = vpack.c.b16 %v6096, %v6092
    %v6245 = vpack.c.b16 %v6101, %v6097
    %v6246 = vpack.c.b16 %v6102, %v6098
    %v6247 = vpack.c.b16 %v6103, %v6099
    %v6248 = vpack.c.b16 %v6104, %v6100
    %v6249 = vpack.c.b16 %v6109, %v6105
    %v6250 = vpack.c.b16 %v6110, %v6106
    %v6251 = vpack.c.b16 %v6111, %v6107
    %v6252 = vpack.c.b16 %v6112, %v6108
    %v6253 = vpack.c.b16 %v6117, %v6113
    %v6254 = vpack.c.b16 %v6118, %v6114
    %v6255 = vpack.c.b16 %v6119, %v6115
    %v6256 = vpack.c.b16 %v6120, %v6116
    %v6257 = vpack.c.b16 %v6125, %v6121
    %v6258 = vpack.c.b16 %v6126, %v6122
    %v6259 = vpack.c.b16 %v6127, %v6123
    %v6260 = vpack.c.b16 %v6128, %v6124
    %v6261 = vpack.c.b16 %v6133, %v6129
    %v6262 = vpack.c.b16 %v6134, %v6130
    %v6263 = vpack.c.b16 %v6135, %v6131
    %v6264 = vpack.c.b16 %v6136, %v6132
    %v6265 = vpack.c.b16 %v6141, %v6137
    %v6266 = vpack.c.b16 %v6142, %v6138
    %v6267 = vpack.c.b16 %v6143, %v6139
    %v6268 = vpack.c.b16 %v6144, %v6140
    %v6269 = vpack.c.b16 %v6149, %v6145
    %v6270 = vpack.c.b16 %v6150, %v6146
    %v6271 = vpack.c.b16 %v6151, %v6147
    %v6272 = vpack.c.b16 %v6152, %v6148
    %v6273 = vpack.c.b16 %v6157, %v6153
    %v6274 = vpack.c.b16 %v6158, %v6154
    %v6275 = vpack.c.b16 %v6159, %v6155
    %v6276 = vpack.c.b16 %v6160, %v6156
    %v6277 = vpack.c.b16 %v6165, %v6161
    %v6278 = vpack.c.b16 %v6166, %v6162
    %v6279 = vpack.c.b16 %v6167, %v6163
    %v6280 = vpack.c.b16 %v6168, %v6164
    %6393 = vmatprep.subr.bf16.mxu0 %v6170
    %6394 = vmatpush1.bf16.msra.mxu0 %v6169
    %6395 = vmatprep.subr.bf16.mxu0 %v6174
    %6396 = vmatpush1.bf16.msra.mxu0 %v6173
    %6397 = vmatprep.subr.bf16.mxu0 %v6178
    %6398 = vmatpush1.bf16.msra.mxu0 %v6177
    %6399 = vmatprep.subr.bf16.mxu0 %v6182
    %6400 = vmatpush1.bf16.msra.mxu0 %v6181
    %6401 = vmatprep.subr.bf16.mxu0 %v6186
    %6402 = vmatpush1.bf16.msra.mxu0 %v6185
    %6403 = vmatprep.subr.bf16.mxu0 %v6190
    %6404 = vmatpush1.bf16.msra.mxu0 %v6189
    %6405 = vmatprep.subr.bf16.mxu0 %v6194
    %6406 = vmatpush1.bf16.msra.mxu0 %v6193
    %6407 = vmatprep.subr.bf16.mxu0 %v6198
    %6408 = vmatpush1.bf16.msra.mxu0 %v6197
    %6409 = vmatprep.subr.bf16.mxu0 %v6202
    %6410 = vmatpush1.bf16.msra.mxu0 %v6201
    %6411 = vmatprep.subr.bf16.mxu0 %v6206
    %6412 = vmatpush1.bf16.msra.mxu0 %v6205
    %6413 = vmatprep.subr.bf16.mxu0 %v6210
    %6414 = vmatpush1.bf16.msra.mxu0 %v6209
    %6415 = vmatprep.subr.bf16.mxu0 %v6214
    %6416 = vmatpush1.bf16.msra.mxu0 %v6213
    %6417 = vmatprep.subr.bf16.mxu0 %v6218
    %6418 = vmatpush1.bf16.msra.mxu0 %v6217
    %6419 = vmatprep.subr.bf16.mxu0 %v6222
    %6420 = vmatpush1.bf16.msra.mxu0 %v6221
    %6421 = vmatprep.subr.bf16.mxu0 %v6226
    %6422 = vmatpush1.bf16.msra.mxu0 %v6225
    %6423 = vmatprep.subr.bf16.mxu0 %v6230
    %6424 = vmatpush1.bf16.msra.mxu0 %v6229
    %6425 = vmatprep.mubr.bf16.mxu0 %v2041
    %6426 = vmatmul.mubr.bf16.gmra.mrb[0].mxu0 %v2040
    %v6427 = vpop.f32.mrb[0].mxu0
    %v6428 = vadd.f32 %v5709, %v6427
    %v6429 = vpop.f32.mrb[0].mxu0
    %v6430 = vadd.f32 %v5711, %v6429
    %v6431 = vpop.f32.mrb[0].mxu0
    %v6432 = vadd.f32 %v5713, %v6431
    %v6433 = vpop.f32.mrb[0].mxu0
    %v6434 = vadd.f32 %v5715, %v6433
    %6435 = vmatprep.mubr.bf16.mxu0 %v2045
    %6436 = vmatmul.mubr.bf16.gmra.mrb[0].mxu0 %v2044
    %v6437 = vpop.f32.mrb[0].mxu0
    %v6438 = vadd.f32 %v5719, %v6437
    %v6439 = vpop.f32.mrb[0].mxu0
    %v6440 = vadd.f32 %v5721, %v6439
    %v6441 = vpop.f32.mrb[0].mxu0
    %v6442 = vadd.f32 %v5723, %v6441
    %v6443 = vpop.f32.mrb[0].mxu0
    %v6444 = vadd.f32 %v5725, %v6443
    %6445 = vdwg.mxu0
    %6446 = vmatprep.subr.bf16.mxu0 %v6234
    %6447 = vmatpush1.bf16.msra.mxu0 %v6233
    %6448 = vmatprep.subr.bf16.mxu0 %v6238
    %6449 = vmatpush1.bf16.msra.mxu0 %v6237
    %6450 = vmatprep.subr.bf16.mxu0 %v6242
    %6451 = vmatpush1.bf16.msra.mxu0 %v6241
    %6452 = vmatprep.subr.bf16.mxu0 %v6246
    %6453 = vmatpush1.bf16.msra.mxu0 %v6245
    %6454 = vmatprep.subr.bf16.mxu0 %v6250
    %6455 = vmatpush1.bf16.msra.mxu0 %v6249
    %6456 = vmatprep.subr.bf16.mxu0 %v6254
    %6457 = vmatpush1.bf16.msra.mxu0 %v6253
    %6458 = vmatprep.subr.bf16.mxu0 %v6258
    %6459 = vmatpush1.bf16.msra.mxu0 %v6257
    %6460 = vmatprep.subr.bf16.mxu0 %v6262
    %6461 = vmatpush1.bf16.msra.mxu0 %v6261
    %6462 = vmatprep.subr.bf16.mxu0 %v6266
    %6463 = vmatpush1.bf16.msra.mxu0 %v6265
    %6464 = vmatprep.subr.bf16.mxu0 %v6270
    %6465 = vmatpush1.bf16.msra.mxu0 %v6269
    %6466 = vmatprep.subr.bf16.mxu0 %v6274
    %6467 = vmatpush1.bf16.msra.mxu0 %v6273
    %6468 = vmatprep.subr.bf16.mxu0 %v6278
    %6469 = vmatpush1.bf16.msra.mxu0 %v6277
    %6470 = vmatprep.subr.bf16.mxu0 0
    %6471 = vmatpush1.bf16.msra.mxu0 0
    %6472 = vmatprep.subr.bf16.mxu0 0
    %6473 = vmatpush1.bf16.msra.mxu0 0
    %6474 = vmatprep.subr.bf16.mxu0 0
    %6475 = vmatpush1.bf16.msra.mxu0 0
    %6476 = vmatprep.subr.bf16.mxu0 0
    %6477 = vmatpush1.bf16.msra.mxu0 0
    %6478 = vmatprep.mubr.bf16.mxu0 %v3681
    %6479 = vmatmul.mubr.bf16.gmra.mrb[0].mxu0 %v2042
    %v6480 = vpop.f32.mrb[0].mxu0
    %v6481 = vadd.f32 %v6428, %v6480
    %v6482 = vpop.f32.mrb[0].mxu0
    %v6483 = vadd.f32 %v6430, %v6482
    %v6484 = vpop.f32.mrb[0].mxu0
    %v6485 = vadd.f32 %v6432, %v6484
    %v6486 = vpop.f32.mrb[0].mxu0
    %v6487 = vadd.f32 %v6434, %v6486
    %6488 = vmatprep.mubr.bf16.mxu0 %v3684
    %6489 = vmatmul.mubr.bf16.gmra.mrb[0].mxu0 %v2046
    %v6490 = vpop.f32.mrb[0].mxu0
    %v6491 = vadd.f32 %v6438, %v6490
    %v6492 = vpop.f32.mrb[0].mxu0
    %v6493 = vadd.f32 %v6440, %v6492
    %v6494 = vpop.f32.mrb[0].mxu0
    %v6495 = vadd.f32 %v6442, %v6494
    %v6496 = vpop.f32.mrb[0].mxu0
    %v6497 = vadd.f32 %v6444, %v6496
    %6498 = vdwg.mxu0
    %6499 = vmatprep.subr.bf16.mxu0 %v6172
    %6500 = vmatpush1.bf16.msra.mxu0 %v6171
    %6501 = vmatprep.subr.bf16.mxu0 %v6176
    %6502 = vmatpush1.bf16.msra.mxu0 %v6175
    %6503 = vmatprep.subr.bf16.mxu0 %v6180
    %6504 = vmatpush1.bf16.msra.mxu0 %v6179
    %6505 = vmatprep.subr.bf16.mxu0 %v6184
    %6506 = vmatpush1.bf16.msra.mxu0 %v6183
    %6507 = vmatprep.subr.bf16.mxu0 %v6188
    %6508 = vmatpush1.bf16.msra.mxu0 %v6187
    %6509 = vmatprep.subr.bf16.mxu0 %v6192
    %6510 = vmatpush1.bf16.msra.mxu0 %v6191
    %6511 = vmatprep.subr.bf16.mxu0 %v6196
    %6512 = vmatpush1.bf16.msra.mxu0 %v6195
    %6513 = vmatprep.subr.bf16.mxu0 %v6200
    %6514 = vmatpush1.bf16.msra.mxu0 %v6199
    %6515 = vmatprep.subr.bf16.mxu0 %v6204
    %6516 = vmatpush1.bf16.msra.mxu0 %v6203
    %6517 = vmatprep.subr.bf16.mxu0 %v6208
    %6518 = vmatpush1.bf16.msra.mxu0 %v6207
    %6519 = vmatprep.subr.bf16.mxu0 %v6212
    %6520 = vmatpush1.bf16.msra.mxu0 %v6211
    %6521 = vmatprep.subr.bf16.mxu0 %v6216
    %6522 = vmatpush1.bf16.msra.mxu0 %v6215
    %6523 = vmatprep.subr.bf16.mxu0 %v6220
    %6524 = vmatpush1.bf16.msra.mxu0 %v6219
    %6525 = vmatprep.subr.bf16.mxu0 %v6224
    %6526 = vmatpush1.bf16.msra.mxu0 %v6223
    %6527 = vmatprep.subr.bf16.mxu0 %v6228
    %6528 = vmatpush1.bf16.msra.mxu0 %v6227
    %6529 = vmatprep.subr.bf16.mxu0 %v6232
    %6530 = vmatpush1.bf16.msra.mxu0 %v6231
    %6531 = vmatprep.mubr.bf16.mxu0 %v2041
    %6532 = vmatmul.mubr.bf16.gmra.mrb[0].mxu0 %v2040
    %v6533 = vpop.f32.mrb[0].mxu0
    %v6534 = vadd.f32 %v5815, %v6533
    %v6535 = vpop.f32.mrb[0].mxu0
    %v6536 = vadd.f32 %v5817, %v6535
    %v6537 = vpop.f32.mrb[0].mxu0
    %v6538 = vadd.f32 %v5819, %v6537
    %v6539 = vpop.f32.mrb[0].mxu0
    %v6540 = vadd.f32 %v5821, %v6539
    %6541 = vmatprep.mubr.bf16.mxu0 %v2045
    %6542 = vmatmul.mubr.bf16.gmra.mrb[0].mxu0 %v2044
    %v6543 = vpop.f32.mrb[0].mxu0
    %v6544 = vadd.f32 %v5825, %v6543
    %v6545 = vpop.f32.mrb[0].mxu0
    %v6546 = vadd.f32 %v5827, %v6545
    %v6547 = vpop.f32.mrb[0].mxu0
    %v6548 = vadd.f32 %v5829, %v6547
    %v6549 = vpop.f32.mrb[0].mxu0
    %v6550 = vadd.f32 %v5831, %v6549
    %6551 = vdwg.mxu0
    %6552 = vmatprep.subr.bf16.mxu0 %v6236
    %6553 = vmatpush1.bf16.msra.mxu0 %v6235
    %6554 = vmatprep.subr.bf16.mxu0 %v6240
    %6555 = vmatpush1.bf16.msra.mxu0 %v6239
    %6556 = vmatprep.subr.bf16.mxu0 %v6244
    %6557 = vmatpush1.bf16.msra.mxu0 %v6243
    %6558 = vmatprep.subr.bf16.mxu0 %v6248
    %6559 = vmatpush1.bf16.msra.mxu0 %v6247
    %6560 = vmatprep.subr.bf16.mxu0 %v6252
    %6561 = vmatpush1.bf16.msra.mxu0 %v6251
    %6562 = vmatprep.subr.bf16.mxu0 %v6256
    %6563 = vmatpush1.bf16.msra.mxu0 %v6255
    %6564 = vmatprep.subr.bf16.mxu0 %v6260
    %6565 = vmatpush1.bf16.msra.mxu0 %v6259
    %6566 = vmatprep.subr.bf16.mxu0 %v6264
    %6567 = vmatpush1.bf16.msra.mxu0 %v6263
    %6568 = vmatprep.subr.bf16.mxu0 %v6268
    %6569 = vmatpush1.bf16.msra.mxu0 %v6267
    %6570 = vmatprep.subr.bf16.mxu0 %v6272
    %6571 = vmatpush1.bf16.msra.mxu0 %v6271
    %6572 = vmatprep.subr.bf16.mxu0 %v6276
    %6573 = vmatpush1.bf16.msra.mxu0 %v6275
    %6574 = vmatprep.subr.bf16.mxu0 %v6280
    %6575 = vmatpush1.bf16.msra.mxu0 %v6279
    %6576 = vmatprep.subr.bf16.mxu0 0
    %6577 = vmatpush1.bf16.msra.mxu0 0
    %6578 = vmatprep.subr.bf16.mxu0 0
    %6579 = vmatpush1.bf16.msra.mxu0 0
    %6580 = vmatprep.subr.bf16.mxu0 0
    %6581 = vmatpush1.bf16.msra.mxu0 0
    %6582 = vmatprep.subr.bf16.mxu0 0
    %6583 = vmatpush1.bf16.msra.mxu0 0
    %6584 = vmatprep.mubr.bf16.mxu0 %v3681
    %6585 = vmatmul.mubr.bf16.gmra.mrb[0].mxu0 %v2042
    %v6586 = vpop.f32.mrb[0].mxu0
    %v6587 = vadd.f32 %v6534, %v6586
    %v6588 = vpop.f32.mrb[0].mxu0
    %v6589 = vadd.f32 %v6536, %v6588
    %v6590 = vpop.f32.mrb[0].mxu0
    %v6591 = vadd.f32 %v6538, %v6590
    %v6592 = vpop.f32.mrb[0].mxu0
    %v6593 = vadd.f32 %v6540, %v6592
    %6594 = vmatprep.mubr.bf16.mxu0 %v3684
    %6595 = vmatmul.mubr.bf16.gmra.mrb[0].mxu0 %v2046
    %v6596 = vpop.f32.mrb[0].mxu0
    %v6597 = vadd.f32 %v6544, %v6596
    %v6598 = vpop.f32.mrb[0].mxu0
    %v6599 = vadd.f32 %v6546, %v6598
    %v6600 = vpop.f32.mrb[0].mxu0
    %v6601 = vadd.f32 %v6548, %v6600
    %v6602 = vpop.f32.mrb[0].mxu0
    %v6603 = vadd.f32 %v6550, %v6602
    %6604 = vdwg.mxu0
    %s6605 = scalar_lea.vmem [#allocation5], 4480
    %v6606 = vld [vmem:[%s6605] sm:$0xff]
    %v6607 = vld [vmem:[%s6605 + $0x8] sm:$0xff]
    %v6608 = vld [vmem:[%s6605 + $0x10] sm:$0xff]
    %v6609 = vld [vmem:[%s6605 + $0x18] sm:$0xff]
    %v6610 = vld [vmem:[%s6605 + $0x20] sm:$0xff]
    %v6611 = vld [vmem:[%s6605 + $0x28] sm:$0xff]
    %v6612 = vld [vmem:[%s6605 + $0x30] sm:$0xff]
    %v6613 = vld [vmem:[%s6605 + $0x38] sm:$0xff]
    %v6614 = vld [vmem:[%s6605 + $0x40] sm:$0xff]
    %v6615 = vld [vmem:[%s6605 + $0x48] sm:$0xff]
    %v6616 = vld [vmem:[%s6605 + $0x50] sm:$0xff]
    %v6617 = vld [vmem:[%s6605 + $0x58] sm:$0xff]
    %v6618 = vld [vmem:[%s6605 + $0x60] sm:$0xff]
    %v6619 = vld [vmem:[%s6605 + $0x68] sm:$0xff]
    %v6620 = vld [vmem:[%s6605 + $0x70] sm:$0xff]
    %v6621 = vld [vmem:[%s6605 + $0x78] sm:$0xff]
    %v6622 = vld [vmem:[%s6605 + $0x80] sm:$0xff]
    %v6623 = vld [vmem:[%s6605 + $0x88] sm:$0xff]
    %v6624 = vld [vmem:[%s6605 + $0x90] sm:$0xff]
    %v6625 = vld [vmem:[%s6605 + $0x98] sm:$0xff]
    %v6626 = vld [vmem:[%s6605 + $0xa0] sm:$0xff]
    %v6627 = vld [vmem:[%s6605 + $0xa8] sm:$0xff]
    %v6628 = vld [vmem:[%s6605 + $0xb0] sm:$0xff]
    %v6629 = vld [vmem:[%s6605 + $0xb8] sm:$0xff]
    %v6630 = vld [vmem:[%s6605 + $0xc0] sm:$0xff]
    %v6631 = vld [vmem:[%s6605 + $0xc8] sm:$0xff]
    %v6632 = vld [vmem:[%s6605 + $0xd0] sm:$0xff]
    %v6633 = vld [vmem:[%s6605 + $0xd8] sm:$0xff]
    %v6634 = vld [vmem:[%s6605 + $0xe0] sm:$0xff]
    %v6635 = vld [vmem:[%s6605 + $0xe8] sm:$0xff]
    %v6636 = vld [vmem:[%s6605 + $0xf0] sm:$0xff]
    %v6637 = vld [vmem:[%s6605 + $0xf8] sm:$0xff]
    %v6638 = vld [vmem:[%s6605 + $0x100] sm:$0xff]
    %v6639 = vld [vmem:[%s6605 + $0x108] sm:$0xff]
    %v6640 = vld [vmem:[%s6605 + $0x110] sm:$0xff]
    %v6641 = vld [vmem:[%s6605 + $0x118] sm:$0xff]
    %v6642 = vld [vmem:[%s6605 + $0x120] sm:$0xff]
    %v6643 = vld [vmem:[%s6605 + $0x128] sm:$0xff]
    %v6644 = vld [vmem:[%s6605 + $0x130] sm:$0xff]
    %v6645 = vld [vmem:[%s6605 + $0x138] sm:$0xff]
    %v6646 = vld [vmem:[%s6605 + $0x140] sm:$0xff]
    %v6647 = vld [vmem:[%s6605 + $0x148] sm:$0xff]
    %v6648 = vld [vmem:[%s6605 + $0x150] sm:$0xff]
    %v6649 = vld [vmem:[%s6605 + $0x158] sm:$0xff]
    %v6650 = vld [vmem:[%s6605 + $0x160] sm:$0xff]
    %v6651 = vld [vmem:[%s6605 + $0x168] sm:$0xff]
    %v6652 = vld [vmem:[%s6605 + $0x170] sm:$0xff]
    %v6653 = vld [vmem:[%s6605 + $0x178] sm:$0xff]
    %v6654 = vld [vmem:[%s6605 + $0x180] sm:$0xff]
    %v6655 = vld [vmem:[%s6605 + $0x188] sm:$0xff]
    %v6656 = vld [vmem:[%s6605 + $0x190] sm:$0xff]
    %v6657 = vld [vmem:[%s6605 + $0x198] sm:$0xff]
    %v6658 = vld [vmem:[%s6605 + $0x1a0] sm:$0xff]
    %v6659 = vld [vmem:[%s6605 + $0x1a8] sm:$0xff]
    %v6660 = vld [vmem:[%s6605 + $0x1b0] sm:$0xff]
    %v6661 = vld [vmem:[%s6605 + $0x1b8] sm:$0xff]
    %v6662 = vld [vmem:[%s6605 + $0x1c0] sm:$0xff]
    %v6663 = vld [vmem:[%s6605 + $0x1c8] sm:$0xff]
    %v6664 = vld [vmem:[%s6605 + $0x1d0] sm:$0xff]
    %v6665 = vld [vmem:[%s6605 + $0x1d8] sm:$0xff]
    %v6666 = vld [vmem:[%s6605 + $0x1e0] sm:$0xff]
    %v6667 = vld [vmem:[%s6605 + $0x1e8] sm:$0xff]
    %v6668 = vld [vmem:[%s6605 + $0x1f0] sm:$0xff]
    %v6669 = vld [vmem:[%s6605 + $0x1f8] sm:$0xff]
    %v6670 = vld [vmem:[%s6605 + $0x200] sm:$0xff]
    %v6671 = vld [vmem:[%s6605 + $0x208] sm:$0xff]
    %v6672 = vld [vmem:[%s6605 + $0x210] sm:$0xff]
    %v6673 = vld [vmem:[%s6605 + $0x218] sm:$0xff]
    %v6674 = vld [vmem:[%s6605 + $0x220] sm:$0xff]
    %v6675 = vld [vmem:[%s6605 + $0x228] sm:$0xff]
    %v6676 = vld [vmem:[%s6605 + $0x230] sm:$0xff]
    %v6677 = vld [vmem:[%s6605 + $0x238] sm:$0xff]
    %v6678 = vld [vmem:[%s6605 + $0x240] sm:$0xff]
    %v6679 = vld [vmem:[%s6605 + $0x248] sm:$0xff]
    %v6680 = vld [vmem:[%s6605 + $0x250] sm:$0xff]
    %v6681 = vld [vmem:[%s6605 + $0x258] sm:$0xff]
    %v6682 = vld [vmem:[%s6605 + $0x260] sm:$0xff]
    %v6683 = vld [vmem:[%s6605 + $0x268] sm:$0xff]
    %v6684 = vld [vmem:[%s6605 + $0x270] sm:$0xff]
    %v6685 = vld [vmem:[%s6605 + $0x278] sm:$0xff]
    %v6686 = vld [vmem:[%s6605 + $0x280] sm:$0xff]
    %v6687 = vld [vmem:[%s6605 + $0x288] sm:$0xff]
    %v6688 = vld [vmem:[%s6605 + $0x290] sm:$0xff]
    %v6689 = vld [vmem:[%s6605 + $0x298] sm:$0xff]
    %v6690 = vld [vmem:[%s6605 + $0x2a0] sm:$0xff]
    %v6691 = vld [vmem:[%s6605 + $0x2a8] sm:$0xff]
    %v6692 = vld [vmem:[%s6605 + $0x2b0] sm:$0xff]
    %v6693 = vld [vmem:[%s6605 + $0x2b8] sm:$0xff]
    %v6694 = vld [vmem:[%s6605 + $0x2c0] sm:$0xff]
    %v6695 = vld [vmem:[%s6605 + $0x2c8] sm:$0xff]
    %v6696 = vld [vmem:[%s6605 + $0x2d0] sm:$0xff]
    %v6697 = vld [vmem:[%s6605 + $0x2d8] sm:$0xff]
    %v6698 = vld [vmem:[%s6605 + $0x2e0] sm:$0xff]
    %v6699 = vld [vmem:[%s6605 + $0x2e8] sm:$0xff]
    %v6700 = vld [vmem:[%s6605 + $0x2f0] sm:$0xff]
    %v6701 = vld [vmem:[%s6605 + $0x2f8] sm:$0xff]
    %v6702 = vld [vmem:[%s6605 + $0x300] sm:$0xff]
    %v6703 = vld [vmem:[%s6605 + $0x308] sm:$0xff]
    %v6704 = vld [vmem:[%s6605 + $0x310] sm:$0xff]
    %v6705 = vld [vmem:[%s6605 + $0x318] sm:$0xff]
    %v6706 = vld [vmem:[%s6605 + $0x320] sm:$0xff]
    %v6707 = vld [vmem:[%s6605 + $0x328] sm:$0xff]
    %v6708 = vld [vmem:[%s6605 + $0x330] sm:$0xff]
    %v6709 = vld [vmem:[%s6605 + $0x338] sm:$0xff]
    %v6710 = vld [vmem:[%s6605 + $0x340] sm:$0xff]
    %v6711 = vld [vmem:[%s6605 + $0x348] sm:$0xff]
    %v6712 = vld [vmem:[%s6605 + $0x350] sm:$0xff]
    %v6713 = vld [vmem:[%s6605 + $0x358] sm:$0xff]
    %v6714 = vld [vmem:[%s6605 + $0x360] sm:$0xff]
    %v6715 = vld [vmem:[%s6605 + $0x368] sm:$0xff]
    %v6716 = vld [vmem:[%s6605 + $0x370] sm:$0xff]
    %v6717 = vld [vmem:[%s6605 + $0x378] sm:$0xff]
    %v6830 = vunpack.c.l.b16 %v6606
    %v6831 = vunpack.c.h.b16 %v6606
    %v6832 = vunpack.c.l.b16 %v6607
    %v6833 = vunpack.c.h.b16 %v6607
    %v6834 = vunpack.c.l.b16 %v6608
    %v6835 = vunpack.c.h.b16 %v6608
    %v6836 = vunpack.c.l.b16 %v6609
    %v6837 = vunpack.c.h.b16 %v6609
    %v6838 = vunpack.c.l.b16 %v6610
    %v6839 = vunpack.c.h.b16 %v6610
    %v6840 = vunpack.c.l.b16 %v6611
    %v6841 = vunpack.c.h.b16 %v6611
    %v6842 = vunpack.c.l.b16 %v6612
    %v6843 = vunpack.c.h.b16 %v6612
    %v6844 = vunpack.c.l.b16 %v6613
    %v6845 = vunpack.c.h.b16 %v6613
    %v6846 = vunpack.c.l.b16 %v6614
    %v6847 = vunpack.c.h.b16 %v6614
    %v6848 = vunpack.c.l.b16 %v6615
    %v6849 = vunpack.c.h.b16 %v6615
    %v6850 = vunpack.c.l.b16 %v6616
    %v6851 = vunpack.c.h.b16 %v6616
    %v6852 = vunpack.c.l.b16 %v6617
    %v6853 = vunpack.c.h.b16 %v6617
    %v6854 = vunpack.c.l.b16 %v6618
    %v6855 = vunpack.c.h.b16 %v6618
    %v6856 = vunpack.c.l.b16 %v6619
    %v6857 = vunpack.c.h.b16 %v6619
    %v6858 = vunpack.c.l.b16 %v6620
    %v6859 = vunpack.c.h.b16 %v6620
    %v6860 = vunpack.c.l.b16 %v6621
    %v6861 = vunpack.c.h.b16 %v6621
    %v6862 = vunpack.c.l.b16 %v6622
    %v6863 = vunpack.c.h.b16 %v6622
    %v6864 = vunpack.c.l.b16 %v6623
    %v6865 = vunpack.c.h.b16 %v6623
    %v6866 = vunpack.c.l.b16 %v6624
    %v6867 = vunpack.c.h.b16 %v6624
    %v6868 = vunpack.c.l.b16 %v6625
    %v6869 = vunpack.c.h.b16 %v6625
    %v6870 = vunpack.c.l.b16 %v6626
    %v6871 = vunpack.c.h.b16 %v6626
    %v6872 = vunpack.c.l.b16 %v6627
    %v6873 = vunpack.c.h.b16 %v6627
    %v6874 = vunpack.c.l.b16 %v6628
    %v6875 = vunpack.c.h.b16 %v6628
    %v6876 = vunpack.c.l.b16 %v6629
    %v6877 = vunpack.c.h.b16 %v6629
    %v6878 = vunpack.c.l.b16 %v6630
    %v6879 = vunpack.c.h.b16 %v6630
    %v6880 = vunpack.c.l.b16 %v6631
    %v6881 = vunpack.c.h.b16 %v6631
    %v6882 = vunpack.c.l.b16 %v6632
    %v6883 = vunpack.c.h.b16 %v6632
    %v6884 = vunpack.c.l.b16 %v6633
    %v6885 = vunpack.c.h.b16 %v6633
    %v6886 = vunpack.c.l.b16 %v6634
    %v6887 = vunpack.c.h.b16 %v6634
    %v6888 = vunpack.c.l.b16 %v6635
    %v6889 = vunpack.c.h.b16 %v6635
    %v6890 = vunpack.c.l.b16 %v6636
    %v6891 = vunpack.c.h.b16 %v6636
    %v6892 = vunpack.c.l.b16 %v6637
    %v6893 = vunpack.c.h.b16 %v6637
    %v6894 = vunpack.c.l.b16 %v6638
    %v6895 = vunpack.c.h.b16 %v6638
    %v6896 = vunpack.c.l.b16 %v6639
    %v6897 = vunpack.c.h.b16 %v6639
    %v6898 = vunpack.c.l.b16 %v6640
    %v6899 = vunpack.c.h.b16 %v6640
    %v6900 = vunpack.c.l.b16 %v6641
    %v6901 = vunpack.c.h.b16 %v6641
    %v6902 = vunpack.c.l.b16 %v6642
    %v6903 = vunpack.c.h.b16 %v6642
    %v6904 = vunpack.c.l.b16 %v6643
    %v6905 = vunpack.c.h.b16 %v6643
    %v6906 = vunpack.c.l.b16 %v6644
    %v6907 = vunpack.c.h.b16 %v6644
    %v6908 = vunpack.c.l.b16 %v6645
    %v6909 = vunpack.c.h.b16 %v6645
    %v6910 = vunpack.c.l.b16 %v6646
    %v6911 = vunpack.c.h.b16 %v6646
    %v6912 = vunpack.c.l.b16 %v6647
    %v6913 = vunpack.c.h.b16 %v6647
    %v6914 = vunpack.c.l.b16 %v6648
    %v6915 = vunpack.c.h.b16 %v6648
    %v6916 = vunpack.c.l.b16 %v6649
    %v6917 = vunpack.c.h.b16 %v6649
    %v6918 = vunpack.c.l.b16 %v6650
    %v6919 = vunpack.c.h.b16 %v6650
    %v6920 = vunpack.c.l.b16 %v6651
    %v6921 = vunpack.c.h.b16 %v6651
    %v6922 = vunpack.c.l.b16 %v6652
    %v6923 = vunpack.c.h.b16 %v6652
    %v6924 = vunpack.c.l.b16 %v6653
    %v6925 = vunpack.c.h.b16 %v6653
    %v6926 = vunpack.c.l.b16 %v6654
    %v6927 = vunpack.c.h.b16 %v6654
    %v6928 = vunpack.c.l.b16 %v6655
    %v6929 = vunpack.c.h.b16 %v6655
    %v6930 = vunpack.c.l.b16 %v6656
    %v6931 = vunpack.c.h.b16 %v6656
    %v6932 = vunpack.c.l.b16 %v6657
    %v6933 = vunpack.c.h.b16 %v6657
    %v6934 = vunpack.c.l.b16 %v6658
    %v6935 = vunpack.c.h.b16 %v6658
    %v6936 = vunpack.c.l.b16 %v6659
    %v6937 = vunpack.c.h.b16 %v6659
    %v6938 = vunpack.c.l.b16 %v6660
    %v6939 = vunpack.c.h.b16 %v6660
    %v6940 = vunpack.c.l.b16 %v6661
    %v6941 = vunpack.c.h.b16 %v6661
    %v6942 = vunpack.c.l.b16 %v6662
    %v6943 = vunpack.c.h.b16 %v6662
    %v6944 = vunpack.c.l.b16 %v6663
    %v6945 = vunpack.c.h.b16 %v6663
    %v6946 = vunpack.c.l.b16 %v6664
    %v6947 = vunpack.c.h.b16 %v6664
    %v6948 = vunpack.c.l.b16 %v6665
    %v6949 = vunpack.c.h.b16 %v6665
    %v6950 = vunpack.c.l.b16 %v6666
    %v6951 = vunpack.c.h.b16 %v6666
    %v6952 = vunpack.c.l.b16 %v6667
    %v6953 = vunpack.c.h.b16 %v6667
    %v6954 = vunpack.c.l.b16 %v6668
    %v6955 = vunpack.c.h.b16 %v6668
    %v6956 = vunpack.c.l.b16 %v6669
    %v6957 = vunpack.c.h.b16 %v6669
    %v6958 = vunpack.c.l.b16 %v6670
    %v6959 = vunpack.c.h.b16 %v6670
    %v6960 = vunpack.c.l.b16 %v6671
    %v6961 = vunpack.c.h.b16 %v6671
    %v6962 = vunpack.c.l.b16 %v6672
    %v6963 = vunpack.c.h.b16 %v6672
    %v6964 = vunpack.c.l.b16 %v6673
    %v6965 = vunpack.c.h.b16 %v6673
    %v6966 = vunpack.c.l.b16 %v6674
    %v6967 = vunpack.c.h.b16 %v6674
    %v6968 = vunpack.c.l.b16 %v6675
    %v6969 = vunpack.c.h.b16 %v6675
    %v6970 = vunpack.c.l.b16 %v6676
    %v6971 = vunpack.c.h.b16 %v6676
    %v6972 = vunpack.c.l.b16 %v6677
    %v6973 = vunpack.c.h.b16 %v6677
    %v6974 = vunpack.c.l.b16 %v6678
    %v6975 = vunpack.c.h.b16 %v6678
    %v6976 = vunpack.c.l.b16 %v6679
    %v6977 = vunpack.c.h.b16 %v6679
    %v6978 = vunpack.c.l.b16 %v6680
    %v6979 = vunpack.c.h.b16 %v6680
    %v6980 = vunpack.c.l.b16 %v6681
    %v6981 = vunpack.c.h.b16 %v6681
    %v6982 = vunpack.c.l.b16 %v6682
    %v6983 = vunpack.c.h.b16 %v6682
    %v6984 = vunpack.c.l.b16 %v6683
    %v6985 = vunpack.c.h.b16 %v6683
    %v6986 = vunpack.c.l.b16 %v6684
    %v6987 = vunpack.c.h.b16 %v6684
    %v6988 = vunpack.c.l.b16 %v6685
    %v6989 = vunpack.c.h.b16 %v6685
    %v6990 = vunpack.c.l.b16 %v6686
    %v6991 = vunpack.c.h.b16 %v6686
    %v6992 = vunpack.c.l.b16 %v6687
    %v6993 = vunpack.c.h.b16 %v6687
    %v6994 = vunpack.c.l.b16 %v6688
    %v6995 = vunpack.c.h.b16 %v6688
    %v6996 = vunpack.c.l.b16 %v6689
    %v6997 = vunpack.c.h.b16 %v6689
    %v6998 = vunpack.c.l.b16 %v6690
    %v6999 = vunpack.c.h.b16 %v6690
    %v7000 = vunpack.c.l.b16 %v6691
    %v7001 = vunpack.c.h.b16 %v6691
    %v7002 = vunpack.c.l.b16 %v6692
    %v7003 = vunpack.c.h.b16 %v6692
    %v7004 = vunpack.c.l.b16 %v6693
    %v7005 = vunpack.c.h.b16 %v6693
    %v7006 = vunpack.c.l.b16 %v6694
    %v7007 = vunpack.c.h.b16 %v6694
    %v7008 = vunpack.c.l.b16 %v6695
    %v7009 = vunpack.c.h.b16 %v6695
    %v7010 = vunpack.c.l.b16 %v6696
    %v7011 = vunpack.c.h.b16 %v6696
    %v7012 = vunpack.c.l.b16 %v6697
    %v7013 = vunpack.c.h.b16 %v6697
    %v7014 = vunpack.c.l.b16 %v6698
    %v7015 = vunpack.c.h.b16 %v6698
    %v7016 = vunpack.c.l.b16 %v6699
    %v7017 = vunpack.c.h.b16 %v6699
    %v7018 = vunpack.c.l.b16 %v6700
    %v7019 = vunpack.c.h.b16 %v6700
    %v7020 = vunpack.c.l.b16 %v6701
    %v7021 = vunpack.c.h.b16 %v6701
    %v7022 = vunpack.c.l.b16 %v6702
    %v7023 = vunpack.c.h.b16 %v6702
    %v7024 = vunpack.c.l.b16 %v6703
    %v7025 = vunpack.c.h.b16 %v6703
    %v7026 = vunpack.c.l.b16 %v6704
    %v7027 = vunpack.c.h.b16 %v6704
    %v7028 = vunpack.c.l.b16 %v6705
    %v7029 = vunpack.c.h.b16 %v6705
    %v7030 = vunpack.c.l.b16 %v6706
    %v7031 = vunpack.c.h.b16 %v6706
    %v7032 = vunpack.c.l.b16 %v6707
    %v7033 = vunpack.c.h.b16 %v6707
    %v7034 = vunpack.c.l.b16 %v6708
    %v7035 = vunpack.c.h.b16 %v6708
    %v7036 = vunpack.c.l.b16 %v6709
    %v7037 = vunpack.c.h.b16 %v6709
    %v7038 = vunpack.c.l.b16 %v6710
    %v7039 = vunpack.c.h.b16 %v6710
    %v7040 = vunpack.c.l.b16 %v6711
    %v7041 = vunpack.c.h.b16 %v6711
    %v7042 = vunpack.c.l.b16 %v6712
    %v7043 = vunpack.c.h.b16 %v6712
    %v7044 = vunpack.c.l.b16 %v6713
    %v7045 = vunpack.c.h.b16 %v6713
    %v7046 = vunpack.c.l.b16 %v6714
    %v7047 = vunpack.c.h.b16 %v6714
    %v7048 = vunpack.c.l.b16 %v6715
    %v7049 = vunpack.c.h.b16 %v6715
    %v7050 = vunpack.c.l.b16 %v6716
    %v7051 = vunpack.c.h.b16 %v6716
    %v7052 = vunpack.c.l.b16 %v6717
    %v7053 = vunpack.c.h.b16 %v6717
    %v7054 = vpack.c.b16 %v6834, %v6830
    %v7055 = vpack.c.b16 %v6835, %v6831
    %v7056 = vpack.c.b16 %v6836, %v6832
    %v7057 = vpack.c.b16 %v6837, %v6833
    %v7058 = vpack.c.b16 %v6842, %v6838
    %v7059 = vpack.c.b16 %v6843, %v6839
    %v7060 = vpack.c.b16 %v6844, %v6840
    %v7061 = vpack.c.b16 %v6845, %v6841
    %v7062 = vpack.c.b16 %v6850, %v6846
    %v7063 = vpack.c.b16 %v6851, %v6847
    %v7064 = vpack.c.b16 %v6852, %v6848
    %v7065 = vpack.c.b16 %v6853, %v6849
    %v7066 = vpack.c.b16 %v6858, %v6854
    %v7067 = vpack.c.b16 %v6859, %v6855
    %v7068 = vpack.c.b16 %v6860, %v6856
    %v7069 = vpack.c.b16 %v6861, %v6857
    %v7070 = vpack.c.b16 %v6866, %v6862
    %v7071 = vpack.c.b16 %v6867, %v6863
    %v7072 = vpack.c.b16 %v6868, %v6864
    %v7073 = vpack.c.b16 %v6869, %v6865
    %v7074 = vpack.c.b16 %v6874, %v6870
    %v7075 = vpack.c.b16 %v6875, %v6871
    %v7076 = vpack.c.b16 %v6876, %v6872
    %v7077 = vpack.c.b16 %v6877, %v6873
    %v7078 = vpack.c.b16 %v6882, %v6878
    %v7079 = vpack.c.b16 %v6883, %v6879
    %v7080 = vpack.c.b16 %v6884, %v6880
    %v7081 = vpack.c.b16 %v6885, %v6881
    %v7082 = vpack.c.b16 %v6890, %v6886
    %v7083 = vpack.c.b16 %v6891, %v6887
    %v7084 = vpack.c.b16 %v6892, %v6888
    %v7085 = vpack.c.b16 %v6893, %v6889
    %v7086 = vpack.c.b16 %v6898, %v6894
    %v7087 = vpack.c.b16 %v6899, %v6895
    %v7088 = vpack.c.b16 %v6900, %v6896
    %v7089 = vpack.c.b16 %v6901, %v6897
    %v7090 = vpack.c.b16 %v6906, %v6902
    %v7091 = vpack.c.b16 %v6907, %v6903
    %v7092 = vpack.c.b16 %v6908, %v6904
    %v7093 = vpack.c.b16 %v6909, %v6905
    %v7094 = vpack.c.b16 %v6914, %v6910
    %v7095 = vpack.c.b16 %v6915, %v6911
    %v7096 = vpack.c.b16 %v6916, %v6912
    %v7097 = vpack.c.b16 %v6917, %v6913
    %v7098 = vpack.c.b16 %v6922, %v6918
    %v7099 = vpack.c.b16 %v6923, %v6919
    %v7100 = vpack.c.b16 %v6924, %v6920
    %v7101 = vpack.c.b16 %v6925, %v6921
    %v7102 = vpack.c.b16 %v6930, %v6926
    %v7103 = vpack.c.b16 %v6931, %v6927
    %v7104 = vpack.c.b16 %v6932, %v6928
    %v7105 = vpack.c.b16 %v6933, %v6929
    %v7106 = vpack.c.b16 %v6938, %v6934
    %v7107 = vpack.c.b16 %v6939, %v6935
    %v7108 = vpack.c.b16 %v6940, %v6936
    %v7109 = vpack.c.b16 %v6941, %v6937
    %v7110 = vpack.c.b16 %v6946, %v6942
    %v7111 = vpack.c.b16 %v6947, %v6943
    %v7112 = vpack.c.b16 %v6948, %v6944
    %v7113 = vpack.c.b16 %v6949, %v6945
    %v7114 = vpack.c.b16 %v6954, %v6950
    %v7115 = vpack.c.b16 %v6955, %v6951
    %v7116 = vpack.c.b16 %v6956, %v6952
    %v7117 = vpack.c.b16 %v6957, %v6953
    %v7118 = vpack.c.b16 %v6962, %v6958
    %v7119 = vpack.c.b16 %v6963, %v6959
    %v7120 = vpack.c.b16 %v6964, %v6960
    %v7121 = vpack.c.b16 %v6965, %v6961
    %v7122 = vpack.c.b16 %v6970, %v6966
    %v7123 = vpack.c.b16 %v6971, %v6967
    %v7124 = vpack.c.b16 %v6972, %v6968
    %v7125 = vpack.c.b16 %v6973, %v6969
    %v7126 = vpack.c.b16 %v6978, %v6974
    %v7127 = vpack.c.b16 %v6979, %v6975
    %v7128 = vpack.c.b16 %v6980, %v6976
    %v7129 = vpack.c.b16 %v6981, %v6977
    %v7130 = vpack.c.b16 %v6986, %v6982
    %v7131 = vpack.c.b16 %v6987, %v6983
    %v7132 = vpack.c.b16 %v6988, %v6984
    %v7133 = vpack.c.b16 %v6989, %v6985
    %v7134 = vpack.c.b16 %v6994, %v6990
    %v7135 = vpack.c.b16 %v6995, %v6991
    %v7136 = vpack.c.b16 %v6996, %v6992
    %v7137 = vpack.c.b16 %v6997, %v6993
    %v7138 = vpack.c.b16 %v7002, %v6998
    %v7139 = vpack.c.b16 %v7003, %v6999
    %v7140 = vpack.c.b16 %v7004, %v7000
    %v7141 = vpack.c.b16 %v7005, %v7001
    %v7142 = vpack.c.b16 %v7010, %v7006
    %v7143 = vpack.c.b16 %v7011, %v7007
    %v7144 = vpack.c.b16 %v7012, %v7008
    %v7145 = vpack.c.b16 %v7013, %v7009
    %v7146 = vpack.c.b16 %v7018, %v7014
    %v7147 = vpack.c.b16 %v7019, %v7015
    %v7148 = vpack.c.b16 %v7020, %v7016
    %v7149 = vpack.c.b16 %v7021, %v7017
    %v7150 = vpack.c.b16 %v7026, %v7022
    %v7151 = vpack.c.b16 %v7027, %v7023
    %v7152 = vpack.c.b16 %v7028, %v7024
    %v7153 = vpack.c.b16 %v7029, %v7025
    %v7154 = vpack.c.b16 %v7034, %v7030
    %v7155 = vpack.c.b16 %v7035, %v7031
    %v7156 = vpack.c.b16 %v7036, %v7032
    %v7157 = vpack.c.b16 %v7037, %v7033
    %v7158 = vpack.c.b16 %v7042, %v7038
    %v7159 = vpack.c.b16 %v7043, %v7039
    %v7160 = vpack.c.b16 %v7044, %v7040
    %v7161 = vpack.c.b16 %v7045, %v7041
    %v7162 = vpack.c.b16 %v7050, %v7046
    %v7163 = vpack.c.b16 %v7051, %v7047
    %v7164 = vpack.c.b16 %v7052, %v7048
    %v7165 = vpack.c.b16 %v7053, %v7049
    %7278 = vmatprep.subr.bf16.mxu0 %v7055
    %7279 = vmatpush1.bf16.msra.mxu0 %v7054
    %7280 = vmatprep.subr.bf16.mxu0 %v7059
    %7281 = vmatpush1.bf16.msra.mxu0 %v7058
    %7282 = vmatprep.subr.bf16.mxu0 %v7063
    %7283 = vmatpush1.bf16.msra.mxu0 %v7062
    %7284 = vmatprep.subr.bf16.mxu0 %v7067
    %7285 = vmatpush1.bf16.msra.mxu0 %v7066
    %7286 = vmatprep.subr.bf16.mxu0 %v7071
    %7287 = vmatpush1.bf16.msra.mxu0 %v7070
    %7288 = vmatprep.subr.bf16.mxu0 %v7075
    %7289 = vmatpush1.bf16.msra.mxu0 %v7074
    %7290 = vmatprep.subr.bf16.mxu0 %v7079
    %7291 = vmatpush1.bf16.msra.mxu0 %v7078
    %7292 = vmatprep.subr.bf16.mxu0 %v7083
    %7293 = vmatpush1.bf16.msra.mxu0 %v7082
    %7294 = vmatprep.subr.bf16.mxu0 %v7087
    %7295 = vmatpush1.bf16.msra.mxu0 %v7086
    %7296 = vmatprep.subr.bf16.mxu0 %v7091
    %7297 = vmatpush1.bf16.msra.mxu0 %v7090
    %7298 = vmatprep.subr.bf16.mxu0 %v7095
    %7299 = vmatpush1.bf16.msra.mxu0 %v7094
    %7300 = vmatprep.subr.bf16.mxu0 %v7099
    %7301 = vmatpush1.bf16.msra.mxu0 %v7098
    %7302 = vmatprep.subr.bf16.mxu0 %v7103
    %7303 = vmatpush1.bf16.msra.mxu0 %v7102
    %7304 = vmatprep.subr.bf16.mxu0 %v7107
    %7305 = vmatpush1.bf16.msra.mxu0 %v7106
    %7306 = vmatprep.subr.bf16.mxu0 %v7111
    %7307 = vmatpush1.bf16.msra.mxu0 %v7110
    %7308 = vmatprep.subr.bf16.mxu0 %v7115
    %7309 = vmatpush1.bf16.msra.mxu0 %v7114
    %7310 = vmatprep.mubr.bf16.mxu0 %v4028
    %7311 = vmatmul.mubr.bf16.gmra.mrb[0].mxu0 %v4025
    %v7312 = vpop.f32.mrb[0].mxu0
    %v7313 = vadd.f32 0.0, %v7312
    %v7314 = vpop.f32.mrb[0].mxu0
    %v7315 = vadd.f32 0.0, %v7314
    %v7316 = vpop.f32.mrb[0].mxu0
    %v7317 = vadd.f32 0.0, %v7316
    %v7318 = vpop.f32.mrb[0].mxu0
    %v7319 = vadd.f32 0.0, %v7318
    %7320 = vmatprep.mubr.bf16.mxu0 %v4027
    %7321 = vmatmul.mubr.bf16.gmra.mrb[0].mxu0 %v4024
    %v7322 = vpop.f32.mrb[0].mxu0
    %v7323 = vadd.f32 0.0, %v7322
    %v7324 = vpop.f32.mrb[0].mxu0
    %v7325 = vadd.f32 0.0, %v7324
    %v7326 = vpop.f32.mrb[0].mxu0
    %v7327 = vadd.f32 0.0, %v7326
    %v7328 = vpop.f32.mrb[0].mxu0
    %v7329 = vadd.f32 0.0, %v7328
    %7330 = vdwg.mxu0
    %7331 = vmatprep.subr.bf16.mxu0 %v7119
    %7332 = vmatpush1.bf16.msra.mxu0 %v7118
    %7333 = vmatprep.subr.bf16.mxu0 %v7123
    %7334 = vmatpush1.bf16.msra.mxu0 %v7122
    %7335 = vmatprep.subr.bf16.mxu0 %v7127
    %7336 = vmatpush1.bf16.msra.mxu0 %v7126
    %7337 = vmatprep.subr.bf16.mxu0 %v7131
    %7338 = vmatpush1.bf16.msra.mxu0 %v7130
    %7339 = vmatprep.subr.bf16.mxu0 %v7135
    %7340 = vmatpush1.bf16.msra.mxu0 %v7134
    %7341 = vmatprep.subr.bf16.mxu0 %v7139
    %7342 = vmatpush1.bf16.msra.mxu0 %v7138
    %7343 = vmatprep.subr.bf16.mxu0 %v7143
    %7344 = vmatpush1.bf16.msra.mxu0 %v7142
    %7345 = vmatprep.subr.bf16.mxu0 %v7147
    %7346 = vmatpush1.bf16.msra.mxu0 %v7146
    %7347 = vmatprep.subr.bf16.mxu0 %v7151
    %7348 = vmatpush1.bf16.msra.mxu0 %v7150
    %7349 = vmatprep.subr.bf16.mxu0 %v7155
    %7350 = vmatpush1.bf16.msra.mxu0 %v7154
    %7351 = vmatprep.subr.bf16.mxu0 %v7159
    %7352 = vmatpush1.bf16.msra.mxu0 %v7158
    %7353 = vmatprep.subr.bf16.mxu0 %v7163
    %7354 = vmatpush1.bf16.msra.mxu0 %v7162
    %7355 = vmatprep.subr.bf16.mxu0 0
    %7356 = vmatpush1.bf16.msra.mxu0 0
    %7357 = vmatprep.subr.bf16.mxu0 0
    %7358 = vmatpush1.bf16.msra.mxu0 0
    %7359 = vmatprep.subr.bf16.mxu0 0
    %7360 = vmatpush1.bf16.msra.mxu0 0
    %7361 = vmatprep.subr.bf16.mxu0 0
    %7362 = vmatpush1.bf16.msra.mxu0 0
    %7363 = vmatprep.mubr.bf16.mxu0 %v4602
    %7364 = vmatmul.mubr.bf16.gmra.mrb[0].mxu0 %v4031
    %v7365 = vpop.f32.mrb[0].mxu0
    %v7366 = vadd.f32 %v7313, %v7365
    %v7367 = vpop.f32.mrb[0].mxu0
    %v7368 = vadd.f32 %v7315, %v7367
    %v7369 = vpop.f32.mrb[0].mxu0
    %v7370 = vadd.f32 %v7317, %v7369
    %v7371 = vpop.f32.mrb[0].mxu0
    %v7372 = vadd.f32 %v7319, %v7371
    %7373 = vmatprep.mubr.bf16.mxu0 %v4605
    %7374 = vmatmul.mubr.bf16.gmra.mrb[0].mxu0 %v4030
    %v7375 = vpop.f32.mrb[0].mxu0
    %v7376 = vadd.f32 %v7323, %v7375
    %v7377 = vpop.f32.mrb[0].mxu0
    %v7378 = vadd.f32 %v7325, %v7377
    %v7379 = vpop.f32.mrb[0].mxu0
    %v7380 = vadd.f32 %v7327, %v7379
    %v7381 = vpop.f32.mrb[0].mxu0
    %v7382 = vadd.f32 %v7329, %v7381
    %7383 = vdwg.mxu0
    %7384 = vmatprep.subr.bf16.mxu0 %v7057
    %7385 = vmatpush1.bf16.msra.mxu0 %v7056
    %7386 = vmatprep.subr.bf16.mxu0 %v7061
    %7387 = vmatpush1.bf16.msra.mxu0 %v7060
    %7388 = vmatprep.subr.bf16.mxu0 %v7065
    %7389 = vmatpush1.bf16.msra.mxu0 %v7064
    %7390 = vmatprep.subr.bf16.mxu0 %v7069
    %7391 = vmatpush1.bf16.msra.mxu0 %v7068
    %7392 = vmatprep.subr.bf16.mxu0 %v7073
    %7393 = vmatpush1.bf16.msra.mxu0 %v7072
    %7394 = vmatprep.subr.bf16.mxu0 %v7077
    %7395 = vmatpush1.bf16.msra.mxu0 %v7076
    %7396 = vmatprep.subr.bf16.mxu0 %v7081
    %7397 = vmatpush1.bf16.msra.mxu0 %v7080
    %7398 = vmatprep.subr.bf16.mxu0 %v7085
    %7399 = vmatpush1.bf16.msra.mxu0 %v7084
    %7400 = vmatprep.subr.bf16.mxu0 %v7089
    %7401 = vmatpush1.bf16.msra.mxu0 %v7088
    %7402 = vmatprep.subr.bf16.mxu0 %v7093
    %7403 = vmatpush1.bf16.msra.mxu0 %v7092
    %7404 = vmatprep.subr.bf16.mxu0 %v7097
    %7405 = vmatpush1.bf16.msra.mxu0 %v7096
    %7406 = vmatprep.subr.bf16.mxu0 %v7101
    %7407 = vmatpush1.bf16.msra.mxu0 %v7100
    %7408 = vmatprep.subr.bf16.mxu0 %v7105
    %7409 = vmatpush1.bf16.msra.mxu0 %v7104
    %7410 = vmatprep.subr.bf16.mxu0 %v7109
    %7411 = vmatpush1.bf16.msra.mxu0 %v7108
    %7412 = vmatprep.subr.bf16.mxu0 %v7113
    %7413 = vmatpush1.bf16.msra.mxu0 %v7112
    %7414 = vmatprep.subr.bf16.mxu0 %v7117
    %7415 = vmatpush1.bf16.msra.mxu0 %v7116
    %7416 = vmatprep.mubr.bf16.mxu0 %v4028
    %7417 = vmatmul.mubr.bf16.gmra.mrb[0].mxu0 %v4025
    %v7418 = vpop.f32.mrb[0].mxu0
    %v7419 = vadd.f32 0.0, %v7418
    %v7420 = vpop.f32.mrb[0].mxu0
    %v7421 = vadd.f32 0.0, %v7420
    %v7422 = vpop.f32.mrb[0].mxu0
    %v7423 = vadd.f32 0.0, %v7422
    %v7424 = vpop.f32.mrb[0].mxu0
    %v7425 = vadd.f32 0.0, %v7424
    %7426 = vmatprep.mubr.bf16.mxu0 %v4027
    %7427 = vmatmul.mubr.bf16.gmra.mrb[0].mxu0 %v4024
    %v7428 = vpop.f32.mrb[0].mxu0
    %v7429 = vadd.f32 0.0, %v7428
    %v7430 = vpop.f32.mrb[0].mxu0
    %v7431 = vadd.f32 0.0, %v7430
    %v7432 = vpop.f32.mrb[0].mxu0
    %v7433 = vadd.f32 0.0, %v7432
    %v7434 = vpop.f32.mrb[0].mxu0
    %v7435 = vadd.f32 0.0, %v7434
    %7436 = vdwg.mxu0
    %7437 = vmatprep.subr.bf16.mxu0 %v7121
    %7438 = vmatpush1.bf16.msra.mxu0 %v7120
    %7439 = vmatprep.subr.bf16.mxu0 %v7125
    %7440 = vmatpush1.bf16.msra.mxu0 %v7124
    %7441 = vmatprep.subr.bf16.mxu0 %v7129
    %7442 = vmatpush1.bf16.msra.mxu0 %v7128
    %7443 = vmatprep.subr.bf16.mxu0 %v7133
    %7444 = vmatpush1.bf16.msra.mxu0 %v7132
    %7445 = vmatprep.subr.bf16.mxu0 %v7137
    %7446 = vmatpush1.bf16.msra.mxu0 %v7136
    %7447 = vmatprep.subr.bf16.mxu0 %v7141
    %7448 = vmatpush1.bf16.msra.mxu0 %v7140
    %7449 = vmatprep.subr.bf16.mxu0 %v7145
    %7450 = vmatpush1.bf16.msra.mxu0 %v7144
    %7451 = vmatprep.subr.bf16.mxu0 %v7149
    %7452 = vmatpush1.bf16.msra.mxu0 %v7148
    %7453 = vmatprep.subr.bf16.mxu0 %v7153
    %7454 = vmatpush1.bf16.msra.mxu0 %v7152
    %7455 = vmatprep.subr.bf16.mxu0 %v7157
    %7456 = vmatpush1.bf16.msra.mxu0 %v7156
    %7457 = vmatprep.subr.bf16.mxu0 %v7161
    %7458 = vmatpush1.bf16.msra.mxu0 %v7160
    %7459 = vmatprep.subr.bf16.mxu0 %v7165
    %7460 = vmatpush1.bf16.msra.mxu0 %v7164
    %7461 = vmatprep.subr.bf16.mxu0 0
    %7462 = vmatpush1.bf16.msra.mxu0 0
    %7463 = vmatprep.subr.bf16.mxu0 0
    %7464 = vmatpush1.bf16.msra.mxu0 0
    %7465 = vmatprep.subr.bf16.mxu0 0
    %7466 = vmatpush1.bf16.msra.mxu0 0
    %7467 = vmatprep.subr.bf16.mxu0 0
    %7468 = vmatpush1.bf16.msra.mxu0 0
    %7469 = vmatprep.mubr.bf16.mxu0 %v4602
    %7470 = vmatmul.mubr.bf16.gmra.mrb[0].mxu0 %v4031
    %v7471 = vpop.f32.mrb[0].mxu0
    %v7472 = vadd.f32 %v7419, %v7471
    %v7473 = vpop.f32.mrb[0].mxu0
    %v7474 = vadd.f32 %v7421, %v7473
    %v7475 = vpop.f32.mrb[0].mxu0
    %v7476 = vadd.f32 %v7423, %v7475
    %v7477 = vpop.f32.mrb[0].mxu0
    %v7478 = vadd.f32 %v7425, %v7477
    %7479 = vmatprep.mubr.bf16.mxu0 %v4605
    %7480 = vmatmul.mubr.bf16.gmra.mrb[0].mxu0 %v4030
    %v7481 = vpop.f32.mrb[0].mxu0
    %v7482 = vadd.f32 %v7429, %v7481
    %v7483 = vpop.f32.mrb[0].mxu0
    %v7484 = vadd.f32 %v7431, %v7483
    %v7485 = vpop.f32.mrb[0].mxu0
    %v7486 = vadd.f32 %v7433, %v7485
    %v7487 = vpop.f32.mrb[0].mxu0
    %v7488 = vadd.f32 %v7435, %v7487
    %7489 = vdwg.mxu0
    %v7490 = vadd.f32 %v6481, %v7366
    %v7491 = vadd.f32 %v6483, %v7368
    %v7492 = vadd.f32 %v6587, %v7472
    %v7493 = vadd.f32 %v6589, %v7474
    %v7494 = vadd.f32 %v6485, %v7370
    %v7495 = vadd.f32 %v6487, %v7372
    %v7496 = vadd.f32 %v6591, %v7476
    %v7497 = vadd.f32 %v6593, %v7478
    %v7498 = vadd.f32 %v6491, %v7376
    %v7499 = vadd.f32 %v6493, %v7378
    %v7500 = vadd.f32 %v6597, %v7482
    %v7501 = vadd.f32 %v6599, %v7484
    %v7502 = vadd.f32 %v6495, %v7380
    %v7503 = vadd.f32 %v6497, %v7382
    %v7504 = vadd.f32 %v6601, %v7486
    %v7505 = vadd.f32 %v6603, %v7488
    %v7506 = vmax.f32 %v4819, %v7490
    %v7507 = vmax.f32 %v4820, %v7491
    %v7508 = vmax.f32 %v4821, %v7492
    %v7509 = vmax.f32 %v4822, %v7493
    %v7510 = vmax.f32 %v4823, %v7494
    %v7511 = vmax.f32 %v4824, %v7495
    %v7512 = vmax.f32 %v4825, %v7496
    %v7513 = vmax.f32 %v4826, %v7497
    %v7514 = vmax.f32 %v4827, %v7498
    %v7515 = vmax.f32 %v4828, %v7499
    %v7516 = vmax.f32 %v4829, %v7500
    %v7517 = vmax.f32 %v4830, %v7501
    %v7518 = vmax.f32 %v4831, %v7502
    %v7519 = vmax.f32 %v4832, %v7503
    %v7520 = vmax.f32 %v4833, %v7504
    %v7521 = vmax.f32 %v4834, %v7505
    %v7522 = vld [vmem:[#allocation16] sm:$0xf]
    %v7524 = vlaneseq
    %v7525 = vshrl.u32 %v7524, 7
    %v7526 = vsub.s32 0, %v7525
    %v7527 = vrot.slane %v7522, %v7526
    %v7528 = vlaneseq
    %v7529 = vshrl.u32 %v7528, 7
    %v7530 = vsub.s32 1, %v7529
    %v7531 = vrot.slane %v7522, %v7530
    %v7532 = vlaneseq
    %v7533 = vshrl.u32 %v7532, 7
    %v7534 = vsub.s32 2, %v7533
    %v7535 = vrot.slane %v7522, %v7534
    %v7536 = vlaneseq
    %v7537 = vshrl.u32 %v7536, 7
    %v7538 = vsub.s32 3, %v7537
    %v7539 = vrot.slane %v7522, %v7538
    %v7544 = vadd.f32 %v7506, %v7527
    %v7545 = vadd.f32 %v7507, %v7531
    %v7546 = vadd.f32 %v7508, %v7535
    %v7547 = vadd.f32 %v7509, %v7539
    %v7548 = vadd.f32 %v7510, %v7527
    %v7549 = vadd.f32 %v7511, %v7531
    %v7550 = vadd.f32 %v7512, %v7535
    %v7551 = vadd.f32 %v7513, %v7539
    %v7552 = vadd.f32 %v7514, %v7527
    %v7553 = vadd.f32 %v7515, %v7531
    %v7554 = vadd.f32 %v7516, %v7535
    %v7555 = vadd.f32 %v7517, %v7539
    %v7556 = vadd.f32 %v7518, %v7527
    %v7557 = vadd.f32 %v7519, %v7531
    %v7558 = vadd.f32 %v7520, %v7535
    %v7559 = vadd.f32 %v7521, %v7539
    %v7560 = vpack.c.bf16 %v7548, %v7544
    %v7561 = vpack.c.bf16 %v7549, %v7545
    %v7562 = vpack.c.bf16 %v7550, %v7546
    %v7563 = vpack.c.bf16 %v7551, %v7547
    %v7564 = vpack.c.bf16 %v7556, %v7552
    %v7565 = vpack.c.bf16 %v7557, %v7553
    %v7566 = vpack.c.bf16 %v7558, %v7554
    %v7567 = vpack.c.bf16 %v7559, %v7555
    %v7568 = vld [vmem:[#allocation11] sm:$0xf]
    %v7569 = vld [vmem:[#allocation11 + $0x4] sm:$0xf]
    %v7570 = vld [vmem:[#allocation11 + $0x8] sm:$0x1]
    %v7574 = vunpack.c.l.b16 %v7568
    %v7575 = vunpack.c.l.b16 %v7569
    %v7576 = vunpack.c.l.b16 %v7570
    %v7577 = vpack.c.b16 %v7575, %v7574
    %v7578 = vpack.c.b16 %v7576, %v7576
    %vm7579 = vcmask 244736
    %v7581 = vsel %vm7579, %v7577, 0
    %v7584 = vsel %vm7579, %v7578, 0
    %v7587 = vsel %vm1745, %v7564, 0
    %v7590 = vsel %vm1745, %v7565, 0
    %v7593 = vsel %vm1745, %v7566, 0
    %v7596 = vsel %vm1745, %v7567, 0
    %7598 = vmatprep.subr.bf16.mxu0 %v7561
    %7599 = vmatpush1.bf16.msra.mxu0 %v7560
    %7600 = vmatprep.subr.bf16.mxu0 %v7590
    %7601 = vmatpush1.bf16.msra.mxu0 %v7587
    %7602 = vmatprep.subr.bf16.mxu0 0
    %7603 = vmatpush1.bf16.msra.mxu0 0
    %7604 = vmatprep.subr.bf16.mxu0 0
    %7605 = vmatpush1.bf16.msra.mxu0 0
    %7606 = vmatprep.subr.bf16.mxu0 0
    %7607 = vmatpush1.bf16.msra.mxu0 0
    %7608 = vmatprep.subr.bf16.mxu0 0
    %7609 = vmatpush1.bf16.msra.mxu0 0
    %7610 = vmatprep.subr.bf16.mxu0 0
    %7611 = vmatpush1.bf16.msra.mxu0 0
    %7612 = vmatprep.subr.bf16.mxu0 0
    %7613 = vmatpush1.bf16.msra.mxu0 0
    %7614 = vmatprep.subr.bf16.mxu0 0
    %7615 = vmatpush1.bf16.msra.mxu0 0
    %7616 = vmatprep.subr.bf16.mxu0 0
    %7617 = vmatpush1.bf16.msra.mxu0 0
    %7618 = vmatprep.subr.bf16.mxu0 0
    %7619 = vmatpush1.bf16.msra.mxu0 0
    %7620 = vmatprep.subr.bf16.mxu0 0
    %7621 = vmatpush1.bf16.msra.mxu0 0
    %7622 = vmatprep.subr.bf16.mxu0 0
    %7623 = vmatpush1.bf16.msra.mxu0 0
    %7624 = vmatprep.subr.bf16.mxu0 0
    %7625 = vmatpush1.bf16.msra.mxu0 0
    %7626 = vmatprep.subr.bf16.mxu0 0
    %7627 = vmatpush1.bf16.msra.mxu0 0
    %7628 = vmatprep.subr.bf16.mxu0 0
    %7629 = vmatpush1.bf16.msra.mxu0 0
    %7630 = vmatprep.mubr.bf16.mxu0 0
    %7631 = vmatmul.mubr.bf16.gmra.mrb[0].mxu0 %v7581
    %v7632 = vpop.f32.mrb[0].mxu0
    %v7633 = vadd.f32 0.0, %v7632
    %v7634 = vpop.f32.mrb[0].mxu0
    %v7635 = vadd.f32 0.0, %v7634
    %v7636 = vpop.f32.mrb[0].mxu0
    %v7637 = vadd.f32 0.0, %v7636
    %v7638 = vpop.f32.mrb[0].mxu0
    %v7639 = vadd.f32 0.0, %v7638
    %7640 = vmatprep.mubr.bf16.mxu0 0
    %7641 = vmatmul.mubr.bf16.gmra.mrb[0].mxu0 %v7584
    %v7642 = vpop.f32.mrb[0].mxu0
    %v7643 = vadd.f32 0.0, %v7642
    %v7644 = vpop.f32.mrb[0].mxu0
    %v7645 = vadd.f32 0.0, %v7644
    %v7646 = vpop.f32.mrb[0].mxu0
    %v7647 = vpop.f32.mrb[0].mxu0
    %7648 = vdwg.mxu0
    %7649 = vmatprep.subr.bf16.mxu0 %v7563
    %7650 = vmatpush1.bf16.msra.mxu0 %v7562
    %7651 = vmatprep.subr.bf16.mxu0 %v7596
    %7652 = vmatpush1.bf16.msra.mxu0 %v7593
    %7653 = vmatprep.subr.bf16.mxu0 0
    %7654 = vmatpush1.bf16.msra.mxu0 0
    %7655 = vmatprep.subr.bf16.mxu0 0
    %7656 = vmatpush1.bf16.msra.mxu0 0
    %7657 = vmatprep.subr.bf16.mxu0 0
    %7658 = vmatpush1.bf16.msra.mxu0 0
    %7659 = vmatprep.subr.bf16.mxu0 0
    %7660 = vmatpush1.bf16.msra.mxu0 0
    %7661 = vmatprep.subr.bf16.mxu0 0
    %7662 = vmatpush1.bf16.msra.mxu0 0
    %7663 = vmatprep.subr.bf16.mxu0 0
    %7664 = vmatpush1.bf16.msra.mxu0 0
    %7665 = vmatprep.subr.bf16.mxu0 0
    %7666 = vmatpush1.bf16.msra.mxu0 0
    %7667 = vmatprep.subr.bf16.mxu0 0
    %7668 = vmatpush1.bf16.msra.mxu0 0
    %7669 = vmatprep.subr.bf16.mxu0 0
    %7670 = vmatpush1.bf16.msra.mxu0 0
    %7671 = vmatprep.subr.bf16.mxu0 0
    %7672 = vmatpush1.bf16.msra.mxu0 0
    %7673 = vmatprep.subr.bf16.mxu0 0
    %7674 = vmatpush1.bf16.msra.mxu0 0
    %7675 = vmatprep.subr.bf16.mxu0 0
    %7676 = vmatpush1.bf16.msra.mxu0 0
    %7677 = vmatprep.subr.bf16.mxu0 0
    %7678 = vmatpush1.bf16.msra.mxu0 0
    %7679 = vmatprep.subr.bf16.mxu0 0
    %7680 = vmatpush1.bf16.msra.mxu0 0
    %7681 = vmatprep.mubr.bf16.mxu0 0
    %7682 = vmatmul.mubr.bf16.gmra.mrb[0].mxu0 %v7581
    %v7683 = vpop.f32.mrb[0].mxu0
    %v7684 = vadd.f32 0.0, %v7683
    %v7685 = vpop.f32.mrb[0].mxu0
    %v7686 = vadd.f32 0.0, %v7685
    %v7687 = vpop.f32.mrb[0].mxu0
    %v7688 = vadd.f32 0.0, %v7687
    %v7689 = vpop.f32.mrb[0].mxu0
    %v7690 = vadd.f32 0.0, %v7689
    %7691 = vmatprep.mubr.bf16.mxu0 0
    %7692 = vmatmul.mubr.bf16.gmra.mrb[0].mxu0 %v7584
    %v7693 = vpop.f32.mrb[0].mxu0
    %v7694 = vadd.f32 0.0, %v7693
    %v7695 = vpop.f32.mrb[0].mxu0
    %v7696 = vadd.f32 0.0, %v7695
    %v7697 = vpop.f32.mrb[0].mxu0
    %v7698 = vpop.f32.mrb[0].mxu0
    %7699 = vdwg.mxu0
    %s7700 = scalar_lea.vmem [#allocation11], 12
    %v7701 = vld [vmem:[%s7700] sm:$0xf]
    %v7702 = vld [vmem:[%s7700 + $0x4] sm:$0xf]
    %v7703 = vld [vmem:[%s7700 + $0x8] sm:$0x1]
    %v7707 = vunpack.c.l.b16 %v7701
    %v7708 = vunpack.c.l.b16 %v7702
    %v7709 = vunpack.c.l.b16 %v7703
    %v7710 = vpack.c.b16 %v7708, %v7707
    %v7711 = vpack.c.b16 %v7709, %v7709
    %v7713 = vsel %vm7579, %v7710, 0
    %v7716 = vsel %vm7579, %v7711, 0
    %7718 = vmatprep.subr.bf16.mxu0 %v7561
    %7719 = vmatpush1.bf16.msra.mxu0 %v7560
    %7720 = vmatprep.subr.bf16.mxu0 %v7590
    %7721 = vmatpush1.bf16.msra.mxu0 %v7587
    %7722 = vmatprep.subr.bf16.mxu0 0
    %7723 = vmatpush1.bf16.msra.mxu0 0
    %7724 = vmatprep.subr.bf16.mxu0 0
    %7725 = vmatpush1.bf16.msra.mxu0 0
    %7726 = vmatprep.subr.bf16.mxu0 0
    %7727 = vmatpush1.bf16.msra.mxu0 0
    %7728 = vmatprep.subr.bf16.mxu0 0
    %7729 = vmatpush1.bf16.msra.mxu0 0
    %7730 = vmatprep.subr.bf16.mxu0 0
    %7731 = vmatpush1.bf16.msra.mxu0 0
    %7732 = vmatprep.subr.bf16.mxu0 0
    %7733 = vmatpush1.bf16.msra.mxu0 0
    %7734 = vmatprep.subr.bf16.mxu0 0
    %7735 = vmatpush1.bf16.msra.mxu0 0
    %7736 = vmatprep.subr.bf16.mxu0 0
    %7737 = vmatpush1.bf16.msra.mxu0 0
    %7738 = vmatprep.subr.bf16.mxu0 0
    %7739 = vmatpush1.bf16.msra.mxu0 0
    %7740 = vmatprep.subr.bf16.mxu0 0
    %7741 = vmatpush1.bf16.msra.mxu0 0
    %7742 = vmatprep.subr.bf16.mxu0 0
    %7743 = vmatpush1.bf16.msra.mxu0 0
    %7744 = vmatprep.subr.bf16.mxu0 0
    %7745 = vmatpush1.bf16.msra.mxu0 0
    %7746 = vmatprep.subr.bf16.mxu0 0
    %7747 = vmatpush1.bf16.msra.mxu0 0
    %7748 = vmatprep.subr.bf16.mxu0 0
    %7749 = vmatpush1.bf16.msra.mxu0 0
    %7750 = vmatprep.mubr.bf16.mxu0 0
    %7751 = vmatmul.mubr.bf16.gmra.mrb[0].mxu0 %v7713
    %v7752 = vpop.f32.mrb[0].mxu0
    %v7753 = vadd.f32 0.0, %v7752
    %v7754 = vpop.f32.mrb[0].mxu0
    %v7755 = vadd.f32 0.0, %v7754
    %v7756 = vpop.f32.mrb[0].mxu0
    %v7757 = vadd.f32 0.0, %v7756
    %v7758 = vpop.f32.mrb[0].mxu0
    %v7759 = vadd.f32 0.0, %v7758
    %7760 = vmatprep.mubr.bf16.mxu0 0
    %7761 = vmatmul.mubr.bf16.gmra.mrb[0].mxu0 %v7716
    %v7762 = vpop.f32.mrb[0].mxu0
    %v7763 = vadd.f32 0.0, %v7762
    %v7764 = vpop.f32.mrb[0].mxu0
    %v7765 = vadd.f32 0.0, %v7764
    %v7766 = vpop.f32.mrb[0].mxu0
    %v7767 = vpop.f32.mrb[0].mxu0
    %7768 = vdwg.mxu0
    %7769 = vmatprep.subr.bf16.mxu0 %v7563
    %7770 = vmatpush1.bf16.msra.mxu0 %v7562
    %7771 = vmatprep.subr.bf16.mxu0 %v7596
    %7772 = vmatpush1.bf16.msra.mxu0 %v7593
    %7773 = vmatprep.subr.bf16.mxu0 0
    %7774 = vmatpush1.bf16.msra.mxu0 0
    %7775 = vmatprep.subr.bf16.mxu0 0
    %7776 = vmatpush1.bf16.msra.mxu0 0
    %7777 = vmatprep.subr.bf16.mxu0 0
    %7778 = vmatpush1.bf16.msra.mxu0 0
    %7779 = vmatprep.subr.bf16.mxu0 0
    %7780 = vmatpush1.bf16.msra.mxu0 0
    %7781 = vmatprep.subr.bf16.mxu0 0
    %7782 = vmatpush1.bf16.msra.mxu0 0
    %7783 = vmatprep.subr.bf16.mxu0 0
    %7784 = vmatpush1.bf16.msra.mxu0 0
    %7785 = vmatprep.subr.bf16.mxu0 0
    %7786 = vmatpush1.bf16.msra.mxu0 0
    %7787 = vmatprep.subr.bf16.mxu0 0
    %7788 = vmatpush1.bf16.msra.mxu0 0
    %7789 = vmatprep.subr.bf16.mxu0 0
    %7790 = vmatpush1.bf16.msra.mxu0 0
    %7791 = vmatprep.subr.bf16.mxu0 0
    %7792 = vmatpush1.bf16.msra.mxu0 0
    %7793 = vmatprep.subr.bf16.mxu0 0
    %7794 = vmatpush1.bf16.msra.mxu0 0
    %7795 = vmatprep.subr.bf16.mxu0 0
    %7796 = vmatpush1.bf16.msra.mxu0 0
    %7797 = vmatprep.subr.bf16.mxu0 0
    %7798 = vmatpush1.bf16.msra.mxu0 0
    %7799 = vmatprep.subr.bf16.mxu0 0
    %7800 = vmatpush1.bf16.msra.mxu0 0
    %7801 = vmatprep.mubr.bf16.mxu0 0
    %7802 = vmatmul.mubr.bf16.gmra.mrb[0].mxu0 %v7713
    %v7803 = vpop.f32.mrb[0].mxu0
    %v7804 = vadd.f32 0.0, %v7803
    %v7805 = vpop.f32.mrb[0].mxu0
    %v7806 = vadd.f32 0.0, %v7805
    %v7807 = vpop.f32.mrb[0].mxu0
    %v7808 = vadd.f32 0.0, %v7807
    %v7809 = vpop.f32.mrb[0].mxu0
    %v7810 = vadd.f32 0.0, %v7809
    %7811 = vmatprep.mubr.bf16.mxu0 0
    %7812 = vmatmul.mubr.bf16.gmra.mrb[0].mxu0 %v7716
    %v7813 = vpop.f32.mrb[0].mxu0
    %v7814 = vadd.f32 0.0, %v7813
    %v7815 = vpop.f32.mrb[0].mxu0
    %v7816 = vadd.f32 0.0, %v7815
    %v7817 = vpop.f32.mrb[0].mxu0
    %v7818 = vpop.f32.mrb[0].mxu0
    %7819 = vdwg.mxu0
    %v7820 = vmax.f32 %v7633, %v7753
    %v7821 = vmax.f32 %v7635, %v7755
    %v7822 = vmax.f32 %v7684, %v7804
    %v7823 = vmax.f32 %v7686, %v7806
    %v7824 = vmax.f32 %v7637, %v7757
    %v7825 = vmax.f32 %v7639, %v7759
    %v7826 = vmax.f32 %v7688, %v7808
    %v7827 = vmax.f32 %v7690, %v7810
    %v7828 = vmax.f32 %v7643, %v7763
    %v7829 = vmax.f32 %v7645, %v7765
    %v7830 = vmax.f32 %v7694, %v7814
    %v7831 = vmax.f32 %v7696, %v7816
    %v7832 = vmax.f32 %v7820, 0.0
    %v7833 = vmax.f32 %v7821, 0.0
    %v7834 = vmax.f32 %v7822, 0.0
    %v7835 = vmax.f32 %v7823, 0.0
    %v7836 = vmax.f32 %v7824, 0.0
    %v7837 = vmax.f32 %v7825, 0.0
    %v7838 = vmax.f32 %v7826, 0.0
    %v7839 = vmax.f32 %v7827, 0.0
    %v7840 = vmax.f32 %v7828, 0.0
    %v7841 = vmax.f32 %v7829, 0.0
    %v7842 = vmax.f32 %v7830, 0.0
    %v7843 = vmax.f32 %v7831, 0.0
    %v7844 = vpack.c.bf16 %v7836, %v7832
    %v7845 = vpack.c.bf16 %v7837, %v7833
    %v7846 = vpack.c.bf16 %v7838, %v7834
    %v7847 = vpack.c.bf16 %v7839, %v7835
    %v7848 = vpack.c.bf16 %v7840, %v7840
    %v7849 = vpack.c.bf16 %v7841, %v7841
    %v7850 = vpack.c.bf16 %v7842, %v7842
    %v7851 = vpack.c.bf16 %v7843, %v7843
    %v7860 = vunpack.c.l.b16 %v7844
    %v7861 = vunpack.c.l.b16 %v7845
    %v7862 = vunpack.c.l.b16 %v7846
    %v7863 = vunpack.c.l.b16 %v7847
    %v7864 = vunpack.c.h.b16 %v7844
    %v7865 = vunpack.c.h.b16 %v7845
    %v7866 = vunpack.c.h.b16 %v7846
    %v7867 = vunpack.c.h.b16 %v7847
    %v7868 = vunpack.c.l.b16 %v7848
    %v7869 = vunpack.c.l.b16 %v7849
    %v7870 = vunpack.c.l.b16 %v7850
    %v7871 = vunpack.c.l.b16 %v7851
    %v7872 = vpack.c.b16 %v7861, %v7860
    %v7873 = vpack.c.b16 %v7863, %v7862
    %v7874 = vpack.c.b16 %v7865, %v7864
    %v7875 = vpack.c.b16 %v7867, %v7866
    %v7876 = vpack.c.b16 %v7869, %v7868
    %v7877 = vpack.c.b16 %v7871, %v7870
    %7884 = vst [vmem:[#allocation4] sm:$0xff] %v7872
    %vm7885 = vcmask 1043456
    %vm7886 = vcmask 523268
    %vm7887 = vmor %vm7886, %vm7885
    %7888 = vst.msk [vmem:[#allocation4 + $0x8] sm:$0xff] %vm7887, %v7873
    %7889 = vst [vmem:[#allocation4 + $0x10] sm:$0xff] %v7874
    %7890 = vst.msk [vmem:[#allocation4 + $0x18] sm:$0xff] %vm7887, %v7875
    %7891 = vst [vmem:[#allocation4 + $0x20] sm:$0x11] %v7876
    %vm7892 = vcmask 1040384
    %vm7893 = vcmask 520196
    %vm7894 = vmor %vm7893, %vm7892
    %7895 = vst.msk [vmem:[#allocation4 + $0x28] sm:$0x11] %vm7894, %v7877
    %v7896 = vld [vmem:[#allocation4] sm:$0xff]
    %v7897 = vld [vmem:[#allocation4 + $0x8] sm:$0xff]
    %v7898 = vld [vmem:[#allocation4 + $0x10] sm:$0xff]
    %v7899 = vld [vmem:[#allocation4 + $0x18] sm:$0xff]
    %v7900 = vld [vmem:[#allocation8] sm:$0xff]
    %v7901 = vld [vmem:[#allocation8 + $0x8] sm:$0xf]
    %v7902 = vld [vmem:[#allocation8 + $0xc] sm:$0xff]
    %v7903 = vld [vmem:[#allocation8 + $0x14] sm:$0xf]
    %v7904 = vld [vmem:[#allocation8 + $0x18] sm:$0xff]
    %v7905 = vld [vmem:[#allocation8 + $0x20] sm:$0xf]
    %v7906 = vld [vmem:[#allocation8 + $0x24] sm:$0xff]
    %v7907 = vld [vmem:[#allocation8 + $0x2c] sm:$0xf]
    %v7908 = vld [vmem:[#allocation8 + $0x30] sm:$0xff]
    %v7909 = vld [vmem:[#allocation8 + $0x38] sm:$0xf]
    %v7910 = vld [vmem:[#allocation8 + $0x3c] sm:$0xff]
    %v7911 = vld [vmem:[#allocation8 + $0x44] sm:$0xf]
    %v7912 = vld [vmem:[#allocation8 + $0x48] sm:$0xff]
    %v7913 = vld [vmem:[#allocation8 + $0x50] sm:$0xf]
    %v7914 = vld [vmem:[#allocation8 + $0x54] sm:$0xff]
    %v7915 = vld [vmem:[#allocation8 + $0x5c] sm:$0xf]
    %v7916 = vld [vmem:[#allocation8 + $0x60] sm:$0xff]
    %v7917 = vld [vmem:[#allocation8 + $0x68] sm:$0xf]
    %v7918 = vld [vmem:[#allocation8 + $0x6c] sm:$0xff]
    %v7919 = vld [vmem:[#allocation8 + $0x74] sm:$0xf]
    %v7920 = vld [vmem:[#allocation8 + $0x78] sm:$0xff]
    %v7921 = vld [vmem:[#allocation8 + $0x80] sm:$0xf]
    %v7922 = vld [vmem:[#allocation8 + $0x84] sm:$0xff]
    %v7923 = vld [vmem:[#allocation8 + $0x8c] sm:$0xf]
    %v7924 = vld [vmem:[#allocation8 + $0x90] sm:$0xff]
    %v7925 = vld [vmem:[#allocation8 + $0x98] sm:$0xf]
    %v7926 = vld [vmem:[#allocation8 + $0x9c] sm:$0xff]
    %v7927 = vld [vmem:[#allocation8 + $0xa4] sm:$0xf]
    %v7928 = vld [vmem:[#allocation8 + $0xa8] sm:$0xff]
    %v7929 = vld [vmem:[#allocation8 + $0xb0] sm:$0xf]
    %v7930 = vld [vmem:[#allocation8 + $0xb4] sm:$0xff]
    %v7931 = vld [vmem:[#allocation8 + $0xbc] sm:$0xf]
    %v7932 = vld [vmem:[#allocation8 + $0xc0] sm:$0xff]
    %v7933 = vld [vmem:[#allocation8 + $0xc8] sm:$0xf]
    %v7934 = vld [vmem:[#allocation8 + $0xcc] sm:$0xff]
    %v7935 = vld [vmem:[#allocation8 + $0xd4] sm:$0xf]
    %v7936 = vld [vmem:[#allocation8 + $0xd8] sm:$0xff]
    %v7937 = vld [vmem:[#allocation8 + $0xe0] sm:$0xf]
    %v7938 = vld [vmem:[#allocation8 + $0xe4] sm:$0xff]
    %v7939 = vld [vmem:[#allocation8 + $0xec] sm:$0xf]
    %v7940 = vld [vmem:[#allocation8 + $0xf0] sm:$0xff]
    %v7941 = vld [vmem:[#allocation8 + $0xf8] sm:$0xf]
    %v7942 = vld [vmem:[#allocation8 + $0xfc] sm:$0xff]
    %v7943 = vld [vmem:[#allocation8 + $0x104] sm:$0xf]
    %v7944 = vld [vmem:[#allocation8 + $0x108] sm:$0xff]
    %v7945 = vld [vmem:[#allocation8 + $0x110] sm:$0xf]
    %v7946 = vld [vmem:[#allocation8 + $0x114] sm:$0xff]
    %v7947 = vld [vmem:[#allocation8 + $0x11c] sm:$0xf]
    %v7948 = vld [vmem:[#allocation8 + $0x120] sm:$0xff]
    %v7949 = vld [vmem:[#allocation8 + $0x128] sm:$0xf]
    %v7950 = vld [vmem:[#allocation8 + $0x12c] sm:$0xff]
    %v7951 = vld [vmem:[#allocation8 + $0x134] sm:$0xf]
    %v7952 = vld [vmem:[#allocation8 + $0x138] sm:$0xff]
    %v7953 = vld [vmem:[#allocation8 + $0x140] sm:$0xf]
    %v7954 = vld [vmem:[#allocation8 + $0x144] sm:$0xff]
    %v7955 = vld [vmem:[#allocation8 + $0x14c] sm:$0xf]
    %v7956 = vld [vmem:[#allocation8 + $0x150] sm:$0xff]
    %v7957 = vld [vmem:[#allocation8 + $0x158] sm:$0xf]
    %v7958 = vld [vmem:[#allocation8 + $0x15c] sm:$0xff]
    %v7959 = vld [vmem:[#allocation8 + $0x164] sm:$0xf]
    %v7960 = vld [vmem:[#allocation8 + $0x168] sm:$0xff]
    %v7961 = vld [vmem:[#allocation8 + $0x170] sm:$0xf]
    %v7962 = vld [vmem:[#allocation8 + $0x174] sm:$0xff]
    %v7963 = vld [vmem:[#allocation8 + $0x17c] sm:$0xf]
    %v7964 = vld [vmem:[#allocation8 + $0x180] sm:$0xff]
    %v7965 = vld [vmem:[#allocation8 + $0x188] sm:$0xf]
    %v7966 = vld [vmem:[#allocation8 + $0x18c] sm:$0xff]
    %v7967 = vld [vmem:[#allocation8 + $0x194] sm:$0xf]
    %v7968 = vld [vmem:[#allocation8 + $0x198] sm:$0xff]
    %v7969 = vld [vmem:[#allocation8 + $0x1a0] sm:$0xf]
    %v7970 = vld [vmem:[#allocation8 + $0x1a4] sm:$0xff]
    %v7971 = vld [vmem:[#allocation8 + $0x1ac] sm:$0xf]
    %v7972 = vld [vmem:[#allocation8 + $0x1b0] sm:$0xff]
    %v7973 = vld [vmem:[#allocation8 + $0x1b8] sm:$0xf]
    %v7974 = vld [vmem:[#allocation8 + $0x1bc] sm:$0xff]
    %v7975 = vld [vmem:[#allocation8 + $0x1c4] sm:$0xf]
    %v7976 = vld [vmem:[#allocation8 + $0x1c8] sm:$0xff]
    %v7977 = vld [vmem:[#allocation8 + $0x1d0] sm:$0xf]
    %v7978 = vld [vmem:[#allocation8 + $0x1d4] sm:$0xff]
    %v7979 = vld [vmem:[#allocation8 + $0x1dc] sm:$0xf]
    %v7980 = vld [vmem:[#allocation8 + $0x1e0] sm:$0xff]
    %v7981 = vld [vmem:[#allocation8 + $0x1e8] sm:$0xf]
    %v7982 = vld [vmem:[#allocation8 + $0x1ec] sm:$0xff]
    %v7983 = vld [vmem:[#allocation8 + $0x1f4] sm:$0xf]
    %v7984 = vld [vmem:[#allocation8 + $0x1f8] sm:$0xff]
    %v7985 = vld [vmem:[#allocation8 + $0x200] sm:$0xf]
    %v7986 = vld [vmem:[#allocation8 + $0x204] sm:$0xff]
    %v7987 = vld [vmem:[#allocation8 + $0x20c] sm:$0xf]
    %v7988 = vld [vmem:[#allocation8 + $0x210] sm:$0xff]
    %v7989 = vld [vmem:[#allocation8 + $0x218] sm:$0xf]
    %v7990 = vld [vmem:[#allocation8 + $0x21c] sm:$0xff]
    %v7991 = vld [vmem:[#allocation8 + $0x224] sm:$0xf]
    %v7992 = vld [vmem:[#allocation8 + $0x228] sm:$0xff]
    %v7993 = vld [vmem:[#allocation8 + $0x230] sm:$0xf]
    %v7994 = vld [vmem:[#allocation8 + $0x234] sm:$0xff]
    %v7995 = vld [vmem:[#allocation8 + $0x23c] sm:$0xf]
    %v7996 = vld [vmem:[#allocation8 + $0x240] sm:$0xff]
    %v7997 = vld [vmem:[#allocation8 + $0x248] sm:$0xf]
    %v7998 = vld [vmem:[#allocation8 + $0x24c] sm:$0xff]
    %v7999 = vld [vmem:[#allocation8 + $0x254] sm:$0xf]
    %v8000 = vld [vmem:[#allocation8 + $0x258] sm:$0xff]
    %v8001 = vld [vmem:[#allocation8 + $0x260] sm:$0xf]
    %v8002 = vld [vmem:[#allocation8 + $0x264] sm:$0xff]
    %v8003 = vld [vmem:[#allocation8 + $0x26c] sm:$0xf]
    %v8004 = vld [vmem:[#allocation8 + $0x270] sm:$0xff]
    %v8005 = vld [vmem:[#allocation8 + $0x278] sm:$0xf]
    %v8006 = vld [vmem:[#allocation8 + $0x27c] sm:$0xff]
    %v8007 = vld [vmem:[#allocation8 + $0x284] sm:$0xf]
    %v8008 = vld [vmem:[#allocation8 + $0x288] sm:$0xff]
    %v8009 = vld [vmem:[#allocation8 + $0x290] sm:$0xf]
    %v8010 = vld [vmem:[#allocation8 + $0x294] sm:$0xff]
    %v8011 = vld [vmem:[#allocation8 + $0x29c] sm:$0xf]
    %v8012 = vld [vmem:[#allocation4 + $0x20] sm:$0x11]
    %v8013 = vld [vmem:[#allocation4 + $0x28] sm:$0x11]
    %s8014 = scalar_lea.vmem [#allocation8], 1344
    %v8015 = vld [vmem:[%s8014] sm:$0xff]
    %v8016 = vld [vmem:[%s8014 + $0x8] sm:$0xf]
    %v8017 = vld [vmem:[%s8014 + $0xc] sm:$0xff]
    %v8018 = vld [vmem:[%s8014 + $0x14] sm:$0xf]
    %v8019 = vld [vmem:[%s8014 + $0x18] sm:$0xff]
    %v8020 = vld [vmem:[%s8014 + $0x20] sm:$0xf]
    %v8021 = vld [vmem:[%s8014 + $0x24] sm:$0xff]
    %v8022 = vld [vmem:[%s8014 + $0x2c] sm:$0xf]
    %v8023 = vld [vmem:[%s8014 + $0x30] sm:$0xff]
    %v8024 = vld [vmem:[%s8014 + $0x38] sm:$0xf]
    %v8025 = vld [vmem:[%s8014 + $0x3c] sm:$0xff]
    %v8026 = vld [vmem:[%s8014 + $0x44] sm:$0xf]
    %v8027 = vld [vmem:[%s8014 + $0x48] sm:$0xff]
    %v8028 = vld [vmem:[%s8014 + $0x50] sm:$0xf]
    %v8029 = vld [vmem:[%s8014 + $0x54] sm:$0xff]
    %v8030 = vld [vmem:[%s8014 + $0x5c] sm:$0xf]
    %v8031 = vld [vmem:[%s8014 + $0x60] sm:$0xff]
    %v8032 = vld [vmem:[%s8014 + $0x68] sm:$0xf]
    %v8033 = vld [vmem:[%s8014 + $0x6c] sm:$0xff]
    %v8034 = vld [vmem:[%s8014 + $0x74] sm:$0xf]
    %v8035 = vld [vmem:[%s8014 + $0x78] sm:$0xff]
    %v8036 = vld [vmem:[%s8014 + $0x80] sm:$0xf]
    %v8037 = vld [vmem:[%s8014 + $0x84] sm:$0xff]
    %v8038 = vld [vmem:[%s8014 + $0x8c] sm:$0xf]
    %v8039 = vld [vmem:[%s8014 + $0x90] sm:$0xff]
    %v8040 = vld [vmem:[%s8014 + $0x98] sm:$0xf]
    %v8041 = vld [vmem:[%s8014 + $0x9c] sm:$0xff]
    %v8042 = vld [vmem:[%s8014 + $0xa4] sm:$0xf]
    %v8043 = vld [vmem:[%s8014 + $0xa8] sm:$0xff]
    %v8044 = vld [vmem:[%s8014 + $0xb0] sm:$0xf]
    %v8045 = vld [vmem:[%s8014 + $0xb4] sm:$0xff]
    %v8046 = vld [vmem:[%s8014 + $0xbc] sm:$0xf]
    %v8047 = vld [vmem:[%s8014 + $0xc0] sm:$0xff]
    %v8048 = vld [vmem:[%s8014 + $0xc8] sm:$0xf]
    %v8049 = vld [vmem:[%s8014 + $0xcc] sm:$0xff]
    %v8050 = vld [vmem:[%s8014 + $0xd4] sm:$0xf]
    %v8051 = vld [vmem:[%s8014 + $0xd8] sm:$0xff]
    %v8052 = vld [vmem:[%s8014 + $0xe0] sm:$0xf]
    %v8053 = vld [vmem:[%s8014 + $0xe4] sm:$0xff]
    %v8054 = vld [vmem:[%s8014 + $0xec] sm:$0xf]
    %v8055 = vld [vmem:[%s8014 + $0xf0] sm:$0xff]
    %v8056 = vld [vmem:[%s8014 + $0xf8] sm:$0xf]
    %v8057 = vld [vmem:[%s8014 + $0xfc] sm:$0xff]
    %v8058 = vld [vmem:[%s8014 + $0x104] sm:$0xf]
    %v8059 = vld [vmem:[%s8014 + $0x108] sm:$0xff]
    %v8060 = vld [vmem:[%s8014 + $0x110] sm:$0xf]
    %v8061 = vld [vmem:[%s8014 + $0x114] sm:$0xff]
    %v8062 = vld [vmem:[%s8014 + $0x11c] sm:$0xf]
    %v8063 = vld [vmem:[%s8014 + $0x120] sm:$0xff]
    %v8064 = vld [vmem:[%s8014 + $0x128] sm:$0xf]
    %v8065 = vld [vmem:[%s8014 + $0x12c] sm:$0xff]
    %v8066 = vld [vmem:[%s8014 + $0x134] sm:$0xf]
    %v8067 = vld [vmem:[%s8014 + $0x138] sm:$0xff]
    %v8068 = vld [vmem:[%s8014 + $0x140] sm:$0xf]
    %v8069 = vld [vmem:[%s8014 + $0x144] sm:$0xff]
    %v8070 = vld [vmem:[%s8014 + $0x14c] sm:$0xf]
    %v8071 = vld [vmem:[%s8014 + $0x150] sm:$0xff]
    %v8072 = vld [vmem:[%s8014 + $0x158] sm:$0xf]
    %v8073 = vld [vmem:[%s8014 + $0x15c] sm:$0xff]
    %v8074 = vld [vmem:[%s8014 + $0x164] sm:$0xf]
    %v8075 = vld [vmem:[%s8014 + $0x168] sm:$0xff]
    %v8076 = vld [vmem:[%s8014 + $0x170] sm:$0xf]
    %v8077 = vld [vmem:[%s8014 + $0x174] sm:$0xff]
    %v8078 = vld [vmem:[%s8014 + $0x17c] sm:$0xf]
    %v8079 = vld [vmem:[%s8014 + $0x180] sm:$0xff]
    %v8080 = vld [vmem:[%s8014 + $0x188] sm:$0xf]
    %v8081 = vld [vmem:[%s8014 + $0x18c] sm:$0xff]
    %v8082 = vld [vmem:[%s8014 + $0x194] sm:$0xf]
    %v8083 = vld [vmem:[%s8014 + $0x198] sm:$0xff]
    %v8084 = vld [vmem:[%s8014 + $0x1a0] sm:$0xf]
    %v8085 = vld [vmem:[%s8014 + $0x1a4] sm:$0xff]
    %v8086 = vld [vmem:[%s8014 + $0x1ac] sm:$0xf]
    %v8087 = vld [vmem:[%s8014 + $0x1b0] sm:$0xff]
    %v8088 = vld [vmem:[%s8014 + $0x1b8] sm:$0xf]
    %v8089 = vld [vmem:[%s8014 + $0x1bc] sm:$0xff]
    %v8090 = vld [vmem:[%s8014 + $0x1c4] sm:$0xf]
    %v8091 = vld [vmem:[%s8014 + $0x1c8] sm:$0xff]
    %v8092 = vld [vmem:[%s8014 + $0x1d0] sm:$0xf]
    %v8093 = vld [vmem:[%s8014 + $0x1d4] sm:$0xff]
    %v8094 = vld [vmem:[%s8014 + $0x1dc] sm:$0xf]
    %v8095 = vld [vmem:[%s8014 + $0x1e0] sm:$0xff]
    %v8096 = vld [vmem:[%s8014 + $0x1e8] sm:$0xf]
    %v8097 = vld [vmem:[%s8014 + $0x1ec] sm:$0xff]
    %v8098 = vld [vmem:[%s8014 + $0x1f4] sm:$0xf]
    %v8099 = vld [vmem:[%s8014 + $0x1f8] sm:$0xff]
    %v8100 = vld [vmem:[%s8014 + $0x200] sm:$0xf]
    %v8101 = vld [vmem:[%s8014 + $0x204] sm:$0xff]
    %v8102 = vld [vmem:[%s8014 + $0x20c] sm:$0xf]
    %v8103 = vld [vmem:[%s8014 + $0x210] sm:$0xff]
    %v8104 = vld [vmem:[%s8014 + $0x218] sm:$0xf]
    %v8105 = vld [vmem:[%s8014 + $0x21c] sm:$0xff]
    %v8106 = vld [vmem:[%s8014 + $0x224] sm:$0xf]
    %v8107 = vld [vmem:[%s8014 + $0x228] sm:$0xff]
    %v8108 = vld [vmem:[%s8014 + $0x230] sm:$0xf]
    %v8109 = vld [vmem:[%s8014 + $0x234] sm:$0xff]
    %v8110 = vld [vmem:[%s8014 + $0x23c] sm:$0xf]
    %v8111 = vld [vmem:[%s8014 + $0x240] sm:$0xff]
    %v8112 = vld [vmem:[%s8014 + $0x248] sm:$0xf]
    %v8113 = vld [vmem:[%s8014 + $0x24c] sm:$0xff]
    %v8114 = vld [vmem:[%s8014 + $0x254] sm:$0xf]
    %v8115 = vld [vmem:[%s8014 + $0x258] sm:$0xff]
    %v8116 = vld [vmem:[%s8014 + $0x260] sm:$0xf]
    %v8117 = vld [vmem:[%s8014 + $0x264] sm:$0xff]
    %v8118 = vld [vmem:[%s8014 + $0x26c] sm:$0xf]
    %v8119 = vld [vmem:[%s8014 + $0x270] sm:$0xff]
    %v8120 = vld [vmem:[%s8014 + $0x278] sm:$0xf]
    %v8121 = vld [vmem:[%s8014 + $0x27c] sm:$0xff]
    %v8122 = vld [vmem:[%s8014 + $0x284] sm:$0xf]
    %v8123 = vld [vmem:[%s8014 + $0x288] sm:$0xff]
    %v8124 = vld [vmem:[%s8014 + $0x290] sm:$0xf]
    %v8125 = vld [vmem:[%s8014 + $0x294] sm:$0xff]
    %v8126 = vld [vmem:[%s8014 + $0x29c] sm:$0xf]
    %v8133 = vunpack.c.l.b16 %v7896
    %v8134 = vunpack.c.h.b16 %v7896
    %v8135 = vunpack.c.l.b16 %v7897
    %v8136 = vunpack.c.h.b16 %v7897
    %v8137 = vunpack.c.l.b16 %v7898
    %v8138 = vunpack.c.h.b16 %v7898
    %v8139 = vunpack.c.l.b16 %v7899
    %v8140 = vunpack.c.h.b16 %v7899
    %v8141 = vunpack.c.l.b16 %v8012
    %v8142 = vunpack.c.h.b16 %v8012
    %v8143 = vunpack.c.l.b16 %v8013
    %v8144 = vunpack.c.h.b16 %v8013
    %v8145 = vpack.c.b16 %v8137, %v8133
    %v8146 = vpack.c.b16 %v8138, %v8134
    %v8147 = vpack.c.b16 %v8139, %v8135
    %v8148 = vpack.c.b16 %v8140, %v8136
    %v8149 = vpack.c.b16 %v8141, %v8141
    %v8150 = vpack.c.b16 %v8142, %v8142
    %v8151 = vpack.c.b16 %v8143, %v8143
    %v8152 = vpack.c.b16 %v8144, %v8144
    %v8154 = vshrl.u32 %v8145, 16
    %v8156 = vshll.u32 %v8145, 16
    %v8158 = vrot.slane %v8156, 1
    %v8159 = vor.u32 %v8154, %v8158
    %v8161 = vshll.u32 %v8149, 16
    %v8163 = vrot.slane %v8161, 1
    %v8164 = vsel %vm279, %v8159, %v8163
    %v8166 = vshrl.u32 %v8146, 16
    %v8168 = vshll.u32 %v8146, 16
    %v8170 = vrot.slane %v8168, 1
    %v8171 = vor.u32 %v8166, %v8170
    %v8173 = vshll.u32 %v8150, 16
    %v8175 = vrot.slane %v8173, 1
    %v8176 = vsel %vm279, %v8171, %v8175
    %v8178 = vshrl.u32 %v8147, 16
    %v8180 = vshll.u32 %v8147, 16
    %v8182 = vrot.slane %v8180, 1
    %v8183 = vor.u32 %v8178, %v8182
    %v8185 = vshll.u32 %v8151, 16
    %v8187 = vrot.slane %v8185, 1
    %v8188 = vsel %vm279, %v8183, %v8187
    %v8190 = vshrl.u32 %v8148, 16
    %v8192 = vshll.u32 %v8148, 16
    %v8194 = vrot.slane %v8192, 1
    %v8195 = vor.u32 %v8190, %v8194
    %v8197 = vshll.u32 %v8152, 16
    %v8199 = vrot.slane %v8197, 1
    %v8200 = vsel %vm279, %v8195, %v8199
    %v8316 = vunpack.c.l.b16 %v8015
    %v8317 = vunpack.c.h.b16 %v8015
    %v8318 = vunpack.c.l.b16 %v8016
    %v8319 = vunpack.c.l.b16 %v8017
    %v8320 = vunpack.c.h.b16 %v8017
    %v8321 = vunpack.c.l.b16 %v8018
    %v8322 = vunpack.c.l.b16 %v8019
    %v8323 = vunpack.c.h.b16 %v8019
    %v8324 = vunpack.c.l.b16 %v8020
    %v8325 = vunpack.c.l.b16 %v8021
    %v8326 = vunpack.c.h.b16 %v8021
    %v8327 = vunpack.c.l.b16 %v8022
    %v8328 = vunpack.c.l.b16 %v8023
    %v8329 = vunpack.c.h.b16 %v8023
    %v8330 = vunpack.c.l.b16 %v8024
    %v8331 = vunpack.c.l.b16 %v8025
    %v8332 = vunpack.c.h.b16 %v8025
    %v8333 = vunpack.c.l.b16 %v8026
    %v8334 = vunpack.c.l.b16 %v8027
    %v8335 = vunpack.c.h.b16 %v8027
    %v8336 = vunpack.c.l.b16 %v8028
    %v8337 = vunpack.c.l.b16 %v8029
    %v8338 = vunpack.c.h.b16 %v8029
    %v8339 = vunpack.c.l.b16 %v8030
    %v8340 = vunpack.c.l.b16 %v8031
    %v8341 = vunpack.c.h.b16 %v8031
    %v8342 = vunpack.c.l.b16 %v8032
    %v8343 = vunpack.c.l.b16 %v8033
    %v8344 = vunpack.c.h.b16 %v8033
    %v8345 = vunpack.c.l.b16 %v8034
    %v8346 = vunpack.c.l.b16 %v8035
    %v8347 = vunpack.c.h.b16 %v8035
    %v8348 = vunpack.c.l.b16 %v8036
    %v8349 = vunpack.c.l.b16 %v8037
    %v8350 = vunpack.c.h.b16 %v8037
    %v8351 = vunpack.c.l.b16 %v8038
    %v8352 = vunpack.c.l.b16 %v8039
    %v8353 = vunpack.c.h.b16 %v8039
    %v8354 = vunpack.c.l.b16 %v8040
    %v8355 = vunpack.c.l.b16 %v8041
    %v8356 = vunpack.c.h.b16 %v8041
    %v8357 = vunpack.c.l.b16 %v8042
    %v8358 = vunpack.c.l.b16 %v8043
    %v8359 = vunpack.c.h.b16 %v8043
    %v8360 = vunpack.c.l.b16 %v8044
    %v8361 = vunpack.c.l.b16 %v8045
    %v8362 = vunpack.c.h.b16 %v8045
    %v8363 = vunpack.c.l.b16 %v8046
    %v8364 = vunpack.c.l.b16 %v8047
    %v8365 = vunpack.c.h.b16 %v8047
    %v8366 = vunpack.c.l.b16 %v8048
    %v8367 = vunpack.c.l.b16 %v8049
    %v8368 = vunpack.c.h.b16 %v8049
    %v8369 = vunpack.c.l.b16 %v8050
    %v8370 = vunpack.c.l.b16 %v8051
    %v8371 = vunpack.c.h.b16 %v8051
    %v8372 = vunpack.c.l.b16 %v8052
    %v8373 = vunpack.c.l.b16 %v8053
    %v8374 = vunpack.c.h.b16 %v8053
    %v8375 = vunpack.c.l.b16 %v8054
    %v8376 = vunpack.c.l.b16 %v8055
    %v8377 = vunpack.c.h.b16 %v8055
    %v8378 = vunpack.c.l.b16 %v8056
    %v8379 = vunpack.c.l.b16 %v8057
    %v8380 = vunpack.c.h.b16 %v8057
    %v8381 = vunpack.c.l.b16 %v8058
    %v8382 = vunpack.c.l.b16 %v8059
    %v8383 = vunpack.c.h.b16 %v8059
    %v8384 = vunpack.c.l.b16 %v8060
    %v8385 = vunpack.c.l.b16 %v8061
    %v8386 = vunpack.c.h.b16 %v8061
    %v8387 = vunpack.c.l.b16 %v8062
    %v8388 = vunpack.c.l.b16 %v8063
    %v8389 = vunpack.c.h.b16 %v8063
    %v8390 = vunpack.c.l.b16 %v8064
    %v8391 = vunpack.c.l.b16 %v8065
    %v8392 = vunpack.c.h.b16 %v8065
    %v8393 = vunpack.c.l.b16 %v8066
    %v8394 = vunpack.c.l.b16 %v8067
    %v8395 = vunpack.c.h.b16 %v8067
    %v8396 = vunpack.c.l.b16 %v8068
    %v8397 = vunpack.c.l.b16 %v8069
    %v8398 = vunpack.c.h.b16 %v8069
    %v8399 = vunpack.c.l.b16 %v8070
    %v8400 = vunpack.c.l.b16 %v8071
    %v8401 = vunpack.c.h.b16 %v8071
    %v8402 = vunpack.c.l.b16 %v8072
    %v8403 = vunpack.c.l.b16 %v8073
    %v8404 = vunpack.c.h.b16 %v8073
    %v8405 = vunpack.c.l.b16 %v8074
    %v8406 = vunpack.c.l.b16 %v8075
    %v8407 = vunpack.c.h.b16 %v8075
    %v8408 = vunpack.c.l.b16 %v8076
    %v8409 = vunpack.c.l.b16 %v8077
    %v8410 = vunpack.c.h.b16 %v8077
    %v8411 = vunpack.c.l.b16 %v8078
    %v8412 = vunpack.c.l.b16 %v8079
    %v8413 = vunpack.c.h.b16 %v8079
    %v8414 = vunpack.c.l.b16 %v8080
    %v8415 = vunpack.c.l.b16 %v8081
    %v8416 = vunpack.c.h.b16 %v8081
    %v8417 = vunpack.c.l.b16 %v8082
    %v8418 = vunpack.c.l.b16 %v8083
    %v8419 = vunpack.c.h.b16 %v8083
    %v8420 = vunpack.c.l.b16 %v8084
    %v8421 = vunpack.c.l.b16 %v8085
    %v8422 = vunpack.c.h.b16 %v8085
    %v8423 = vunpack.c.l.b16 %v8086
    %v8424 = vunpack.c.l.b16 %v8087
    %v8425 = vunpack.c.h.b16 %v8087
    %v8426 = vunpack.c.l.b16 %v8088
    %v8427 = vunpack.c.l.b16 %v8089
    %v8428 = vunpack.c.h.b16 %v8089
    %v8429 = vunpack.c.l.b16 %v8090
    %v8430 = vunpack.c.l.b16 %v8091
    %v8431 = vunpack.c.h.b16 %v8091
    %v8432 = vunpack.c.l.b16 %v8092
    %v8433 = vunpack.c.l.b16 %v8093
    %v8434 = vunpack.c.h.b16 %v8093
    %v8435 = vunpack.c.l.b16 %v8094
    %v8436 = vunpack.c.l.b16 %v8095
    %v8437 = vunpack.c.h.b16 %v8095
    %v8438 = vunpack.c.l.b16 %v8096
    %v8439 = vunpack.c.l.b16 %v8097
    %v8440 = vunpack.c.h.b16 %v8097
    %v8441 = vunpack.c.l.b16 %v8098
    %v8442 = vunpack.c.l.b16 %v8099
    %v8443 = vunpack.c.h.b16 %v8099
    %v8444 = vunpack.c.l.b16 %v8100
    %v8445 = vunpack.c.l.b16 %v8101
    %v8446 = vunpack.c.h.b16 %v8101
    %v8447 = vunpack.c.l.b16 %v8102
    %v8448 = vunpack.c.l.b16 %v8103
    %v8449 = vunpack.c.h.b16 %v8103
    %v8450 = vunpack.c.l.b16 %v8104
    %v8451 = vunpack.c.l.b16 %v8105
    %v8452 = vunpack.c.h.b16 %v8105
    %v8453 = vunpack.c.l.b16 %v8106
    %v8454 = vunpack.c.l.b16 %v8107
    %v8455 = vunpack.c.h.b16 %v8107
    %v8456 = vunpack.c.l.b16 %v8108
    %v8457 = vunpack.c.l.b16 %v8109
    %v8458 = vunpack.c.h.b16 %v8109
    %v8459 = vunpack.c.l.b16 %v8110
    %v8460 = vunpack.c.l.b16 %v8111
    %v8461 = vunpack.c.h.b16 %v8111
    %v8462 = vunpack.c.l.b16 %v8112
    %v8463 = vunpack.c.l.b16 %v8113
    %v8464 = vunpack.c.h.b16 %v8113
    %v8465 = vunpack.c.l.b16 %v8114
    %v8466 = vunpack.c.l.b16 %v8115
    %v8467 = vunpack.c.h.b16 %v8115
    %v8468 = vunpack.c.l.b16 %v8116
    %v8469 = vunpack.c.l.b16 %v8117
    %v8470 = vunpack.c.h.b16 %v8117
    %v8471 = vunpack.c.l.b16 %v8118
    %v8472 = vunpack.c.l.b16 %v8119
    %v8473 = vunpack.c.h.b16 %v8119
    %v8474 = vunpack.c.l.b16 %v8120
    %v8475 = vunpack.c.l.b16 %v8121
    %v8476 = vunpack.c.h.b16 %v8121
    %v8477 = vunpack.c.l.b16 %v8122
    %v8478 = vunpack.c.l.b16 %v8123
    %v8479 = vunpack.c.h.b16 %v8123
    %v8480 = vunpack.c.l.b16 %v8124
    %v8481 = vunpack.c.l.b16 %v8125
    %v8482 = vunpack.c.h.b16 %v8125
    %v8483 = vunpack.c.l.b16 %v8126
    %v8484 = vpack.c.b16 %v8319, %v8316
    %v8485 = vpack.c.b16 %v8320, %v8317
    %v8486 = vpack.c.b16 %v8321, %v8318
    %v8487 = vpack.c.b16 %v8325, %v8322
    %v8488 = vpack.c.b16 %v8326, %v8323
    %v8489 = vpack.c.b16 %v8327, %v8324
    %v8490 = vpack.c.b16 %v8331, %v8328
    %v8491 = vpack.c.b16 %v8332, %v8329
    %v8492 = vpack.c.b16 %v8333, %v8330
    %v8493 = vpack.c.b16 %v8337, %v8334
    %v8494 = vpack.c.b16 %v8338, %v8335
    %v8495 = vpack.c.b16 %v8339, %v8336
    %v8496 = vpack.c.b16 %v8343, %v8340
    %v8497 = vpack.c.b16 %v8344, %v8341
    %v8498 = vpack.c.b16 %v8345, %v8342
    %v8499 = vpack.c.b16 %v8349, %v8346
    %v8500 = vpack.c.b16 %v8350, %v8347
    %v8501 = vpack.c.b16 %v8351, %v8348
    %v8502 = vpack.c.b16 %v8355, %v8352
    %v8503 = vpack.c.b16 %v8356, %v8353
    %v8504 = vpack.c.b16 %v8357, %v8354
    %v8505 = vpack.c.b16 %v8361, %v8358
    %v8506 = vpack.c.b16 %v8362, %v8359
    %v8507 = vpack.c.b16 %v8363, %v8360
    %v8508 = vpack.c.b16 %v8367, %v8364
    %v8509 = vpack.c.b16 %v8368, %v8365
    %v8510 = vpack.c.b16 %v8369, %v8366
    %v8511 = vpack.c.b16 %v8373, %v8370
    %v8512 = vpack.c.b16 %v8374, %v8371
    %v8513 = vpack.c.b16 %v8375, %v8372
    %v8514 = vpack.c.b16 %v8379, %v8376
    %v8515 = vpack.c.b16 %v8380, %v8377
    %v8516 = vpack.c.b16 %v8381, %v8378
    %v8517 = vpack.c.b16 %v8385, %v8382
    %v8518 = vpack.c.b16 %v8386, %v8383
    %v8519 = vpack.c.b16 %v8387, %v8384
    %v8520 = vpack.c.b16 %v8391, %v8388
    %v8521 = vpack.c.b16 %v8392, %v8389
    %v8522 = vpack.c.b16 %v8393, %v8390
    %v8523 = vpack.c.b16 %v8397, %v8394
    %v8524 = vpack.c.b16 %v8398, %v8395
    %v8525 = vpack.c.b16 %v8399, %v8396
    %v8526 = vpack.c.b16 %v8403, %v8400
    %v8527 = vpack.c.b16 %v8404, %v8401
    %v8528 = vpack.c.b16 %v8405, %v8402
    %v8529 = vpack.c.b16 %v8409, %v8406
    %v8530 = vpack.c.b16 %v8410, %v8407
    %v8531 = vpack.c.b16 %v8411, %v8408
    %v8532 = vpack.c.b16 %v8415, %v8412
    %v8533 = vpack.c.b16 %v8416, %v8413
    %v8534 = vpack.c.b16 %v8417, %v8414
    %v8535 = vpack.c.b16 %v8421, %v8418
    %v8536 = vpack.c.b16 %v8422, %v8419
    %v8537 = vpack.c.b16 %v8423, %v8420
    %v8538 = vpack.c.b16 %v8427, %v8424
    %v8539 = vpack.c.b16 %v8428, %v8425
    %v8540 = vpack.c.b16 %v8429, %v8426
    %v8541 = vpack.c.b16 %v8433, %v8430
    %v8542 = vpack.c.b16 %v8434, %v8431
    %v8543 = vpack.c.b16 %v8435, %v8432
    %v8544 = vpack.c.b16 %v8439, %v8436
    %v8545 = vpack.c.b16 %v8440, %v8437
    %v8546 = vpack.c.b16 %v8441, %v8438
    %v8547 = vpack.c.b16 %v8445, %v8442
    %v8548 = vpack.c.b16 %v8446, %v8443
    %v8549 = vpack.c.b16 %v8447, %v8444
    %v8550 = vpack.c.b16 %v8451, %v8448
    %v8551 = vpack.c.b16 %v8452, %v8449
    %v8552 = vpack.c.b16 %v8453, %v8450
    %v8553 = vpack.c.b16 %v8457, %v8454
    %v8554 = vpack.c.b16 %v8458, %v8455
    %v8555 = vpack.c.b16 %v8459, %v8456
    %v8556 = vpack.c.b16 %v8463, %v8460
    %v8557 = vpack.c.b16 %v8464, %v8461
    %v8558 = vpack.c.b16 %v8465, %v8462
    %v8559 = vpack.c.b16 %v8469, %v8466
    %v8560 = vpack.c.b16 %v8470, %v8467
    %v8561 = vpack.c.b16 %v8471, %v8468
    %v8562 = vpack.c.b16 %v8475, %v8472
    %v8563 = vpack.c.b16 %v8476, %v8473
    %v8564 = vpack.c.b16 %v8477, %v8474
    %v8565 = vpack.c.b16 %v8481, %v8478
    %v8566 = vpack.c.b16 %v8482, %v8479
    %v8567 = vpack.c.b16 %v8483, %v8480
    %v8653 = vsel %vm2034, %v8200, 0
    %8655 = vmatprep.subr.bf16.mxu0 %v8485
    %8656 = vmatpush1.bf16.msra.mxu0 %v8484
    %8657 = vmatprep.subr.bf16.mxu0 %v8488
    %8658 = vmatpush1.bf16.msra.mxu0 %v8487
    %8659 = vmatprep.subr.bf16.mxu0 %v8491
    %8660 = vmatpush1.bf16.msra.mxu0 %v8490
    %8661 = vmatprep.subr.bf16.mxu0 %v8494
    %8662 = vmatpush1.bf16.msra.mxu0 %v8493
    %8663 = vmatprep.subr.bf16.mxu0 %v8497
    %8664 = vmatpush1.bf16.msra.mxu0 %v8496
    %8665 = vmatprep.subr.bf16.mxu0 %v8500
    %8666 = vmatpush1.bf16.msra.mxu0 %v8499
    %8667 = vmatprep.subr.bf16.mxu0 %v8503
    %8668 = vmatpush1.bf16.msra.mxu0 %v8502
    %8669 = vmatprep.subr.bf16.mxu0 %v8506
    %8670 = vmatpush1.bf16.msra.mxu0 %v8505
    %8671 = vmatprep.subr.bf16.mxu0 %v8509
    %8672 = vmatpush1.bf16.msra.mxu0 %v8508
    %8673 = vmatprep.subr.bf16.mxu0 %v8512
    %8674 = vmatpush1.bf16.msra.mxu0 %v8511
    %8675 = vmatprep.subr.bf16.mxu0 %v8515
    %8676 = vmatpush1.bf16.msra.mxu0 %v8514
    %8677 = vmatprep.subr.bf16.mxu0 %v8518
    %8678 = vmatpush1.bf16.msra.mxu0 %v8517
    %8679 = vmatprep.subr.bf16.mxu0 %v8521
    %8680 = vmatpush1.bf16.msra.mxu0 %v8520
    %8681 = vmatprep.subr.bf16.mxu0 %v8524
    %8682 = vmatpush1.bf16.msra.mxu0 %v8523
    %8683 = vmatprep.subr.bf16.mxu0 %v8527
    %8684 = vmatpush1.bf16.msra.mxu0 %v8526
    %8685 = vmatprep.subr.bf16.mxu0 %v8530
    %8686 = vmatpush1.bf16.msra.mxu0 %v8529
    %8687 = vmatprep.mubr.bf16.mxu0 %v8176
    %8688 = vmatmul.mubr.bf16.gmra.mrb[0].mxu0 %v8164
    %v8689 = vpop.f32.mrb[0].mxu0
    %v8690 = vadd.f32 0.0, %v8689
    %v8691 = vpop.f32.mrb[0].mxu0
    %v8692 = vadd.f32 0.0, %v8691
    %v8693 = vpop.f32.mrb[0].mxu0
    %v8694 = vadd.f32 0.0, %v8693
    %v8695 = vpop.f32.mrb[0].mxu0
    %v8696 = vadd.f32 0.0, %v8695
    %8697 = vdwg.mxu0
    %8698 = vmatprep.subr.bf16.mxu0 %v8533
    %8699 = vmatpush1.bf16.msra.mxu0 %v8532
    %8700 = vmatprep.subr.bf16.mxu0 %v8536
    %8701 = vmatpush1.bf16.msra.mxu0 %v8535
    %8702 = vmatprep.subr.bf16.mxu0 %v8539
    %8703 = vmatpush1.bf16.msra.mxu0 %v8538
    %8704 = vmatprep.subr.bf16.mxu0 %v8542
    %8705 = vmatpush1.bf16.msra.mxu0 %v8541
    %8706 = vmatprep.subr.bf16.mxu0 %v8545
    %8707 = vmatpush1.bf16.msra.mxu0 %v8544
    %8708 = vmatprep.subr.bf16.mxu0 %v8548
    %8709 = vmatpush1.bf16.msra.mxu0 %v8547
    %8710 = vmatprep.subr.bf16.mxu0 %v8551
    %8711 = vmatpush1.bf16.msra.mxu0 %v8550
    %8712 = vmatprep.subr.bf16.mxu0 %v8554
    %8713 = vmatpush1.bf16.msra.mxu0 %v8553
    %8714 = vmatprep.subr.bf16.mxu0 %v8557
    %8715 = vmatpush1.bf16.msra.mxu0 %v8556
    %8716 = vmatprep.subr.bf16.mxu0 %v8560
    %8717 = vmatpush1.bf16.msra.mxu0 %v8559
    %8718 = vmatprep.subr.bf16.mxu0 %v8563
    %8719 = vmatpush1.bf16.msra.mxu0 %v8562
    %8720 = vmatprep.subr.bf16.mxu0 %v8566
    %8721 = vmatpush1.bf16.msra.mxu0 %v8565
    %8722 = vmatprep.subr.bf16.mxu0 0
    %8723 = vmatpush1.bf16.msra.mxu0 0
    %8724 = vmatprep.subr.bf16.mxu0 0
    %8725 = vmatpush1.bf16.msra.mxu0 0
    %8726 = vmatprep.subr.bf16.mxu0 0
    %8727 = vmatpush1.bf16.msra.mxu0 0
    %8728 = vmatprep.subr.bf16.mxu0 0
    %8729 = vmatpush1.bf16.msra.mxu0 0
    %8730 = vmatprep.mubr.bf16.mxu0 %v8653
    %8731 = vmatmul.mubr.bf16.gmra.mrb[0].mxu0 %v8188
    %v8732 = vpop.f32.mrb[0].mxu0
    %v8733 = vadd.f32 %v8690, %v8732
    %v8734 = vpop.f32.mrb[0].mxu0
    %v8735 = vadd.f32 %v8692, %v8734
    %v8736 = vpop.f32.mrb[0].mxu0
    %v8737 = vadd.f32 %v8694, %v8736
    %v8738 = vpop.f32.mrb[0].mxu0
    %v8739 = vadd.f32 %v8696, %v8738
    %8740 = vdwg.mxu0
    %8741 = vmatprep.subr.bf16.mxu0 0
    %8742 = vmatpush1.bf16.msra.mxu0 %v8486
    %8743 = vmatprep.subr.bf16.mxu0 0
    %8744 = vmatpush1.bf16.msra.mxu0 %v8489
    %8745 = vmatprep.subr.bf16.mxu0 0
    %8746 = vmatpush1.bf16.msra.mxu0 %v8492
    %8747 = vmatprep.subr.bf16.mxu0 0
    %8748 = vmatpush1.bf16.msra.mxu0 %v8495
    %8749 = vmatprep.subr.bf16.mxu0 0
    %8750 = vmatpush1.bf16.msra.mxu0 %v8498
    %8751 = vmatprep.subr.bf16.mxu0 0
    %8752 = vmatpush1.bf16.msra.mxu0 %v8501
    %8753 = vmatprep.subr.bf16.mxu0 0
    %8754 = vmatpush1.bf16.msra.mxu0 %v8504
    %8755 = vmatprep.subr.bf16.mxu0 0
    %8756 = vmatpush1.bf16.msra.mxu0 %v8507
    %8757 = vmatprep.subr.bf16.mxu0 0
    %8758 = vmatpush1.bf16.msra.mxu0 %v8510
    %8759 = vmatprep.subr.bf16.mxu0 0
    %8760 = vmatpush1.bf16.msra.mxu0 %v8513
    %8761 = vmatprep.subr.bf16.mxu0 0
    %8762 = vmatpush1.bf16.msra.mxu0 %v8516
    %8763 = vmatprep.subr.bf16.mxu0 0
    %8764 = vmatpush1.bf16.msra.mxu0 %v8519
    %8765 = vmatprep.subr.bf16.mxu0 0
    %8766 = vmatpush1.bf16.msra.mxu0 %v8522
    %8767 = vmatprep.subr.bf16.mxu0 0
    %8768 = vmatpush1.bf16.msra.mxu0 %v8525
    %8769 = vmatprep.subr.bf16.mxu0 0
    %8770 = vmatpush1.bf16.msra.mxu0 %v8528
    %8771 = vmatprep.subr.bf16.mxu0 0
    %8772 = vmatpush1.bf16.msra.mxu0 %v8531
    %8773 = vmatprep.mubr.bf16.mxu0 %v8176
    %8774 = vmatmul.mubr.bf16.gmra.mrb[0].mxu0 %v8164
    %v8775 = vpop.f32.mrb[0].mxu0
    %v8776 = vadd.f32 0.0, %v8775
    %v8777 = vpop.f32.mrb[0].mxu0
    %v8778 = vpop.f32.mrb[0].mxu0
    %v8779 = vadd.f32 0.0, %v8778
    %v8780 = vpop.f32.mrb[0].mxu0
    %8781 = vdwg.mxu0
    %8782 = vmatprep.subr.bf16.mxu0 0
    %8783 = vmatpush1.bf16.msra.mxu0 %v8534
    %8784 = vmatprep.subr.bf16.mxu0 0
    %8785 = vmatpush1.bf16.msra.mxu0 %v8537
    %8786 = vmatprep.subr.bf16.mxu0 0
    %8787 = vmatpush1.bf16.msra.mxu0 %v8540
    %8788 = vmatprep.subr.bf16.mxu0 0
    %8789 = vmatpush1.bf16.msra.mxu0 %v8543
    %8790 = vmatprep.subr.bf16.mxu0 0
    %8791 = vmatpush1.bf16.msra.mxu0 %v8546
    %8792 = vmatprep.subr.bf16.mxu0 0
    %8793 = vmatpush1.bf16.msra.mxu0 %v8549
    %8794 = vmatprep.subr.bf16.mxu0 0
    %8795 = vmatpush1.bf16.msra.mxu0 %v8552
    %8796 = vmatprep.subr.bf16.mxu0 0
    %8797 = vmatpush1.bf16.msra.mxu0 %v8555
    %8798 = vmatprep.subr.bf16.mxu0 0
    %8799 = vmatpush1.bf16.msra.mxu0 %v8558
    %8800 = vmatprep.subr.bf16.mxu0 0
    %8801 = vmatpush1.bf16.msra.mxu0 %v8561
    %8802 = vmatprep.subr.bf16.mxu0 0
    %8803 = vmatpush1.bf16.msra.mxu0 %v8564
    %8804 = vmatprep.subr.bf16.mxu0 0
    %8805 = vmatpush1.bf16.msra.mxu0 %v8567
    %8806 = vmatprep.subr.bf16.mxu0 0
    %8807 = vmatpush1.bf16.msra.mxu0 0
    %8808 = vmatprep.subr.bf16.mxu0 0
    %8809 = vmatpush1.bf16.msra.mxu0 0
    %8810 = vmatprep.subr.bf16.mxu0 0
    %8811 = vmatpush1.bf16.msra.mxu0 0
    %8812 = vmatprep.subr.bf16.mxu0 0
    %8813 = vmatpush1.bf16.msra.mxu0 0
    %8814 = vmatprep.mubr.bf16.mxu0 %v8653
    %8815 = vmatmul.mubr.bf16.gmra.mrb[0].mxu0 %v8188
    %v8816 = vpop.f32.mrb[0].mxu0
    %v8817 = vadd.f32 %v8776, %v8816
    %v8818 = vpop.f32.mrb[0].mxu0
    %v8819 = vpop.f32.mrb[0].mxu0
    %v8820 = vadd.f32 %v8779, %v8819
    %v8821 = vpop.f32.mrb[0].mxu0
    %8822 = vdwg.mxu0
    %v8938 = vunpack.c.l.b16 %v7900
    %v8939 = vunpack.c.h.b16 %v7900
    %v8940 = vunpack.c.l.b16 %v7901
    %v8941 = vunpack.c.l.b16 %v7902
    %v8942 = vunpack.c.h.b16 %v7902
    %v8943 = vunpack.c.l.b16 %v7903
    %v8944 = vunpack.c.l.b16 %v7904
    %v8945 = vunpack.c.h.b16 %v7904
    %v8946 = vunpack.c.l.b16 %v7905
    %v8947 = vunpack.c.l.b16 %v7906
    %v8948 = vunpack.c.h.b16 %v7906
    %v8949 = vunpack.c.l.b16 %v7907
    %v8950 = vunpack.c.l.b16 %v7908
    %v8951 = vunpack.c.h.b16 %v7908
    %v8952 = vunpack.c.l.b16 %v7909
    %v8953 = vunpack.c.l.b16 %v7910
    %v8954 = vunpack.c.h.b16 %v7910
    %v8955 = vunpack.c.l.b16 %v7911
    %v8956 = vunpack.c.l.b16 %v7912
    %v8957 = vunpack.c.h.b16 %v7912
    %v8958 = vunpack.c.l.b16 %v7913
    %v8959 = vunpack.c.l.b16 %v7914
    %v8960 = vunpack.c.h.b16 %v7914
    %v8961 = vunpack.c.l.b16 %v7915
    %v8962 = vunpack.c.l.b16 %v7916
    %v8963 = vunpack.c.h.b16 %v7916
    %v8964 = vunpack.c.l.b16 %v7917
    %v8965 = vunpack.c.l.b16 %v7918
    %v8966 = vunpack.c.h.b16 %v7918
    %v8967 = vunpack.c.l.b16 %v7919
    %v8968 = vunpack.c.l.b16 %v7920
    %v8969 = vunpack.c.h.b16 %v7920
    %v8970 = vunpack.c.l.b16 %v7921
    %v8971 = vunpack.c.l.b16 %v7922
    %v8972 = vunpack.c.h.b16 %v7922
    %v8973 = vunpack.c.l.b16 %v7923
    %v8974 = vunpack.c.l.b16 %v7924
    %v8975 = vunpack.c.h.b16 %v7924
    %v8976 = vunpack.c.l.b16 %v7925
    %v8977 = vunpack.c.l.b16 %v7926
    %v8978 = vunpack.c.h.b16 %v7926
    %v8979 = vunpack.c.l.b16 %v7927
    %v8980 = vunpack.c.l.b16 %v7928
    %v8981 = vunpack.c.h.b16 %v7928
    %v8982 = vunpack.c.l.b16 %v7929
    %v8983 = vunpack.c.l.b16 %v7930
    %v8984 = vunpack.c.h.b16 %v7930
    %v8985 = vunpack.c.l.b16 %v7931
    %v8986 = vunpack.c.l.b16 %v7932
    %v8987 = vunpack.c.h.b16 %v7932
    %v8988 = vunpack.c.l.b16 %v7933
    %v8989 = vunpack.c.l.b16 %v7934
    %v8990 = vunpack.c.h.b16 %v7934
    %v8991 = vunpack.c.l.b16 %v7935
    %v8992 = vunpack.c.l.b16 %v7936
    %v8993 = vunpack.c.h.b16 %v7936
    %v8994 = vunpack.c.l.b16 %v7937
    %v8995 = vunpack.c.l.b16 %v7938
    %v8996 = vunpack.c.h.b16 %v7938
    %v8997 = vunpack.c.l.b16 %v7939
    %v8998 = vunpack.c.l.b16 %v7940
    %v8999 = vunpack.c.h.b16 %v7940
    %v9000 = vunpack.c.l.b16 %v7941
    %v9001 = vunpack.c.l.b16 %v7942
    %v9002 = vunpack.c.h.b16 %v7942
    %v9003 = vunpack.c.l.b16 %v7943
    %v9004 = vunpack.c.l.b16 %v7944
    %v9005 = vunpack.c.h.b16 %v7944
    %v9006 = vunpack.c.l.b16 %v7945
    %v9007 = vunpack.c.l.b16 %v7946
    %v9008 = vunpack.c.h.b16 %v7946
    %v9009 = vunpack.c.l.b16 %v7947
    %v9010 = vunpack.c.l.b16 %v7948
    %v9011 = vunpack.c.h.b16 %v7948
    %v9012 = vunpack.c.l.b16 %v7949
    %v9013 = vunpack.c.l.b16 %v7950
    %v9014 = vunpack.c.h.b16 %v7950
    %v9015 = vunpack.c.l.b16 %v7951
    %v9016 = vunpack.c.l.b16 %v7952
    %v9017 = vunpack.c.h.b16 %v7952
    %v9018 = vunpack.c.l.b16 %v7953
    %v9019 = vunpack.c.l.b16 %v7954
    %v9020 = vunpack.c.h.b16 %v7954
    %v9021 = vunpack.c.l.b16 %v7955
    %v9022 = vunpack.c.l.b16 %v7956
    %v9023 = vunpack.c.h.b16 %v7956
    %v9024 = vunpack.c.l.b16 %v7957
    %v9025 = vunpack.c.l.b16 %v7958
    %v9026 = vunpack.c.h.b16 %v7958
    %v9027 = vunpack.c.l.b16 %v7959
    %v9028 = vunpack.c.l.b16 %v7960
    %v9029 = vunpack.c.h.b16 %v7960
    %v9030 = vunpack.c.l.b16 %v7961
    %v9031 = vunpack.c.l.b16 %v7962
    %v9032 = vunpack.c.h.b16 %v7962
    %v9033 = vunpack.c.l.b16 %v7963
    %v9034 = vunpack.c.l.b16 %v7964
    %v9035 = vunpack.c.h.b16 %v7964
    %v9036 = vunpack.c.l.b16 %v7965
    %v9037 = vunpack.c.l.b16 %v7966
    %v9038 = vunpack.c.h.b16 %v7966
    %v9039 = vunpack.c.l.b16 %v7967
    %v9040 = vunpack.c.l.b16 %v7968
    %v9041 = vunpack.c.h.b16 %v7968
    %v9042 = vunpack.c.l.b16 %v7969
    %v9043 = vunpack.c.l.b16 %v7970
    %v9044 = vunpack.c.h.b16 %v7970
    %v9045 = vunpack.c.l.b16 %v7971
    %v9046 = vunpack.c.l.b16 %v7972
    %v9047 = vunpack.c.h.b16 %v7972
    %v9048 = vunpack.c.l.b16 %v7973
    %v9049 = vunpack.c.l.b16 %v7974
    %v9050 = vunpack.c.h.b16 %v7974
    %v9051 = vunpack.c.l.b16 %v7975
    %v9052 = vunpack.c.l.b16 %v7976
    %v9053 = vunpack.c.h.b16 %v7976
    %v9054 = vunpack.c.l.b16 %v7977
    %v9055 = vunpack.c.l.b16 %v7978
    %v9056 = vunpack.c.h.b16 %v7978
    %v9057 = vunpack.c.l.b16 %v7979
    %v9058 = vunpack.c.l.b16 %v7980
    %v9059 = vunpack.c.h.b16 %v7980
    %v9060 = vunpack.c.l.b16 %v7981
    %v9061 = vunpack.c.l.b16 %v7982
    %v9062 = vunpack.c.h.b16 %v7982
    %v9063 = vunpack.c.l.b16 %v7983
    %v9064 = vunpack.c.l.b16 %v7984
    %v9065 = vunpack.c.h.b16 %v7984
    %v9066 = vunpack.c.l.b16 %v7985
    %v9067 = vunpack.c.l.b16 %v7986
    %v9068 = vunpack.c.h.b16 %v7986
    %v9069 = vunpack.c.l.b16 %v7987
    %v9070 = vunpack.c.l.b16 %v7988
    %v9071 = vunpack.c.h.b16 %v7988
    %v9072 = vunpack.c.l.b16 %v7989
    %v9073 = vunpack.c.l.b16 %v7990
    %v9074 = vunpack.c.h.b16 %v7990
    %v9075 = vunpack.c.l.b16 %v7991
    %v9076 = vunpack.c.l.b16 %v7992
    %v9077 = vunpack.c.h.b16 %v7992
    %v9078 = vunpack.c.l.b16 %v7993
    %v9079 = vunpack.c.l.b16 %v7994
    %v9080 = vunpack.c.h.b16 %v7994
    %v9081 = vunpack.c.l.b16 %v7995
    %v9082 = vunpack.c.l.b16 %v7996
    %v9083 = vunpack.c.h.b16 %v7996
    %v9084 = vunpack.c.l.b16 %v7997
    %v9085 = vunpack.c.l.b16 %v7998
    %v9086 = vunpack.c.h.b16 %v7998
    %v9087 = vunpack.c.l.b16 %v7999
    %v9088 = vunpack.c.l.b16 %v8000
    %v9089 = vunpack.c.h.b16 %v8000
    %v9090 = vunpack.c.l.b16 %v8001
    %v9091 = vunpack.c.l.b16 %v8002
    %v9092 = vunpack.c.h.b16 %v8002
    %v9093 = vunpack.c.l.b16 %v8003
    %v9094 = vunpack.c.l.b16 %v8004
    %v9095 = vunpack.c.h.b16 %v8004
    %v9096 = vunpack.c.l.b16 %v8005
    %v9097 = vunpack.c.l.b16 %v8006
    %v9098 = vunpack.c.h.b16 %v8006
    %v9099 = vunpack.c.l.b16 %v8007
    %v9100 = vunpack.c.l.b16 %v8008
    %v9101 = vunpack.c.h.b16 %v8008
    %v9102 = vunpack.c.l.b16 %v8009
    %v9103 = vunpack.c.l.b16 %v8010
    %v9104 = vunpack.c.h.b16 %v8010
    %v9105 = vunpack.c.l.b16 %v8011
    %v9106 = vpack.c.b16 %v8941, %v8938
    %v9107 = vpack.c.b16 %v8942, %v8939
    %v9108 = vpack.c.b16 %v8943, %v8940
    %v9109 = vpack.c.b16 %v8947, %v8944
    %v9110 = vpack.c.b16 %v8948, %v8945
    %v9111 = vpack.c.b16 %v8949, %v8946
    %v9112 = vpack.c.b16 %v8953, %v8950
    %v9113 = vpack.c.b16 %v8954, %v8951
    %v9114 = vpack.c.b16 %v8955, %v8952
    %v9115 = vpack.c.b16 %v8959, %v8956
    %v9116 = vpack.c.b16 %v8960, %v8957
    %v9117 = vpack.c.b16 %v8961, %v8958
    %v9118 = vpack.c.b16 %v8965, %v8962
    %v9119 = vpack.c.b16 %v8966, %v8963
    %v9120 = vpack.c.b16 %v8967, %v8964
    %v9121 = vpack.c.b16 %v8971, %v8968
    %v9122 = vpack.c.b16 %v8972, %v8969
    %v9123 = vpack.c.b16 %v8973, %v8970
    %v9124 = vpack.c.b16 %v8977, %v8974
    %v9125 = vpack.c.b16 %v8978, %v8975
    %v9126 = vpack.c.b16 %v8979, %v8976
    %v9127 = vpack.c.b16 %v8983, %v8980
    %v9128 = vpack.c.b16 %v8984, %v8981
    %v9129 = vpack.c.b16 %v8985, %v8982
    %v9130 = vpack.c.b16 %v8989, %v8986
    %v9131 = vpack.c.b16 %v8990, %v8987
    %v9132 = vpack.c.b16 %v8991, %v8988
    %v9133 = vpack.c.b16 %v8995, %v8992
    %v9134 = vpack.c.b16 %v8996, %v8993
    %v9135 = vpack.c.b16 %v8997, %v8994
    %v9136 = vpack.c.b16 %v9001, %v8998
    %v9137 = vpack.c.b16 %v9002, %v8999
    %v9138 = vpack.c.b16 %v9003, %v9000
    %v9139 = vpack.c.b16 %v9007, %v9004
    %v9140 = vpack.c.b16 %v9008, %v9005
    %v9141 = vpack.c.b16 %v9009, %v9006
    %v9142 = vpack.c.b16 %v9013, %v9010
    %v9143 = vpack.c.b16 %v9014, %v9011
    %v9144 = vpack.c.b16 %v9015, %v9012
    %v9145 = vpack.c.b16 %v9019, %v9016
    %v9146 = vpack.c.b16 %v9020, %v9017
    %v9147 = vpack.c.b16 %v9021, %v9018
    %v9148 = vpack.c.b16 %v9025, %v9022
    %v9149 = vpack.c.b16 %v9026, %v9023
    %v9150 = vpack.c.b16 %v9027, %v9024
    %v9151 = vpack.c.b16 %v9031, %v9028
    %v9152 = vpack.c.b16 %v9032, %v9029
    %v9153 = vpack.c.b16 %v9033, %v9030
    %v9154 = vpack.c.b16 %v9037, %v9034
    %v9155 = vpack.c.b16 %v9038, %v9035
    %v9156 = vpack.c.b16 %v9039, %v9036
    %v9157 = vpack.c.b16 %v9043, %v9040
    %v9158 = vpack.c.b16 %v9044, %v9041
    %v9159 = vpack.c.b16 %v9045, %v9042
    %v9160 = vpack.c.b16 %v9049, %v9046
    %v9161 = vpack.c.b16 %v9050, %v9047
    %v9162 = vpack.c.b16 %v9051, %v9048
    %v9163 = vpack.c.b16 %v9055, %v9052
    %v9164 = vpack.c.b16 %v9056, %v9053
    %v9165 = vpack.c.b16 %v9057, %v9054
    %v9166 = vpack.c.b16 %v9061, %v9058
    %v9167 = vpack.c.b16 %v9062, %v9059
    %v9168 = vpack.c.b16 %v9063, %v9060
    %v9169 = vpack.c.b16 %v9067, %v9064
    %v9170 = vpack.c.b16 %v9068, %v9065
    %v9171 = vpack.c.b16 %v9069, %v9066
    %v9172 = vpack.c.b16 %v9073, %v9070
    %v9173 = vpack.c.b16 %v9074, %v9071
    %v9174 = vpack.c.b16 %v9075, %v9072
    %v9175 = vpack.c.b16 %v9079, %v9076
    %v9176 = vpack.c.b16 %v9080, %v9077
    %v9177 = vpack.c.b16 %v9081, %v9078
    %v9178 = vpack.c.b16 %v9085, %v9082
    %v9179 = vpack.c.b16 %v9086, %v9083
    %v9180 = vpack.c.b16 %v9087, %v9084
    %v9181 = vpack.c.b16 %v9091, %v9088
    %v9182 = vpack.c.b16 %v9092, %v9089
    %v9183 = vpack.c.b16 %v9093, %v9090
    %v9184 = vpack.c.b16 %v9097, %v9094
    %v9185 = vpack.c.b16 %v9098, %v9095
    %v9186 = vpack.c.b16 %v9099, %v9096
    %v9187 = vpack.c.b16 %v9103, %v9100
    %v9188 = vpack.c.b16 %v9104, %v9101
    %v9189 = vpack.c.b16 %v9105, %v9102
    %v9274 = vsel %vm2034, %v8148, 0
    %9276 = vmatprep.subr.bf16.mxu0 %v9107
    %9277 = vmatpush1.bf16.msra.mxu0 %v9106
    %9278 = vmatprep.subr.bf16.mxu0 %v9110
    %9279 = vmatpush1.bf16.msra.mxu0 %v9109
    %9280 = vmatprep.subr.bf16.mxu0 %v9113
    %9281 = vmatpush1.bf16.msra.mxu0 %v9112
    %9282 = vmatprep.subr.bf16.mxu0 %v9116
    %9283 = vmatpush1.bf16.msra.mxu0 %v9115
    %9284 = vmatprep.subr.bf16.mxu0 %v9119
    %9285 = vmatpush1.bf16.msra.mxu0 %v9118
    %9286 = vmatprep.subr.bf16.mxu0 %v9122
    %9287 = vmatpush1.bf16.msra.mxu0 %v9121
    %9288 = vmatprep.subr.bf16.mxu0 %v9125
    %9289 = vmatpush1.bf16.msra.mxu0 %v9124
    %9290 = vmatprep.subr.bf16.mxu0 %v9128
    %9291 = vmatpush1.bf16.msra.mxu0 %v9127
    %9292 = vmatprep.subr.bf16.mxu0 %v9131
    %9293 = vmatpush1.bf16.msra.mxu0 %v9130
    %9294 = vmatprep.subr.bf16.mxu0 %v9134
    %9295 = vmatpush1.bf16.msra.mxu0 %v9133
    %9296 = vmatprep.subr.bf16.mxu0 %v9137
    %9297 = vmatpush1.bf16.msra.mxu0 %v9136
    %9298 = vmatprep.subr.bf16.mxu0 %v9140
    %9299 = vmatpush1.bf16.msra.mxu0 %v9139
    %9300 = vmatprep.subr.bf16.mxu0 %v9143
    %9301 = vmatpush1.bf16.msra.mxu0 %v9142
    %9302 = vmatprep.subr.bf16.mxu0 %v9146
    %9303 = vmatpush1.bf16.msra.mxu0 %v9145
    %9304 = vmatprep.subr.bf16.mxu0 %v9149
    %9305 = vmatpush1.bf16.msra.mxu0 %v9148
    %9306 = vmatprep.subr.bf16.mxu0 %v9152
    %9307 = vmatpush1.bf16.msra.mxu0 %v9151
    %9308 = vmatprep.mubr.bf16.mxu0 %v8146
    %9309 = vmatmul.mubr.bf16.gmra.mrb[0].mxu0 %v8145
    %v9310 = vpop.f32.mrb[0].mxu0
    %v9311 = vadd.f32 %v8733, %v9310
    %v9312 = vpop.f32.mrb[0].mxu0
    %v9313 = vadd.f32 %v8735, %v9312
    %v9314 = vpop.f32.mrb[0].mxu0
    %v9315 = vadd.f32 %v8737, %v9314
    %v9316 = vpop.f32.mrb[0].mxu0
    %v9317 = vadd.f32 %v8739, %v9316
    %9318 = vdwg.mxu0
    %9319 = vmatprep.subr.bf16.mxu0 %v9155
    %9320 = vmatpush1.bf16.msra.mxu0 %v9154
    %9321 = vmatprep.subr.bf16.mxu0 %v9158
    %9322 = vmatpush1.bf16.msra.mxu0 %v9157
    %9323 = vmatprep.subr.bf16.mxu0 %v9161
    %9324 = vmatpush1.bf16.msra.mxu0 %v9160
    %9325 = vmatprep.subr.bf16.mxu0 %v9164
    %9326 = vmatpush1.bf16.msra.mxu0 %v9163
    %9327 = vmatprep.subr.bf16.mxu0 %v9167
    %9328 = vmatpush1.bf16.msra.mxu0 %v9166
    %9329 = vmatprep.subr.bf16.mxu0 %v9170
    %9330 = vmatpush1.bf16.msra.mxu0 %v9169
    %9331 = vmatprep.subr.bf16.mxu0 %v9173
    %9332 = vmatpush1.bf16.msra.mxu0 %v9172
    %9333 = vmatprep.subr.bf16.mxu0 %v9176
    %9334 = vmatpush1.bf16.msra.mxu0 %v9175
    %9335 = vmatprep.subr.bf16.mxu0 %v9179
    %9336 = vmatpush1.bf16.msra.mxu0 %v9178
    %9337 = vmatprep.subr.bf16.mxu0 %v9182
    %9338 = vmatpush1.bf16.msra.mxu0 %v9181
    %9339 = vmatprep.subr.bf16.mxu0 %v9185
    %9340 = vmatpush1.bf16.msra.mxu0 %v9184
    %9341 = vmatprep.subr.bf16.mxu0 %v9188
    %9342 = vmatpush1.bf16.msra.mxu0 %v9187
    %9343 = vmatprep.subr.bf16.mxu0 0
    %9344 = vmatpush1.bf16.msra.mxu0 0
    %9345 = vmatprep.subr.bf16.mxu0 0
    %9346 = vmatpush1.bf16.msra.mxu0 0
    %9347 = vmatprep.subr.bf16.mxu0 0
    %9348 = vmatpush1.bf16.msra.mxu0 0
    %9349 = vmatprep.subr.bf16.mxu0 0
    %9350 = vmatpush1.bf16.msra.mxu0 0
    %9351 = vmatprep.mubr.bf16.mxu0 %v9274
    %9352 = vmatmul.mubr.bf16.gmra.mrb[0].mxu0 %v8147
    %v9353 = vpop.f32.mrb[0].mxu0
    %v9354 = vadd.f32 %v9311, %v9353
    %v9355 = vpop.f32.mrb[0].mxu0
    %v9356 = vadd.f32 %v9313, %v9355
    %v9357 = vpop.f32.mrb[0].mxu0
    %v9358 = vadd.f32 %v9315, %v9357
    %v9359 = vpop.f32.mrb[0].mxu0
    %v9360 = vadd.f32 %v9317, %v9359
    %9361 = vdwg.mxu0
    %9362 = vmatprep.subr.bf16.mxu0 0
    %9363 = vmatpush1.bf16.msra.mxu0 %v9108
    %9364 = vmatprep.subr.bf16.mxu0 0
    %9365 = vmatpush1.bf16.msra.mxu0 %v9111
    %9366 = vmatprep.subr.bf16.mxu0 0
    %9367 = vmatpush1.bf16.msra.mxu0 %v9114
    %9368 = vmatprep.subr.bf16.mxu0 0
    %9369 = vmatpush1.bf16.msra.mxu0 %v9117
    %9370 = vmatprep.subr.bf16.mxu0 0
    %9371 = vmatpush1.bf16.msra.mxu0 %v9120
    %9372 = vmatprep.subr.bf16.mxu0 0
    %9373 = vmatpush1.bf16.msra.mxu0 %v9123
    %9374 = vmatprep.subr.bf16.mxu0 0
    %9375 = vmatpush1.bf16.msra.mxu0 %v9126
    %9376 = vmatprep.subr.bf16.mxu0 0
    %9377 = vmatpush1.bf16.msra.mxu0 %v9129
    %9378 = vmatprep.subr.bf16.mxu0 0
    %9379 = vmatpush1.bf16.msra.mxu0 %v9132
    %9380 = vmatprep.subr.bf16.mxu0 0
    %9381 = vmatpush1.bf16.msra.mxu0 %v9135
    %9382 = vmatprep.subr.bf16.mxu0 0
    %9383 = vmatpush1.bf16.msra.mxu0 %v9138
    %9384 = vmatprep.subr.bf16.mxu0 0
    %9385 = vmatpush1.bf16.msra.mxu0 %v9141
    %9386 = vmatprep.subr.bf16.mxu0 0
    %9387 = vmatpush1.bf16.msra.mxu0 %v9144
    %9388 = vmatprep.subr.bf16.mxu0 0
    %9389 = vmatpush1.bf16.msra.mxu0 %v9147
    %9390 = vmatprep.subr.bf16.mxu0 0
    %9391 = vmatpush1.bf16.msra.mxu0 %v9150
    %9392 = vmatprep.subr.bf16.mxu0 0
    %9393 = vmatpush1.bf16.msra.mxu0 %v9153
    %9394 = vmatprep.mubr.bf16.mxu0 %v8146
    %9395 = vmatmul.mubr.bf16.gmra.mrb[0].mxu0 %v8145
    %v9396 = vpop.f32.mrb[0].mxu0
    %v9397 = vadd.f32 %v8817, %v9396
    %v9398 = vpop.f32.mrb[0].mxu0
    %v9399 = vpop.f32.mrb[0].mxu0
    %v9400 = vadd.f32 %v8820, %v9399
    %v9401 = vpop.f32.mrb[0].mxu0
    %9402 = vdwg.mxu0
    %9403 = vmatprep.subr.bf16.mxu0 0
    %9404 = vmatpush1.bf16.msra.mxu0 %v9156
    %9405 = vmatprep.subr.bf16.mxu0 0
    %9406 = vmatpush1.bf16.msra.mxu0 %v9159
    %9407 = vmatprep.subr.bf16.mxu0 0
    %9408 = vmatpush1.bf16.msra.mxu0 %v9162
    %9409 = vmatprep.subr.bf16.mxu0 0
    %9410 = vmatpush1.bf16.msra.mxu0 %v9165
    %9411 = vmatprep.subr.bf16.mxu0 0
    %9412 = vmatpush1.bf16.msra.mxu0 %v9168
    %9413 = vmatprep.subr.bf16.mxu0 0
    %9414 = vmatpush1.bf16.msra.mxu0 %v9171
    %9415 = vmatprep.subr.bf16.mxu0 0
    %9416 = vmatpush1.bf16.msra.mxu0 %v9174
    %9417 = vmatprep.subr.bf16.mxu0 0
    %9418 = vmatpush1.bf16.msra.mxu0 %v9177
    %9419 = vmatprep.subr.bf16.mxu0 0
    %9420 = vmatpush1.bf16.msra.mxu0 %v9180
    %9421 = vmatprep.subr.bf16.mxu0 0
    %9422 = vmatpush1.bf16.msra.mxu0 %v9183
    %9423 = vmatprep.subr.bf16.mxu0 0
    %9424 = vmatpush1.bf16.msra.mxu0 %v9186
    %9425 = vmatprep.subr.bf16.mxu0 0
    %9426 = vmatpush1.bf16.msra.mxu0 %v9189
    %9427 = vmatprep.subr.bf16.mxu0 0
    %9428 = vmatpush1.bf16.msra.mxu0 0
    %9429 = vmatprep.subr.bf16.mxu0 0
    %9430 = vmatpush1.bf16.msra.mxu0 0
    %9431 = vmatprep.subr.bf16.mxu0 0
    %9432 = vmatpush1.bf16.msra.mxu0 0
    %9433 = vmatprep.subr.bf16.mxu0 0
    %9434 = vmatpush1.bf16.msra.mxu0 0
    %9435 = vmatprep.mubr.bf16.mxu0 %v9274
    %9436 = vmatmul.mubr.bf16.gmra.mrb[0].mxu0 %v8147
    %v9437 = vpop.f32.mrb[0].mxu0
    %v9438 = vadd.f32 %v9397, %v9437
    %v9439 = vpop.f32.mrb[0].mxu0
    %v9440 = vpop.f32.mrb[0].mxu0
    %v9441 = vadd.f32 %v9400, %v9440
    %v9442 = vpop.f32.mrb[0].mxu0
    %9443 = vdwg.mxu0
    %v9444 = vld [vmem:[#allocation4] sm:$0xee]
    %v9445 = vld [vmem:[#allocation4 + $0x8] sm:$0xee]
    %s9446 = scalar_lea.vmem [#allocation8], 2688
    %v9447 = vld [vmem:[%s9446] sm:$0xff]
    %v9448 = vld [vmem:[%s9446 + $0x8] sm:$0xf]
    %v9449 = vld [vmem:[%s9446 + $0xc] sm:$0xff]
    %v9450 = vld [vmem:[%s9446 + $0x14] sm:$0xf]
    %v9451 = vld [vmem:[%s9446 + $0x18] sm:$0xff]
    %v9452 = vld [vmem:[%s9446 + $0x20] sm:$0xf]
    %v9453 = vld [vmem:[%s9446 + $0x24] sm:$0xff]
    %v9454 = vld [vmem:[%s9446 + $0x2c] sm:$0xf]
    %v9455 = vld [vmem:[%s9446 + $0x30] sm:$0xff]
    %v9456 = vld [vmem:[%s9446 + $0x38] sm:$0xf]
    %v9457 = vld [vmem:[%s9446 + $0x3c] sm:$0xff]
    %v9458 = vld [vmem:[%s9446 + $0x44] sm:$0xf]
    %v9459 = vld [vmem:[%s9446 + $0x48] sm:$0xff]
    %v9460 = vld [vmem:[%s9446 + $0x50] sm:$0xf]
    %v9461 = vld [vmem:[%s9446 + $0x54] sm:$0xff]
    %v9462 = vld [vmem:[%s9446 + $0x5c] sm:$0xf]
    %v9463 = vld [vmem:[%s9446 + $0x60] sm:$0xff]
    %v9464 = vld [vmem:[%s9446 + $0x68] sm:$0xf]
    %v9465 = vld [vmem:[%s9446 + $0x6c] sm:$0xff]
    %v9466 = vld [vmem:[%s9446 + $0x74] sm:$0xf]
    %v9467 = vld [vmem:[%s9446 + $0x78] sm:$0xff]
    %v9468 = vld [vmem:[%s9446 + $0x80] sm:$0xf]
    %v9469 = vld [vmem:[%s9446 + $0x84] sm:$0xff]
    %v9470 = vld [vmem:[%s9446 + $0x8c] sm:$0xf]
    %v9471 = vld [vmem:[%s9446 + $0x90] sm:$0xff]
    %v9472 = vld [vmem:[%s9446 + $0x98] sm:$0xf]
    %v9473 = vld [vmem:[%s9446 + $0x9c] sm:$0xff]
    %v9474 = vld [vmem:[%s9446 + $0xa4] sm:$0xf]
    %v9475 = vld [vmem:[%s9446 + $0xa8] sm:$0xff]
    %v9476 = vld [vmem:[%s9446 + $0xb0] sm:$0xf]
    %v9477 = vld [vmem:[%s9446 + $0xb4] sm:$0xff]
    %v9478 = vld [vmem:[%s9446 + $0xbc] sm:$0xf]
    %v9479 = vld [vmem:[%s9446 + $0xc0] sm:$0xff]
    %v9480 = vld [vmem:[%s9446 + $0xc8] sm:$0xf]
    %v9481 = vld [vmem:[%s9446 + $0xcc] sm:$0xff]
    %v9482 = vld [vmem:[%s9446 + $0xd4] sm:$0xf]
    %v9483 = vld [vmem:[%s9446 + $0xd8] sm:$0xff]
    %v9484 = vld [vmem:[%s9446 + $0xe0] sm:$0xf]
    %v9485 = vld [vmem:[%s9446 + $0xe4] sm:$0xff]
    %v9486 = vld [vmem:[%s9446 + $0xec] sm:$0xf]
    %v9487 = vld [vmem:[%s9446 + $0xf0] sm:$0xff]
    %v9488 = vld [vmem:[%s9446 + $0xf8] sm:$0xf]
    %v9489 = vld [vmem:[%s9446 + $0xfc] sm:$0xff]
    %v9490 = vld [vmem:[%s9446 + $0x104] sm:$0xf]
    %v9491 = vld [vmem:[%s9446 + $0x108] sm:$0xff]
    %v9492 = vld [vmem:[%s9446 + $0x110] sm:$0xf]
    %v9493 = vld [vmem:[%s9446 + $0x114] sm:$0xff]
    %v9494 = vld [vmem:[%s9446 + $0x11c] sm:$0xf]
    %v9495 = vld [vmem:[%s9446 + $0x120] sm:$0xff]
    %v9496 = vld [vmem:[%s9446 + $0x128] sm:$0xf]
    %v9497 = vld [vmem:[%s9446 + $0x12c] sm:$0xff]
    %v9498 = vld [vmem:[%s9446 + $0x134] sm:$0xf]
    %v9499 = vld [vmem:[%s9446 + $0x138] sm:$0xff]
    %v9500 = vld [vmem:[%s9446 + $0x140] sm:$0xf]
    %v9501 = vld [vmem:[%s9446 + $0x144] sm:$0xff]
    %v9502 = vld [vmem:[%s9446 + $0x14c] sm:$0xf]
    %v9503 = vld [vmem:[%s9446 + $0x150] sm:$0xff]
    %v9504 = vld [vmem:[%s9446 + $0x158] sm:$0xf]
    %v9505 = vld [vmem:[%s9446 + $0x15c] sm:$0xff]
    %v9506 = vld [vmem:[%s9446 + $0x164] sm:$0xf]
    %v9507 = vld [vmem:[%s9446 + $0x168] sm:$0xff]
    %v9508 = vld [vmem:[%s9446 + $0x170] sm:$0xf]
    %v9509 = vld [vmem:[%s9446 + $0x174] sm:$0xff]
    %v9510 = vld [vmem:[%s9446 + $0x17c] sm:$0xf]
    %v9511 = vld [vmem:[%s9446 + $0x180] sm:$0xff]
    %v9512 = vld [vmem:[%s9446 + $0x188] sm:$0xf]
    %v9513 = vld [vmem:[%s9446 + $0x18c] sm:$0xff]
    %v9514 = vld [vmem:[%s9446 + $0x194] sm:$0xf]
    %v9515 = vld [vmem:[%s9446 + $0x198] sm:$0xff]
    %v9516 = vld [vmem:[%s9446 + $0x1a0] sm:$0xf]
    %v9517 = vld [vmem:[%s9446 + $0x1a4] sm:$0xff]
    %v9518 = vld [vmem:[%s9446 + $0x1ac] sm:$0xf]
    %v9519 = vld [vmem:[%s9446 + $0x1b0] sm:$0xff]
    %v9520 = vld [vmem:[%s9446 + $0x1b8] sm:$0xf]
    %v9521 = vld [vmem:[%s9446 + $0x1bc] sm:$0xff]
    %v9522 = vld [vmem:[%s9446 + $0x1c4] sm:$0xf]
    %v9523 = vld [vmem:[%s9446 + $0x1c8] sm:$0xff]
    %v9524 = vld [vmem:[%s9446 + $0x1d0] sm:$0xf]
    %v9525 = vld [vmem:[%s9446 + $0x1d4] sm:$0xff]
    %v9526 = vld [vmem:[%s9446 + $0x1dc] sm:$0xf]
    %v9527 = vld [vmem:[%s9446 + $0x1e0] sm:$0xff]
    %v9528 = vld [vmem:[%s9446 + $0x1e8] sm:$0xf]
    %v9529 = vld [vmem:[%s9446 + $0x1ec] sm:$0xff]
    %v9530 = vld [vmem:[%s9446 + $0x1f4] sm:$0xf]
    %v9531 = vld [vmem:[%s9446 + $0x1f8] sm:$0xff]
    %v9532 = vld [vmem:[%s9446 + $0x200] sm:$0xf]
    %v9533 = vld [vmem:[%s9446 + $0x204] sm:$0xff]
    %v9534 = vld [vmem:[%s9446 + $0x20c] sm:$0xf]
    %v9535 = vld [vmem:[%s9446 + $0x210] sm:$0xff]
    %v9536 = vld [vmem:[%s9446 + $0x218] sm:$0xf]
    %v9537 = vld [vmem:[%s9446 + $0x21c] sm:$0xff]
    %v9538 = vld [vmem:[%s9446 + $0x224] sm:$0xf]
    %v9539 = vld [vmem:[%s9446 + $0x228] sm:$0xff]
    %v9540 = vld [vmem:[%s9446 + $0x230] sm:$0xf]
    %v9541 = vld [vmem:[%s9446 + $0x234] sm:$0xff]
    %v9542 = vld [vmem:[%s9446 + $0x23c] sm:$0xf]
    %v9543 = vld [vmem:[%s9446 + $0x240] sm:$0xff]
    %v9544 = vld [vmem:[%s9446 + $0x248] sm:$0xf]
    %v9545 = vld [vmem:[%s9446 + $0x24c] sm:$0xff]
    %v9546 = vld [vmem:[%s9446 + $0x254] sm:$0xf]
    %v9547 = vld [vmem:[%s9446 + $0x258] sm:$0xff]
    %v9548 = vld [vmem:[%s9446 + $0x260] sm:$0xf]
    %v9549 = vld [vmem:[%s9446 + $0x264] sm:$0xff]
    %v9550 = vld [vmem:[%s9446 + $0x26c] sm:$0xf]
    %v9551 = vld [vmem:[%s9446 + $0x270] sm:$0xff]
    %v9552 = vld [vmem:[%s9446 + $0x278] sm:$0xf]
    %v9553 = vld [vmem:[%s9446 + $0x27c] sm:$0xff]
    %v9554 = vld [vmem:[%s9446 + $0x284] sm:$0xf]
    %v9555 = vld [vmem:[%s9446 + $0x288] sm:$0xff]
    %v9556 = vld [vmem:[%s9446 + $0x290] sm:$0xf]
    %v9557 = vld [vmem:[%s9446 + $0x294] sm:$0xff]
    %v9558 = vld [vmem:[%s9446 + $0x29c] sm:$0xf]
    %v9561 = vunpack.c.l.b16 %v9444
    %v9562 = vunpack.c.h.b16 %v9444
    %v9563 = vunpack.c.l.b16 %v9445
    %v9564 = vunpack.c.h.b16 %v9445
    %v9565 = vpack.c.b16 %v8137, %v9561
    %v9566 = vpack.c.b16 %v8138, %v9562
    %v9567 = vpack.c.b16 %v8139, %v9563
    %v9568 = vpack.c.b16 %v8140, %v9564
    %v9569 = vrot.slane %v9565, 1
    %v9570 = vrot.slane %v8149, 1
    %v9571 = vsel %vm735, %v9569, %v9570
    %v9572 = vrot.slane %v9566, 1
    %v9573 = vrot.slane %v8150, 1
    %v9574 = vsel %vm735, %v9572, %v9573
    %v9575 = vrot.slane %v9567, 1
    %v9576 = vrot.slane %v8151, 1
    %v9577 = vsel %vm735, %v9575, %v9576
    %v9578 = vrot.slane %v9568, 1
    %v9579 = vrot.slane %v8152, 1
    %v9580 = vsel %vm735, %v9578, %v9579
    %v9696 = vunpack.c.l.b16 %v9447
    %v9697 = vunpack.c.h.b16 %v9447
    %v9698 = vunpack.c.l.b16 %v9448
    %v9699 = vunpack.c.l.b16 %v9449
    %v9700 = vunpack.c.h.b16 %v9449
    %v9701 = vunpack.c.l.b16 %v9450
    %v9702 = vunpack.c.l.b16 %v9451
    %v9703 = vunpack.c.h.b16 %v9451
    %v9704 = vunpack.c.l.b16 %v9452
    %v9705 = vunpack.c.l.b16 %v9453
    %v9706 = vunpack.c.h.b16 %v9453
    %v9707 = vunpack.c.l.b16 %v9454
    %v9708 = vunpack.c.l.b16 %v9455
    %v9709 = vunpack.c.h.b16 %v9455
    %v9710 = vunpack.c.l.b16 %v9456
    %v9711 = vunpack.c.l.b16 %v9457
    %v9712 = vunpack.c.h.b16 %v9457
    %v9713 = vunpack.c.l.b16 %v9458
    %v9714 = vunpack.c.l.b16 %v9459
    %v9715 = vunpack.c.h.b16 %v9459
    %v9716 = vunpack.c.l.b16 %v9460
    %v9717 = vunpack.c.l.b16 %v9461
    %v9718 = vunpack.c.h.b16 %v9461
    %v9719 = vunpack.c.l.b16 %v9462
    %v9720 = vunpack.c.l.b16 %v9463
    %v9721 = vunpack.c.h.b16 %v9463
    %v9722 = vunpack.c.l.b16 %v9464
    %v9723 = vunpack.c.l.b16 %v9465
    %v9724 = vunpack.c.h.b16 %v9465
    %v9725 = vunpack.c.l.b16 %v9466
    %v9726 = vunpack.c.l.b16 %v9467
    %v9727 = vunpack.c.h.b16 %v9467
    %v9728 = vunpack.c.l.b16 %v9468
    %v9729 = vunpack.c.l.b16 %v9469
    %v9730 = vunpack.c.h.b16 %v9469
    %v9731 = vunpack.c.l.b16 %v9470
    %v9732 = vunpack.c.l.b16 %v9471
    %v9733 = vunpack.c.h.b16 %v9471
    %v9734 = vunpack.c.l.b16 %v9472
    %v9735 = vunpack.c.l.b16 %v9473
    %v9736 = vunpack.c.h.b16 %v9473
    %v9737 = vunpack.c.l.b16 %v9474
    %v9738 = vunpack.c.l.b16 %v9475
    %v9739 = vunpack.c.h.b16 %v9475
    %v9740 = vunpack.c.l.b16 %v9476
    %v9741 = vunpack.c.l.b16 %v9477
    %v9742 = vunpack.c.h.b16 %v9477
    %v9743 = vunpack.c.l.b16 %v9478
    %v9744 = vunpack.c.l.b16 %v9479
    %v9745 = vunpack.c.h.b16 %v9479
    %v9746 = vunpack.c.l.b16 %v9480
    %v9747 = vunpack.c.l.b16 %v9481
    %v9748 = vunpack.c.h.b16 %v9481
    %v9749 = vunpack.c.l.b16 %v9482
    %v9750 = vunpack.c.l.b16 %v9483
    %v9751 = vunpack.c.h.b16 %v9483
    %v9752 = vunpack.c.l.b16 %v9484
    %v9753 = vunpack.c.l.b16 %v9485
    %v9754 = vunpack.c.h.b16 %v9485
    %v9755 = vunpack.c.l.b16 %v9486
    %v9756 = vunpack.c.l.b16 %v9487
    %v9757 = vunpack.c.h.b16 %v9487
    %v9758 = vunpack.c.l.b16 %v9488
    %v9759 = vunpack.c.l.b16 %v9489
    %v9760 = vunpack.c.h.b16 %v9489
    %v9761 = vunpack.c.l.b16 %v9490
    %v9762 = vunpack.c.l.b16 %v9491
    %v9763 = vunpack.c.h.b16 %v9491
    %v9764 = vunpack.c.l.b16 %v9492
    %v9765 = vunpack.c.l.b16 %v9493
    %v9766 = vunpack.c.h.b16 %v9493
    %v9767 = vunpack.c.l.b16 %v9494
    %v9768 = vunpack.c.l.b16 %v9495
    %v9769 = vunpack.c.h.b16 %v9495
    %v9770 = vunpack.c.l.b16 %v9496
    %v9771 = vunpack.c.l.b16 %v9497
    %v9772 = vunpack.c.h.b16 %v9497
    %v9773 = vunpack.c.l.b16 %v9498
    %v9774 = vunpack.c.l.b16 %v9499
    %v9775 = vunpack.c.h.b16 %v9499
    %v9776 = vunpack.c.l.b16 %v9500
    %v9777 = vunpack.c.l.b16 %v9501
    %v9778 = vunpack.c.h.b16 %v9501
    %v9779 = vunpack.c.l.b16 %v9502
    %v9780 = vunpack.c.l.b16 %v9503
    %v9781 = vunpack.c.h.b16 %v9503
    %v9782 = vunpack.c.l.b16 %v9504
    %v9783 = vunpack.c.l.b16 %v9505
    %v9784 = vunpack.c.h.b16 %v9505
    %v9785 = vunpack.c.l.b16 %v9506
    %v9786 = vunpack.c.l.b16 %v9507
    %v9787 = vunpack.c.h.b16 %v9507
    %v9788 = vunpack.c.l.b16 %v9508
    %v9789 = vunpack.c.l.b16 %v9509
    %v9790 = vunpack.c.h.b16 %v9509
    %v9791 = vunpack.c.l.b16 %v9510
    %v9792 = vunpack.c.l.b16 %v9511
    %v9793 = vunpack.c.h.b16 %v9511
    %v9794 = vunpack.c.l.b16 %v9512
    %v9795 = vunpack.c.l.b16 %v9513
    %v9796 = vunpack.c.h.b16 %v9513
    %v9797 = vunpack.c.l.b16 %v9514
    %v9798 = vunpack.c.l.b16 %v9515
    %v9799 = vunpack.c.h.b16 %v9515
    %v9800 = vunpack.c.l.b16 %v9516
    %v9801 = vunpack.c.l.b16 %v9517
    %v9802 = vunpack.c.h.b16 %v9517
    %v9803 = vunpack.c.l.b16 %v9518
    %v9804 = vunpack.c.l.b16 %v9519
    %v9805 = vunpack.c.h.b16 %v9519
    %v9806 = vunpack.c.l.b16 %v9520
    %v9807 = vunpack.c.l.b16 %v9521
    %v9808 = vunpack.c.h.b16 %v9521
    %v9809 = vunpack.c.l.b16 %v9522
    %v9810 = vunpack.c.l.b16 %v9523
    %v9811 = vunpack.c.h.b16 %v9523
    %v9812 = vunpack.c.l.b16 %v9524
    %v9813 = vunpack.c.l.b16 %v9525
    %v9814 = vunpack.c.h.b16 %v9525
    %v9815 = vunpack.c.l.b16 %v9526
    %v9816 = vunpack.c.l.b16 %v9527
    %v9817 = vunpack.c.h.b16 %v9527
    %v9818 = vunpack.c.l.b16 %v9528
    %v9819 = vunpack.c.l.b16 %v9529
    %v9820 = vunpack.c.h.b16 %v9529
    %v9821 = vunpack.c.l.b16 %v9530
    %v9822 = vunpack.c.l.b16 %v9531
    %v9823 = vunpack.c.h.b16 %v9531
    %v9824 = vunpack.c.l.b16 %v9532
    %v9825 = vunpack.c.l.b16 %v9533
    %v9826 = vunpack.c.h.b16 %v9533
    %v9827 = vunpack.c.l.b16 %v9534
    %v9828 = vunpack.c.l.b16 %v9535
    %v9829 = vunpack.c.h.b16 %v9535
    %v9830 = vunpack.c.l.b16 %v9536
    %v9831 = vunpack.c.l.b16 %v9537
    %v9832 = vunpack.c.h.b16 %v9537
    %v9833 = vunpack.c.l.b16 %v9538
    %v9834 = vunpack.c.l.b16 %v9539
    %v9835 = vunpack.c.h.b16 %v9539
    %v9836 = vunpack.c.l.b16 %v9540
    %v9837 = vunpack.c.l.b16 %v9541
    %v9838 = vunpack.c.h.b16 %v9541
    %v9839 = vunpack.c.l.b16 %v9542
    %v9840 = vunpack.c.l.b16 %v9543
    %v9841 = vunpack.c.h.b16 %v9543
    %v9842 = vunpack.c.l.b16 %v9544
    %v9843 = vunpack.c.l.b16 %v9545
    %v9844 = vunpack.c.h.b16 %v9545
    %v9845 = vunpack.c.l.b16 %v9546
    %v9846 = vunpack.c.l.b16 %v9547
    %v9847 = vunpack.c.h.b16 %v9547
    %v9848 = vunpack.c.l.b16 %v9548
    %v9849 = vunpack.c.l.b16 %v9549
    %v9850 = vunpack.c.h.b16 %v9549
    %v9851 = vunpack.c.l.b16 %v9550
    %v9852 = vunpack.c.l.b16 %v9551
    %v9853 = vunpack.c.h.b16 %v9551
    %v9854 = vunpack.c.l.b16 %v9552
    %v9855 = vunpack.c.l.b16 %v9553
    %v9856 = vunpack.c.h.b16 %v9553
    %v9857 = vunpack.c.l.b16 %v9554
    %v9858 = vunpack.c.l.b16 %v9555
    %v9859 = vunpack.c.h.b16 %v9555
    %v9860 = vunpack.c.l.b16 %v9556
    %v9861 = vunpack.c.l.b16 %v9557
    %v9862 = vunpack.c.h.b16 %v9557
    %v9863 = vunpack.c.l.b16 %v9558
    %v9864 = vpack.c.b16 %v9699, %v9696
    %v9865 = vpack.c.b16 %v9700, %v9697
    %v9866 = vpack.c.b16 %v9701, %v9698
    %v9867 = vpack.c.b16 %v9705, %v9702
    %v9868 = vpack.c.b16 %v9706, %v9703
    %v9869 = vpack.c.b16 %v9707, %v9704
    %v9870 = vpack.c.b16 %v9711, %v9708
    %v9871 = vpack.c.b16 %v9712, %v9709
    %v9872 = vpack.c.b16 %v9713, %v9710
    %v9873 = vpack.c.b16 %v9717, %v9714
    %v9874 = vpack.c.b16 %v9718, %v9715
    %v9875 = vpack.c.b16 %v9719, %v9716
    %v9876 = vpack.c.b16 %v9723, %v9720
    %v9877 = vpack.c.b16 %v9724, %v9721
    %v9878 = vpack.c.b16 %v9725, %v9722
    %v9879 = vpack.c.b16 %v9729, %v9726
    %v9880 = vpack.c.b16 %v9730, %v9727
    %v9881 = vpack.c.b16 %v9731, %v9728
    %v9882 = vpack.c.b16 %v9735, %v9732
    %v9883 = vpack.c.b16 %v9736, %v9733
    %v9884 = vpack.c.b16 %v9737, %v9734
    %v9885 = vpack.c.b16 %v9741, %v9738
    %v9886 = vpack.c.b16 %v9742, %v9739
    %v9887 = vpack.c.b16 %v9743, %v9740
    %v9888 = vpack.c.b16 %v9747, %v9744
    %v9889 = vpack.c.b16 %v9748, %v9745
    %v9890 = vpack.c.b16 %v9749, %v9746
    %v9891 = vpack.c.b16 %v9753, %v9750
    %v9892 = vpack.c.b16 %v9754, %v9751
    %v9893 = vpack.c.b16 %v9755, %v9752
    %v9894 = vpack.c.b16 %v9759, %v9756
    %v9895 = vpack.c.b16 %v9760, %v9757
    %v9896 = vpack.c.b16 %v9761, %v9758
    %v9897 = vpack.c.b16 %v9765, %v9762
    %v9898 = vpack.c.b16 %v9766, %v9763
    %v9899 = vpack.c.b16 %v9767, %v9764
    %v9900 = vpack.c.b16 %v9771, %v9768
    %v9901 = vpack.c.b16 %v9772, %v9769
    %v9902 = vpack.c.b16 %v9773, %v9770
    %v9903 = vpack.c.b16 %v9777, %v9774
    %v9904 = vpack.c.b16 %v9778, %v9775
    %v9905 = vpack.c.b16 %v9779, %v9776
    %v9906 = vpack.c.b16 %v9783, %v9780
    %v9907 = vpack.c.b16 %v9784, %v9781
    %v9908 = vpack.c.b16 %v9785, %v9782
    %v9909 = vpack.c.b16 %v9789, %v9786
    %v9910 = vpack.c.b16 %v9790, %v9787
    %v9911 = vpack.c.b16 %v9791, %v9788
    %v9912 = vpack.c.b16 %v9795, %v9792
    %v9913 = vpack.c.b16 %v9796, %v9793
    %v9914 = vpack.c.b16 %v9797, %v9794
    %v9915 = vpack.c.b16 %v9801, %v9798
    %v9916 = vpack.c.b16 %v9802, %v9799
    %v9917 = vpack.c.b16 %v9803, %v9800
    %v9918 = vpack.c.b16 %v9807, %v9804
    %v9919 = vpack.c.b16 %v9808, %v9805
    %v9920 = vpack.c.b16 %v9809, %v9806
    %v9921 = vpack.c.b16 %v9813, %v9810
    %v9922 = vpack.c.b16 %v9814, %v9811
    %v9923 = vpack.c.b16 %v9815, %v9812
    %v9924 = vpack.c.b16 %v9819, %v9816
    %v9925 = vpack.c.b16 %v9820, %v9817
    %v9926 = vpack.c.b16 %v9821, %v9818
    %v9927 = vpack.c.b16 %v9825, %v9822
    %v9928 = vpack.c.b16 %v9826, %v9823
    %v9929 = vpack.c.b16 %v9827, %v9824
    %v9930 = vpack.c.b16 %v9831, %v9828
    %v9931 = vpack.c.b16 %v9832, %v9829
    %v9932 = vpack.c.b16 %v9833, %v9830
    %v9933 = vpack.c.b16 %v9837, %v9834
    %v9934 = vpack.c.b16 %v9838, %v9835
    %v9935 = vpack.c.b16 %v9839, %v9836
    %v9936 = vpack.c.b16 %v9843, %v9840
    %v9937 = vpack.c.b16 %v9844, %v9841
    %v9938 = vpack.c.b16 %v9845, %v9842
    %v9939 = vpack.c.b16 %v9849, %v9846
    %v9940 = vpack.c.b16 %v9850, %v9847
    %v9941 = vpack.c.b16 %v9851, %v9848
    %v9942 = vpack.c.b16 %v9855, %v9852
    %v9943 = vpack.c.b16 %v9856, %v9853
    %v9944 = vpack.c.b16 %v9857, %v9854
    %v9945 = vpack.c.b16 %v9861, %v9858
    %v9946 = vpack.c.b16 %v9862, %v9859
    %v9947 = vpack.c.b16 %v9863, %v9860
    %v10033 = vsel %vm2034, %v9580, 0
    %10035 = vmatprep.subr.bf16.mxu0 %v9865
    %10036 = vmatpush1.bf16.msra.mxu0 %v9864
    %10037 = vmatprep.subr.bf16.mxu0 %v9868
    %10038 = vmatpush1.bf16.msra.mxu0 %v9867
    %10039 = vmatprep.subr.bf16.mxu0 %v9871
    %10040 = vmatpush1.bf16.msra.mxu0 %v9870
    %10041 = vmatprep.subr.bf16.mxu0 %v9874
    %10042 = vmatpush1.bf16.msra.mxu0 %v9873
    %10043 = vmatprep.subr.bf16.mxu0 %v9877
    %10044 = vmatpush1.bf16.msra.mxu0 %v9876
    %10045 = vmatprep.subr.bf16.mxu0 %v9880
    %10046 = vmatpush1.bf16.msra.mxu0 %v9879
    %10047 = vmatprep.subr.bf16.mxu0 %v9883
    %10048 = vmatpush1.bf16.msra.mxu0 %v9882
    %10049 = vmatprep.subr.bf16.mxu0 %v9886
    %10050 = vmatpush1.bf16.msra.mxu0 %v9885
    %10051 = vmatprep.subr.bf16.mxu0 %v9889
    %10052 = vmatpush1.bf16.msra.mxu0 %v9888
    %10053 = vmatprep.subr.bf16.mxu0 %v9892
    %10054 = vmatpush1.bf16.msra.mxu0 %v9891
    %10055 = vmatprep.subr.bf16.mxu0 %v9895
    %10056 = vmatpush1.bf16.msra.mxu0 %v9894
    %10057 = vmatprep.subr.bf16.mxu0 %v9898
    %10058 = vmatpush1.bf16.msra.mxu0 %v9897
    %10059 = vmatprep.subr.bf16.mxu0 %v9901
    %10060 = vmatpush1.bf16.msra.mxu0 %v9900
    %10061 = vmatprep.subr.bf16.mxu0 %v9904
    %10062 = vmatpush1.bf16.msra.mxu0 %v9903
    %10063 = vmatprep.subr.bf16.mxu0 %v9907
    %10064 = vmatpush1.bf16.msra.mxu0 %v9906
    %10065 = vmatprep.subr.bf16.mxu0 %v9910
    %10066 = vmatpush1.bf16.msra.mxu0 %v9909
    %10067 = vmatprep.mubr.bf16.mxu0 %v9574
    %10068 = vmatmul.mubr.bf16.gmra.mrb[0].mxu0 %v9571
    %v10069 = vpop.f32.mrb[0].mxu0
    %v10070 = vadd.f32 0.0, %v10069
    %v10071 = vpop.f32.mrb[0].mxu0
    %v10072 = vadd.f32 0.0, %v10071
    %v10073 = vpop.f32.mrb[0].mxu0
    %v10074 = vadd.f32 0.0, %v10073
    %v10075 = vpop.f32.mrb[0].mxu0
    %v10076 = vadd.f32 0.0, %v10075
    %10077 = vdwg.mxu0
    %10078 = vmatprep.subr.bf16.mxu0 %v9913
    %10079 = vmatpush1.bf16.msra.mxu0 %v9912
    %10080 = vmatprep.subr.bf16.mxu0 %v9916
    %10081 = vmatpush1.bf16.msra.mxu0 %v9915
    %10082 = vmatprep.subr.bf16.mxu0 %v9919
    %10083 = vmatpush1.bf16.msra.mxu0 %v9918
    %10084 = vmatprep.subr.bf16.mxu0 %v9922
    %10085 = vmatpush1.bf16.msra.mxu0 %v9921
    %10086 = vmatprep.subr.bf16.mxu0 %v9925
    %10087 = vmatpush1.bf16.msra.mxu0 %v9924
    %10088 = vmatprep.subr.bf16.mxu0 %v9928
    %10089 = vmatpush1.bf16.msra.mxu0 %v9927
    %10090 = vmatprep.subr.bf16.mxu0 %v9931
    %10091 = vmatpush1.bf16.msra.mxu0 %v9930
    %10092 = vmatprep.subr.bf16.mxu0 %v9934
    %10093 = vmatpush1.bf16.msra.mxu0 %v9933
    %10094 = vmatprep.subr.bf16.mxu0 %v9937
    %10095 = vmatpush1.bf16.msra.mxu0 %v9936
    %10096 = vmatprep.subr.bf16.mxu0 %v9940
    %10097 = vmatpush1.bf16.msra.mxu0 %v9939
    %10098 = vmatprep.subr.bf16.mxu0 %v9943
    %10099 = vmatpush1.bf16.msra.mxu0 %v9942
    %10100 = vmatprep.subr.bf16.mxu0 %v9946
    %10101 = vmatpush1.bf16.msra.mxu0 %v9945
    %10102 = vmatprep.subr.bf16.mxu0 0
    %10103 = vmatpush1.bf16.msra.mxu0 0
    %10104 = vmatprep.subr.bf16.mxu0 0
    %10105 = vmatpush1.bf16.msra.mxu0 0
    %10106 = vmatprep.subr.bf16.mxu0 0
    %10107 = vmatpush1.bf16.msra.mxu0 0
    %10108 = vmatprep.subr.bf16.mxu0 0
    %10109 = vmatpush1.bf16.msra.mxu0 0
    %10110 = vmatprep.mubr.bf16.mxu0 %v10033
    %10111 = vmatmul.mubr.bf16.gmra.mrb[0].mxu0 %v9577
    %v10112 = vpop.f32.mrb[0].mxu0
    %v10113 = vadd.f32 %v10070, %v10112
    %v10114 = vpop.f32.mrb[0].mxu0
    %v10115 = vadd.f32 %v10072, %v10114
    %v10116 = vpop.f32.mrb[0].mxu0
    %v10117 = vadd.f32 %v10074, %v10116
    %v10118 = vpop.f32.mrb[0].mxu0
    %v10119 = vadd.f32 %v10076, %v10118
    %10120 = vdwg.mxu0
    %10121 = vmatprep.subr.bf16.mxu0 0
    %10122 = vmatpush1.bf16.msra.mxu0 %v9866
    %10123 = vmatprep.subr.bf16.mxu0 0
    %10124 = vmatpush1.bf16.msra.mxu0 %v9869
    %10125 = vmatprep.subr.bf16.mxu0 0
    %10126 = vmatpush1.bf16.msra.mxu0 %v9872
    %10127 = vmatprep.subr.bf16.mxu0 0
    %10128 = vmatpush1.bf16.msra.mxu0 %v9875
    %10129 = vmatprep.subr.bf16.mxu0 0
    %10130 = vmatpush1.bf16.msra.mxu0 %v9878
    %10131 = vmatprep.subr.bf16.mxu0 0
    %10132 = vmatpush1.bf16.msra.mxu0 %v9881
    %10133 = vmatprep.subr.bf16.mxu0 0
    %10134 = vmatpush1.bf16.msra.mxu0 %v9884
    %10135 = vmatprep.subr.bf16.mxu0 0
    %10136 = vmatpush1.bf16.msra.mxu0 %v9887
    %10137 = vmatprep.subr.bf16.mxu0 0
    %10138 = vmatpush1.bf16.msra.mxu0 %v9890
    %10139 = vmatprep.subr.bf16.mxu0 0
    %10140 = vmatpush1.bf16.msra.mxu0 %v9893
    %10141 = vmatprep.subr.bf16.mxu0 0
    %10142 = vmatpush1.bf16.msra.mxu0 %v9896
    %10143 = vmatprep.subr.bf16.mxu0 0
    %10144 = vmatpush1.bf16.msra.mxu0 %v9899
    %10145 = vmatprep.subr.bf16.mxu0 0
    %10146 = vmatpush1.bf16.msra.mxu0 %v9902
    %10147 = vmatprep.subr.bf16.mxu0 0
    %10148 = vmatpush1.bf16.msra.mxu0 %v9905
    %10149 = vmatprep.subr.bf16.mxu0 0
    %10150 = vmatpush1.bf16.msra.mxu0 %v9908
    %10151 = vmatprep.subr.bf16.mxu0 0
    %10152 = vmatpush1.bf16.msra.mxu0 %v9911
    %10153 = vmatprep.mubr.bf16.mxu0 %v9574
    %10154 = vmatmul.mubr.bf16.gmra.mrb[0].mxu0 %v9571
    %v10155 = vpop.f32.mrb[0].mxu0
    %v10156 = vadd.f32 0.0, %v10155
    %v10157 = vpop.f32.mrb[0].mxu0
    %v10158 = vpop.f32.mrb[0].mxu0
    %v10159 = vadd.f32 0.0, %v10158
    %v10160 = vpop.f32.mrb[0].mxu0
    %10161 = vdwg.mxu0
    %10162 = vmatprep.subr.bf16.mxu0 0
    %10163 = vmatpush1.bf16.msra.mxu0 %v9914
    %10164 = vmatprep.subr.bf16.mxu0 0
    %10165 = vmatpush1.bf16.msra.mxu0 %v9917
    %10166 = vmatprep.subr.bf16.mxu0 0
    %10167 = vmatpush1.bf16.msra.mxu0 %v9920
    %10168 = vmatprep.subr.bf16.mxu0 0
    %10169 = vmatpush1.bf16.msra.mxu0 %v9923
    %10170 = vmatprep.subr.bf16.mxu0 0
    %10171 = vmatpush1.bf16.msra.mxu0 %v9926
    %10172 = vmatprep.subr.bf16.mxu0 0
    %10173 = vmatpush1.bf16.msra.mxu0 %v9929
    %10174 = vmatprep.subr.bf16.mxu0 0
    %10175 = vmatpush1.bf16.msra.mxu0 %v9932
    %10176 = vmatprep.subr.bf16.mxu0 0
    %10177 = vmatpush1.bf16.msra.mxu0 %v9935
    %10178 = vmatprep.subr.bf16.mxu0 0
    %10179 = vmatpush1.bf16.msra.mxu0 %v9938
    %10180 = vmatprep.subr.bf16.mxu0 0
    %10181 = vmatpush1.bf16.msra.mxu0 %v9941
    %10182 = vmatprep.subr.bf16.mxu0 0
    %10183 = vmatpush1.bf16.msra.mxu0 %v9944
    %10184 = vmatprep.subr.bf16.mxu0 0
    %10185 = vmatpush1.bf16.msra.mxu0 %v9947
    %10186 = vmatprep.subr.bf16.mxu0 0
    %10187 = vmatpush1.bf16.msra.mxu0 0
    %10188 = vmatprep.subr.bf16.mxu0 0
    %10189 = vmatpush1.bf16.msra.mxu0 0
    %10190 = vmatprep.subr.bf16.mxu0 0
    %10191 = vmatpush1.bf16.msra.mxu0 0
    %10192 = vmatprep.subr.bf16.mxu0 0
    %10193 = vmatpush1.bf16.msra.mxu0 0
    %10194 = vmatprep.mubr.bf16.mxu0 %v10033
    %10195 = vmatmul.mubr.bf16.gmra.mrb[0].mxu0 %v9577
    %v10196 = vpop.f32.mrb[0].mxu0
    %v10197 = vadd.f32 %v10156, %v10196
    %v10198 = vpop.f32.mrb[0].mxu0
    %v10199 = vpop.f32.mrb[0].mxu0
    %v10200 = vadd.f32 %v10159, %v10199
    %v10201 = vpop.f32.mrb[0].mxu0
    %10202 = vdwg.mxu0
    %v10203 = vadd.f32 %v9354, %v10113
    %v10204 = vadd.f32 %v9356, %v10115
    %v10205 = vadd.f32 %v9438, %v10197
    %v10206 = vadd.f32 %v9358, %v10117
    %v10207 = vadd.f32 %v9360, %v10119
    %v10208 = vadd.f32 %v9441, %v10200
    %s10209 = scalar_lea.vmem [#allocation8], 672
    %v10210 = vld [vmem:[%s10209] sm:$0xff]
    %v10211 = vld [vmem:[%s10209 + $0x8] sm:$0xf]
    %v10212 = vld [vmem:[%s10209 + $0xc] sm:$0xff]
    %v10213 = vld [vmem:[%s10209 + $0x14] sm:$0xf]
    %v10214 = vld [vmem:[%s10209 + $0x18] sm:$0xff]
    %v10215 = vld [vmem:[%s10209 + $0x20] sm:$0xf]
    %v10216 = vld [vmem:[%s10209 + $0x24] sm:$0xff]
    %v10217 = vld [vmem:[%s10209 + $0x2c] sm:$0xf]
    %v10218 = vld [vmem:[%s10209 + $0x30] sm:$0xff]
    %v10219 = vld [vmem:[%s10209 + $0x38] sm:$0xf]
    %v10220 = vld [vmem:[%s10209 + $0x3c] sm:$0xff]
    %v10221 = vld [vmem:[%s10209 + $0x44] sm:$0xf]
    %v10222 = vld [vmem:[%s10209 + $0x48] sm:$0xff]
    %v10223 = vld [vmem:[%s10209 + $0x50] sm:$0xf]
    %v10224 = vld [vmem:[%s10209 + $0x54] sm:$0xff]
    %v10225 = vld [vmem:[%s10209 + $0x5c] sm:$0xf]
    %v10226 = vld [vmem:[%s10209 + $0x60] sm:$0xff]
    %v10227 = vld [vmem:[%s10209 + $0x68] sm:$0xf]
    %v10228 = vld [vmem:[%s10209 + $0x6c] sm:$0xff]
    %v10229 = vld [vmem:[%s10209 + $0x74] sm:$0xf]
    %v10230 = vld [vmem:[%s10209 + $0x78] sm:$0xff]
    %v10231 = vld [vmem:[%s10209 + $0x80] sm:$0xf]
    %v10232 = vld [vmem:[%s10209 + $0x84] sm:$0xff]
    %v10233 = vld [vmem:[%s10209 + $0x8c] sm:$0xf]
    %v10234 = vld [vmem:[%s10209 + $0x90] sm:$0xff]
    %v10235 = vld [vmem:[%s10209 + $0x98] sm:$0xf]
    %v10236 = vld [vmem:[%s10209 + $0x9c] sm:$0xff]
    %v10237 = vld [vmem:[%s10209 + $0xa4] sm:$0xf]
    %v10238 = vld [vmem:[%s10209 + $0xa8] sm:$0xff]
    %v10239 = vld [vmem:[%s10209 + $0xb0] sm:$0xf]
    %v10240 = vld [vmem:[%s10209 + $0xb4] sm:$0xff]
    %v10241 = vld [vmem:[%s10209 + $0xbc] sm:$0xf]
    %v10242 = vld [vmem:[%s10209 + $0xc0] sm:$0xff]
    %v10243 = vld [vmem:[%s10209 + $0xc8] sm:$0xf]
    %v10244 = vld [vmem:[%s10209 + $0xcc] sm:$0xff]
    %v10245 = vld [vmem:[%s10209 + $0xd4] sm:$0xf]
    %v10246 = vld [vmem:[%s10209 + $0xd8] sm:$0xff]
    %v10247 = vld [vmem:[%s10209 + $0xe0] sm:$0xf]
    %v10248 = vld [vmem:[%s10209 + $0xe4] sm:$0xff]
    %v10249 = vld [vmem:[%s10209 + $0xec] sm:$0xf]
    %v10250 = vld [vmem:[%s10209 + $0xf0] sm:$0xff]
    %v10251 = vld [vmem:[%s10209 + $0xf8] sm:$0xf]
    %v10252 = vld [vmem:[%s10209 + $0xfc] sm:$0xff]
    %v10253 = vld [vmem:[%s10209 + $0x104] sm:$0xf]
    %v10254 = vld [vmem:[%s10209 + $0x108] sm:$0xff]
    %v10255 = vld [vmem:[%s10209 + $0x110] sm:$0xf]
    %v10256 = vld [vmem:[%s10209 + $0x114] sm:$0xff]
    %v10257 = vld [vmem:[%s10209 + $0x11c] sm:$0xf]
    %v10258 = vld [vmem:[%s10209 + $0x120] sm:$0xff]
    %v10259 = vld [vmem:[%s10209 + $0x128] sm:$0xf]
    %v10260 = vld [vmem:[%s10209 + $0x12c] sm:$0xff]
    %v10261 = vld [vmem:[%s10209 + $0x134] sm:$0xf]
    %v10262 = vld [vmem:[%s10209 + $0x138] sm:$0xff]
    %v10263 = vld [vmem:[%s10209 + $0x140] sm:$0xf]
    %v10264 = vld [vmem:[%s10209 + $0x144] sm:$0xff]
    %v10265 = vld [vmem:[%s10209 + $0x14c] sm:$0xf]
    %v10266 = vld [vmem:[%s10209 + $0x150] sm:$0xff]
    %v10267 = vld [vmem:[%s10209 + $0x158] sm:$0xf]
    %v10268 = vld [vmem:[%s10209 + $0x15c] sm:$0xff]
    %v10269 = vld [vmem:[%s10209 + $0x164] sm:$0xf]
    %v10270 = vld [vmem:[%s10209 + $0x168] sm:$0xff]
    %v10271 = vld [vmem:[%s10209 + $0x170] sm:$0xf]
    %v10272 = vld [vmem:[%s10209 + $0x174] sm:$0xff]
    %v10273 = vld [vmem:[%s10209 + $0x17c] sm:$0xf]
    %v10274 = vld [vmem:[%s10209 + $0x180] sm:$0xff]
    %v10275 = vld [vmem:[%s10209 + $0x188] sm:$0xf]
    %v10276 = vld [vmem:[%s10209 + $0x18c] sm:$0xff]
    %v10277 = vld [vmem:[%s10209 + $0x194] sm:$0xf]
    %v10278 = vld [vmem:[%s10209 + $0x198] sm:$0xff]
    %v10279 = vld [vmem:[%s10209 + $0x1a0] sm:$0xf]
    %v10280 = vld [vmem:[%s10209 + $0x1a4] sm:$0xff]
    %v10281 = vld [vmem:[%s10209 + $0x1ac] sm:$0xf]
    %v10282 = vld [vmem:[%s10209 + $0x1b0] sm:$0xff]
    %v10283 = vld [vmem:[%s10209 + $0x1b8] sm:$0xf]
    %v10284 = vld [vmem:[%s10209 + $0x1bc] sm:$0xff]
    %v10285 = vld [vmem:[%s10209 + $0x1c4] sm:$0xf]
    %v10286 = vld [vmem:[%s10209 + $0x1c8] sm:$0xff]
    %v10287 = vld [vmem:[%s10209 + $0x1d0] sm:$0xf]
    %v10288 = vld [vmem:[%s10209 + $0x1d4] sm:$0xff]
    %v10289 = vld [vmem:[%s10209 + $0x1dc] sm:$0xf]
    %v10290 = vld [vmem:[%s10209 + $0x1e0] sm:$0xff]
    %v10291 = vld [vmem:[%s10209 + $0x1e8] sm:$0xf]
    %v10292 = vld [vmem:[%s10209 + $0x1ec] sm:$0xff]
    %v10293 = vld [vmem:[%s10209 + $0x1f4] sm:$0xf]
    %v10294 = vld [vmem:[%s10209 + $0x1f8] sm:$0xff]
    %v10295 = vld [vmem:[%s10209 + $0x200] sm:$0xf]
    %v10296 = vld [vmem:[%s10209 + $0x204] sm:$0xff]
    %v10297 = vld [vmem:[%s10209 + $0x20c] sm:$0xf]
    %v10298 = vld [vmem:[%s10209 + $0x210] sm:$0xff]
    %v10299 = vld [vmem:[%s10209 + $0x218] sm:$0xf]
    %v10300 = vld [vmem:[%s10209 + $0x21c] sm:$0xff]
    %v10301 = vld [vmem:[%s10209 + $0x224] sm:$0xf]
    %v10302 = vld [vmem:[%s10209 + $0x228] sm:$0xff]
    %v10303 = vld [vmem:[%s10209 + $0x230] sm:$0xf]
    %v10304 = vld [vmem:[%s10209 + $0x234] sm:$0xff]
    %v10305 = vld [vmem:[%s10209 + $0x23c] sm:$0xf]
    %v10306 = vld [vmem:[%s10209 + $0x240] sm:$0xff]
    %v10307 = vld [vmem:[%s10209 + $0x248] sm:$0xf]
    %v10308 = vld [vmem:[%s10209 + $0x24c] sm:$0xff]
    %v10309 = vld [vmem:[%s10209 + $0x254] sm:$0xf]
    %v10310 = vld [vmem:[%s10209 + $0x258] sm:$0xff]
    %v10311 = vld [vmem:[%s10209 + $0x260] sm:$0xf]
    %v10312 = vld [vmem:[%s10209 + $0x264] sm:$0xff]
    %v10313 = vld [vmem:[%s10209 + $0x26c] sm:$0xf]
    %v10314 = vld [vmem:[%s10209 + $0x270] sm:$0xff]
    %v10315 = vld [vmem:[%s10209 + $0x278] sm:$0xf]
    %v10316 = vld [vmem:[%s10209 + $0x27c] sm:$0xff]
    %v10317 = vld [vmem:[%s10209 + $0x284] sm:$0xf]
    %v10318 = vld [vmem:[%s10209 + $0x288] sm:$0xff]
    %v10319 = vld [vmem:[%s10209 + $0x290] sm:$0xf]
    %v10320 = vld [vmem:[%s10209 + $0x294] sm:$0xff]
    %v10321 = vld [vmem:[%s10209 + $0x29c] sm:$0xf]
    %s10322 = scalar_lea.vmem [#allocation8], 2016
    %v10323 = vld [vmem:[%s10322] sm:$0xff]
    %v10324 = vld [vmem:[%s10322 + $0x8] sm:$0xf]
    %v10325 = vld [vmem:[%s10322 + $0xc] sm:$0xff]
    %v10326 = vld [vmem:[%s10322 + $0x14] sm:$0xf]
    %v10327 = vld [vmem:[%s10322 + $0x18] sm:$0xff]
    %v10328 = vld [vmem:[%s10322 + $0x20] sm:$0xf]
    %v10329 = vld [vmem:[%s10322 + $0x24] sm:$0xff]
    %v10330 = vld [vmem:[%s10322 + $0x2c] sm:$0xf]
    %v10331 = vld [vmem:[%s10322 + $0x30] sm:$0xff]
    %v10332 = vld [vmem:[%s10322 + $0x38] sm:$0xf]
    %v10333 = vld [vmem:[%s10322 + $0x3c] sm:$0xff]
    %v10334 = vld [vmem:[%s10322 + $0x44] sm:$0xf]
    %v10335 = vld [vmem:[%s10322 + $0x48] sm:$0xff]
    %v10336 = vld [vmem:[%s10322 + $0x50] sm:$0xf]
    %v10337 = vld [vmem:[%s10322 + $0x54] sm:$0xff]
    %v10338 = vld [vmem:[%s10322 + $0x5c] sm:$0xf]
    %v10339 = vld [vmem:[%s10322 + $0x60] sm:$0xff]
    %v10340 = vld [vmem:[%s10322 + $0x68] sm:$0xf]
    %v10341 = vld [vmem:[%s10322 + $0x6c] sm:$0xff]
    %v10342 = vld [vmem:[%s10322 + $0x74] sm:$0xf]
    %v10343 = vld [vmem:[%s10322 + $0x78] sm:$0xff]
    %v10344 = vld [vmem:[%s10322 + $0x80] sm:$0xf]
    %v10345 = vld [vmem:[%s10322 + $0x84] sm:$0xff]
    %v10346 = vld [vmem:[%s10322 + $0x8c] sm:$0xf]
    %v10347 = vld [vmem:[%s10322 + $0x90] sm:$0xff]
    %v10348 = vld [vmem:[%s10322 + $0x98] sm:$0xf]
    %v10349 = vld [vmem:[%s10322 + $0x9c] sm:$0xff]
    %v10350 = vld [vmem:[%s10322 + $0xa4] sm:$0xf]
    %v10351 = vld [vmem:[%s10322 + $0xa8] sm:$0xff]
    %v10352 = vld [vmem:[%s10322 + $0xb0] sm:$0xf]
    %v10353 = vld [vmem:[%s10322 + $0xb4] sm:$0xff]
    %v10354 = vld [vmem:[%s10322 + $0xbc] sm:$0xf]
    %v10355 = vld [vmem:[%s10322 + $0xc0] sm:$0xff]
    %v10356 = vld [vmem:[%s10322 + $0xc8] sm:$0xf]
    %v10357 = vld [vmem:[%s10322 + $0xcc] sm:$0xff]
    %v10358 = vld [vmem:[%s10322 + $0xd4] sm:$0xf]
    %v10359 = vld [vmem:[%s10322 + $0xd8] sm:$0xff]
    %v10360 = vld [vmem:[%s10322 + $0xe0] sm:$0xf]
    %v10361 = vld [vmem:[%s10322 + $0xe4] sm:$0xff]
    %v10362 = vld [vmem:[%s10322 + $0xec] sm:$0xf]
    %v10363 = vld [vmem:[%s10322 + $0xf0] sm:$0xff]
    %v10364 = vld [vmem:[%s10322 + $0xf8] sm:$0xf]
    %v10365 = vld [vmem:[%s10322 + $0xfc] sm:$0xff]
    %v10366 = vld [vmem:[%s10322 + $0x104] sm:$0xf]
    %v10367 = vld [vmem:[%s10322 + $0x108] sm:$0xff]
    %v10368 = vld [vmem:[%s10322 + $0x110] sm:$0xf]
    %v10369 = vld [vmem:[%s10322 + $0x114] sm:$0xff]
    %v10370 = vld [vmem:[%s10322 + $0x11c] sm:$0xf]
    %v10371 = vld [vmem:[%s10322 + $0x120] sm:$0xff]
    %v10372 = vld [vmem:[%s10322 + $0x128] sm:$0xf]
    %v10373 = vld [vmem:[%s10322 + $0x12c] sm:$0xff]
    %v10374 = vld [vmem:[%s10322 + $0x134] sm:$0xf]
    %v10375 = vld [vmem:[%s10322 + $0x138] sm:$0xff]
    %v10376 = vld [vmem:[%s10322 + $0x140] sm:$0xf]
    %v10377 = vld [vmem:[%s10322 + $0x144] sm:$0xff]
    %v10378 = vld [vmem:[%s10322 + $0x14c] sm:$0xf]
    %v10379 = vld [vmem:[%s10322 + $0x150] sm:$0xff]
    %v10380 = vld [vmem:[%s10322 + $0x158] sm:$0xf]
    %v10381 = vld [vmem:[%s10322 + $0x15c] sm:$0xff]
    %v10382 = vld [vmem:[%s10322 + $0x164] sm:$0xf]
    %v10383 = vld [vmem:[%s10322 + $0x168] sm:$0xff]
    %v10384 = vld [vmem:[%s10322 + $0x170] sm:$0xf]
    %v10385 = vld [vmem:[%s10322 + $0x174] sm:$0xff]
    %v10386 = vld [vmem:[%s10322 + $0x17c] sm:$0xf]
    %v10387 = vld [vmem:[%s10322 + $0x180] sm:$0xff]
    %v10388 = vld [vmem:[%s10322 + $0x188] sm:$0xf]
    %v10389 = vld [vmem:[%s10322 + $0x18c] sm:$0xff]
    %v10390 = vld [vmem:[%s10322 + $0x194] sm:$0xf]
    %v10391 = vld [vmem:[%s10322 + $0x198] sm:$0xff]
    %v10392 = vld [vmem:[%s10322 + $0x1a0] sm:$0xf]
    %v10393 = vld [vmem:[%s10322 + $0x1a4] sm:$0xff]
    %v10394 = vld [vmem:[%s10322 + $0x1ac] sm:$0xf]
    %v10395 = vld [vmem:[%s10322 + $0x1b0] sm:$0xff]
    %v10396 = vld [vmem:[%s10322 + $0x1b8] sm:$0xf]
    %v10397 = vld [vmem:[%s10322 + $0x1bc] sm:$0xff]
    %v10398 = vld [vmem:[%s10322 + $0x1c4] sm:$0xf]
    %v10399 = vld [vmem:[%s10322 + $0x1c8] sm:$0xff]
    %v10400 = vld [vmem:[%s10322 + $0x1d0] sm:$0xf]
    %v10401 = vld [vmem:[%s10322 + $0x1d4] sm:$0xff]
    %v10402 = vld [vmem:[%s10322 + $0x1dc] sm:$0xf]
    %v10403 = vld [vmem:[%s10322 + $0x1e0] sm:$0xff]
    %v10404 = vld [vmem:[%s10322 + $0x1e8] sm:$0xf]
    %v10405 = vld [vmem:[%s10322 + $0x1ec] sm:$0xff]
    %v10406 = vld [vmem:[%s10322 + $0x1f4] sm:$0xf]
    %v10407 = vld [vmem:[%s10322 + $0x1f8] sm:$0xff]
    %v10408 = vld [vmem:[%s10322 + $0x200] sm:$0xf]
    %v10409 = vld [vmem:[%s10322 + $0x204] sm:$0xff]
    %v10410 = vld [vmem:[%s10322 + $0x20c] sm:$0xf]
    %v10411 = vld [vmem:[%s10322 + $0x210] sm:$0xff]
    %v10412 = vld [vmem:[%s10322 + $0x218] sm:$0xf]
    %v10413 = vld [vmem:[%s10322 + $0x21c] sm:$0xff]
    %v10414 = vld [vmem:[%s10322 + $0x224] sm:$0xf]
    %v10415 = vld [vmem:[%s10322 + $0x228] sm:$0xff]
    %v10416 = vld [vmem:[%s10322 + $0x230] sm:$0xf]
    %v10417 = vld [vmem:[%s10322 + $0x234] sm:$0xff]
    %v10418 = vld [vmem:[%s10322 + $0x23c] sm:$0xf]
    %v10419 = vld [vmem:[%s10322 + $0x240] sm:$0xff]
    %v10420 = vld [vmem:[%s10322 + $0x248] sm:$0xf]
    %v10421 = vld [vmem:[%s10322 + $0x24c] sm:$0xff]
    %v10422 = vld [vmem:[%s10322 + $0x254] sm:$0xf]
    %v10423 = vld [vmem:[%s10322 + $0x258] sm:$0xff]
    %v10424 = vld [vmem:[%s10322 + $0x260] sm:$0xf]
    %v10425 = vld [vmem:[%s10322 + $0x264] sm:$0xff]
    %v10426 = vld [vmem:[%s10322 + $0x26c] sm:$0xf]
    %v10427 = vld [vmem:[%s10322 + $0x270] sm:$0xff]
    %v10428 = vld [vmem:[%s10322 + $0x278] sm:$0xf]
    %v10429 = vld [vmem:[%s10322 + $0x27c] sm:$0xff]
    %v10430 = vld [vmem:[%s10322 + $0x284] sm:$0xf]
    %v10431 = vld [vmem:[%s10322 + $0x288] sm:$0xff]
    %v10432 = vld [vmem:[%s10322 + $0x290] sm:$0xf]
    %v10433 = vld [vmem:[%s10322 + $0x294] sm:$0xff]
    %v10434 = vld [vmem:[%s10322 + $0x29c] sm:$0xf]
    %v10547 = vunpack.c.l.b16 %v10323
    %v10548 = vunpack.c.h.b16 %v10323
    %v10549 = vunpack.c.l.b16 %v10324
    %v10550 = vunpack.c.l.b16 %v10325
    %v10551 = vunpack.c.h.b16 %v10325
    %v10552 = vunpack.c.l.b16 %v10326
    %v10553 = vunpack.c.l.b16 %v10327
    %v10554 = vunpack.c.h.b16 %v10327
    %v10555 = vunpack.c.l.b16 %v10328
    %v10556 = vunpack.c.l.b16 %v10329
    %v10557 = vunpack.c.h.b16 %v10329
    %v10558 = vunpack.c.l.b16 %v10330
    %v10559 = vunpack.c.l.b16 %v10331
    %v10560 = vunpack.c.h.b16 %v10331
    %v10561 = vunpack.c.l.b16 %v10332
    %v10562 = vunpack.c.l.b16 %v10333
    %v10563 = vunpack.c.h.b16 %v10333
    %v10564 = vunpack.c.l.b16 %v10334
    %v10565 = vunpack.c.l.b16 %v10335
    %v10566 = vunpack.c.h.b16 %v10335
    %v10567 = vunpack.c.l.b16 %v10336
    %v10568 = vunpack.c.l.b16 %v10337
    %v10569 = vunpack.c.h.b16 %v10337
    %v10570 = vunpack.c.l.b16 %v10338
    %v10571 = vunpack.c.l.b16 %v10339
    %v10572 = vunpack.c.h.b16 %v10339
    %v10573 = vunpack.c.l.b16 %v10340
    %v10574 = vunpack.c.l.b16 %v10341
    %v10575 = vunpack.c.h.b16 %v10341
    %v10576 = vunpack.c.l.b16 %v10342
    %v10577 = vunpack.c.l.b16 %v10343
    %v10578 = vunpack.c.h.b16 %v10343
    %v10579 = vunpack.c.l.b16 %v10344
    %v10580 = vunpack.c.l.b16 %v10345
    %v10581 = vunpack.c.h.b16 %v10345
    %v10582 = vunpack.c.l.b16 %v10346
    %v10583 = vunpack.c.l.b16 %v10347
    %v10584 = vunpack.c.h.b16 %v10347
    %v10585 = vunpack.c.l.b16 %v10348
    %v10586 = vunpack.c.l.b16 %v10349
    %v10587 = vunpack.c.h.b16 %v10349
    %v10588 = vunpack.c.l.b16 %v10350
    %v10589 = vunpack.c.l.b16 %v10351
    %v10590 = vunpack.c.h.b16 %v10351
    %v10591 = vunpack.c.l.b16 %v10352
    %v10592 = vunpack.c.l.b16 %v10353
    %v10593 = vunpack.c.h.b16 %v10353
    %v10594 = vunpack.c.l.b16 %v10354
    %v10595 = vunpack.c.l.b16 %v10355
    %v10596 = vunpack.c.h.b16 %v10355
    %v10597 = vunpack.c.l.b16 %v10356
    %v10598 = vunpack.c.l.b16 %v10357
    %v10599 = vunpack.c.h.b16 %v10357
    %v10600 = vunpack.c.l.b16 %v10358
    %v10601 = vunpack.c.l.b16 %v10359
    %v10602 = vunpack.c.h.b16 %v10359
    %v10603 = vunpack.c.l.b16 %v10360
    %v10604 = vunpack.c.l.b16 %v10361
    %v10605 = vunpack.c.h.b16 %v10361
    %v10606 = vunpack.c.l.b16 %v10362
    %v10607 = vunpack.c.l.b16 %v10363
    %v10608 = vunpack.c.h.b16 %v10363
    %v10609 = vunpack.c.l.b16 %v10364
    %v10610 = vunpack.c.l.b16 %v10365
    %v10611 = vunpack.c.h.b16 %v10365
    %v10612 = vunpack.c.l.b16 %v10366
    %v10613 = vunpack.c.l.b16 %v10367
    %v10614 = vunpack.c.h.b16 %v10367
    %v10615 = vunpack.c.l.b16 %v10368
    %v10616 = vunpack.c.l.b16 %v10369
    %v10617 = vunpack.c.h.b16 %v10369
    %v10618 = vunpack.c.l.b16 %v10370
    %v10619 = vunpack.c.l.b16 %v10371
    %v10620 = vunpack.c.h.b16 %v10371
    %v10621 = vunpack.c.l.b16 %v10372
    %v10622 = vunpack.c.l.b16 %v10373
    %v10623 = vunpack.c.h.b16 %v10373
    %v10624 = vunpack.c.l.b16 %v10374
    %v10625 = vunpack.c.l.b16 %v10375
    %v10626 = vunpack.c.h.b16 %v10375
    %v10627 = vunpack.c.l.b16 %v10376
    %v10628 = vunpack.c.l.b16 %v10377
    %v10629 = vunpack.c.h.b16 %v10377
    %v10630 = vunpack.c.l.b16 %v10378
    %v10631 = vunpack.c.l.b16 %v10379
    %v10632 = vunpack.c.h.b16 %v10379
    %v10633 = vunpack.c.l.b16 %v10380
    %v10634 = vunpack.c.l.b16 %v10381
    %v10635 = vunpack.c.h.b16 %v10381
    %v10636 = vunpack.c.l.b16 %v10382
    %v10637 = vunpack.c.l.b16 %v10383
    %v10638 = vunpack.c.h.b16 %v10383
    %v10639 = vunpack.c.l.b16 %v10384
    %v10640 = vunpack.c.l.b16 %v10385
    %v10641 = vunpack.c.h.b16 %v10385
    %v10642 = vunpack.c.l.b16 %v10386
    %v10643 = vunpack.c.l.b16 %v10387
    %v10644 = vunpack.c.h.b16 %v10387
    %v10645 = vunpack.c.l.b16 %v10388
    %v10646 = vunpack.c.l.b16 %v10389
    %v10647 = vunpack.c.h.b16 %v10389
    %v10648 = vunpack.c.l.b16 %v10390
    %v10649 = vunpack.c.l.b16 %v10391
    %v10650 = vunpack.c.h.b16 %v10391
    %v10651 = vunpack.c.l.b16 %v10392
    %v10652 = vunpack.c.l.b16 %v10393
    %v10653 = vunpack.c.h.b16 %v10393
    %v10654 = vunpack.c.l.b16 %v10394
    %v10655 = vunpack.c.l.b16 %v10395
    %v10656 = vunpack.c.h.b16 %v10395
    %v10657 = vunpack.c.l.b16 %v10396
    %v10658 = vunpack.c.l.b16 %v10397
    %v10659 = vunpack.c.h.b16 %v10397
    %v10660 = vunpack.c.l.b16 %v10398
    %v10661 = vunpack.c.l.b16 %v10399
    %v10662 = vunpack.c.h.b16 %v10399
    %v10663 = vunpack.c.l.b16 %v10400
    %v10664 = vunpack.c.l.b16 %v10401
    %v10665 = vunpack.c.h.b16 %v10401
    %v10666 = vunpack.c.l.b16 %v10402
    %v10667 = vunpack.c.l.b16 %v10403
    %v10668 = vunpack.c.h.b16 %v10403
    %v10669 = vunpack.c.l.b16 %v10404
    %v10670 = vunpack.c.l.b16 %v10405
    %v10671 = vunpack.c.h.b16 %v10405
    %v10672 = vunpack.c.l.b16 %v10406
    %v10673 = vunpack.c.l.b16 %v10407
    %v10674 = vunpack.c.h.b16 %v10407
    %v10675 = vunpack.c.l.b16 %v10408
    %v10676 = vunpack.c.l.b16 %v10409
    %v10677 = vunpack.c.h.b16 %v10409
    %v10678 = vunpack.c.l.b16 %v10410
    %v10679 = vunpack.c.l.b16 %v10411
    %v10680 = vunpack.c.h.b16 %v10411
    %v10681 = vunpack.c.l.b16 %v10412
    %v10682 = vunpack.c.l.b16 %v10413
    %v10683 = vunpack.c.h.b16 %v10413
    %v10684 = vunpack.c.l.b16 %v10414
    %v10685 = vunpack.c.l.b16 %v10415
    %v10686 = vunpack.c.h.b16 %v10415
    %v10687 = vunpack.c.l.b16 %v10416
    %v10688 = vunpack.c.l.b16 %v10417
    %v10689 = vunpack.c.h.b16 %v10417
    %v10690 = vunpack.c.l.b16 %v10418
    %v10691 = vunpack.c.l.b16 %v10419
    %v10692 = vunpack.c.h.b16 %v10419
    %v10693 = vunpack.c.l.b16 %v10420
    %v10694 = vunpack.c.l.b16 %v10421
    %v10695 = vunpack.c.h.b16 %v10421
    %v10696 = vunpack.c.l.b16 %v10422
    %v10697 = vunpack.c.l.b16 %v10423
    %v10698 = vunpack.c.h.b16 %v10423
    %v10699 = vunpack.c.l.b16 %v10424
    %v10700 = vunpack.c.l.b16 %v10425
    %v10701 = vunpack.c.h.b16 %v10425
    %v10702 = vunpack.c.l.b16 %v10426
    %v10703 = vunpack.c.l.b16 %v10427
    %v10704 = vunpack.c.h.b16 %v10427
    %v10705 = vunpack.c.l.b16 %v10428
    %v10706 = vunpack.c.l.b16 %v10429
    %v10707 = vunpack.c.h.b16 %v10429
    %v10708 = vunpack.c.l.b16 %v10430
    %v10709 = vunpack.c.l.b16 %v10431
    %v10710 = vunpack.c.h.b16 %v10431
    %v10711 = vunpack.c.l.b16 %v10432
    %v10712 = vunpack.c.l.b16 %v10433
    %v10713 = vunpack.c.h.b16 %v10433
    %v10714 = vunpack.c.l.b16 %v10434
    %v10715 = vpack.c.b16 %v10550, %v10547
    %v10716 = vpack.c.b16 %v10551, %v10548
    %v10717 = vpack.c.b16 %v10552, %v10549
    %v10718 = vpack.c.b16 %v10556, %v10553
    %v10719 = vpack.c.b16 %v10557, %v10554
    %v10720 = vpack.c.b16 %v10558, %v10555
    %v10721 = vpack.c.b16 %v10562, %v10559
    %v10722 = vpack.c.b16 %v10563, %v10560
    %v10723 = vpack.c.b16 %v10564, %v10561
    %v10724 = vpack.c.b16 %v10568, %v10565
    %v10725 = vpack.c.b16 %v10569, %v10566
    %v10726 = vpack.c.b16 %v10570, %v10567
    %v10727 = vpack.c.b16 %v10574, %v10571
    %v10728 = vpack.c.b16 %v10575, %v10572
    %v10729 = vpack.c.b16 %v10576, %v10573
    %v10730 = vpack.c.b16 %v10580, %v10577
    %v10731 = vpack.c.b16 %v10581, %v10578
    %v10732 = vpack.c.b16 %v10582, %v10579
    %v10733 = vpack.c.b16 %v10586, %v10583
    %v10734 = vpack.c.b16 %v10587, %v10584
    %v10735 = vpack.c.b16 %v10588, %v10585
    %v10736 = vpack.c.b16 %v10592, %v10589
    %v10737 = vpack.c.b16 %v10593, %v10590
    %v10738 = vpack.c.b16 %v10594, %v10591
    %v10739 = vpack.c.b16 %v10598, %v10595
    %v10740 = vpack.c.b16 %v10599, %v10596
    %v10741 = vpack.c.b16 %v10600, %v10597
    %v10742 = vpack.c.b16 %v10604, %v10601
    %v10743 = vpack.c.b16 %v10605, %v10602
    %v10744 = vpack.c.b16 %v10606, %v10603
    %v10745 = vpack.c.b16 %v10610, %v10607
    %v10746 = vpack.c.b16 %v10611, %v10608
    %v10747 = vpack.c.b16 %v10612, %v10609
    %v10748 = vpack.c.b16 %v10616, %v10613
    %v10749 = vpack.c.b16 %v10617, %v10614
    %v10750 = vpack.c.b16 %v10618, %v10615
    %v10751 = vpack.c.b16 %v10622, %v10619
    %v10752 = vpack.c.b16 %v10623, %v10620
    %v10753 = vpack.c.b16 %v10624, %v10621
    %v10754 = vpack.c.b16 %v10628, %v10625
    %v10755 = vpack.c.b16 %v10629, %v10626
    %v10756 = vpack.c.b16 %v10630, %v10627
    %v10757 = vpack.c.b16 %v10634, %v10631
    %v10758 = vpack.c.b16 %v10635, %v10632
    %v10759 = vpack.c.b16 %v10636, %v10633
    %v10760 = vpack.c.b16 %v10640, %v10637
    %v10761 = vpack.c.b16 %v10641, %v10638
    %v10762 = vpack.c.b16 %v10642, %v10639
    %v10763 = vpack.c.b16 %v10646, %v10643
    %v10764 = vpack.c.b16 %v10647, %v10644
    %v10765 = vpack.c.b16 %v10648, %v10645
    %v10766 = vpack.c.b16 %v10652, %v10649
    %v10767 = vpack.c.b16 %v10653, %v10650
    %v10768 = vpack.c.b16 %v10654, %v10651
    %v10769 = vpack.c.b16 %v10658, %v10655
    %v10770 = vpack.c.b16 %v10659, %v10656
    %v10771 = vpack.c.b16 %v10660, %v10657
    %v10772 = vpack.c.b16 %v10664, %v10661
    %v10773 = vpack.c.b16 %v10665, %v10662
    %v10774 = vpack.c.b16 %v10666, %v10663
    %v10775 = vpack.c.b16 %v10670, %v10667
    %v10776 = vpack.c.b16 %v10671, %v10668
    %v10777 = vpack.c.b16 %v10672, %v10669
    %v10778 = vpack.c.b16 %v10676, %v10673
    %v10779 = vpack.c.b16 %v10677, %v10674
    %v10780 = vpack.c.b16 %v10678, %v10675
    %v10781 = vpack.c.b16 %v10682, %v10679
    %v10782 = vpack.c.b16 %v10683, %v10680
    %v10783 = vpack.c.b16 %v10684, %v10681
    %v10784 = vpack.c.b16 %v10688, %v10685
    %v10785 = vpack.c.b16 %v10689, %v10686
    %v10786 = vpack.c.b16 %v10690, %v10687
    %v10787 = vpack.c.b16 %v10694, %v10691
    %v10788 = vpack.c.b16 %v10695, %v10692
    %v10789 = vpack.c.b16 %v10696, %v10693
    %v10790 = vpack.c.b16 %v10700, %v10697
    %v10791 = vpack.c.b16 %v10701, %v10698
    %v10792 = vpack.c.b16 %v10702, %v10699
    %v10793 = vpack.c.b16 %v10706, %v10703
    %v10794 = vpack.c.b16 %v10707, %v10704
    %v10795 = vpack.c.b16 %v10708, %v10705
    %v10796 = vpack.c.b16 %v10712, %v10709
    %v10797 = vpack.c.b16 %v10713, %v10710
    %v10798 = vpack.c.b16 %v10714, %v10711
    %10883 = vmatprep.subr.bf16.mxu0 %v10716
    %10884 = vmatpush1.bf16.msra.mxu0 %v10715
    %10885 = vmatprep.subr.bf16.mxu0 %v10719
    %10886 = vmatpush1.bf16.msra.mxu0 %v10718
    %10887 = vmatprep.subr.bf16.mxu0 %v10722
    %10888 = vmatpush1.bf16.msra.mxu0 %v10721
    %10889 = vmatprep.subr.bf16.mxu0 %v10725
    %10890 = vmatpush1.bf16.msra.mxu0 %v10724
    %10891 = vmatprep.subr.bf16.mxu0 %v10728
    %10892 = vmatpush1.bf16.msra.mxu0 %v10727
    %10893 = vmatprep.subr.bf16.mxu0 %v10731
    %10894 = vmatpush1.bf16.msra.mxu0 %v10730
    %10895 = vmatprep.subr.bf16.mxu0 %v10734
    %10896 = vmatpush1.bf16.msra.mxu0 %v10733
    %10897 = vmatprep.subr.bf16.mxu0 %v10737
    %10898 = vmatpush1.bf16.msra.mxu0 %v10736
    %10899 = vmatprep.subr.bf16.mxu0 %v10740
    %10900 = vmatpush1.bf16.msra.mxu0 %v10739
    %10901 = vmatprep.subr.bf16.mxu0 %v10743
    %10902 = vmatpush1.bf16.msra.mxu0 %v10742
    %10903 = vmatprep.subr.bf16.mxu0 %v10746
    %10904 = vmatpush1.bf16.msra.mxu0 %v10745
    %10905 = vmatprep.subr.bf16.mxu0 %v10749
    %10906 = vmatpush1.bf16.msra.mxu0 %v10748
    %10907 = vmatprep.subr.bf16.mxu0 %v10752
    %10908 = vmatpush1.bf16.msra.mxu0 %v10751
    %10909 = vmatprep.subr.bf16.mxu0 %v10755
    %10910 = vmatpush1.bf16.msra.mxu0 %v10754
    %10911 = vmatprep.subr.bf16.mxu0 %v10758
    %10912 = vmatpush1.bf16.msra.mxu0 %v10757
    %10913 = vmatprep.subr.bf16.mxu0 %v10761
    %10914 = vmatpush1.bf16.msra.mxu0 %v10760
    %10915 = vmatprep.mubr.bf16.mxu0 %v8176
    %10916 = vmatmul.mubr.bf16.gmra.mrb[0].mxu0 %v8164
    %v10917 = vpop.f32.mrb[0].mxu0
    %v10918 = vadd.f32 0.0, %v10917
    %v10919 = vpop.f32.mrb[0].mxu0
    %v10920 = vadd.f32 0.0, %v10919
    %v10921 = vpop.f32.mrb[0].mxu0
    %v10922 = vadd.f32 0.0, %v10921
    %v10923 = vpop.f32.mrb[0].mxu0
    %v10924 = vadd.f32 0.0, %v10923
    %10925 = vdwg.mxu0
    %10926 = vmatprep.subr.bf16.mxu0 %v10764
    %10927 = vmatpush1.bf16.msra.mxu0 %v10763
    %10928 = vmatprep.subr.bf16.mxu0 %v10767
    %10929 = vmatpush1.bf16.msra.mxu0 %v10766
    %10930 = vmatprep.subr.bf16.mxu0 %v10770
    %10931 = vmatpush1.bf16.msra.mxu0 %v10769
    %10932 = vmatprep.subr.bf16.mxu0 %v10773
    %10933 = vmatpush1.bf16.msra.mxu0 %v10772
    %10934 = vmatprep.subr.bf16.mxu0 %v10776
    %10935 = vmatpush1.bf16.msra.mxu0 %v10775
    %10936 = vmatprep.subr.bf16.mxu0 %v10779
    %10937 = vmatpush1.bf16.msra.mxu0 %v10778
    %10938 = vmatprep.subr.bf16.mxu0 %v10782
    %10939 = vmatpush1.bf16.msra.mxu0 %v10781
    %10940 = vmatprep.subr.bf16.mxu0 %v10785
    %10941 = vmatpush1.bf16.msra.mxu0 %v10784
    %10942 = vmatprep.subr.bf16.mxu0 %v10788
    %10943 = vmatpush1.bf16.msra.mxu0 %v10787
    %10944 = vmatprep.subr.bf16.mxu0 %v10791
    %10945 = vmatpush1.bf16.msra.mxu0 %v10790
    %10946 = vmatprep.subr.bf16.mxu0 %v10794
    %10947 = vmatpush1.bf16.msra.mxu0 %v10793
    %10948 = vmatprep.subr.bf16.mxu0 %v10797
    %10949 = vmatpush1.bf16.msra.mxu0 %v10796
    %10950 = vmatprep.subr.bf16.mxu0 0
    %10951 = vmatpush1.bf16.msra.mxu0 0
    %10952 = vmatprep.subr.bf16.mxu0 0
    %10953 = vmatpush1.bf16.msra.mxu0 0
    %10954 = vmatprep.subr.bf16.mxu0 0
    %10955 = vmatpush1.bf16.msra.mxu0 0
    %10956 = vmatprep.subr.bf16.mxu0 0
    %10957 = vmatpush1.bf16.msra.mxu0 0
    %10958 = vmatprep.mubr.bf16.mxu0 %v8653
    %10959 = vmatmul.mubr.bf16.gmra.mrb[0].mxu0 %v8188
    %v10960 = vpop.f32.mrb[0].mxu0
    %v10961 = vadd.f32 %v10918, %v10960
    %v10962 = vpop.f32.mrb[0].mxu0
    %v10963 = vadd.f32 %v10920, %v10962
    %v10964 = vpop.f32.mrb[0].mxu0
    %v10965 = vadd.f32 %v10922, %v10964
    %v10966 = vpop.f32.mrb[0].mxu0
    %v10967 = vadd.f32 %v10924, %v10966
    %10968 = vdwg.mxu0
    %10969 = vmatprep.subr.bf16.mxu0 0
    %10970 = vmatpush1.bf16.msra.mxu0 %v10717
    %10971 = vmatprep.subr.bf16.mxu0 0
    %10972 = vmatpush1.bf16.msra.mxu0 %v10720
    %10973 = vmatprep.subr.bf16.mxu0 0
    %10974 = vmatpush1.bf16.msra.mxu0 %v10723
    %10975 = vmatprep.subr.bf16.mxu0 0
    %10976 = vmatpush1.bf16.msra.mxu0 %v10726
    %10977 = vmatprep.subr.bf16.mxu0 0
    %10978 = vmatpush1.bf16.msra.mxu0 %v10729
    %10979 = vmatprep.subr.bf16.mxu0 0
    %10980 = vmatpush1.bf16.msra.mxu0 %v10732
    %10981 = vmatprep.subr.bf16.mxu0 0
    %10982 = vmatpush1.bf16.msra.mxu0 %v10735
    %10983 = vmatprep.subr.bf16.mxu0 0
    %10984 = vmatpush1.bf16.msra.mxu0 %v10738
    %10985 = vmatprep.subr.bf16.mxu0 0
    %10986 = vmatpush1.bf16.msra.mxu0 %v10741
    %10987 = vmatprep.subr.bf16.mxu0 0
    %10988 = vmatpush1.bf16.msra.mxu0 %v10744
    %10989 = vmatprep.subr.bf16.mxu0 0
    %10990 = vmatpush1.bf16.msra.mxu0 %v10747
    %10991 = vmatprep.subr.bf16.mxu0 0
    %10992 = vmatpush1.bf16.msra.mxu0 %v10750
    %10993 = vmatprep.subr.bf16.mxu0 0
    %10994 = vmatpush1.bf16.msra.mxu0 %v10753
    %10995 = vmatprep.subr.bf16.mxu0 0
    %10996 = vmatpush1.bf16.msra.mxu0 %v10756
    %10997 = vmatprep.subr.bf16.mxu0 0
    %10998 = vmatpush1.bf16.msra.mxu0 %v10759
    %10999 = vmatprep.subr.bf16.mxu0 0
    %11000 = vmatpush1.bf16.msra.mxu0 %v10762
    %11001 = vmatprep.mubr.bf16.mxu0 %v8176
    %11002 = vmatmul.mubr.bf16.gmra.mrb[0].mxu0 %v8164
    %v11003 = vpop.f32.mrb[0].mxu0
    %v11004 = vadd.f32 0.0, %v11003
    %v11005 = vpop.f32.mrb[0].mxu0
    %v11006 = vpop.f32.mrb[0].mxu0
    %v11007 = vadd.f32 0.0, %v11006
    %v11008 = vpop.f32.mrb[0].mxu0
    %11009 = vdwg.mxu0
    %11010 = vmatprep.subr.bf16.mxu0 0
    %11011 = vmatpush1.bf16.msra.mxu0 %v10765
    %11012 = vmatprep.subr.bf16.mxu0 0
    %11013 = vmatpush1.bf16.msra.mxu0 %v10768
    %11014 = vmatprep.subr.bf16.mxu0 0
    %11015 = vmatpush1.bf16.msra.mxu0 %v10771
    %11016 = vmatprep.subr.bf16.mxu0 0
    %11017 = vmatpush1.bf16.msra.mxu0 %v10774
    %11018 = vmatprep.subr.bf16.mxu0 0
    %11019 = vmatpush1.bf16.msra.mxu0 %v10777
    %11020 = vmatprep.subr.bf16.mxu0 0
    %11021 = vmatpush1.bf16.msra.mxu0 %v10780
    %11022 = vmatprep.subr.bf16.mxu0 0
    %11023 = vmatpush1.bf16.msra.mxu0 %v10783
    %11024 = vmatprep.subr.bf16.mxu0 0
    %11025 = vmatpush1.bf16.msra.mxu0 %v10786
    %11026 = vmatprep.subr.bf16.mxu0 0
    %11027 = vmatpush1.bf16.msra.mxu0 %v10789
    %11028 = vmatprep.subr.bf16.mxu0 0
    %11029 = vmatpush1.bf16.msra.mxu0 %v10792
    %11030 = vmatprep.subr.bf16.mxu0 0
    %11031 = vmatpush1.bf16.msra.mxu0 %v10795
    %11032 = vmatprep.subr.bf16.mxu0 0
    %11033 = vmatpush1.bf16.msra.mxu0 %v10798
    %11034 = vmatprep.subr.bf16.mxu0 0
    %11035 = vmatpush1.bf16.msra.mxu0 0
    %11036 = vmatprep.subr.bf16.mxu0 0
    %11037 = vmatpush1.bf16.msra.mxu0 0
    %11038 = vmatprep.subr.bf16.mxu0 0
    %11039 = vmatpush1.bf16.msra.mxu0 0
    %11040 = vmatprep.subr.bf16.mxu0 0
    %11041 = vmatpush1.bf16.msra.mxu0 0
    %11042 = vmatprep.mubr.bf16.mxu0 %v8653
    %11043 = vmatmul.mubr.bf16.gmra.mrb[0].mxu0 %v8188
    %v11044 = vpop.f32.mrb[0].mxu0
    %v11045 = vadd.f32 %v11004, %v11044
    %v11046 = vpop.f32.mrb[0].mxu0
    %v11047 = vpop.f32.mrb[0].mxu0
    %v11048 = vadd.f32 %v11007, %v11047
    %v11049 = vpop.f32.mrb[0].mxu0
    %11050 = vdwg.mxu0
    %v11163 = vunpack.c.l.b16 %v10210
    %v11164 = vunpack.c.h.b16 %v10210
    %v11165 = vunpack.c.l.b16 %v10211
    %v11166 = vunpack.c.l.b16 %v10212
    %v11167 = vunpack.c.h.b16 %v10212
    %v11168 = vunpack.c.l.b16 %v10213
    %v11169 = vunpack.c.l.b16 %v10214
    %v11170 = vunpack.c.h.b16 %v10214
    %v11171 = vunpack.c.l.b16 %v10215
    %v11172 = vunpack.c.l.b16 %v10216
    %v11173 = vunpack.c.h.b16 %v10216
    %v11174 = vunpack.c.l.b16 %v10217
    %v11175 = vunpack.c.l.b16 %v10218
    %v11176 = vunpack.c.h.b16 %v10218
    %v11177 = vunpack.c.l.b16 %v10219
    %v11178 = vunpack.c.l.b16 %v10220
    %v11179 = vunpack.c.h.b16 %v10220
    %v11180 = vunpack.c.l.b16 %v10221
    %v11181 = vunpack.c.l.b16 %v10222
    %v11182 = vunpack.c.h.b16 %v10222
    %v11183 = vunpack.c.l.b16 %v10223
    %v11184 = vunpack.c.l.b16 %v10224
    %v11185 = vunpack.c.h.b16 %v10224
    %v11186 = vunpack.c.l.b16 %v10225
    %v11187 = vunpack.c.l.b16 %v10226
    %v11188 = vunpack.c.h.b16 %v10226
    %v11189 = vunpack.c.l.b16 %v10227
    %v11190 = vunpack.c.l.b16 %v10228
    %v11191 = vunpack.c.h.b16 %v10228
    %v11192 = vunpack.c.l.b16 %v10229
    %v11193 = vunpack.c.l.b16 %v10230
    %v11194 = vunpack.c.h.b16 %v10230
    %v11195 = vunpack.c.l.b16 %v10231
    %v11196 = vunpack.c.l.b16 %v10232
    %v11197 = vunpack.c.h.b16 %v10232
    %v11198 = vunpack.c.l.b16 %v10233
    %v11199 = vunpack.c.l.b16 %v10234
    %v11200 = vunpack.c.h.b16 %v10234
    %v11201 = vunpack.c.l.b16 %v10235
    %v11202 = vunpack.c.l.b16 %v10236
    %v11203 = vunpack.c.h.b16 %v10236
    %v11204 = vunpack.c.l.b16 %v10237
    %v11205 = vunpack.c.l.b16 %v10238
    %v11206 = vunpack.c.h.b16 %v10238
    %v11207 = vunpack.c.l.b16 %v10239
    %v11208 = vunpack.c.l.b16 %v10240
    %v11209 = vunpack.c.h.b16 %v10240
    %v11210 = vunpack.c.l.b16 %v10241
    %v11211 = vunpack.c.l.b16 %v10242
    %v11212 = vunpack.c.h.b16 %v10242
    %v11213 = vunpack.c.l.b16 %v10243
    %v11214 = vunpack.c.l.b16 %v10244
    %v11215 = vunpack.c.h.b16 %v10244
    %v11216 = vunpack.c.l.b16 %v10245
    %v11217 = vunpack.c.l.b16 %v10246
    %v11218 = vunpack.c.h.b16 %v10246
    %v11219 = vunpack.c.l.b16 %v10247
    %v11220 = vunpack.c.l.b16 %v10248
    %v11221 = vunpack.c.h.b16 %v10248
    %v11222 = vunpack.c.l.b16 %v10249
    %v11223 = vunpack.c.l.b16 %v10250
    %v11224 = vunpack.c.h.b16 %v10250
    %v11225 = vunpack.c.l.b16 %v10251
    %v11226 = vunpack.c.l.b16 %v10252
    %v11227 = vunpack.c.h.b16 %v10252
    %v11228 = vunpack.c.l.b16 %v10253
    %v11229 = vunpack.c.l.b16 %v10254
    %v11230 = vunpack.c.h.b16 %v10254
    %v11231 = vunpack.c.l.b16 %v10255
    %v11232 = vunpack.c.l.b16 %v10256
    %v11233 = vunpack.c.h.b16 %v10256
    %v11234 = vunpack.c.l.b16 %v10257
    %v11235 = vunpack.c.l.b16 %v10258
    %v11236 = vunpack.c.h.b16 %v10258
    %v11237 = vunpack.c.l.b16 %v10259
    %v11238 = vunpack.c.l.b16 %v10260
    %v11239 = vunpack.c.h.b16 %v10260
    %v11240 = vunpack.c.l.b16 %v10261
    %v11241 = vunpack.c.l.b16 %v10262
    %v11242 = vunpack.c.h.b16 %v10262
    %v11243 = vunpack.c.l.b16 %v10263
    %v11244 = vunpack.c.l.b16 %v10264
    %v11245 = vunpack.c.h.b16 %v10264
    %v11246 = vunpack.c.l.b16 %v10265
    %v11247 = vunpack.c.l.b16 %v10266
    %v11248 = vunpack.c.h.b16 %v10266
    %v11249 = vunpack.c.l.b16 %v10267
    %v11250 = vunpack.c.l.b16 %v10268
    %v11251 = vunpack.c.h.b16 %v10268
    %v11252 = vunpack.c.l.b16 %v10269
    %v11253 = vunpack.c.l.b16 %v10270
    %v11254 = vunpack.c.h.b16 %v10270
    %v11255 = vunpack.c.l.b16 %v10271
    %v11256 = vunpack.c.l.b16 %v10272
    %v11257 = vunpack.c.h.b16 %v10272
    %v11258 = vunpack.c.l.b16 %v10273
    %v11259 = vunpack.c.l.b16 %v10274
    %v11260 = vunpack.c.h.b16 %v10274
    %v11261 = vunpack.c.l.b16 %v10275
    %v11262 = vunpack.c.l.b16 %v10276
    %v11263 = vunpack.c.h.b16 %v10276
    %v11264 = vunpack.c.l.b16 %v10277
    %v11265 = vunpack.c.l.b16 %v10278
    %v11266 = vunpack.c.h.b16 %v10278
    %v11267 = vunpack.c.l.b16 %v10279
    %v11268 = vunpack.c.l.b16 %v10280
    %v11269 = vunpack.c.h.b16 %v10280
    %v11270 = vunpack.c.l.b16 %v10281
    %v11271 = vunpack.c.l.b16 %v10282
    %v11272 = vunpack.c.h.b16 %v10282
    %v11273 = vunpack.c.l.b16 %v10283
    %v11274 = vunpack.c.l.b16 %v10284
    %v11275 = vunpack.c.h.b16 %v10284
    %v11276 = vunpack.c.l.b16 %v10285
    %v11277 = vunpack.c.l.b16 %v10286
    %v11278 = vunpack.c.h.b16 %v10286
    %v11279 = vunpack.c.l.b16 %v10287
    %v11280 = vunpack.c.l.b16 %v10288
    %v11281 = vunpack.c.h.b16 %v10288
    %v11282 = vunpack.c.l.b16 %v10289
    %v11283 = vunpack.c.l.b16 %v10290
    %v11284 = vunpack.c.h.b16 %v10290
    %v11285 = vunpack.c.l.b16 %v10291
    %v11286 = vunpack.c.l.b16 %v10292
    %v11287 = vunpack.c.h.b16 %v10292
    %v11288 = vunpack.c.l.b16 %v10293
    %v11289 = vunpack.c.l.b16 %v10294
    %v11290 = vunpack.c.h.b16 %v10294
    %v11291 = vunpack.c.l.b16 %v10295
    %v11292 = vunpack.c.l.b16 %v10296
    %v11293 = vunpack.c.h.b16 %v10296
    %v11294 = vunpack.c.l.b16 %v10297
    %v11295 = vunpack.c.l.b16 %v10298
    %v11296 = vunpack.c.h.b16 %v10298
    %v11297 = vunpack.c.l.b16 %v10299
    %v11298 = vunpack.c.l.b16 %v10300
    %v11299 = vunpack.c.h.b16 %v10300
    %v11300 = vunpack.c.l.b16 %v10301
    %v11301 = vunpack.c.l.b16 %v10302
    %v11302 = vunpack.c.h.b16 %v10302
    %v11303 = vunpack.c.l.b16 %v10303
    %v11304 = vunpack.c.l.b16 %v10304
    %v11305 = vunpack.c.h.b16 %v10304
    %v11306 = vunpack.c.l.b16 %v10305
    %v11307 = vunpack.c.l.b16 %v10306
    %v11308 = vunpack.c.h.b16 %v10306
    %v11309 = vunpack.c.l.b16 %v10307
    %v11310 = vunpack.c.l.b16 %v10308
    %v11311 = vunpack.c.h.b16 %v10308
    %v11312 = vunpack.c.l.b16 %v10309
    %v11313 = vunpack.c.l.b16 %v10310
    %v11314 = vunpack.c.h.b16 %v10310
    %v11315 = vunpack.c.l.b16 %v10311
    %v11316 = vunpack.c.l.b16 %v10312
    %v11317 = vunpack.c.h.b16 %v10312
    %v11318 = vunpack.c.l.b16 %v10313
    %v11319 = vunpack.c.l.b16 %v10314
    %v11320 = vunpack.c.h.b16 %v10314
    %v11321 = vunpack.c.l.b16 %v10315
    %v11322 = vunpack.c.l.b16 %v10316
    %v11323 = vunpack.c.h.b16 %v10316
    %v11324 = vunpack.c.l.b16 %v10317
    %v11325 = vunpack.c.l.b16 %v10318
    %v11326 = vunpack.c.h.b16 %v10318
    %v11327 = vunpack.c.l.b16 %v10319
    %v11328 = vunpack.c.l.b16 %v10320
    %v11329 = vunpack.c.h.b16 %v10320
    %v11330 = vunpack.c.l.b16 %v10321
    %v11331 = vpack.c.b16 %v11166, %v11163
    %v11332 = vpack.c.b16 %v11167, %v11164
    %v11333 = vpack.c.b16 %v11168, %v11165
    %v11334 = vpack.c.b16 %v11172, %v11169
    %v11335 = vpack.c.b16 %v11173, %v11170
    %v11336 = vpack.c.b16 %v11174, %v11171
    %v11337 = vpack.c.b16 %v11178, %v11175
    %v11338 = vpack.c.b16 %v11179, %v11176
    %v11339 = vpack.c.b16 %v11180, %v11177
    %v11340 = vpack.c.b16 %v11184, %v11181
    %v11341 = vpack.c.b16 %v11185, %v11182
    %v11342 = vpack.c.b16 %v11186, %v11183
    %v11343 = vpack.c.b16 %v11190, %v11187
    %v11344 = vpack.c.b16 %v11191, %v11188
    %v11345 = vpack.c.b16 %v11192, %v11189
    %v11346 = vpack.c.b16 %v11196, %v11193
    %v11347 = vpack.c.b16 %v11197, %v11194
    %v11348 = vpack.c.b16 %v11198, %v11195
    %v11349 = vpack.c.b16 %v11202, %v11199
    %v11350 = vpack.c.b16 %v11203, %v11200
    %v11351 = vpack.c.b16 %v11204, %v11201
    %v11352 = vpack.c.b16 %v11208, %v11205
    %v11353 = vpack.c.b16 %v11209, %v11206
    %v11354 = vpack.c.b16 %v11210, %v11207
    %v11355 = vpack.c.b16 %v11214, %v11211
    %v11356 = vpack.c.b16 %v11215, %v11212
    %v11357 = vpack.c.b16 %v11216, %v11213
    %v11358 = vpack.c.b16 %v11220, %v11217
    %v11359 = vpack.c.b16 %v11221, %v11218
    %v11360 = vpack.c.b16 %v11222, %v11219
    %v11361 = vpack.c.b16 %v11226, %v11223
    %v11362 = vpack.c.b16 %v11227, %v11224
    %v11363 = vpack.c.b16 %v11228, %v11225
    %v11364 = vpack.c.b16 %v11232, %v11229
    %v11365 = vpack.c.b16 %v11233, %v11230
    %v11366 = vpack.c.b16 %v11234, %v11231
    %v11367 = vpack.c.b16 %v11238, %v11235
    %v11368 = vpack.c.b16 %v11239, %v11236
    %v11369 = vpack.c.b16 %v11240, %v11237
    %v11370 = vpack.c.b16 %v11244, %v11241
    %v11371 = vpack.c.b16 %v11245, %v11242
    %v11372 = vpack.c.b16 %v11246, %v11243
    %v11373 = vpack.c.b16 %v11250, %v11247
    %v11374 = vpack.c.b16 %v11251, %v11248
    %v11375 = vpack.c.b16 %v11252, %v11249
    %v11376 = vpack.c.b16 %v11256, %v11253
    %v11377 = vpack.c.b16 %v11257, %v11254
    %v11378 = vpack.c.b16 %v11258, %v11255
    %v11379 = vpack.c.b16 %v11262, %v11259
    %v11380 = vpack.c.b16 %v11263, %v11260
    %v11381 = vpack.c.b16 %v11264, %v11261
    %v11382 = vpack.c.b16 %v11268, %v11265
    %v11383 = vpack.c.b16 %v11269, %v11266
    %v11384 = vpack.c.b16 %v11270, %v11267
    %v11385 = vpack.c.b16 %v11274, %v11271
    %v11386 = vpack.c.b16 %v11275, %v11272
    %v11387 = vpack.c.b16 %v11276, %v11273
    %v11388 = vpack.c.b16 %v11280, %v11277
    %v11389 = vpack.c.b16 %v11281, %v11278
    %v11390 = vpack.c.b16 %v11282, %v11279
    %v11391 = vpack.c.b16 %v11286, %v11283
    %v11392 = vpack.c.b16 %v11287, %v11284
    %v11393 = vpack.c.b16 %v11288, %v11285
    %v11394 = vpack.c.b16 %v11292, %v11289
    %v11395 = vpack.c.b16 %v11293, %v11290
    %v11396 = vpack.c.b16 %v11294, %v11291
    %v11397 = vpack.c.b16 %v11298, %v11295
    %v11398 = vpack.c.b16 %v11299, %v11296
    %v11399 = vpack.c.b16 %v11300, %v11297
    %v11400 = vpack.c.b16 %v11304, %v11301
    %v11401 = vpack.c.b16 %v11305, %v11302
    %v11402 = vpack.c.b16 %v11306, %v11303
    %v11403 = vpack.c.b16 %v11310, %v11307
    %v11404 = vpack.c.b16 %v11311, %v11308
    %v11405 = vpack.c.b16 %v11312, %v11309
    %v11406 = vpack.c.b16 %v11316, %v11313
    %v11407 = vpack.c.b16 %v11317, %v11314
    %v11408 = vpack.c.b16 %v11318, %v11315
    %v11409 = vpack.c.b16 %v11322, %v11319
    %v11410 = vpack.c.b16 %v11323, %v11320
    %v11411 = vpack.c.b16 %v11324, %v11321
    %v11412 = vpack.c.b16 %v11328, %v11325
    %v11413 = vpack.c.b16 %v11329, %v11326
    %v11414 = vpack.c.b16 %v11330, %v11327
    %11499 = vmatprep.subr.bf16.mxu0 %v11332
    %11500 = vmatpush1.bf16.msra.mxu0 %v11331
    %11501 = vmatprep.subr.bf16.mxu0 %v11335
    %11502 = vmatpush1.bf16.msra.mxu0 %v11334
    %11503 = vmatprep.subr.bf16.mxu0 %v11338
    %11504 = vmatpush1.bf16.msra.mxu0 %v11337
    %11505 = vmatprep.subr.bf16.mxu0 %v11341
    %11506 = vmatpush1.bf16.msra.mxu0 %v11340
    %11507 = vmatprep.subr.bf16.mxu0 %v11344
    %11508 = vmatpush1.bf16.msra.mxu0 %v11343
    %11509 = vmatprep.subr.bf16.mxu0 %v11347
    %11510 = vmatpush1.bf16.msra.mxu0 %v11346
    %11511 = vmatprep.subr.bf16.mxu0 %v11350
    %11512 = vmatpush1.bf16.msra.mxu0 %v11349
    %11513 = vmatprep.subr.bf16.mxu0 %v11353
    %11514 = vmatpush1.bf16.msra.mxu0 %v11352
    %11515 = vmatprep.subr.bf16.mxu0 %v11356
    %11516 = vmatpush1.bf16.msra.mxu0 %v11355
    %11517 = vmatprep.subr.bf16.mxu0 %v11359
    %11518 = vmatpush1.bf16.msra.mxu0 %v11358
    %11519 = vmatprep.subr.bf16.mxu0 %v11362
    %11520 = vmatpush1.bf16.msra.mxu0 %v11361
    %11521 = vmatprep.subr.bf16.mxu0 %v11365
    %11522 = vmatpush1.bf16.msra.mxu0 %v11364
    %11523 = vmatprep.subr.bf16.mxu0 %v11368
    %11524 = vmatpush1.bf16.msra.mxu0 %v11367
    %11525 = vmatprep.subr.bf16.mxu0 %v11371
    %11526 = vmatpush1.bf16.msra.mxu0 %v11370
    %11527 = vmatprep.subr.bf16.mxu0 %v11374
    %11528 = vmatpush1.bf16.msra.mxu0 %v11373
    %11529 = vmatprep.subr.bf16.mxu0 %v11377
    %11530 = vmatpush1.bf16.msra.mxu0 %v11376
    %11531 = vmatprep.mubr.bf16.mxu0 %v8146
    %11532 = vmatmul.mubr.bf16.gmra.mrb[0].mxu0 %v8145
    %v11533 = vpop.f32.mrb[0].mxu0
    %v11534 = vadd.f32 %v10961, %v11533
    %v11535 = vpop.f32.mrb[0].mxu0
    %v11536 = vadd.f32 %v10963, %v11535
    %v11537 = vpop.f32.mrb[0].mxu0
    %v11538 = vadd.f32 %v10965, %v11537
    %v11539 = vpop.f32.mrb[0].mxu0
    %v11540 = vadd.f32 %v10967, %v11539
    %11541 = vdwg.mxu0
    %11542 = vmatprep.subr.bf16.mxu0 %v11380
    %11543 = vmatpush1.bf16.msra.mxu0 %v11379
    %11544 = vmatprep.subr.bf16.mxu0 %v11383
    %11545 = vmatpush1.bf16.msra.mxu0 %v11382
    %11546 = vmatprep.subr.bf16.mxu0 %v11386
    %11547 = vmatpush1.bf16.msra.mxu0 %v11385
    %11548 = vmatprep.subr.bf16.mxu0 %v11389
    %11549 = vmatpush1.bf16.msra.mxu0 %v11388
    %11550 = vmatprep.subr.bf16.mxu0 %v11392
    %11551 = vmatpush1.bf16.msra.mxu0 %v11391
    %11552 = vmatprep.subr.bf16.mxu0 %v11395
    %11553 = vmatpush1.bf16.msra.mxu0 %v11394
    %11554 = vmatprep.subr.bf16.mxu0 %v11398
    %11555 = vmatpush1.bf16.msra.mxu0 %v11397
    %11556 = vmatprep.subr.bf16.mxu0 %v11401
    %11557 = vmatpush1.bf16.msra.mxu0 %v11400
    %11558 = vmatprep.subr.bf16.mxu0 %v11404
    %11559 = vmatpush1.bf16.msra.mxu0 %v11403
    %11560 = vmatprep.subr.bf16.mxu0 %v11407
    %11561 = vmatpush1.bf16.msra.mxu0 %v11406
    %11562 = vmatprep.subr.bf16.mxu0 %v11410
    %11563 = vmatpush1.bf16.msra.mxu0 %v11409
    %11564 = vmatprep.subr.bf16.mxu0 %v11413
    %11565 = vmatpush1.bf16.msra.mxu0 %v11412
    %11566 = vmatprep.subr.bf16.mxu0 0
    %11567 = vmatpush1.bf16.msra.mxu0 0
    %11568 = vmatprep.subr.bf16.mxu0 0
    %11569 = vmatpush1.bf16.msra.mxu0 0
    %11570 = vmatprep.subr.bf16.mxu0 0
    %11571 = vmatpush1.bf16.msra.mxu0 0
    %11572 = vmatprep.subr.bf16.mxu0 0
    %11573 = vmatpush1.bf16.msra.mxu0 0
    %11574 = vmatprep.mubr.bf16.mxu0 %v9274
    %11575 = vmatmul.mubr.bf16.gmra.mrb[0].mxu0 %v8147
    %v11576 = vpop.f32.mrb[0].mxu0
    %v11577 = vadd.f32 %v11534, %v11576
    %v11578 = vpop.f32.mrb[0].mxu0
    %v11579 = vadd.f32 %v11536, %v11578
    %v11580 = vpop.f32.mrb[0].mxu0
    %v11581 = vadd.f32 %v11538, %v11580
    %v11582 = vpop.f32.mrb[0].mxu0
    %v11583 = vadd.f32 %v11540, %v11582
    %11584 = vdwg.mxu0
    %11585 = vmatprep.subr.bf16.mxu0 0
    %11586 = vmatpush1.bf16.msra.mxu0 %v11333
    %11587 = vmatprep.subr.bf16.mxu0 0
    %11588 = vmatpush1.bf16.msra.mxu0 %v11336
    %11589 = vmatprep.subr.bf16.mxu0 0
    %11590 = vmatpush1.bf16.msra.mxu0 %v11339
    %11591 = vmatprep.subr.bf16.mxu0 0
    %11592 = vmatpush1.bf16.msra.mxu0 %v11342
    %11593 = vmatprep.subr.bf16.mxu0 0
    %11594 = vmatpush1.bf16.msra.mxu0 %v11345
    %11595 = vmatprep.subr.bf16.mxu0 0
    %11596 = vmatpush1.bf16.msra.mxu0 %v11348
    %11597 = vmatprep.subr.bf16.mxu0 0
    %11598 = vmatpush1.bf16.msra.mxu0 %v11351
    %11599 = vmatprep.subr.bf16.mxu0 0
    %11600 = vmatpush1.bf16.msra.mxu0 %v11354
    %11601 = vmatprep.subr.bf16.mxu0 0
    %11602 = vmatpush1.bf16.msra.mxu0 %v11357
    %11603 = vmatprep.subr.bf16.mxu0 0
    %11604 = vmatpush1.bf16.msra.mxu0 %v11360
    %11605 = vmatprep.subr.bf16.mxu0 0
    %11606 = vmatpush1.bf16.msra.mxu0 %v11363
    %11607 = vmatprep.subr.bf16.mxu0 0
    %11608 = vmatpush1.bf16.msra.mxu0 %v11366
    %11609 = vmatprep.subr.bf16.mxu0 0
    %11610 = vmatpush1.bf16.msra.mxu0 %v11369
    %11611 = vmatprep.subr.bf16.mxu0 0
    %11612 = vmatpush1.bf16.msra.mxu0 %v11372
    %11613 = vmatprep.subr.bf16.mxu0 0
    %11614 = vmatpush1.bf16.msra.mxu0 %v11375
    %11615 = vmatprep.subr.bf16.mxu0 0
    %11616 = vmatpush1.bf16.msra.mxu0 %v11378
    %11617 = vmatprep.mubr.bf16.mxu0 %v8146
    %11618 = vmatmul.mubr.bf16.gmra.mrb[0].mxu0 %v8145
    %v11619 = vpop.f32.mrb[0].mxu0
    %v11620 = vadd.f32 %v11045, %v11619
    %v11621 = vpop.f32.mrb[0].mxu0
    %v11622 = vpop.f32.mrb[0].mxu0
    %v11623 = vadd.f32 %v11048, %v11622
    %v11624 = vpop.f32.mrb[0].mxu0
    %11625 = vdwg.mxu0
    %11626 = vmatprep.subr.bf16.mxu0 0
    %11627 = vmatpush1.bf16.msra.mxu0 %v11381
    %11628 = vmatprep.subr.bf16.mxu0 0
    %11629 = vmatpush1.bf16.msra.mxu0 %v11384
    %11630 = vmatprep.subr.bf16.mxu0 0
    %11631 = vmatpush1.bf16.msra.mxu0 %v11387
    %11632 = vmatprep.subr.bf16.mxu0 0
    %11633 = vmatpush1.bf16.msra.mxu0 %v11390
    %11634 = vmatprep.subr.bf16.mxu0 0
    %11635 = vmatpush1.bf16.msra.mxu0 %v11393
    %11636 = vmatprep.subr.bf16.mxu0 0
    %11637 = vmatpush1.bf16.msra.mxu0 %v11396
    %11638 = vmatprep.subr.bf16.mxu0 0
    %11639 = vmatpush1.bf16.msra.mxu0 %v11399
    %11640 = vmatprep.subr.bf16.mxu0 0
    %11641 = vmatpush1.bf16.msra.mxu0 %v11402
    %11642 = vmatprep.subr.bf16.mxu0 0
    %11643 = vmatpush1.bf16.msra.mxu0 %v11405
    %11644 = vmatprep.subr.bf16.mxu0 0
    %11645 = vmatpush1.bf16.msra.mxu0 %v11408
    %11646 = vmatprep.subr.bf16.mxu0 0
    %11647 = vmatpush1.bf16.msra.mxu0 %v11411
    %11648 = vmatprep.subr.bf16.mxu0 0
    %11649 = vmatpush1.bf16.msra.mxu0 %v11414
    %11650 = vmatprep.subr.bf16.mxu0 0
    %11651 = vmatpush1.bf16.msra.mxu0 0
    %11652 = vmatprep.subr.bf16.mxu0 0
    %11653 = vmatpush1.bf16.msra.mxu0 0
    %11654 = vmatprep.subr.bf16.mxu0 0
    %11655 = vmatpush1.bf16.msra.mxu0 0
    %11656 = vmatprep.subr.bf16.mxu0 0
    %11657 = vmatpush1.bf16.msra.mxu0 0
    %11658 = vmatprep.mubr.bf16.mxu0 %v9274
    %11659 = vmatmul.mubr.bf16.gmra.mrb[0].mxu0 %v8147
    %v11660 = vpop.f32.mrb[0].mxu0
    %v11661 = vadd.f32 %v11620, %v11660
    %v11662 = vpop.f32.mrb[0].mxu0
    %v11663 = vpop.f32.mrb[0].mxu0
    %v11664 = vadd.f32 %v11623, %v11663
    %v11665 = vpop.f32.mrb[0].mxu0
    %11666 = vdwg.mxu0
    %s11667 = scalar_lea.vmem [#allocation8], 3360
    %v11668 = vld [vmem:[%s11667] sm:$0xff]
    %v11669 = vld [vmem:[%s11667 + $0x8] sm:$0xf]
    %v11670 = vld [vmem:[%s11667 + $0xc] sm:$0xff]
    %v11671 = vld [vmem:[%s11667 + $0x14] sm:$0xf]
    %v11672 = vld [vmem:[%s11667 + $0x18] sm:$0xff]
    %v11673 = vld [vmem:[%s11667 + $0x20] sm:$0xf]
    %v11674 = vld [vmem:[%s11667 + $0x24] sm:$0xff]
    %v11675 = vld [vmem:[%s11667 + $0x2c] sm:$0xf]
    %v11676 = vld [vmem:[%s11667 + $0x30] sm:$0xff]
    %v11677 = vld [vmem:[%s11667 + $0x38] sm:$0xf]
    %v11678 = vld [vmem:[%s11667 + $0x3c] sm:$0xff]
    %v11679 = vld [vmem:[%s11667 + $0x44] sm:$0xf]
    %v11680 = vld [vmem:[%s11667 + $0x48] sm:$0xff]
    %v11681 = vld [vmem:[%s11667 + $0x50] sm:$0xf]
    %v11682 = vld [vmem:[%s11667 + $0x54] sm:$0xff]
    %v11683 = vld [vmem:[%s11667 + $0x5c] sm:$0xf]
    %v11684 = vld [vmem:[%s11667 + $0x60] sm:$0xff]
    %v11685 = vld [vmem:[%s11667 + $0x68] sm:$0xf]
    %v11686 = vld [vmem:[%s11667 + $0x6c] sm:$0xff]
    %v11687 = vld [vmem:[%s11667 + $0x74] sm:$0xf]
    %v11688 = vld [vmem:[%s11667 + $0x78] sm:$0xff]
    %v11689 = vld [vmem:[%s11667 + $0x80] sm:$0xf]
    %v11690 = vld [vmem:[%s11667 + $0x84] sm:$0xff]
    %v11691 = vld [vmem:[%s11667 + $0x8c] sm:$0xf]
    %v11692 = vld [vmem:[%s11667 + $0x90] sm:$0xff]
    %v11693 = vld [vmem:[%s11667 + $0x98] sm:$0xf]
    %v11694 = vld [vmem:[%s11667 + $0x9c] sm:$0xff]
    %v11695 = vld [vmem:[%s11667 + $0xa4] sm:$0xf]
    %v11696 = vld [vmem:[%s11667 + $0xa8] sm:$0xff]
    %v11697 = vld [vmem:[%s11667 + $0xb0] sm:$0xf]
    %v11698 = vld [vmem:[%s11667 + $0xb4] sm:$0xff]
    %v11699 = vld [vmem:[%s11667 + $0xbc] sm:$0xf]
    %v11700 = vld [vmem:[%s11667 + $0xc0] sm:$0xff]
    %v11701 = vld [vmem:[%s11667 + $0xc8] sm:$0xf]
    %v11702 = vld [vmem:[%s11667 + $0xcc] sm:$0xff]
    %v11703 = vld [vmem:[%s11667 + $0xd4] sm:$0xf]
    %v11704 = vld [vmem:[%s11667 + $0xd8] sm:$0xff]
    %v11705 = vld [vmem:[%s11667 + $0xe0] sm:$0xf]
    %v11706 = vld [vmem:[%s11667 + $0xe4] sm:$0xff]
    %v11707 = vld [vmem:[%s11667 + $0xec] sm:$0xf]
    %v11708 = vld [vmem:[%s11667 + $0xf0] sm:$0xff]
    %v11709 = vld [vmem:[%s11667 + $0xf8] sm:$0xf]
    %v11710 = vld [vmem:[%s11667 + $0xfc] sm:$0xff]
    %v11711 = vld [vmem:[%s11667 + $0x104] sm:$0xf]
    %v11712 = vld [vmem:[%s11667 + $0x108] sm:$0xff]
    %v11713 = vld [vmem:[%s11667 + $0x110] sm:$0xf]
    %v11714 = vld [vmem:[%s11667 + $0x114] sm:$0xff]
    %v11715 = vld [vmem:[%s11667 + $0x11c] sm:$0xf]
    %v11716 = vld [vmem:[%s11667 + $0x120] sm:$0xff]
    %v11717 = vld [vmem:[%s11667 + $0x128] sm:$0xf]
    %v11718 = vld [vmem:[%s11667 + $0x12c] sm:$0xff]
    %v11719 = vld [vmem:[%s11667 + $0x134] sm:$0xf]
    %v11720 = vld [vmem:[%s11667 + $0x138] sm:$0xff]
    %v11721 = vld [vmem:[%s11667 + $0x140] sm:$0xf]
    %v11722 = vld [vmem:[%s11667 + $0x144] sm:$0xff]
    %v11723 = vld [vmem:[%s11667 + $0x14c] sm:$0xf]
    %v11724 = vld [vmem:[%s11667 + $0x150] sm:$0xff]
    %v11725 = vld [vmem:[%s11667 + $0x158] sm:$0xf]
    %v11726 = vld [vmem:[%s11667 + $0x15c] sm:$0xff]
    %v11727 = vld [vmem:[%s11667 + $0x164] sm:$0xf]
    %v11728 = vld [vmem:[%s11667 + $0x168] sm:$0xff]
    %v11729 = vld [vmem:[%s11667 + $0x170] sm:$0xf]
    %v11730 = vld [vmem:[%s11667 + $0x174] sm:$0xff]
    %v11731 = vld [vmem:[%s11667 + $0x17c] sm:$0xf]
    %v11732 = vld [vmem:[%s11667 + $0x180] sm:$0xff]
    %v11733 = vld [vmem:[%s11667 + $0x188] sm:$0xf]
    %v11734 = vld [vmem:[%s11667 + $0x18c] sm:$0xff]
    %v11735 = vld [vmem:[%s11667 + $0x194] sm:$0xf]
    %v11736 = vld [vmem:[%s11667 + $0x198] sm:$0xff]
    %v11737 = vld [vmem:[%s11667 + $0x1a0] sm:$0xf]
    %v11738 = vld [vmem:[%s11667 + $0x1a4] sm:$0xff]
    %v11739 = vld [vmem:[%s11667 + $0x1ac] sm:$0xf]
    %v11740 = vld [vmem:[%s11667 + $0x1b0] sm:$0xff]
    %v11741 = vld [vmem:[%s11667 + $0x1b8] sm:$0xf]
    %v11742 = vld [vmem:[%s11667 + $0x1bc] sm:$0xff]
    %v11743 = vld [vmem:[%s11667 + $0x1c4] sm:$0xf]
    %v11744 = vld [vmem:[%s11667 + $0x1c8] sm:$0xff]
    %v11745 = vld [vmem:[%s11667 + $0x1d0] sm:$0xf]
    %v11746 = vld [vmem:[%s11667 + $0x1d4] sm:$0xff]
    %v11747 = vld [vmem:[%s11667 + $0x1dc] sm:$0xf]
    %v11748 = vld [vmem:[%s11667 + $0x1e0] sm:$0xff]
    %v11749 = vld [vmem:[%s11667 + $0x1e8] sm:$0xf]
    %v11750 = vld [vmem:[%s11667 + $0x1ec] sm:$0xff]
    %v11751 = vld [vmem:[%s11667 + $0x1f4] sm:$0xf]
    %v11752 = vld [vmem:[%s11667 + $0x1f8] sm:$0xff]
    %v11753 = vld [vmem:[%s11667 + $0x200] sm:$0xf]
    %v11754 = vld [vmem:[%s11667 + $0x204] sm:$0xff]
    %v11755 = vld [vmem:[%s11667 + $0x20c] sm:$0xf]
    %v11756 = vld [vmem:[%s11667 + $0x210] sm:$0xff]
    %v11757 = vld [vmem:[%s11667 + $0x218] sm:$0xf]
    %v11758 = vld [vmem:[%s11667 + $0x21c] sm:$0xff]
    %v11759 = vld [vmem:[%s11667 + $0x224] sm:$0xf]
    %v11760 = vld [vmem:[%s11667 + $0x228] sm:$0xff]
    %v11761 = vld [vmem:[%s11667 + $0x230] sm:$0xf]
    %v11762 = vld [vmem:[%s11667 + $0x234] sm:$0xff]
    %v11763 = vld [vmem:[%s11667 + $0x23c] sm:$0xf]
    %v11764 = vld [vmem:[%s11667 + $0x240] sm:$0xff]
    %v11765 = vld [vmem:[%s11667 + $0x248] sm:$0xf]
    %v11766 = vld [vmem:[%s11667 + $0x24c] sm:$0xff]
    %v11767 = vld [vmem:[%s11667 + $0x254] sm:$0xf]
    %v11768 = vld [vmem:[%s11667 + $0x258] sm:$0xff]
    %v11769 = vld [vmem:[%s11667 + $0x260] sm:$0xf]
    %v11770 = vld [vmem:[%s11667 + $0x264] sm:$0xff]
    %v11771 = vld [vmem:[%s11667 + $0x26c] sm:$0xf]
    %v11772 = vld [vmem:[%s11667 + $0x270] sm:$0xff]
    %v11773 = vld [vmem:[%s11667 + $0x278] sm:$0xf]
    %v11774 = vld [vmem:[%s11667 + $0x27c] sm:$0xff]
    %v11775 = vld [vmem:[%s11667 + $0x284] sm:$0xf]
    %v11776 = vld [vmem:[%s11667 + $0x288] sm:$0xff]
    %v11777 = vld [vmem:[%s11667 + $0x290] sm:$0xf]
    %v11778 = vld [vmem:[%s11667 + $0x294] sm:$0xff]
    %v11779 = vld [vmem:[%s11667 + $0x29c] sm:$0xf]
    %v11892 = vunpack.c.l.b16 %v11668
    %v11893 = vunpack.c.h.b16 %v11668
    %v11894 = vunpack.c.l.b16 %v11669
    %v11895 = vunpack.c.l.b16 %v11670
    %v11896 = vunpack.c.h.b16 %v11670
    %v11897 = vunpack.c.l.b16 %v11671
    %v11898 = vunpack.c.l.b16 %v11672
    %v11899 = vunpack.c.h.b16 %v11672
    %v11900 = vunpack.c.l.b16 %v11673
    %v11901 = vunpack.c.l.b16 %v11674
    %v11902 = vunpack.c.h.b16 %v11674
    %v11903 = vunpack.c.l.b16 %v11675
    %v11904 = vunpack.c.l.b16 %v11676
    %v11905 = vunpack.c.h.b16 %v11676
    %v11906 = vunpack.c.l.b16 %v11677
    %v11907 = vunpack.c.l.b16 %v11678
    %v11908 = vunpack.c.h.b16 %v11678
    %v11909 = vunpack.c.l.b16 %v11679
    %v11910 = vunpack.c.l.b16 %v11680
    %v11911 = vunpack.c.h.b16 %v11680
    %v11912 = vunpack.c.l.b16 %v11681
    %v11913 = vunpack.c.l.b16 %v11682
    %v11914 = vunpack.c.h.b16 %v11682
    %v11915 = vunpack.c.l.b16 %v11683
    %v11916 = vunpack.c.l.b16 %v11684
    %v11917 = vunpack.c.h.b16 %v11684
    %v11918 = vunpack.c.l.b16 %v11685
    %v11919 = vunpack.c.l.b16 %v11686
    %v11920 = vunpack.c.h.b16 %v11686
    %v11921 = vunpack.c.l.b16 %v11687
    %v11922 = vunpack.c.l.b16 %v11688
    %v11923 = vunpack.c.h.b16 %v11688
    %v11924 = vunpack.c.l.b16 %v11689
    %v11925 = vunpack.c.l.b16 %v11690
    %v11926 = vunpack.c.h.b16 %v11690
    %v11927 = vunpack.c.l.b16 %v11691
    %v11928 = vunpack.c.l.b16 %v11692
    %v11929 = vunpack.c.h.b16 %v11692
    %v11930 = vunpack.c.l.b16 %v11693
    %v11931 = vunpack.c.l.b16 %v11694
    %v11932 = vunpack.c.h.b16 %v11694
    %v11933 = vunpack.c.l.b16 %v11695
    %v11934 = vunpack.c.l.b16 %v11696
    %v11935 = vunpack.c.h.b16 %v11696
    %v11936 = vunpack.c.l.b16 %v11697
    %v11937 = vunpack.c.l.b16 %v11698
    %v11938 = vunpack.c.h.b16 %v11698
    %v11939 = vunpack.c.l.b16 %v11699
    %v11940 = vunpack.c.l.b16 %v11700
    %v11941 = vunpack.c.h.b16 %v11700
    %v11942 = vunpack.c.l.b16 %v11701
    %v11943 = vunpack.c.l.b16 %v11702
    %v11944 = vunpack.c.h.b16 %v11702
    %v11945 = vunpack.c.l.b16 %v11703
    %v11946 = vunpack.c.l.b16 %v11704
    %v11947 = vunpack.c.h.b16 %v11704
    %v11948 = vunpack.c.l.b16 %v11705
    %v11949 = vunpack.c.l.b16 %v11706
    %v11950 = vunpack.c.h.b16 %v11706
    %v11951 = vunpack.c.l.b16 %v11707
    %v11952 = vunpack.c.l.b16 %v11708
    %v11953 = vunpack.c.h.b16 %v11708
    %v11954 = vunpack.c.l.b16 %v11709
    %v11955 = vunpack.c.l.b16 %v11710
    %v11956 = vunpack.c.h.b16 %v11710
    %v11957 = vunpack.c.l.b16 %v11711
    %v11958 = vunpack.c.l.b16 %v11712
    %v11959 = vunpack.c.h.b16 %v11712
    %v11960 = vunpack.c.l.b16 %v11713
    %v11961 = vunpack.c.l.b16 %v11714
    %v11962 = vunpack.c.h.b16 %v11714
    %v11963 = vunpack.c.l.b16 %v11715
    %v11964 = vunpack.c.l.b16 %v11716
    %v11965 = vunpack.c.h.b16 %v11716
    %v11966 = vunpack.c.l.b16 %v11717
    %v11967 = vunpack.c.l.b16 %v11718
    %v11968 = vunpack.c.h.b16 %v11718
    %v11969 = vunpack.c.l.b16 %v11719
    %v11970 = vunpack.c.l.b16 %v11720
    %v11971 = vunpack.c.h.b16 %v11720
    %v11972 = vunpack.c.l.b16 %v11721
    %v11973 = vunpack.c.l.b16 %v11722
    %v11974 = vunpack.c.h.b16 %v11722
    %v11975 = vunpack.c.l.b16 %v11723
    %v11976 = vunpack.c.l.b16 %v11724
    %v11977 = vunpack.c.h.b16 %v11724
    %v11978 = vunpack.c.l.b16 %v11725
    %v11979 = vunpack.c.l.b16 %v11726
    %v11980 = vunpack.c.h.b16 %v11726
    %v11981 = vunpack.c.l.b16 %v11727
    %v11982 = vunpack.c.l.b16 %v11728
    %v11983 = vunpack.c.h.b16 %v11728
    %v11984 = vunpack.c.l.b16 %v11729
    %v11985 = vunpack.c.l.b16 %v11730
    %v11986 = vunpack.c.h.b16 %v11730
    %v11987 = vunpack.c.l.b16 %v11731
    %v11988 = vunpack.c.l.b16 %v11732
    %v11989 = vunpack.c.h.b16 %v11732
    %v11990 = vunpack.c.l.b16 %v11733
    %v11991 = vunpack.c.l.b16 %v11734
    %v11992 = vunpack.c.h.b16 %v11734
    %v11993 = vunpack.c.l.b16 %v11735
    %v11994 = vunpack.c.l.b16 %v11736
    %v11995 = vunpack.c.h.b16 %v11736
    %v11996 = vunpack.c.l.b16 %v11737
    %v11997 = vunpack.c.l.b16 %v11738
    %v11998 = vunpack.c.h.b16 %v11738
    %v11999 = vunpack.c.l.b16 %v11739
    %v12000 = vunpack.c.l.b16 %v11740
    %v12001 = vunpack.c.h.b16 %v11740
    %v12002 = vunpack.c.l.b16 %v11741
    %v12003 = vunpack.c.l.b16 %v11742
    %v12004 = vunpack.c.h.b16 %v11742
    %v12005 = vunpack.c.l.b16 %v11743
    %v12006 = vunpack.c.l.b16 %v11744
    %v12007 = vunpack.c.h.b16 %v11744
    %v12008 = vunpack.c.l.b16 %v11745
    %v12009 = vunpack.c.l.b16 %v11746
    %v12010 = vunpack.c.h.b16 %v11746
    %v12011 = vunpack.c.l.b16 %v11747
    %v12012 = vunpack.c.l.b16 %v11748
    %v12013 = vunpack.c.h.b16 %v11748
    %v12014 = vunpack.c.l.b16 %v11749
    %v12015 = vunpack.c.l.b16 %v11750
    %v12016 = vunpack.c.h.b16 %v11750
    %v12017 = vunpack.c.l.b16 %v11751
    %v12018 = vunpack.c.l.b16 %v11752
    %v12019 = vunpack.c.h.b16 %v11752
    %v12020 = vunpack.c.l.b16 %v11753
    %v12021 = vunpack.c.l.b16 %v11754
    %v12022 = vunpack.c.h.b16 %v11754
    %v12023 = vunpack.c.l.b16 %v11755
    %v12024 = vunpack.c.l.b16 %v11756
    %v12025 = vunpack.c.h.b16 %v11756
    %v12026 = vunpack.c.l.b16 %v11757
    %v12027 = vunpack.c.l.b16 %v11758
    %v12028 = vunpack.c.h.b16 %v11758
    %v12029 = vunpack.c.l.b16 %v11759
    %v12030 = vunpack.c.l.b16 %v11760
    %v12031 = vunpack.c.h.b16 %v11760
    %v12032 = vunpack.c.l.b16 %v11761
    %v12033 = vunpack.c.l.b16 %v11762
    %v12034 = vunpack.c.h.b16 %v11762
    %v12035 = vunpack.c.l.b16 %v11763
    %v12036 = vunpack.c.l.b16 %v11764
    %v12037 = vunpack.c.h.b16 %v11764
    %v12038 = vunpack.c.l.b16 %v11765
    %v12039 = vunpack.c.l.b16 %v11766
    %v12040 = vunpack.c.h.b16 %v11766
    %v12041 = vunpack.c.l.b16 %v11767
    %v12042 = vunpack.c.l.b16 %v11768
    %v12043 = vunpack.c.h.b16 %v11768
    %v12044 = vunpack.c.l.b16 %v11769
    %v12045 = vunpack.c.l.b16 %v11770
    %v12046 = vunpack.c.h.b16 %v11770
    %v12047 = vunpack.c.l.b16 %v11771
    %v12048 = vunpack.c.l.b16 %v11772
    %v12049 = vunpack.c.h.b16 %v11772
    %v12050 = vunpack.c.l.b16 %v11773
    %v12051 = vunpack.c.l.b16 %v11774
    %v12052 = vunpack.c.h.b16 %v11774
    %v12053 = vunpack.c.l.b16 %v11775
    %v12054 = vunpack.c.l.b16 %v11776
    %v12055 = vunpack.c.h.b16 %v11776
    %v12056 = vunpack.c.l.b16 %v11777
    %v12057 = vunpack.c.l.b16 %v11778
    %v12058 = vunpack.c.h.b16 %v11778
    %v12059 = vunpack.c.l.b16 %v11779
    %v12060 = vpack.c.b16 %v11895, %v11892
    %v12061 = vpack.c.b16 %v11896, %v11893
    %v12062 = vpack.c.b16 %v11897, %v11894
    %v12063 = vpack.c.b16 %v11901, %v11898
    %v12064 = vpack.c.b16 %v11902, %v11899
    %v12065 = vpack.c.b16 %v11903, %v11900
    %v12066 = vpack.c.b16 %v11907, %v11904
    %v12067 = vpack.c.b16 %v11908, %v11905
    %v12068 = vpack.c.b16 %v11909, %v11906
    %v12069 = vpack.c.b16 %v11913, %v11910
    %v12070 = vpack.c.b16 %v11914, %v11911
    %v12071 = vpack.c.b16 %v11915, %v11912
    %v12072 = vpack.c.b16 %v11919, %v11916
    %v12073 = vpack.c.b16 %v11920, %v11917
    %v12074 = vpack.c.b16 %v11921, %v11918
    %v12075 = vpack.c.b16 %v11925, %v11922
    %v12076 = vpack.c.b16 %v11926, %v11923
    %v12077 = vpack.c.b16 %v11927, %v11924
    %v12078 = vpack.c.b16 %v11931, %v11928
    %v12079 = vpack.c.b16 %v11932, %v11929
    %v12080 = vpack.c.b16 %v11933, %v11930
    %v12081 = vpack.c.b16 %v11937, %v11934
    %v12082 = vpack.c.b16 %v11938, %v11935
    %v12083 = vpack.c.b16 %v11939, %v11936
    %v12084 = vpack.c.b16 %v11943, %v11940
    %v12085 = vpack.c.b16 %v11944, %v11941
    %v12086 = vpack.c.b16 %v11945, %v11942
    %v12087 = vpack.c.b16 %v11949, %v11946
    %v12088 = vpack.c.b16 %v11950, %v11947
    %v12089 = vpack.c.b16 %v11951, %v11948
    %v12090 = vpack.c.b16 %v11955, %v11952
    %v12091 = vpack.c.b16 %v11956, %v11953
    %v12092 = vpack.c.b16 %v11957, %v11954
    %v12093 = vpack.c.b16 %v11961, %v11958
    %v12094 = vpack.c.b16 %v11962, %v11959
    %v12095 = vpack.c.b16 %v11963, %v11960
    %v12096 = vpack.c.b16 %v11967, %v11964
    %v12097 = vpack.c.b16 %v11968, %v11965
    %v12098 = vpack.c.b16 %v11969, %v11966
    %v12099 = vpack.c.b16 %v11973, %v11970
    %v12100 = vpack.c.b16 %v11974, %v11971
    %v12101 = vpack.c.b16 %v11975, %v11972
    %v12102 = vpack.c.b16 %v11979, %v11976
    %v12103 = vpack.c.b16 %v11980, %v11977
    %v12104 = vpack.c.b16 %v11981, %v11978
    %v12105 = vpack.c.b16 %v11985, %v11982
    %v12106 = vpack.c.b16 %v11986, %v11983
    %v12107 = vpack.c.b16 %v11987, %v11984
    %v12108 = vpack.c.b16 %v11991, %v11988
    %v12109 = vpack.c.b16 %v11992, %v11989
    %v12110 = vpack.c.b16 %v11993, %v11990
    %v12111 = vpack.c.b16 %v11997, %v11994
    %v12112 = vpack.c.b16 %v11998, %v11995
    %v12113 = vpack.c.b16 %v11999, %v11996
    %v12114 = vpack.c.b16 %v12003, %v12000
    %v12115 = vpack.c.b16 %v12004, %v12001
    %v12116 = vpack.c.b16 %v12005, %v12002
    %v12117 = vpack.c.b16 %v12009, %v12006
    %v12118 = vpack.c.b16 %v12010, %v12007
    %v12119 = vpack.c.b16 %v12011, %v12008
    %v12120 = vpack.c.b16 %v12015, %v12012
    %v12121 = vpack.c.b16 %v12016, %v12013
    %v12122 = vpack.c.b16 %v12017, %v12014
    %v12123 = vpack.c.b16 %v12021, %v12018
    %v12124 = vpack.c.b16 %v12022, %v12019
    %v12125 = vpack.c.b16 %v12023, %v12020
    %v12126 = vpack.c.b16 %v12027, %v12024
    %v12127 = vpack.c.b16 %v12028, %v12025
    %v12128 = vpack.c.b16 %v12029, %v12026
    %v12129 = vpack.c.b16 %v12033, %v12030
    %v12130 = vpack.c.b16 %v12034, %v12031
    %v12131 = vpack.c.b16 %v12035, %v12032
    %v12132 = vpack.c.b16 %v12039, %v12036
    %v12133 = vpack.c.b16 %v12040, %v12037
    %v12134 = vpack.c.b16 %v12041, %v12038
    %v12135 = vpack.c.b16 %v12045, %v12042
    %v12136 = vpack.c.b16 %v12046, %v12043
    %v12137 = vpack.c.b16 %v12047, %v12044
    %v12138 = vpack.c.b16 %v12051, %v12048
    %v12139 = vpack.c.b16 %v12052, %v12049
    %v12140 = vpack.c.b16 %v12053, %v12050
    %v12141 = vpack.c.b16 %v12057, %v12054
    %v12142 = vpack.c.b16 %v12058, %v12055
    %v12143 = vpack.c.b16 %v12059, %v12056
    %12228 = vmatprep.subr.bf16.mxu0 %v12061
    %12229 = vmatpush1.bf16.msra.mxu0 %v12060
    %12230 = vmatprep.subr.bf16.mxu0 %v12064
    %12231 = vmatpush1.bf16.msra.mxu0 %v12063
    %12232 = vmatprep.subr.bf16.mxu0 %v12067
    %12233 = vmatpush1.bf16.msra.mxu0 %v12066
    %12234 = vmatprep.subr.bf16.mxu0 %v12070
    %12235 = vmatpush1.bf16.msra.mxu0 %v12069
    %12236 = vmatprep.subr.bf16.mxu0 %v12073
    %12237 = vmatpush1.bf16.msra.mxu0 %v12072
    %12238 = vmatprep.subr.bf16.mxu0 %v12076
    %12239 = vmatpush1.bf16.msra.mxu0 %v12075
    %12240 = vmatprep.subr.bf16.mxu0 %v12079
    %12241 = vmatpush1.bf16.msra.mxu0 %v12078
    %12242 = vmatprep.subr.bf16.mxu0 %v12082
    %12243 = vmatpush1.bf16.msra.mxu0 %v12081
    %12244 = vmatprep.subr.bf16.mxu0 %v12085
    %12245 = vmatpush1.bf16.msra.mxu0 %v12084
    %12246 = vmatprep.subr.bf16.mxu0 %v12088
    %12247 = vmatpush1.bf16.msra.mxu0 %v12087
    %12248 = vmatprep.subr.bf16.mxu0 %v12091
    %12249 = vmatpush1.bf16.msra.mxu0 %v12090
    %12250 = vmatprep.subr.bf16.mxu0 %v12094
    %12251 = vmatpush1.bf16.msra.mxu0 %v12093
    %12252 = vmatprep.subr.bf16.mxu0 %v12097
    %12253 = vmatpush1.bf16.msra.mxu0 %v12096
    %12254 = vmatprep.subr.bf16.mxu0 %v12100
    %12255 = vmatpush1.bf16.msra.mxu0 %v12099
    %12256 = vmatprep.subr.bf16.mxu0 %v12103
    %12257 = vmatpush1.bf16.msra.mxu0 %v12102
    %12258 = vmatprep.subr.bf16.mxu0 %v12106
    %12259 = vmatpush1.bf16.msra.mxu0 %v12105
    %12260 = vmatprep.mubr.bf16.mxu0 %v9574
    %12261 = vmatmul.mubr.bf16.gmra.mrb[0].mxu0 %v9571
    %v12262 = vpop.f32.mrb[0].mxu0
    %v12263 = vadd.f32 0.0, %v12262
    %v12264 = vpop.f32.mrb[0].mxu0
    %v12265 = vadd.f32 0.0, %v12264
    %v12266 = vpop.f32.mrb[0].mxu0
    %v12267 = vadd.f32 0.0, %v12266
    %v12268 = vpop.f32.mrb[0].mxu0
    %v12269 = vadd.f32 0.0, %v12268
    %12270 = vdwg.mxu0
    %12271 = vmatprep.subr.bf16.mxu0 %v12109
    %12272 = vmatpush1.bf16.msra.mxu0 %v12108
    %12273 = vmatprep.subr.bf16.mxu0 %v12112
    %12274 = vmatpush1.bf16.msra.mxu0 %v12111
    %12275 = vmatprep.subr.bf16.mxu0 %v12115
    %12276 = vmatpush1.bf16.msra.mxu0 %v12114
    %12277 = vmatprep.subr.bf16.mxu0 %v12118
    %12278 = vmatpush1.bf16.msra.mxu0 %v12117
    %12279 = vmatprep.subr.bf16.mxu0 %v12121
    %12280 = vmatpush1.bf16.msra.mxu0 %v12120
    %12281 = vmatprep.subr.bf16.mxu0 %v12124
    %12282 = vmatpush1.bf16.msra.mxu0 %v12123
    %12283 = vmatprep.subr.bf16.mxu0 %v12127
    %12284 = vmatpush1.bf16.msra.mxu0 %v12126
    %12285 = vmatprep.subr.bf16.mxu0 %v12130
    %12286 = vmatpush1.bf16.msra.mxu0 %v12129
    %12287 = vmatprep.subr.bf16.mxu0 %v12133
    %12288 = vmatpush1.bf16.msra.mxu0 %v12132
    %12289 = vmatprep.subr.bf16.mxu0 %v12136
    %12290 = vmatpush1.bf16.msra.mxu0 %v12135
    %12291 = vmatprep.subr.bf16.mxu0 %v12139
    %12292 = vmatpush1.bf16.msra.mxu0 %v12138
    %12293 = vmatprep.subr.bf16.mxu0 %v12142
    %12294 = vmatpush1.bf16.msra.mxu0 %v12141
    %12295 = vmatprep.subr.bf16.mxu0 0
    %12296 = vmatpush1.bf16.msra.mxu0 0
    %12297 = vmatprep.subr.bf16.mxu0 0
    %12298 = vmatpush1.bf16.msra.mxu0 0
    %12299 = vmatprep.subr.bf16.mxu0 0
    %12300 = vmatpush1.bf16.msra.mxu0 0
    %12301 = vmatprep.subr.bf16.mxu0 0
    %12302 = vmatpush1.bf16.msra.mxu0 0
    %12303 = vmatprep.mubr.bf16.mxu0 %v10033
    %12304 = vmatmul.mubr.bf16.gmra.mrb[0].mxu0 %v9577
    %v12305 = vpop.f32.mrb[0].mxu0
    %v12306 = vadd.f32 %v12263, %v12305
    %v12307 = vpop.f32.mrb[0].mxu0
    %v12308 = vadd.f32 %v12265, %v12307
    %v12309 = vpop.f32.mrb[0].mxu0
    %v12310 = vadd.f32 %v12267, %v12309
    %v12311 = vpop.f32.mrb[0].mxu0
    %v12312 = vadd.f32 %v12269, %v12311
    %12313 = vdwg.mxu0
    %12314 = vmatprep.subr.bf16.mxu0 0
    %12315 = vmatpush1.bf16.msra.mxu0 %v12062
    %12316 = vmatprep.subr.bf16.mxu0 0
    %12317 = vmatpush1.bf16.msra.mxu0 %v12065
    %12318 = vmatprep.subr.bf16.mxu0 0
    %12319 = vmatpush1.bf16.msra.mxu0 %v12068
    %12320 = vmatprep.subr.bf16.mxu0 0
    %12321 = vmatpush1.bf16.msra.mxu0 %v12071
    %12322 = vmatprep.subr.bf16.mxu0 0
    %12323 = vmatpush1.bf16.msra.mxu0 %v12074
    %12324 = vmatprep.subr.bf16.mxu0 0
    %12325 = vmatpush1.bf16.msra.mxu0 %v12077
    %12326 = vmatprep.subr.bf16.mxu0 0
    %12327 = vmatpush1.bf16.msra.mxu0 %v12080
    %12328 = vmatprep.subr.bf16.mxu0 0
    %12329 = vmatpush1.bf16.msra.mxu0 %v12083
    %12330 = vmatprep.subr.bf16.mxu0 0
    %12331 = vmatpush1.bf16.msra.mxu0 %v12086
    %12332 = vmatprep.subr.bf16.mxu0 0
    %12333 = vmatpush1.bf16.msra.mxu0 %v12089
    %12334 = vmatprep.subr.bf16.mxu0 0
    %12335 = vmatpush1.bf16.msra.mxu0 %v12092
    %12336 = vmatprep.subr.bf16.mxu0 0
    %12337 = vmatpush1.bf16.msra.mxu0 %v12095
    %12338 = vmatprep.subr.bf16.mxu0 0
    %12339 = vmatpush1.bf16.msra.mxu0 %v12098
    %12340 = vmatprep.subr.bf16.mxu0 0
    %12341 = vmatpush1.bf16.msra.mxu0 %v12101
    %12342 = vmatprep.subr.bf16.mxu0 0
    %12343 = vmatpush1.bf16.msra.mxu0 %v12104
    %12344 = vmatprep.subr.bf16.mxu0 0
    %12345 = vmatpush1.bf16.msra.mxu0 %v12107
    %12346 = vmatprep.mubr.bf16.mxu0 %v9574
    %12347 = vmatmul.mubr.bf16.gmra.mrb[0].mxu0 %v9571
    %v12348 = vpop.f32.mrb[0].mxu0
    %v12349 = vadd.f32 0.0, %v12348
    %v12350 = vpop.f32.mrb[0].mxu0
    %v12351 = vpop.f32.mrb[0].mxu0
    %v12352 = vadd.f32 0.0, %v12351
    %v12353 = vpop.f32.mrb[0].mxu0
    %12354 = vdwg.mxu0
    %12355 = vmatprep.subr.bf16.mxu0 0
    %12356 = vmatpush1.bf16.msra.mxu0 %v12110
    %12357 = vmatprep.subr.bf16.mxu0 0
    %12358 = vmatpush1.bf16.msra.mxu0 %v12113
    %12359 = vmatprep.subr.bf16.mxu0 0
    %12360 = vmatpush1.bf16.msra.mxu0 %v12116
    %12361 = vmatprep.subr.bf16.mxu0 0
    %12362 = vmatpush1.bf16.msra.mxu0 %v12119
    %12363 = vmatprep.subr.bf16.mxu0 0
    %12364 = vmatpush1.bf16.msra.mxu0 %v12122
    %12365 = vmatprep.subr.bf16.mxu0 0
    %12366 = vmatpush1.bf16.msra.mxu0 %v12125
    %12367 = vmatprep.subr.bf16.mxu0 0
    %12368 = vmatpush1.bf16.msra.mxu0 %v12128
    %12369 = vmatprep.subr.bf16.mxu0 0
    %12370 = vmatpush1.bf16.msra.mxu0 %v12131
    %12371 = vmatprep.subr.bf16.mxu0 0
    %12372 = vmatpush1.bf16.msra.mxu0 %v12134
    %12373 = vmatprep.subr.bf16.mxu0 0
    %12374 = vmatpush1.bf16.msra.mxu0 %v12137
    %12375 = vmatprep.subr.bf16.mxu0 0
    %12376 = vmatpush1.bf16.msra.mxu0 %v12140
    %12377 = vmatprep.subr.bf16.mxu0 0
    %12378 = vmatpush1.bf16.msra.mxu0 %v12143
    %12379 = vmatprep.subr.bf16.mxu0 0
    %12380 = vmatpush1.bf16.msra.mxu0 0
    %12381 = vmatprep.subr.bf16.mxu0 0
    %12382 = vmatpush1.bf16.msra.mxu0 0
    %12383 = vmatprep.subr.bf16.mxu0 0
    %12384 = vmatpush1.bf16.msra.mxu0 0
    %12385 = vmatprep.subr.bf16.mxu0 0
    %12386 = vmatpush1.bf16.msra.mxu0 0
    %12387 = vmatprep.mubr.bf16.mxu0 %v10033
    %12388 = vmatmul.mubr.bf16.gmra.mrb[0].mxu0 %v9577
    %v12389 = vpop.f32.mrb[0].mxu0
    %v12390 = vadd.f32 %v12349, %v12389
    %v12391 = vpop.f32.mrb[0].mxu0
    %v12392 = vpop.f32.mrb[0].mxu0
    %v12393 = vadd.f32 %v12352, %v12392
    %v12394 = vpop.f32.mrb[0].mxu0
    %12395 = vdwg.mxu0
    %v12396 = vadd.f32 %v11577, %v12306
    %v12397 = vadd.f32 %v11579, %v12308
    %v12398 = vadd.f32 %v11661, %v12390
    %v12399 = vadd.f32 %v11581, %v12310
    %v12400 = vadd.f32 %v11583, %v12312
    %v12401 = vadd.f32 %v11664, %v12393
    %v12402 = vmax.f32 %v10203, %v12396
    %v12403 = vmax.f32 %v10204, %v12397
    %v12404 = vmax.f32 %v10205, %v12398
    %v12405 = vmax.f32 %v10206, %v12399
    %v12406 = vmax.f32 %v10207, %v12400
    %v12407 = vmax.f32 %v10208, %v12401
    %v12408 = vld [vmem:[#allocation17] sm:$0x7]
    %v12410 = vlaneseq
    %v12411 = vshrl.u32 %v12410, 7
    %v12412 = vsub.s32 0, %v12411
    %v12413 = vrot.slane %v12408, %v12412
    %v12414 = vlaneseq
    %v12415 = vshrl.u32 %v12414, 7
    %v12416 = vsub.s32 1, %v12415
    %v12417 = vrot.slane %v12408, %v12416
    %v12418 = vlaneseq
    %v12419 = vshrl.u32 %v12418, 7
    %v12420 = vsub.s32 2, %v12419
    %v12421 = vrot.slane %v12408, %v12420
    %v12425 = vadd.f32 %v12402, %v12413
    %v12426 = vadd.f32 %v12403, %v12417
    %v12427 = vadd.f32 %v12404, %v12421
    %v12428 = vadd.f32 %v12405, %v12413
    %v12429 = vadd.f32 %v12406, %v12417
    %v12430 = vadd.f32 %v12407, %v12421
    %v12431 = vpack.c.bf16 %v12428, %v12425
    %v12432 = vpack.c.bf16 %v12429, %v12426
    %v12433 = vpack.c.bf16 %v12430, %v12427
    %v12434 = vld [vmem:[#allocation13] sm:$0x7]
    %vm12435 = vcmask 130048
    %v12437 = vsel %vm12435, %v12434, 0
    %12439 = vmatprep.subr.bf16.mxu0 %v12432
    %12440 = vmatpush1.bf16.msra.mxu0 %v12431
    %12441 = vmatprep.subr.bf16.mxu0 0
    %12442 = vmatpush1.bf16.msra.mxu0 0
    %12443 = vmatprep.subr.bf16.mxu0 0
    %12444 = vmatpush1.bf16.msra.mxu0 0
    %12445 = vmatprep.subr.bf16.mxu0 0
    %12446 = vmatpush1.bf16.msra.mxu0 0
    %12447 = vmatprep.subr.bf16.mxu0 0
    %12448 = vmatpush1.bf16.msra.mxu0 0
    %12449 = vmatprep.subr.bf16.mxu0 0
    %12450 = vmatpush1.bf16.msra.mxu0 0
    %12451 = vmatprep.subr.bf16.mxu0 0
    %12452 = vmatpush1.bf16.msra.mxu0 0
    %12453 = vmatprep.subr.bf16.mxu0 0
    %12454 = vmatpush1.bf16.msra.mxu0 0
    %12455 = vmatprep.subr.bf16.mxu0 0
    %12456 = vmatpush1.bf16.msra.mxu0 0
    %12457 = vmatprep.subr.bf16.mxu0 0
    %12458 = vmatpush1.bf16.msra.mxu0 0
    %12459 = vmatprep.subr.bf16.mxu0 0
    %12460 = vmatpush1.bf16.msra.mxu0 0
    %12461 = vmatprep.subr.bf16.mxu0 0
    %12462 = vmatpush1.bf16.msra.mxu0 0
    %12463 = vmatprep.subr.bf16.mxu0 0
    %12464 = vmatpush1.bf16.msra.mxu0 0
    %12465 = vmatprep.subr.bf16.mxu0 0
    %12466 = vmatpush1.bf16.msra.mxu0 0
    %12467 = vmatprep.subr.bf16.mxu0 0
    %12468 = vmatpush1.bf16.msra.mxu0 0
    %12469 = vmatprep.subr.bf16.mxu0 0
    %12470 = vmatpush1.bf16.msra.mxu0 0
    %12471 = vmatprep.mubr.bf16.mxu0 0
    %12472 = vmatmul.mubr.bf16.gmra.mrb[0].mxu0 %v12437
    %v12473 = vpop.f32.mrb[0].mxu0
    %v12474 = vadd.f32 0.0, %v12473
    %v12475 = vpop.f32.mrb[0].mxu0
    %v12476 = vadd.f32 0.0, %v12475
    %v12477 = vpop.f32.mrb[0].mxu0
    %v12478 = vpop.f32.mrb[0].mxu0
    %12479 = vdwg.mxu0
    %12480 = vmatprep.subr.bf16.mxu0 0
    %12481 = vmatpush1.bf16.msra.mxu0 %v12433
    %12482 = vmatprep.subr.bf16.mxu0 0
    %12483 = vmatpush1.bf16.msra.mxu0 0
    %12484 = vmatprep.subr.bf16.mxu0 0
    %12485 = vmatpush1.bf16.msra.mxu0 0
    %12486 = vmatprep.subr.bf16.mxu0 0
    %12487 = vmatpush1.bf16.msra.mxu0 0
    %12488 = vmatprep.subr.bf16.mxu0 0
    %12489 = vmatpush1.bf16.msra.mxu0 0
    %12490 = vmatprep.subr.bf16.mxu0 0
    %12491 = vmatpush1.bf16.msra.mxu0 0
    %12492 = vmatprep.subr.bf16.mxu0 0
    %12493 = vmatpush1.bf16.msra.mxu0 0
    %12494 = vmatprep.subr.bf16.mxu0 0
    %12495 = vmatpush1.bf16.msra.mxu0 0
    %12496 = vmatprep.subr.bf16.mxu0 0
    %12497 = vmatpush1.bf16.msra.mxu0 0
    %12498 = vmatprep.subr.bf16.mxu0 0
    %12499 = vmatpush1.bf16.msra.mxu0 0
    %12500 = vmatprep.subr.bf16.mxu0 0
    %12501 = vmatpush1.bf16.msra.mxu0 0
    %12502 = vmatprep.subr.bf16.mxu0 0
    %12503 = vmatpush1.bf16.msra.mxu0 0
    %12504 = vmatprep.subr.bf16.mxu0 0
    %12505 = vmatpush1.bf16.msra.mxu0 0
    %12506 = vmatprep.subr.bf16.mxu0 0
    %12507 = vmatpush1.bf16.msra.mxu0 0
    %12508 = vmatprep.subr.bf16.mxu0 0
    %12509 = vmatpush1.bf16.msra.mxu0 0
    %12510 = vmatprep.subr.bf16.mxu0 0
    %12511 = vmatpush1.bf16.msra.mxu0 0
    %12512 = vmatprep.mubr.bf16.mxu0 0
    %12513 = vmatmul.mubr.bf16.gmra.mrb[0].mxu0 %v12437
    %v12514 = vpop.f32.mrb[0].mxu0
    %v12515 = vadd.f32 0.0, %v12514
    %v12516 = vpop.f32.mrb[0].mxu0
    %v12517 = vpop.f32.mrb[0].mxu0
    %v12518 = vpop.f32.mrb[0].mxu0
    %12519 = vdwg.mxu0
    %s12520 = scalar_lea.vmem [#allocation13], 4
    %v12521 = vld [vmem:[%s12520] sm:$0x7]
    %v12523 = vsel %vm12435, %v12521, 0
    %12525 = vmatprep.subr.bf16.mxu0 %v12432
    %12526 = vmatpush1.bf16.msra.mxu0 %v12431
    %12527 = vmatprep.subr.bf16.mxu0 0
    %12528 = vmatpush1.bf16.msra.mxu0 0
    %12529 = vmatprep.subr.bf16.mxu0 0
    %12530 = vmatpush1.bf16.msra.mxu0 0
    %12531 = vmatprep.subr.bf16.mxu0 0
    %12532 = vmatpush1.bf16.msra.mxu0 0
    %12533 = vmatprep.subr.bf16.mxu0 0
    %12534 = vmatpush1.bf16.msra.mxu0 0
    %12535 = vmatprep.subr.bf16.mxu0 0
    %12536 = vmatpush1.bf16.msra.mxu0 0
    %12537 = vmatprep.subr.bf16.mxu0 0
    %12538 = vmatpush1.bf16.msra.mxu0 0
    %12539 = vmatprep.subr.bf16.mxu0 0
    %12540 = vmatpush1.bf16.msra.mxu0 0
    %12541 = vmatprep.subr.bf16.mxu0 0
    %12542 = vmatpush1.bf16.msra.mxu0 0
    %12543 = vmatprep.subr.bf16.mxu0 0
    %12544 = vmatpush1.bf16.msra.mxu0 0
    %12545 = vmatprep.subr.bf16.mxu0 0
    %12546 = vmatpush1.bf16.msra.mxu0 0
    %12547 = vmatprep.subr.bf16.mxu0 0
    %12548 = vmatpush1.bf16.msra.mxu0 0
    %12549 = vmatprep.subr.bf16.mxu0 0
    %12550 = vmatpush1.bf16.msra.mxu0 0
    %12551 = vmatprep.subr.bf16.mxu0 0
    %12552 = vmatpush1.bf16.msra.mxu0 0
    %12553 = vmatprep.subr.bf16.mxu0 0
    %12554 = vmatpush1.bf16.msra.mxu0 0
    %12555 = vmatprep.subr.bf16.mxu0 0
    %12556 = vmatpush1.bf16.msra.mxu0 0
    %12557 = vmatprep.mubr.bf16.mxu0 0
    %12558 = vmatmul.mubr.bf16.gmra.mrb[0].mxu0 %v12523
    %v12559 = vpop.f32.mrb[0].mxu0
    %v12560 = vadd.f32 0.0, %v12559
    %v12561 = vpop.f32.mrb[0].mxu0
    %v12562 = vadd.f32 0.0, %v12561
    %v12563 = vpop.f32.mrb[0].mxu0
    %v12564 = vpop.f32.mrb[0].mxu0
    %12565 = vdwg.mxu0
    %12566 = vmatprep.subr.bf16.mxu0 0
    %12567 = vmatpush1.bf16.msra.mxu0 %v12433
    %12568 = vmatprep.subr.bf16.mxu0 0
    %12569 = vmatpush1.bf16.msra.mxu0 0
    %12570 = vmatprep.subr.bf16.mxu0 0
    %12571 = vmatpush1.bf16.msra.mxu0 0
    %12572 = vmatprep.subr.bf16.mxu0 0
    %12573 = vmatpush1.bf16.msra.mxu0 0
    %12574 = vmatprep.subr.bf16.mxu0 0
    %12575 = vmatpush1.bf16.msra.mxu0 0
    %12576 = vmatprep.subr.bf16.mxu0 0
    %12577 = vmatpush1.bf16.msra.mxu0 0
    %12578 = vmatprep.subr.bf16.mxu0 0
    %12579 = vmatpush1.bf16.msra.mxu0 0
    %12580 = vmatprep.subr.bf16.mxu0 0
    %12581 = vmatpush1.bf16.msra.mxu0 0
    %12582 = vmatprep.subr.bf16.mxu0 0
    %12583 = vmatpush1.bf16.msra.mxu0 0
    %12584 = vmatprep.subr.bf16.mxu0 0
    %12585 = vmatpush1.bf16.msra.mxu0 0
    %12586 = vmatprep.subr.bf16.mxu0 0
    %12587 = vmatpush1.bf16.msra.mxu0 0
    %12588 = vmatprep.subr.bf16.mxu0 0
    %12589 = vmatpush1.bf16.msra.mxu0 0
    %12590 = vmatprep.subr.bf16.mxu0 0
    %12591 = vmatpush1.bf16.msra.mxu0 0
    %12592 = vmatprep.subr.bf16.mxu0 0
    %12593 = vmatpush1.bf16.msra.mxu0 0
    %12594 = vmatprep.subr.bf16.mxu0 0
    %12595 = vmatpush1.bf16.msra.mxu0 0
    %12596 = vmatprep.subr.bf16.mxu0 0
    %12597 = vmatpush1.bf16.msra.mxu0 0
    %12598 = vmatprep.mubr.bf16.mxu0 0
    %12599 = vmatmul.mubr.bf16.gmra.mrb[0].mxu0 %v12523
    %v12600 = vpop.f32.mrb[0].mxu0
    %v12601 = vadd.f32 0.0, %v12600
    %v12602 = vpop.f32.mrb[0].mxu0
    %v12603 = vpop.f32.mrb[0].mxu0
    %v12604 = vpop.f32.mrb[0].mxu0
    %12605 = vdwg.mxu0
    %v12606 = vmax.f32 %v12474, %v12560
    %v12607 = vmax.f32 %v12476, %v12562
    %v12608 = vmax.f32 %v12515, %v12601
    %v12609 = vmax.f32 %v12606, 0.0
    %v12610 = vmax.f32 %v12607, 0.0
    %v12611 = vmax.f32 %v12608, 0.0
    %v12612 = vpack.c.bf16 %v12609, %v12609
    %v12613 = vpack.c.bf16 %v12610, %v12610
    %v12614 = vpack.c.bf16 %v12611, %v12611
    %v12615 = vld [vmem:[#allocation20] sm:$0x1]
    %v12616 = vld [vmem:[#allocation19] sm:$0xf]
    %v12617 = vld [vmem:[#allocation19 + $0x4] sm:$0xf]
    %v12618 = vld [vmem:[#allocation19 + $0x8] sm:$0xf]
    %v12619 = vld [vmem:[#allocation19 + $0xc] sm:$0xf]
    %v12620 = vld [vmem:[#allocation19 + $0x10] sm:$0xf]
    %v12621 = vld [vmem:[#allocation19 + $0x14] sm:$0xf]
    %v12622 = vld [vmem:[#allocation19 + $0x18] sm:$0xf]
    %v12623 = vld [vmem:[#allocation19 + $0x1c] sm:$0xf]
    %v12624 = vld [vmem:[#allocation19 + $0x20] sm:$0xf]
    %v12625 = vld [vmem:[#allocation19 + $0x24] sm:$0xf]
    %v12626 = vld [vmem:[#allocation19 + $0x28] sm:$0xf]
    %v12627 = vld [vmem:[#allocation19 + $0x2c] sm:$0xf]
    %v12628 = vld [vmem:[#allocation19 + $0x30] sm:$0xf]
    %v12629 = vld [vmem:[#allocation19 + $0x34] sm:$0xf]
    %v12630 = vld [vmem:[#allocation19 + $0x38] sm:$0xf]
    %v12631 = vld [vmem:[#allocation19 + $0x3c] sm:$0xf]
    %v12632 = vld [vmem:[#allocation19 + $0x40] sm:$0xf]
    %v12633 = vld [vmem:[#allocation19 + $0x44] sm:$0xf]
    %v12634 = vld [vmem:[#allocation19 + $0x48] sm:$0xf]
    %v12635 = vld [vmem:[#allocation19 + $0x4c] sm:$0xf]
    %v12636 = vld [vmem:[#allocation19 + $0x50] sm:$0xf]
    %v12637 = vld [vmem:[#allocation19 + $0x54] sm:$0xf]
    %v12638 = vld [vmem:[#allocation19 + $0x58] sm:$0xf]
    %v12639 = vld [vmem:[#allocation19 + $0x5c] sm:$0xf]
    %v12640 = vld [vmem:[#allocation19 + $0x60] sm:$0xf]
    %v12641 = vld [vmem:[#allocation19 + $0x64] sm:$0xf]
    %v12642 = vld [vmem:[#allocation19 + $0x68] sm:$0xf]
    %v12643 = vld [vmem:[#allocation19 + $0x6c] sm:$0xf]
    %v12644 = vld [vmem:[#allocation19 + $0x70] sm:$0xf]
    %v12645 = vld [vmem:[#allocation19 + $0x74] sm:$0xf]
    %v12646 = vld [vmem:[#allocation19 + $0x78] sm:$0xf]
    %v12647 = vld [vmem:[#allocation19 + $0x7c] sm:$0xf]
    %v12648 = vld [vmem:[#allocation19 + $0x80] sm:$0xf]
    %v12649 = vld [vmem:[#allocation19 + $0x84] sm:$0xf]
    %v12650 = vld [vmem:[#allocation19 + $0x88] sm:$0xf]
    %v12651 = vld [vmem:[#allocation19 + $0x8c] sm:$0xf]
    %v12652 = vld [vmem:[#allocation19 + $0x90] sm:$0xf]
    %v12653 = vld [vmem:[#allocation19 + $0x94] sm:$0xf]
    %v12654 = vld [vmem:[#allocation19 + $0x98] sm:$0xf]
    %v12655 = vld [vmem:[#allocation19 + $0x9c] sm:$0xf]
    %v12656 = vld [vmem:[#allocation19 + $0xa0] sm:$0xf]
    %v12657 = vld [vmem:[#allocation19 + $0xa4] sm:$0xf]
    %v12658 = vld [vmem:[#allocation19 + $0xa8] sm:$0xf]
    %v12659 = vld [vmem:[#allocation19 + $0xac] sm:$0xf]
    %v12660 = vld [vmem:[#allocation19 + $0xb0] sm:$0xf]
    %v12661 = vld [vmem:[#allocation19 + $0xb4] sm:$0xf]
    %v12662 = vld [vmem:[#allocation19 + $0xb8] sm:$0xf]
    %v12663 = vld [vmem:[#allocation19 + $0xbc] sm:$0xf]
    %v12712 = vunpack.c.l.b16 %v12616
    %v12713 = vunpack.c.l.b16 %v12617
    %v12714 = vunpack.c.l.b16 %v12618
    %v12715 = vunpack.c.l.b16 %v12619
    %v12716 = vunpack.c.l.b16 %v12620
    %v12717 = vunpack.c.l.b16 %v12621
    %v12718 = vunpack.c.l.b16 %v12622
    %v12719 = vunpack.c.l.b16 %v12623
    %v12720 = vunpack.c.l.b16 %v12624
    %v12721 = vunpack.c.l.b16 %v12625
    %v12722 = vunpack.c.l.b16 %v12626
    %v12723 = vunpack.c.l.b16 %v12627
    %v12724 = vunpack.c.l.b16 %v12628
    %v12725 = vunpack.c.l.b16 %v12629
    %v12726 = vunpack.c.l.b16 %v12630
    %v12727 = vunpack.c.l.b16 %v12631
    %v12728 = vunpack.c.l.b16 %v12632
    %v12729 = vunpack.c.l.b16 %v12633
    %v12730 = vunpack.c.l.b16 %v12634
    %v12731 = vunpack.c.l.b16 %v12635
    %v12732 = vunpack.c.l.b16 %v12636
    %v12733 = vunpack.c.l.b16 %v12637
    %v12734 = vunpack.c.l.b16 %v12638
    %v12735 = vunpack.c.l.b16 %v12639
    %v12736 = vunpack.c.l.b16 %v12640
    %v12737 = vunpack.c.l.b16 %v12641
    %v12738 = vunpack.c.l.b16 %v12642
    %v12739 = vunpack.c.l.b16 %v12643
    %v12740 = vunpack.c.l.b16 %v12644
    %v12741 = vunpack.c.l.b16 %v12645
    %v12742 = vunpack.c.l.b16 %v12646
    %v12743 = vunpack.c.l.b16 %v12647
    %v12744 = vunpack.c.l.b16 %v12648
    %v12745 = vunpack.c.l.b16 %v12649
    %v12746 = vunpack.c.l.b16 %v12650
    %v12747 = vunpack.c.l.b16 %v12651
    %v12748 = vunpack.c.l.b16 %v12652
    %v12749 = vunpack.c.l.b16 %v12653
    %v12750 = vunpack.c.l.b16 %v12654
    %v12751 = vunpack.c.l.b16 %v12655
    %v12752 = vunpack.c.l.b16 %v12656
    %v12753 = vunpack.c.l.b16 %v12657
    %v12754 = vunpack.c.l.b16 %v12658
    %v12755 = vunpack.c.l.b16 %v12659
    %v12756 = vunpack.c.l.b16 %v12660
    %v12757 = vunpack.c.l.b16 %v12661
    %v12758 = vunpack.c.l.b16 %v12662
    %v12759 = vunpack.c.l.b16 %v12663
    %v12760 = vpack.c.b16 %v12713, %v12712
    %v12761 = vpack.c.b16 %v12715, %v12714
    %v12762 = vpack.c.b16 %v12717, %v12716
    %v12763 = vpack.c.b16 %v12719, %v12718
    %v12764 = vpack.c.b16 %v12721, %v12720
    %v12765 = vpack.c.b16 %v12723, %v12722
    %v12766 = vpack.c.b16 %v12725, %v12724
    %v12767 = vpack.c.b16 %v12727, %v12726
    %v12768 = vpack.c.b16 %v12729, %v12728
    %v12769 = vpack.c.b16 %v12731, %v12730
    %v12770 = vpack.c.b16 %v12733, %v12732
    %v12771 = vpack.c.b16 %v12735, %v12734
    %v12772 = vpack.c.b16 %v12737, %v12736
    %v12773 = vpack.c.b16 %v12739, %v12738
    %v12774 = vpack.c.b16 %v12741, %v12740
    %v12775 = vpack.c.b16 %v12743, %v12742
    %v12776 = vpack.c.b16 %v12745, %v12744
    %v12777 = vpack.c.b16 %v12747, %v12746
    %v12778 = vpack.c.b16 %v12749, %v12748
    %v12779 = vpack.c.b16 %v12751, %v12750
    %v12780 = vpack.c.b16 %v12753, %v12752
    %v12781 = vpack.c.b16 %v12755, %v12754
    %v12782 = vpack.c.b16 %v12757, %v12756
    %v12783 = vpack.c.b16 %v12759, %v12758
    %12808 = vmatprep.subr.bf16.mxu0 0
    %12809 = vmatpush1.bf16.msra.mxu0 %v12760
    %12810 = vmatprep.subr.bf16.mxu0 0
    %12811 = vmatpush1.bf16.msra.mxu0 %v12761
    %12812 = vmatprep.subr.bf16.mxu0 0
    %12813 = vmatpush1.bf16.msra.mxu0 %v12762
    %12814 = vmatprep.subr.bf16.mxu0 0
    %12815 = vmatpush1.bf16.msra.mxu0 %v12763
    %12816 = vmatprep.subr.bf16.mxu0 0
    %12817 = vmatpush1.bf16.msra.mxu0 %v12764
    %12818 = vmatprep.subr.bf16.mxu0 0
    %12819 = vmatpush1.bf16.msra.mxu0 %v12765
    %12820 = vmatprep.subr.bf16.mxu0 0
    %12821 = vmatpush1.bf16.msra.mxu0 %v12766
    %12822 = vmatprep.subr.bf16.mxu0 0
    %12823 = vmatpush1.bf16.msra.mxu0 %v12767
    %12824 = vmatprep.subr.bf16.mxu0 0
    %12825 = vmatpush1.bf16.msra.mxu0 %v12768
    %12826 = vmatprep.subr.bf16.mxu0 0
    %12827 = vmatpush1.bf16.msra.mxu0 %v12769
    %12828 = vmatprep.subr.bf16.mxu0 0
    %12829 = vmatpush1.bf16.msra.mxu0 %v12770
    %12830 = vmatprep.subr.bf16.mxu0 0
    %12831 = vmatpush1.bf16.msra.mxu0 %v12771
    %12832 = vmatprep.subr.bf16.mxu0 0
    %12833 = vmatpush1.bf16.msra.mxu0 %v12772
    %12834 = vmatprep.subr.bf16.mxu0 0
    %12835 = vmatpush1.bf16.msra.mxu0 %v12773
    %12836 = vmatprep.subr.bf16.mxu0 0
    %12837 = vmatpush1.bf16.msra.mxu0 %v12774
    %12838 = vmatprep.subr.bf16.mxu0 0
    %12839 = vmatpush1.bf16.msra.mxu0 %v12775
    %12840 = vmatprep.mubr.bf16.mxu0 %v12613
    %12841 = vmatmul.mubr.bf16.gmra.mrb[0].mxu0 %v12612
    %v12842 = vpop.f32.mrb[0].mxu0
    %v12843 = vadd.f32 0.0, %v12842
    %v12844 = vpop.f32.mrb[0].mxu0
    %v12845 = vpop.f32.mrb[0].mxu0
    %v12846 = vpop.f32.mrb[0].mxu0
    %12847 = vdwg.mxu0
    %12848 = vmatprep.subr.bf16.mxu0 0
    %12849 = vmatpush1.bf16.msra.mxu0 %v12776
    %12850 = vmatprep.subr.bf16.mxu0 0
    %12851 = vmatpush1.bf16.msra.mxu0 %v12777
    %12852 = vmatprep.subr.bf16.mxu0 0
    %12853 = vmatpush1.bf16.msra.mxu0 %v12778
    %12854 = vmatprep.subr.bf16.mxu0 0
    %12855 = vmatpush1.bf16.msra.mxu0 %v12779
    %12856 = vmatprep.subr.bf16.mxu0 0
    %12857 = vmatpush1.bf16.msra.mxu0 %v12780
    %12858 = vmatprep.subr.bf16.mxu0 0
    %12859 = vmatpush1.bf16.msra.mxu0 %v12781
    %12860 = vmatprep.subr.bf16.mxu0 0
    %12861 = vmatpush1.bf16.msra.mxu0 %v12782
    %12862 = vmatprep.subr.bf16.mxu0 0
    %12863 = vmatpush1.bf16.msra.mxu0 %v12783
    %12864 = vmatprep.subr.bf16.mxu0 0
    %12865 = vmatpush1.bf16.msra.mxu0 0
    %12866 = vmatprep.subr.bf16.mxu0 0
    %12867 = vmatpush1.bf16.msra.mxu0 0
    %12868 = vmatprep.subr.bf16.mxu0 0
    %12869 = vmatpush1.bf16.msra.mxu0 0
    %12870 = vmatprep.subr.bf16.mxu0 0
    %12871 = vmatpush1.bf16.msra.mxu0 0
    %12872 = vmatprep.subr.bf16.mxu0 0
    %12873 = vmatpush1.bf16.msra.mxu0 0
    %12874 = vmatprep.subr.bf16.mxu0 0
    %12875 = vmatpush1.bf16.msra.mxu0 0
    %12876 = vmatprep.subr.bf16.mxu0 0
    %12877 = vmatpush1.bf16.msra.mxu0 0
    %12878 = vmatprep.subr.bf16.mxu0 0
    %12879 = vmatpush1.bf16.msra.mxu0 0
    %12880 = vmatprep.mubr.bf16.mxu0 0
    %12881 = vmatmul.mubr.bf16.gmra.mrb[0].mxu0 %v12614
    %v12882 = vpop.f32.mrb[0].mxu0
    %v12883 = vadd.f32 %v12843, %v12882
    %v12884 = vpop.f32.mrb[0].mxu0
    %v12885 = vpop.f32.mrb[0].mxu0
    %v12886 = vpop.f32.mrb[0].mxu0
    %12887 = vdwg.mxu0
    %v12889 = vlaneseq
    %v12890 = vshrl.u32 %v12889, 7
    %v12891 = vsub.s32 0, %v12890
    %v12892 = vrot.slane %v12615, %v12891
    %v12894 = vadd.f32 %v12892, %v12883
    %s12895 = scalar_lea.vmem [#allocation19], 192
    %v12896 = vld [vmem:[%s12895] sm:$0xf]
    %v12897 = vld [vmem:[%s12895 + $0x4] sm:$0xf]
    %v12898 = vld [vmem:[%s12895 + $0x8] sm:$0xf]
    %v12899 = vld [vmem:[%s12895 + $0xc] sm:$0xf]
    %v12900 = vld [vmem:[%s12895 + $0x10] sm:$0xf]
    %v12901 = vld [vmem:[%s12895 + $0x14] sm:$0xf]
    %v12902 = vld [vmem:[%s12895 + $0x18] sm:$0xf]
    %v12903 = vld [vmem:[%s12895 + $0x1c] sm:$0xf]
    %v12904 = vld [vmem:[%s12895 + $0x20] sm:$0xf]
    %v12905 = vld [vmem:[%s12895 + $0x24] sm:$0xf]
    %v12906 = vld [vmem:[%s12895 + $0x28] sm:$0xf]
    %v12907 = vld [vmem:[%s12895 + $0x2c] sm:$0xf]
    %v12908 = vld [vmem:[%s12895 + $0x30] sm:$0xf]
    %v12909 = vld [vmem:[%s12895 + $0x34] sm:$0xf]
    %v12910 = vld [vmem:[%s12895 + $0x38] sm:$0xf]
    %v12911 = vld [vmem:[%s12895 + $0x3c] sm:$0xf]
    %v12912 = vld [vmem:[%s12895 + $0x40] sm:$0xf]
    %v12913 = vld [vmem:[%s12895 + $0x44] sm:$0xf]
    %v12914 = vld [vmem:[%s12895 + $0x48] sm:$0xf]
    %v12915 = vld [vmem:[%s12895 + $0x4c] sm:$0xf]
    %v12916 = vld [vmem:[%s12895 + $0x50] sm:$0xf]
    %v12917 = vld [vmem:[%s12895 + $0x54] sm:$0xf]
    %v12918 = vld [vmem:[%s12895 + $0x58] sm:$0xf]
    %v12919 = vld [vmem:[%s12895 + $0x5c] sm:$0xf]
    %v12920 = vld [vmem:[%s12895 + $0x60] sm:$0xf]
    %v12921 = vld [vmem:[%s12895 + $0x64] sm:$0xf]
    %v12922 = vld [vmem:[%s12895 + $0x68] sm:$0xf]
    %v12923 = vld [vmem:[%s12895 + $0x6c] sm:$0xf]
    %v12924 = vld [vmem:[%s12895 + $0x70] sm:$0xf]
    %v12925 = vld [vmem:[%s12895 + $0x74] sm:$0xf]
    %v12926 = vld [vmem:[%s12895 + $0x78] sm:$0xf]
    %v12927 = vld [vmem:[%s12895 + $0x7c] sm:$0xf]
    %v12928 = vld [vmem:[%s12895 + $0x80] sm:$0xf]
    %v12929 = vld [vmem:[%s12895 + $0x84] sm:$0xf]
    %v12930 = vld [vmem:[%s12895 + $0x88] sm:$0xf]
    %v12931 = vld [vmem:[%s12895 + $0x8c] sm:$0xf]
    %v12932 = vld [vmem:[%s12895 + $0x90] sm:$0xf]
    %v12933 = vld [vmem:[%s12895 + $0x94] sm:$0xf]
    %v12934 = vld [vmem:[%s12895 + $0x98] sm:$0xf]
    %v12935 = vld [vmem:[%s12895 + $0x9c] sm:$0xf]
    %v12936 = vld [vmem:[%s12895 + $0xa0] sm:$0xf]
    %v12937 = vld [vmem:[%s12895 + $0xa4] sm:$0xf]
    %v12938 = vld [vmem:[%s12895 + $0xa8] sm:$0xf]
    %v12939 = vld [vmem:[%s12895 + $0xac] sm:$0xf]
    %v12940 = vld [vmem:[%s12895 + $0xb0] sm:$0xf]
    %v12941 = vld [vmem:[%s12895 + $0xb4] sm:$0xf]
    %v12942 = vld [vmem:[%s12895 + $0xb8] sm:$0xf]
    %v12943 = vld [vmem:[%s12895 + $0xbc] sm:$0xf]
    %v12947 = vrot.slane %v12612, 1
    %v12948 = vrot.slane %v12613, 1
    %v12949 = vrot.slane %v12614, 1
    %v13001 = vunpack.c.l.b16 %v12896
    %v13002 = vunpack.c.l.b16 %v12897
    %v13003 = vunpack.c.l.b16 %v12898
    %v13004 = vunpack.c.l.b16 %v12899
    %v13005 = vunpack.c.l.b16 %v12900
    %v13006 = vunpack.c.l.b16 %v12901
    %v13007 = vunpack.c.l.b16 %v12902
    %v13008 = vunpack.c.l.b16 %v12903
    %v13009 = vunpack.c.l.b16 %v12904
    %v13010 = vunpack.c.l.b16 %v12905
    %v13011 = vunpack.c.l.b16 %v12906
    %v13012 = vunpack.c.l.b16 %v12907
    %v13013 = vunpack.c.l.b16 %v12908
    %v13014 = vunpack.c.l.b16 %v12909
    %v13015 = vunpack.c.l.b16 %v12910
    %v13016 = vunpack.c.l.b16 %v12911
    %v13017 = vunpack.c.l.b16 %v12912
    %v13018 = vunpack.c.l.b16 %v12913
    %v13019 = vunpack.c.l.b16 %v12914
    %v13020 = vunpack.c.l.b16 %v12915
    %v13021 = vunpack.c.l.b16 %v12916
    %v13022 = vunpack.c.l.b16 %v12917
    %v13023 = vunpack.c.l.b16 %v12918
    %v13024 = vunpack.c.l.b16 %v12919
    %v13025 = vunpack.c.l.b16 %v12920
    %v13026 = vunpack.c.l.b16 %v12921
    %v13027 = vunpack.c.l.b16 %v12922
    %v13028 = vunpack.c.l.b16 %v12923
    %v13029 = vunpack.c.l.b16 %v12924
    %v13030 = vunpack.c.l.b16 %v12925
    %v13031 = vunpack.c.l.b16 %v12926
    %v13032 = vunpack.c.l.b16 %v12927
    %v13033 = vunpack.c.l.b16 %v12928
    %v13034 = vunpack.c.l.b16 %v12929
    %v13035 = vunpack.c.l.b16 %v12930
    %v13036 = vunpack.c.l.b16 %v12931
    %v13037 = vunpack.c.l.b16 %v12932
    %v13038 = vunpack.c.l.b16 %v12933
    %v13039 = vunpack.c.l.b16 %v12934
    %v13040 = vunpack.c.l.b16 %v12935
    %v13041 = vunpack.c.l.b16 %v12936
    %v13042 = vunpack.c.l.b16 %v12937
    %v13043 = vunpack.c.l.b16 %v12938
    %v13044 = vunpack.c.l.b16 %v12939
    %v13045 = vunpack.c.l.b16 %v12940
    %v13046 = vunpack.c.l.b16 %v12941
    %v13047 = vunpack.c.l.b16 %v12942
    %v13048 = vunpack.c.l.b16 %v12943
    %v13049 = vpack.c.b16 %v13002, %v13001
    %v13050 = vpack.c.b16 %v13004, %v13003
    %v13051 = vpack.c.b16 %v13006, %v13005
    %v13052 = vpack.c.b16 %v13008, %v13007
    %v13053 = vpack.c.b16 %v13010, %v13009
    %v13054 = vpack.c.b16 %v13012, %v13011
    %v13055 = vpack.c.b16 %v13014, %v13013
    %v13056 = vpack.c.b16 %v13016, %v13015
    %v13057 = vpack.c.b16 %v13018, %v13017
    %v13058 = vpack.c.b16 %v13020, %v13019
    %v13059 = vpack.c.b16 %v13022, %v13021
    %v13060 = vpack.c.b16 %v13024, %v13023
    %v13061 = vpack.c.b16 %v13026, %v13025
    %v13062 = vpack.c.b16 %v13028, %v13027
    %v13063 = vpack.c.b16 %v13030, %v13029
    %v13064 = vpack.c.b16 %v13032, %v13031
    %v13065 = vpack.c.b16 %v13034, %v13033
    %v13066 = vpack.c.b16 %v13036, %v13035
    %v13067 = vpack.c.b16 %v13038, %v13037
    %v13068 = vpack.c.b16 %v13040, %v13039
    %v13069 = vpack.c.b16 %v13042, %v13041
    %v13070 = vpack.c.b16 %v13044, %v13043
    %v13071 = vpack.c.b16 %v13046, %v13045
    %v13072 = vpack.c.b16 %v13048, %v13047
    %13097 = vmatprep.subr.bf16.mxu0 0
    %13098 = vmatpush1.bf16.msra.mxu0 %v13049
    %13099 = vmatprep.subr.bf16.mxu0 0
    %13100 = vmatpush1.bf16.msra.mxu0 %v13050
    %13101 = vmatprep.subr.bf16.mxu0 0
    %13102 = vmatpush1.bf16.msra.mxu0 %v13051
    %13103 = vmatprep.subr.bf16.mxu0 0
    %13104 = vmatpush1.bf16.msra.mxu0 %v13052
    %13105 = vmatprep.subr.bf16.mxu0 0
    %13106 = vmatpush1.bf16.msra.mxu0 %v13053
    %13107 = vmatprep.subr.bf16.mxu0 0
    %13108 = vmatpush1.bf16.msra.mxu0 %v13054
    %13109 = vmatprep.subr.bf16.mxu0 0
    %13110 = vmatpush1.bf16.msra.mxu0 %v13055
    %13111 = vmatprep.subr.bf16.mxu0 0
    %13112 = vmatpush1.bf16.msra.mxu0 %v13056
    %13113 = vmatprep.subr.bf16.mxu0 0
    %13114 = vmatpush1.bf16.msra.mxu0 %v13057
    %13115 = vmatprep.subr.bf16.mxu0 0
    %13116 = vmatpush1.bf16.msra.mxu0 %v13058
    %13117 = vmatprep.subr.bf16.mxu0 0
    %13118 = vmatpush1.bf16.msra.mxu0 %v13059
    %13119 = vmatprep.subr.bf16.mxu0 0
    %13120 = vmatpush1.bf16.msra.mxu0 %v13060
    %13121 = vmatprep.subr.bf16.mxu0 0
    %13122 = vmatpush1.bf16.msra.mxu0 %v13061
    %13123 = vmatprep.subr.bf16.mxu0 0
    %13124 = vmatpush1.bf16.msra.mxu0 %v13062
    %13125 = vmatprep.subr.bf16.mxu0 0
    %13126 = vmatpush1.bf16.msra.mxu0 %v13063
    %13127 = vmatprep.subr.bf16.mxu0 0
    %13128 = vmatpush1.bf16.msra.mxu0 %v13064
    %13129 = vmatprep.mubr.bf16.mxu0 %v12948
    %13130 = vmatmul.mubr.bf16.gmra.mrb[0].mxu0 %v12947
    %v13131 = vpop.f32.mrb[0].mxu0
    %v13132 = vadd.f32 0.0, %v13131
    %v13133 = vpop.f32.mrb[0].mxu0
    %v13134 = vpop.f32.mrb[0].mxu0
    %v13135 = vpop.f32.mrb[0].mxu0
    %13136 = vdwg.mxu0
    %13137 = vmatprep.subr.bf16.mxu0 0
    %13138 = vmatpush1.bf16.msra.mxu0 %v13065
    %13139 = vmatprep.subr.bf16.mxu0 0
    %13140 = vmatpush1.bf16.msra.mxu0 %v13066
    %13141 = vmatprep.subr.bf16.mxu0 0
    %13142 = vmatpush1.bf16.msra.mxu0 %v13067
    %13143 = vmatprep.subr.bf16.mxu0 0
    %13144 = vmatpush1.bf16.msra.mxu0 %v13068
    %13145 = vmatprep.subr.bf16.mxu0 0
    %13146 = vmatpush1.bf16.msra.mxu0 %v13069
    %13147 = vmatprep.subr.bf16.mxu0 0
    %13148 = vmatpush1.bf16.msra.mxu0 %v13070
    %13149 = vmatprep.subr.bf16.mxu0 0
    %13150 = vmatpush1.bf16.msra.mxu0 %v13071
    %13151 = vmatprep.subr.bf16.mxu0 0
    %13152 = vmatpush1.bf16.msra.mxu0 %v13072
    %13153 = vmatprep.subr.bf16.mxu0 0
    %13154 = vmatpush1.bf16.msra.mxu0 0
    %13155 = vmatprep.subr.bf16.mxu0 0
    %13156 = vmatpush1.bf16.msra.mxu0 0
    %13157 = vmatprep.subr.bf16.mxu0 0
    %13158 = vmatpush1.bf16.msra.mxu0 0
    %13159 = vmatprep.subr.bf16.mxu0 0
    %13160 = vmatpush1.bf16.msra.mxu0 0
    %13161 = vmatprep.subr.bf16.mxu0 0
    %13162 = vmatpush1.bf16.msra.mxu0 0
    %13163 = vmatprep.subr.bf16.mxu0 0
    %13164 = vmatpush1.bf16.msra.mxu0 0
    %13165 = vmatprep.subr.bf16.mxu0 0
    %13166 = vmatpush1.bf16.msra.mxu0 0
    %13167 = vmatprep.subr.bf16.mxu0 0
    %13168 = vmatpush1.bf16.msra.mxu0 0
    %13169 = vmatprep.mubr.bf16.mxu0 0
    %13170 = vmatmul.mubr.bf16.gmra.mrb[0].mxu0 %v12949
    %v13171 = vpop.f32.mrb[0].mxu0
    %v13172 = vadd.f32 %v13132, %v13171
    %v13173 = vpop.f32.mrb[0].mxu0
    %v13174 = vpop.f32.mrb[0].mxu0
    %v13175 = vpop.f32.mrb[0].mxu0
    %13176 = vdwg.mxu0
    %v13177 = vadd.f32 %v12894, %v13172
    %s13178 = scalar_lea.vmem [#allocation19], 384
    %v13179 = vld [vmem:[%s13178] sm:$0xf]
    %v13180 = vld [vmem:[%s13178 + $0x4] sm:$0xf]
    %v13181 = vld [vmem:[%s13178 + $0x8] sm:$0xf]
    %v13182 = vld [vmem:[%s13178 + $0xc] sm:$0xf]
    %v13183 = vld [vmem:[%s13178 + $0x10] sm:$0xf]
    %v13184 = vld [vmem:[%s13178 + $0x14] sm:$0xf]
    %v13185 = vld [vmem:[%s13178 + $0x18] sm:$0xf]
    %v13186 = vld [vmem:[%s13178 + $0x1c] sm:$0xf]
    %v13187 = vld [vmem:[%s13178 + $0x20] sm:$0xf]
    %v13188 = vld [vmem:[%s13178 + $0x24] sm:$0xf]
    %v13189 = vld [vmem:[%s13178 + $0x28] sm:$0xf]
    %v13190 = vld [vmem:[%s13178 + $0x2c] sm:$0xf]
    %v13191 = vld [vmem:[%s13178 + $0x30] sm:$0xf]
    %v13192 = vld [vmem:[%s13178 + $0x34] sm:$0xf]
    %v13193 = vld [vmem:[%s13178 + $0x38] sm:$0xf]
    %v13194 = vld [vmem:[%s13178 + $0x3c] sm:$0xf]
    %v13195 = vld [vmem:[%s13178 + $0x40] sm:$0xf]
    %v13196 = vld [vmem:[%s13178 + $0x44] sm:$0xf]
    %v13197 = vld [vmem:[%s13178 + $0x48] sm:$0xf]
    %v13198 = vld [vmem:[%s13178 + $0x4c] sm:$0xf]
    %v13199 = vld [vmem:[%s13178 + $0x50] sm:$0xf]
    %v13200 = vld [vmem:[%s13178 + $0x54] sm:$0xf]
    %v13201 = vld [vmem:[%s13178 + $0x58] sm:$0xf]
    %v13202 = vld [vmem:[%s13178 + $0x5c] sm:$0xf]
    %v13203 = vld [vmem:[%s13178 + $0x60] sm:$0xf]
    %v13204 = vld [vmem:[%s13178 + $0x64] sm:$0xf]
    %v13205 = vld [vmem:[%s13178 + $0x68] sm:$0xf]
    %v13206 = vld [vmem:[%s13178 + $0x6c] sm:$0xf]
    %v13207 = vld [vmem:[%s13178 + $0x70] sm:$0xf]
    %v13208 = vld [vmem:[%s13178 + $0x74] sm:$0xf]
    %v13209 = vld [vmem:[%s13178 + $0x78] sm:$0xf]
    %v13210 = vld [vmem:[%s13178 + $0x7c] sm:$0xf]
    %v13211 = vld [vmem:[%s13178 + $0x80] sm:$0xf]
    %v13212 = vld [vmem:[%s13178 + $0x84] sm:$0xf]
    %v13213 = vld [vmem:[%s13178 + $0x88] sm:$0xf]
    %v13214 = vld [vmem:[%s13178 + $0x8c] sm:$0xf]
    %v13215 = vld [vmem:[%s13178 + $0x90] sm:$0xf]
    %v13216 = vld [vmem:[%s13178 + $0x94] sm:$0xf]
    %v13217 = vld [vmem:[%s13178 + $0x98] sm:$0xf]
    %v13218 = vld [vmem:[%s13178 + $0x9c] sm:$0xf]
    %v13219 = vld [vmem:[%s13178 + $0xa0] sm:$0xf]
    %v13220 = vld [vmem:[%s13178 + $0xa4] sm:$0xf]
    %v13221 = vld [vmem:[%s13178 + $0xa8] sm:$0xf]
    %v13222 = vld [vmem:[%s13178 + $0xac] sm:$0xf]
    %v13223 = vld [vmem:[%s13178 + $0xb0] sm:$0xf]
    %v13224 = vld [vmem:[%s13178 + $0xb4] sm:$0xf]
    %v13225 = vld [vmem:[%s13178 + $0xb8] sm:$0xf]
    %v13226 = vld [vmem:[%s13178 + $0xbc] sm:$0xf]
    %v13227 = vrot.slane %v12612, 2
    %v13228 = vrot.slane %v12613, 2
    %v13229 = vrot.slane %v12614, 2
    %v13281 = vunpack.c.l.b16 %v13179
    %v13282 = vunpack.c.l.b16 %v13180
    %v13283 = vunpack.c.l.b16 %v13181
    %v13284 = vunpack.c.l.b16 %v13182
    %v13285 = vunpack.c.l.b16 %v13183
    %v13286 = vunpack.c.l.b16 %v13184
    %v13287 = vunpack.c.l.b16 %v13185
    %v13288 = vunpack.c.l.b16 %v13186
    %v13289 = vunpack.c.l.b16 %v13187
    %v13290 = vunpack.c.l.b16 %v13188
    %v13291 = vunpack.c.l.b16 %v13189
    %v13292 = vunpack.c.l.b16 %v13190
    %v13293 = vunpack.c.l.b16 %v13191
    %v13294 = vunpack.c.l.b16 %v13192
    %v13295 = vunpack.c.l.b16 %v13193
    %v13296 = vunpack.c.l.b16 %v13194
    %v13297 = vunpack.c.l.b16 %v13195
    %v13298 = vunpack.c.l.b16 %v13196
    %v13299 = vunpack.c.l.b16 %v13197
    %v13300 = vunpack.c.l.b16 %v13198
    %v13301 = vunpack.c.l.b16 %v13199
    %v13302 = vunpack.c.l.b16 %v13200
    %v13303 = vunpack.c.l.b16 %v13201
    %v13304 = vunpack.c.l.b16 %v13202
    %v13305 = vunpack.c.l.b16 %v13203
    %v13306 = vunpack.c.l.b16 %v13204
    %v13307 = vunpack.c.l.b16 %v13205
    %v13308 = vunpack.c.l.b16 %v13206
    %v13309 = vunpack.c.l.b16 %v13207
    %v13310 = vunpack.c.l.b16 %v13208
    %v13311 = vunpack.c.l.b16 %v13209
    %v13312 = vunpack.c.l.b16 %v13210
    %v13313 = vunpack.c.l.b16 %v13211
    %v13314 = vunpack.c.l.b16 %v13212
    %v13315 = vunpack.c.l.b16 %v13213
    %v13316 = vunpack.c.l.b16 %v13214
    %v13317 = vunpack.c.l.b16 %v13215
    %v13318 = vunpack.c.l.b16 %v13216
    %v13319 = vunpack.c.l.b16 %v13217
    %v13320 = vunpack.c.l.b16 %v13218
    %v13321 = vunpack.c.l.b16 %v13219
    %v13322 = vunpack.c.l.b16 %v13220
    %v13323 = vunpack.c.l.b16 %v13221
    %v13324 = vunpack.c.l.b16 %v13222
    %v13325 = vunpack.c.l.b16 %v13223
    %v13326 = vunpack.c.l.b16 %v13224
    %v13327 = vunpack.c.l.b16 %v13225
    %v13328 = vunpack.c.l.b16 %v13226
    %v13329 = vpack.c.b16 %v13282, %v13281
    %v13330 = vpack.c.b16 %v13284, %v13283
    %v13331 = vpack.c.b16 %v13286, %v13285
    %v13332 = vpack.c.b16 %v13288, %v13287
    %v13333 = vpack.c.b16 %v13290, %v13289
    %v13334 = vpack.c.b16 %v13292, %v13291
    %v13335 = vpack.c.b16 %v13294, %v13293
    %v13336 = vpack.c.b16 %v13296, %v13295
    %v13337 = vpack.c.b16 %v13298, %v13297
    %v13338 = vpack.c.b16 %v13300, %v13299
    %v13339 = vpack.c.b16 %v13302, %v13301
    %v13340 = vpack.c.b16 %v13304, %v13303
    %v13341 = vpack.c.b16 %v13306, %v13305
    %v13342 = vpack.c.b16 %v13308, %v13307
    %v13343 = vpack.c.b16 %v13310, %v13309
    %v13344 = vpack.c.b16 %v13312, %v13311
    %v13345 = vpack.c.b16 %v13314, %v13313
    %v13346 = vpack.c.b16 %v13316, %v13315
    %v13347 = vpack.c.b16 %v13318, %v13317
    %v13348 = vpack.c.b16 %v13320, %v13319
    %v13349 = vpack.c.b16 %v13322, %v13321
    %v13350 = vpack.c.b16 %v13324, %v13323
    %v13351 = vpack.c.b16 %v13326, %v13325
    %v13352 = vpack.c.b16 %v13328, %v13327
    %13377 = vmatprep.subr.bf16.mxu0 0
    %13378 = vmatpush1.bf16.msra.mxu0 %v13329
    %13379 = vmatprep.subr.bf16.mxu0 0
    %13380 = vmatpush1.bf16.msra.mxu0 %v13330
    %13381 = vmatprep.subr.bf16.mxu0 0
    %13382 = vmatpush1.bf16.msra.mxu0 %v13331
    %13383 = vmatprep.subr.bf16.mxu0 0
    %13384 = vmatpush1.bf16.msra.mxu0 %v13332
    %13385 = vmatprep.subr.bf16.mxu0 0
    %13386 = vmatpush1.bf16.msra.mxu0 %v13333
    %13387 = vmatprep.subr.bf16.mxu0 0
    %13388 = vmatpush1.bf16.msra.mxu0 %v13334
    %13389 = vmatprep.subr.bf16.mxu0 0
    %13390 = vmatpush1.bf16.msra.mxu0 %v13335
    %13391 = vmatprep.subr.bf16.mxu0 0
    %13392 = vmatpush1.bf16.msra.mxu0 %v13336
    %13393 = vmatprep.subr.bf16.mxu0 0
    %13394 = vmatpush1.bf16.msra.mxu0 %v13337
    %13395 = vmatprep.subr.bf16.mxu0 0
    %13396 = vmatpush1.bf16.msra.mxu0 %v13338
    %13397 = vmatprep.subr.bf16.mxu0 0
    %13398 = vmatpush1.bf16.msra.mxu0 %v13339
    %13399 = vmatprep.subr.bf16.mxu0 0
    %13400 = vmatpush1.bf16.msra.mxu0 %v13340
    %13401 = vmatprep.subr.bf16.mxu0 0
    %13402 = vmatpush1.bf16.msra.mxu0 %v13341
    %13403 = vmatprep.subr.bf16.mxu0 0
    %13404 = vmatpush1.bf16.msra.mxu0 %v13342
    %13405 = vmatprep.subr.bf16.mxu0 0
    %13406 = vmatpush1.bf16.msra.mxu0 %v13343
    %13407 = vmatprep.subr.bf16.mxu0 0
    %13408 = vmatpush1.bf16.msra.mxu0 %v13344
    %13409 = vmatprep.mubr.bf16.mxu0 %v13228
    %13410 = vmatmul.mubr.bf16.gmra.mrb[0].mxu0 %v13227
    %v13411 = vpop.f32.mrb[0].mxu0
    %v13412 = vadd.f32 0.0, %v13411
    %v13413 = vpop.f32.mrb[0].mxu0
    %v13414 = vpop.f32.mrb[0].mxu0
    %v13415 = vpop.f32.mrb[0].mxu0
    %13416 = vdwg.mxu0
    %13417 = vmatprep.subr.bf16.mxu0 0
    %13418 = vmatpush1.bf16.msra.mxu0 %v13345
    %13419 = vmatprep.subr.bf16.mxu0 0
    %13420 = vmatpush1.bf16.msra.mxu0 %v13346
    %13421 = vmatprep.subr.bf16.mxu0 0
    %13422 = vmatpush1.bf16.msra.mxu0 %v13347
    %13423 = vmatprep.subr.bf16.mxu0 0
    %13424 = vmatpush1.bf16.msra.mxu0 %v13348
    %13425 = vmatprep.subr.bf16.mxu0 0
    %13426 = vmatpush1.bf16.msra.mxu0 %v13349
    %13427 = vmatprep.subr.bf16.mxu0 0
    %13428 = vmatpush1.bf16.msra.mxu0 %v13350
    %13429 = vmatprep.subr.bf16.mxu0 0
    %13430 = vmatpush1.bf16.msra.mxu0 %v13351
    %13431 = vmatprep.subr.bf16.mxu0 0
    %13432 = vmatpush1.bf16.msra.mxu0 %v13352
    %13433 = vmatprep.subr.bf16.mxu0 0
    %13434 = vmatpush1.bf16.msra.mxu0 0
    %13435 = vmatprep.subr.bf16.mxu0 0
    %13436 = vmatpush1.bf16.msra.mxu0 0
    %13437 = vmatprep.subr.bf16.mxu0 0
    %13438 = vmatpush1.bf16.msra.mxu0 0
    %13439 = vmatprep.subr.bf16.mxu0 0
    %13440 = vmatpush1.bf16.msra.mxu0 0
    %13441 = vmatprep.subr.bf16.mxu0 0
    %13442 = vmatpush1.bf16.msra.mxu0 0
    %13443 = vmatprep.subr.bf16.mxu0 0
    %13444 = vmatpush1.bf16.msra.mxu0 0
    %13445 = vmatprep.subr.bf16.mxu0 0
    %13446 = vmatpush1.bf16.msra.mxu0 0
    %13447 = vmatprep.subr.bf16.mxu0 0
    %13448 = vmatpush1.bf16.msra.mxu0 0
    %13449 = vmatprep.mubr.bf16.mxu0 0
    %13450 = vmatmul.mubr.bf16.gmra.mrb[0].mxu0 %v13229
    %v13451 = vpop.f32.mrb[0].mxu0
    %v13452 = vadd.f32 %v13412, %v13451
    %v13453 = vpop.f32.mrb[0].mxu0
    %v13454 = vpop.f32.mrb[0].mxu0
    %v13455 = vpop.f32.mrb[0].mxu0
    %13456 = vdwg.mxu0
    %v13457 = vadd.f32 %v13177, %v13452
    %v13458 = vpack.c.bf16 %v13457, %v13457
    %v13459 = vld [vmem:[%s12] sm:$0xf]
    %v13460 = vld [vmem:[%s12 + $0x4] sm:$0xf]
    %v13461 = vld [vmem:[%s12 + $0x8] sm:$0xf]
    %v13462 = vld [vmem:[%s12 + $0xc] sm:$0xf]
    %v13463 = vld [vmem:[%s12 + $0x10] sm:$0xf]
    %v13464 = vld [vmem:[%s12 + $0x14] sm:$0xf]
    %v13465 = vld [vmem:[%s12 + $0x18] sm:$0xf]
    %v13466 = vld [vmem:[%s12 + $0x1c] sm:$0xf]
    %v13467 = vld [vmem:[%s12 + $0x20] sm:$0xf]
    %v13468 = vld [vmem:[%s12 + $0x24] sm:$0xf]
    %v13469 = vld [vmem:[%s12 + $0x28] sm:$0xf]
    %v13470 = vld [vmem:[%s12 + $0x2c] sm:$0xf]
    %v13471 = vld [vmem:[%s12 + $0x30] sm:$0xf]
    %v13472 = vld [vmem:[%s12 + $0x34] sm:$0xf]
    %v13473 = vld [vmem:[%s12 + $0x38] sm:$0xf]
    %v13474 = vld [vmem:[%s12 + $0x3c] sm:$0xf]
    %v13475 = vld [vmem:[#allocation22] sm:$0x1]
    %v13477 = vlaneseq
    %v13478 = vshrl.u32 %v13477, 7
    %v13479 = vsub.s32 0, %v13478
    %v13480 = vrot.slane %v13475, %v13479
    %v13498 = vunpack.c.l.b16 %v13459
    %v13499 = vunpack.c.l.b16 %v13460
    %v13500 = vunpack.c.l.b16 %v13461
    %v13501 = vunpack.c.l.b16 %v13462
    %v13502 = vunpack.c.l.b16 %v13463
    %v13503 = vunpack.c.l.b16 %v13464
    %v13504 = vunpack.c.l.b16 %v13465
    %v13505 = vunpack.c.l.b16 %v13466
    %v13506 = vunpack.c.l.b16 %v13467
    %v13507 = vunpack.c.l.b16 %v13468
    %v13508 = vunpack.c.l.b16 %v13469
    %v13509 = vunpack.c.l.b16 %v13470
    %v13510 = vunpack.c.l.b16 %v13471
    %v13511 = vunpack.c.l.b16 %v13472
    %v13512 = vunpack.c.l.b16 %v13473
    %v13513 = vunpack.c.l.b16 %v13474
    %v13514 = vpack.c.b16 %v13499, %v13498
    %v13515 = vpack.c.b16 %v13501, %v13500
    %v13516 = vpack.c.b16 %v13503, %v13502
    %v13517 = vpack.c.b16 %v13505, %v13504
    %v13518 = vpack.c.b16 %v13507, %v13506
    %v13519 = vpack.c.b16 %v13509, %v13508
    %v13520 = vpack.c.b16 %v13511, %v13510
    %v13521 = vpack.c.b16 %v13513, %v13512
    %13530 = vmatprep.subr.bf16.mxu0 0
    %13531 = vmatpush1.bf16.msra.mxu0 %v13514
    %13532 = vmatprep.subr.bf16.mxu0 0
    %13533 = vmatpush1.bf16.msra.mxu0 %v13515
    %13534 = vmatprep.subr.bf16.mxu0 0
    %13535 = vmatpush1.bf16.msra.mxu0 %v13516
    %13536 = vmatprep.subr.bf16.mxu0 0
    %13537 = vmatpush1.bf16.msra.mxu0 %v13517
    %13538 = vmatprep.subr.bf16.mxu0 0
    %13539 = vmatpush1.bf16.msra.mxu0 %v13518
    %13540 = vmatprep.subr.bf16.mxu0 0
    %13541 = vmatpush1.bf16.msra.mxu0 %v13519
    %13542 = vmatprep.subr.bf16.mxu0 0
    %13543 = vmatpush1.bf16.msra.mxu0 %v13520
    %13544 = vmatprep.subr.bf16.mxu0 0
    %13545 = vmatpush1.bf16.msra.mxu0 %v13521
    %13546 = vmatprep.subr.bf16.mxu0 0
    %13547 = vmatpush1.bf16.msra.mxu0 0
    %13548 = vmatprep.subr.bf16.mxu0 0
    %13549 = vmatpush1.bf16.msra.mxu0 0
    %13550 = vmatprep.subr.bf16.mxu0 0
    %13551 = vmatpush1.bf16.msra.mxu0 0
    %13552 = vmatprep.subr.bf16.mxu0 0
    %13553 = vmatpush1.bf16.msra.mxu0 0
    %13554 = vmatprep.subr.bf16.mxu0 0
    %13555 = vmatpush1.bf16.msra.mxu0 0
    %13556 = vmatprep.subr.bf16.mxu0 0
    %13557 = vmatpush1.bf16.msra.mxu0 0
    %13558 = vmatprep.subr.bf16.mxu0 0
    %13559 = vmatpush1.bf16.msra.mxu0 0
    %13560 = vmatprep.subr.bf16.mxu0 0
    %13561 = vmatpush1.bf16.msra.mxu0 0
    %13562 = vmatprep.mubr.bf16.mxu0 0
    %13563 = vmatmul.mubr.bf16.gmra.mrb[0].mxu0 %v13458
    %v13564 = vpop.f32.mrb[0].mxu0
    %v13565 = vadd.f32 %v13480, %v13564
    %v13566 = vpop.f32.mrb[0].mxu0
    %v13567 = vpop.f32.mrb[0].mxu0
    %v13568 = vpop.f32.mrb[0].mxu0
    %13569 = vdwg.mxu0
    %v13570 = vpack.c.bf16 %v13565, %v13565
    %v13571 = vld [vmem:[#allocation23] sm:$0xf]
    %v13572 = vld [vmem:[#allocation23 + $0x4] sm:$0xf]
    %v13573 = vld [vmem:[#allocation23 + $0x8] sm:$0xf]
    %v13574 = vld [vmem:[#allocation23 + $0xc] sm:$0xf]
    %v13575 = vld [vmem:[#allocation23 + $0x10] sm:$0xf]
    %v13576 = vld [vmem:[#allocation23 + $0x14] sm:$0xf]
    %v13577 = vld [vmem:[#allocation23 + $0x18] sm:$0xf]
    %v13578 = vld [vmem:[#allocation23 + $0x1c] sm:$0xf]
    %v13579 = vld [vmem:[#allocation25] sm:$0x1]
    %v13581 = vlaneseq
    %v13582 = vshrl.u32 %v13581, 7
    %v13583 = vsub.s32 0, %v13582
    %v13584 = vrot.slane %v13579, %v13583
    %v13594 = vunpack.c.l.b16 %v13571
    %v13595 = vunpack.c.l.b16 %v13572
    %v13596 = vunpack.c.l.b16 %v13573
    %v13597 = vunpack.c.l.b16 %v13574
    %v13598 = vunpack.c.l.b16 %v13575
    %v13599 = vunpack.c.l.b16 %v13576
    %v13600 = vunpack.c.l.b16 %v13577
    %v13601 = vunpack.c.l.b16 %v13578
    %v13602 = vpack.c.b16 %v13595, %v13594
    %v13603 = vpack.c.b16 %v13597, %v13596
    %v13604 = vpack.c.b16 %v13599, %v13598
    %v13605 = vpack.c.b16 %v13601, %v13600
    %v13611 = vsel %vm2034, %v13570, 0
    %13613 = vmatprep.subr.bf16.mxu0 0
    %13614 = vmatpush1.bf16.msra.mxu0 %v13602
    %13615 = vmatprep.subr.bf16.mxu0 0
    %13616 = vmatpush1.bf16.msra.mxu0 %v13603
    %13617 = vmatprep.subr.bf16.mxu0 0
    %13618 = vmatpush1.bf16.msra.mxu0 %v13604
    %13619 = vmatprep.subr.bf16.mxu0 0
    %13620 = vmatpush1.bf16.msra.mxu0 %v13605
    %13621 = vmatprep.subr.bf16.mxu0 0
    %13622 = vmatpush1.bf16.msra.mxu0 0
    %13623 = vmatprep.subr.bf16.mxu0 0
    %13624 = vmatpush1.bf16.msra.mxu0 0
    %13625 = vmatprep.subr.bf16.mxu0 0
    %13626 = vmatpush1.bf16.msra.mxu0 0
    %13627 = vmatprep.subr.bf16.mxu0 0
    %13628 = vmatpush1.bf16.msra.mxu0 0
    %13629 = vmatprep.subr.bf16.mxu0 0
    %13630 = vmatpush1.bf16.msra.mxu0 0
    %13631 = vmatprep.subr.bf16.mxu0 0
    %13632 = vmatpush1.bf16.msra.mxu0 0
    %13633 = vmatprep.subr.bf16.mxu0 0
    %13634 = vmatpush1.bf16.msra.mxu0 0
    %13635 = vmatprep.subr.bf16.mxu0 0
    %13636 = vmatpush1.bf16.msra.mxu0 0
    %13637 = vmatprep.subr.bf16.mxu0 0
    %13638 = vmatpush1.bf16.msra.mxu0 0
    %13639 = vmatprep.subr.bf16.mxu0 0
    %13640 = vmatpush1.bf16.msra.mxu0 0
    %13641 = vmatprep.subr.bf16.mxu0 0
    %13642 = vmatpush1.bf16.msra.mxu0 0
    %13643 = vmatprep.subr.bf16.mxu0 0
    %13644 = vmatpush1.bf16.msra.mxu0 0
    %13645 = vmatprep.mubr.bf16.mxu0 0
    %13646 = vmatmul.mubr.bf16.gmra.mrb[0].mxu0 %v13611
    %v13647 = vpop.f32.mrb[0].mxu0
    %v13648 = vadd.f32 %v13584, %v13647
    %v13649 = vpop.f32.mrb[0].mxu0
    %v13650 = vpop.f32.mrb[0].mxu0
    %v13651 = vpop.f32.mrb[0].mxu0
    %13652 = vdwg.mxu0
    %13653 = vst [vmem:[#allocation26] sm:$0x3] %v13648
    // Predicated region
    $region118: #{_mnist_forward_impl.1} parent=1 // pred_check
      _
    $region119: #{_mnist_forward_impl.1} parent=1 // pred_check_branch
      %13655 = sbr.rel (0) target = $region121
    $region120: #{_mnist_forward_impl.1} parent=1 // pred_region
      %s13657 = ssub.s32 32, 32
      %13658 = vsyncadd [#allocation7], %s13657
      %s13660 = sshll.u32 [#allocation26], 4
      %s13661 = int_to_ptr.vmem [resolvable:$true] %s13660
      %13663 = dma.vmem_to_hbm [thread:$0]  %s13661, 32, %s16, [#allocation7]
    $region121: #{_mnist_forward_impl.1} parent=1 // pred_fallthru
      _
    // Predicated region
    $region122: #{_mnist_forward_impl.1} parent=1 // pred_check
      _
    $region123: #{_mnist_forward_impl.1} parent=1 // pred_check_branch
      %13665 = sbr.rel (0) target = $region125
    $region124: #{_mnist_forward_impl.1} parent=1 // pred_region
      %13666 = dma.done [#allocation7], 32
    $region125: #{_mnist_forward_impl.1} parent=1 // pred_fallthru
      _
    %13667 = vsyncpa [#allocation6], 1
    %13668 = vsyncpa [#allocation9], 1
    %13669 = vsyncpa [#allocation12], 1
    %13670 = vsyncpa [#allocation15], 1
    %13671 = vsyncpa [#allocation18], 1
    %13672 = vsyncpa [#allocation21], 1
    %13673 = vsyncpa [#allocation24], 1
    %13674 = vsyncpa [#allocation7], 1

</llo_original>
